<compile_context>
chip_gen: v7x
topology: tpu7x:2x2x1
jax: 0.10.0
libtpu: 0.0.40
codegen_flags: <defaults>
</compile_context>

<pallas_src>
import functools

import jax
import jax.numpy as jnp
from jax.experimental import pallas as pl
from jax.experimental.pallas import tpu as pltpu

EPS = 1e-5
NUM_HEADS = 4


# ------------------------------ fused kernel -------------------------------- #

def _fused_kernel(pos_ref, loc_ref, glob_ref,
                  gw_ref, gb_ref, gg_ref, gbeta_ref,
                  mwg_ref, mwl_ref, mb_ref, mg_ref, mbeta_ref,
                  n1g_ref, n1b_ref,
                  wq_ref, bq_ref, wk_ref, bk_ref, wv_ref, bv_ref,
                  wm_ref, bm_ref, w1_ref, b1_ref, w2_ref, b2_ref,
                  o_ref, *, layer_names, num_heads, n_pts):
    """Whole PairwiseFeatProcessor forward for one batch element.

    Rows 0..N-1 of the (2N, D) slab are the x-stream, rows N..2N-1 the y-stream.
    """
    N = n_pts
    pos = pos_ref[0]                     # (2N, C)
    loc = loc_ref[0]                     # (2N, D)
    glob = glob_ref[0]                   # (2, D)   [x_global; y_global]
    D = loc.shape[-1]
    P = 2 * N
    head_dim = D // num_heads
    scale = 1.0 / (head_dim ** 0.5)

    def layer_norm(x, gamma, beta):
        mu = jnp.mean(x, axis=-1, keepdims=True)
        var = jnp.mean((x - mu) ** 2, axis=-1, keepdims=True)
        return (x - mu) * jax.lax.rsqrt(var + EPS) * gamma + beta

    # 1) GeoEncoder('abs_coord'): Linear(3,D) + LayerNorm + ReLU, residual add.
    g = jnp.dot(pos, gw_ref[...], preferred_element_type=jnp.float32) + gb_ref[...]
    g = jnp.maximum(layer_norm(g, gg_ref[...], gbeta_ref[...]), 0.0)
    local = loc + g                                                 # (P, D)

    # 2) cat([global, local]) -> Linear -> LayerNorm -> ReLU, without
    #    materializing the concat: split weight into global/local halves.
    gproj = jnp.dot(glob, mwg_ref[...], preferred_element_type=jnp.float32)  # (2, D)
    gfull = jnp.concatenate(
        [jnp.broadcast_to(gproj[0:1, :], (N, D)),
         jnp.broadcast_to(gproj[1:2, :], (N, D))], axis=0)          # (P, D)
    feat = (gfull
            + jnp.dot(local, mwl_ref[...], preferred_element_type=jnp.float32)
            + mb_ref[...])
    feat = jnp.maximum(layer_norm(feat, mg_ref[...], mbeta_ref[...]), 0.0)

    # 3) norm1
    feat = layer_norm(feat, n1g_ref[...], n1b_ref[...])

    # 4) AttentionalGNN layers (static unrolled; weights shared by both streams)
    for li, name in enumerate(layer_names):
        q = jnp.dot(feat, wq_ref[li], preferred_element_type=jnp.float32) + bq_ref[li]
        k = jnp.dot(feat, wk_ref[li], preferred_element_type=jnp.float32) + bk_ref[li]
        v = jnp.dot(feat, wv_ref[li], preferred_element_type=jnp.float32) + bv_ref[li]

        q3 = q.reshape(2, N, D)          # stream-major view (layout no-op)
        k3 = k.reshape(2, N, D)
        v3 = v.reshape(2, N, D)
        if name == 'cross':              # x attends to y, y attends to x
            k3 = jnp.concatenate([k3[1:2], k3[0:1]], axis=0)
            v3 = jnp.concatenate([v3[1:2], v3[0:1]], axis=0)

        heads_out = []
        for h in range(num_heads):       # static head loop, stream-batched dots
            lo = h * head_dim
            qh = q3[:, :, lo:lo + head_dim]
            kh = k3[:, :, lo:lo + head_dim]
            vh = v3[:, :, lo:lo + head_dim]
            sc = jnp.einsum('bnd,bmd->bnm', qh, kh,
                            preferred_element_type=jnp.float32) * scale
            sc = sc - jnp.max(sc, axis=-1, keepdims=True)
            e = jnp.exp(sc)
            p = e * pl.reciprocal(jnp.sum(e, axis=-1, keepdims=True), approx=True)
            heads_out.append(jnp.einsum('bnm,bmd->bnd', p, vh,
                                        preferred_element_type=jnp.float32))
        o_cat = jnp.concatenate(heads_out, axis=-1).reshape(P, D)   # (P, D)
        msg = jnp.dot(o_cat, wm_ref[li],
                      preferred_element_type=jnp.float32) + bm_ref[li]

        # MLP([2D, 2D, D]): Conv1d + InstanceNorm1d + ReLU + Conv1d
        w1 = w1_ref[li]                                             # (2D, 2D)
        h1 = (jnp.dot(feat, w1[0:D, :], preferred_element_type=jnp.float32)
              + jnp.dot(msg, w1[D:2 * D, :], preferred_element_type=jnp.float32)
              + b1_ref[li])                                         # (P, 2D)
        # InstanceNorm over positions, kept per stream instance.
        h13 = h1.reshape(2, N, 2 * D)
        mu = jnp.mean(h13, axis=1, keepdims=True)
        var = jnp.mean((h13 - mu) ** 2, axis=1, keepdims=True)
        h13 = (h13 - mu) * jax.lax.rsqrt(var + EPS)
        h1 = jnp.maximum(h13.reshape(P, 2 * D), 0.0)
        delta = jnp.dot(h1, w2_ref[li],
                        preferred_element_type=jnp.float32) + b2_ref[li]
        feat = feat + delta                                         # residual

    # 5) Lane-dense store: row s of the output is stream s's (N, D) features
    #    flattened row-major (N*D = 256 lanes, multiple of 128).
    rows = []
    for s in range(2):
        pieces = [feat[s * N + i:s * N + i + 1, :] for i in range(N)]
        rows.append(jnp.concatenate(pieces, axis=-1))               # (1, N*D)
    o_ref[0] = jnp.concatenate(rows, axis=0)                        # (2, N*D)


# --------------------------- parameter setup --------------------------------- #

def init_params(key, d, coord_dim, layer_names):
    heads = NUM_HEADS
    hd = d // heads
    # grouped index g = h*hd + i  <->  original conv channel c = i*heads + h
    perm = jnp.array([(g % hd) * heads + (g // hd) for g in range(d)],
                     dtype=jnp.int32)
    keys = iter(jax.random.split(key, 64))

    def rnd(shape, scale=0.1):
        return (scale * jax.random.normal(next(keys), shape)).astype(jnp.float32)

    params = {}
    # GeoEncoder('abs_coord'): Linear(3, d) + LayerNorm(d) + ReLU
    params['geo'] = dict(w=rnd((coord_dim, d)), b=rnd((1, d), 0.01),
                         gamma=jnp.ones((1, d), jnp.float32),
                         beta=jnp.zeros((1, d), jnp.float32))
    # self.mlp: Linear(global_dim + local_dim, embed_dim) + LayerNorm + ReLU
    # stored transposed: rows 0..d-1 = global input channels, d..2d-1 = local.
    params['mlp'] = dict(w=rnd((2 * d, d)), b=rnd((1, d), 0.01),
                         gamma=jnp.ones((1, d), jnp.float32),
                         beta=jnp.zeros((1, d), jnp.float32))
    params['norm1'] = dict(gamma=jnp.ones((1, d), jnp.float32),
                           beta=jnp.zeros((1, d), jnp.float32))

    # AttentionalGNN layers, stacked over layers along a leading axis.
    acc = {k: [] for k in
           ('wq', 'bq', 'wk', 'bk', 'wv', 'bv', 'wm', 'bm', 'w1', 'b1', 'w2', 'b2')}
    for _ in layer_names:
        wq, bq = rnd((d, d)), rnd((d,), 0.01)
        wk, bk = rnd((d, d)), rnd((d,), 0.01)
        wv, bv = rnd((d, d)), rnd((d,), 0.01)
        wm, bm = rnd((d, d)), rnd((d,), 0.01)
        w1, b1 = rnd((2 * d, 2 * d)), rnd((2 * d,), 0.01)
        w2, b2 = rnd((d, 2 * d)), jnp.zeros((d,), jnp.float32)   # bias init 0.0
        acc['wq'].append(wq[perm, :].T); acc['bq'].append(bq[perm][None, :])
        acc['wk'].append(wk[perm, :].T); acc['bk'].append(bk[perm][None, :])
        acc['wv'].append(wv[perm, :].T); acc['bv'].append(bv[perm][None, :])
        acc['wm'].append(wm[:, perm].T); acc['bm'].append(bm[None, :])
        acc['w1'].append(w1.T);          acc['b1'].append(b1[None, :])
        acc['w2'].append(w2.T);          acc['b2'].append(b2[None, :])
    params['gnn'] = {k: jnp.stack(v) for k, v in acc.items()}
    params['layer_names'] = list(layer_names)
    return params


# ------------------------------ forward --------------------------------------- #

def pairwise_feat_processor(params, x_global, x_local, x_position,
                            y_global, y_local, y_position):
    B, M, D = x_local.shape
    N = y_local.shape[1]
    assert M == N, "fused kernel realization assumes m == n == num_local"
    C = x_position.shape[-1]

    # Stack the two streams (shared weights) into one (2N, ...) slab per batch.
    pos = jnp.concatenate([x_position, y_position], axis=1)     # (B, 2N, C)
    loc = jnp.concatenate([x_local, y_local], axis=1)           # (B, 2N, D)
    glob = jnp.stack([x_global, y_global], axis=1)              # (B, 2, D)

    gp, mp, n1, gnn = params['geo'], params['mlp'], params['norm1'], params['gnn']
    mw = mp['w']
    weights = [gp['w'], gp['b'], gp['gamma'], gp['beta'],
               mw[:D], mw[D:], mp['b'], mp['gamma'], mp['beta'],
               n1['gamma'], n1['beta'],
               gnn['wq'], gnn['bq'], gnn['wk'], gnn['bk'], gnn['wv'], gnn['bv'],
               gnn['wm'], gnn['bm'], gnn['w1'], gnn['b1'], gnn['w2'], gnn['b2']]

    def cspec(a):
        nd = a.ndim
        return pl.BlockSpec(a.shape, lambda b, nd=nd: (0,) * nd)

    kernel = functools.partial(_fused_kernel,
                               layer_names=tuple(params['layer_names']),
                               num_heads=NUM_HEADS, n_pts=N)

    out = pl.pallas_call(
        kernel,
        out_shape=jax.ShapeDtypeStruct((B, 2, N * D), jnp.float32),
        grid=(B,),
        in_specs=[
            pl.BlockSpec((1, 2 * N, C), lambda b: (b, 0, 0)),
            pl.BlockSpec((1, 2 * N, D), lambda b: (b, 0, 0)),
            pl.BlockSpec((1, 2, D), lambda b: (b, 0, 0)),
        ] + [cspec(w) for w in weights],
        out_specs=pl.BlockSpec((1, 2, N * D), lambda b: (b, 0, 0)),
        compiler_params=pltpu.CompilerParams(
            dimension_semantics=("parallel",)),       # v7x: one batch per TC
    )(pos, loc, glob, *weights)

    x_out = out[:, 0, :].reshape(B, N, D)
    y_out = out[:, 1, :].reshape(B, N, D)
    # use_pool=False, use_vlad=False -> return features as-is (b x m x d)
    # TODO(synk): NetVLADBase / get_pool sources not provided; configured off.
    return x_out, y_out


# -------------------------------- main ----------------------------------------- #

if __name__ == "__main__":
    B, M, N, D, C = 2, 8, 8, 32, 3
    key = jax.random.PRNGKey(0)
    k_param, k_xg, k_xl, k_xp, k_yg, k_yl, k_yp = jax.random.split(key, 7)

    params = init_params(k_param, D, C, layer_names=['self', 'cross'])

    x_global = jax.random.normal(k_xg, (B, D), jnp.float32)
    x_local = jax.random.normal(k_xl, (B, M, D), jnp.float32)
    x_position = jax.random.normal(k_xp, (B, M, C), jnp.float32)
    y_global = jax.random.normal(k_yg, (B, D), jnp.float32)
    y_local = jax.random.normal(k_yl, (B, N, D), jnp.float32)
    y_position = jax.random.normal(k_yp, (B, N, C), jnp.float32)

    x_out, y_out = pairwise_feat_processor(params, x_global, x_local, x_position,
                                           y_global, y_local, y_position)
    jax.block_until_ready((x_out, y_out))
    assert x_out.shape == (B, M, D) and y_out.shape == (B, N, D)
    print("KERNEL_OK")
</pallas_src>

<mosaic_0001>
module attributes {stable_mosaic.version = 11 : i64} {
  func.func @_fused_kernel(%arg0: i32, %arg1: memref<1x16x3xf32, #tpu.memory_space<vmem>>, %arg2: memref<1x16x32xf32, #tpu.memory_space<vmem>>, %arg3: memref<1x2x32xf32, #tpu.memory_space<vmem>>, %arg4: memref<3x32xf32, #tpu.memory_space<vmem>>, %arg5: memref<1x32xf32, #tpu.memory_space<vmem>>, %arg6: memref<1x32xf32, #tpu.memory_space<vmem>>, %arg7: memref<1x32xf32, #tpu.memory_space<vmem>>, %arg8: memref<32x32xf32, #tpu.memory_space<vmem>>, %arg9: memref<32x32xf32, #tpu.memory_space<vmem>>, %arg10: memref<1x32xf32, #tpu.memory_space<vmem>>, %arg11: memref<1x32xf32, #tpu.memory_space<vmem>>, %arg12: memref<1x32xf32, #tpu.memory_space<vmem>>, %arg13: memref<1x32xf32, #tpu.memory_space<vmem>>, %arg14: memref<1x32xf32, #tpu.memory_space<vmem>>, %arg15: memref<2x32x32xf32, #tpu.memory_space<vmem>>, %arg16: memref<2x1x32xf32, #tpu.memory_space<vmem>>, %arg17: memref<2x32x32xf32, #tpu.memory_space<vmem>>, %arg18: memref<2x1x32xf32, #tpu.memory_space<vmem>>, %arg19: memref<2x32x32xf32, #tpu.memory_space<vmem>>, %arg20: memref<2x1x32xf32, #tpu.memory_space<vmem>>, %arg21: memref<2x32x32xf32, #tpu.memory_space<vmem>>, %arg22: memref<2x1x32xf32, #tpu.memory_space<vmem>>, %arg23: memref<2x64x64xf32, #tpu.memory_space<vmem>>, %arg24: memref<2x1x64xf32, #tpu.memory_space<vmem>>, %arg25: memref<2x64x32xf32, #tpu.memory_space<vmem>>, %arg26: memref<2x1x32xf32, #tpu.memory_space<vmem>>, %arg27: memref<1x2x256xf32, #tpu.memory_space<vmem>>) attributes {dimension_semantics = [#tpu.dimension_semantics<parallel>], iteration_bounds = array<i64: 2>, scalar_prefetch = 0 : i64, scratch_operands = 0 : i64, tpu.core_type = #tpu.core_type<tc>, window_params = [{transform_indices = @transform_0, window_bounds = array<i64: 1, 16, 3>}, {transform_indices = @transform_1, window_bounds = array<i64: 1, 16, 32>}, {transform_indices = @transform_2, window_bounds = array<i64: 1, 2, 32>}, {pipeline_mode = #tpu.pipeline_mode<synchronous>, transform_indices = @transform_3, window_bounds = array<i64: 3, 32>}, {pipeline_mode = #tpu.pipeline_mode<synchronous>, transform_indices = @transform_4, window_bounds = array<i64: 1, 32>}, {pipeline_mode = #tpu.pipeline_mode<synchronous>, transform_indices = @transform_5, window_bounds = array<i64: 1, 32>}, {pipeline_mode = #tpu.pipeline_mode<synchronous>, transform_indices = @transform_6, window_bounds = array<i64: 1, 32>}, {pipeline_mode = #tpu.pipeline_mode<synchronous>, transform_indices = @transform_7, window_bounds = array<i64: 32, 32>}, {pipeline_mode = #tpu.pipeline_mode<synchronous>, transform_indices = @transform_8, window_bounds = array<i64: 32, 32>}, {pipeline_mode = #tpu.pipeline_mode<synchronous>, transform_indices = @transform_9, window_bounds = array<i64: 1, 32>}, {pipeline_mode = #tpu.pipeline_mode<synchronous>, transform_indices = @transform_10, window_bounds = array<i64: 1, 32>}, {pipeline_mode = #tpu.pipeline_mode<synchronous>, transform_indices = @transform_11, window_bounds = array<i64: 1, 32>}, {pipeline_mode = #tpu.pipeline_mode<synchronous>, transform_indices = @transform_12, window_bounds = array<i64: 1, 32>}, {pipeline_mode = #tpu.pipeline_mode<synchronous>, transform_indices = @transform_13, window_bounds = array<i64: 1, 32>}, {pipeline_mode = #tpu.pipeline_mode<synchronous>, transform_indices = @transform_14, window_bounds = array<i64: 2, 32, 32>}, {pipeline_mode = #tpu.pipeline_mode<synchronous>, transform_indices = @transform_15, window_bounds = array<i64: 2, 1, 32>}, {pipeline_mode = #tpu.pipeline_mode<synchronous>, transform_indices = @transform_16, window_bounds = array<i64: 2, 32, 32>}, {pipeline_mode = #tpu.pipeline_mode<synchronous>, transform_indices = @transform_17, window_bounds = array<i64: 2, 1, 32>}, {pipeline_mode = #tpu.pipeline_mode<synchronous>, transform_indices = @transform_18, window_bounds = array<i64: 2, 32, 32>}, {pipeline_mode = #tpu.pipeline_mode<synchronous>, transform_indices = @transform_19, window_bounds = array<i64: 2, 1, 32>}, {pipeline_mode = #tpu.pipeline_mode<synchronous>, transform_indices = @transform_20, window_bounds = array<i64: 2, 32, 32>}, {pipeline_mode = #tpu.pipeline_mode<synchronous>, transform_indices = @transform_21, window_bounds = array<i64: 2, 1, 32>}, {pipeline_mode = #tpu.pipeline_mode<synchronous>, transform_indices = @transform_22, window_bounds = array<i64: 2, 64, 64>}, {pipeline_mode = #tpu.pipeline_mode<synchronous>, transform_indices = @transform_23, window_bounds = array<i64: 2, 1, 64>}, {pipeline_mode = #tpu.pipeline_mode<synchronous>, transform_indices = @transform_24, window_bounds = array<i64: 2, 64, 32>}, {pipeline_mode = #tpu.pipeline_mode<synchronous>, transform_indices = @transform_25, window_bounds = array<i64: 2, 1, 32>}, {transform_indices = @transform_26, window_bounds = array<i64: 1, 2, 256>}]} {
    %c0 = arith.constant 0 : index
    %c0_0 = arith.constant 0 : index
    %c0_1 = arith.constant 0 : index
    %0 = vector.load %arg1[%c0, %c0_0, %c0_1] : memref<1x16x3xf32, #tpu.memory_space<vmem>>, vector<1x16x3xf32>
    %1 = vector.shape_cast %0 : vector<1x16x3xf32> to vector<16x3xf32>
    %c0_2 = arith.constant 0 : index
    %c0_3 = arith.constant 0 : index
    %c0_4 = arith.constant 0 : index
    %2 = vector.load %arg2[%c0_2, %c0_3, %c0_4] : memref<1x16x32xf32, #tpu.memory_space<vmem>>, vector<1x16x32xf32>
    %3 = vector.shape_cast %2 : vector<1x16x32xf32> to vector<16x32xf32>
    %c0_5 = arith.constant 0 : index
    %c0_6 = arith.constant 0 : index
    %c0_7 = arith.constant 0 : index
    %4 = vector.load %arg3[%c0_5, %c0_6, %c0_7] : memref<1x2x32xf32, #tpu.memory_space<vmem>>, vector<1x2x32xf32>
    %5 = vector.shape_cast %4 : vector<1x2x32xf32> to vector<2x32xf32>
    %c0_8 = arith.constant 0 : index
    %c0_9 = arith.constant 0 : index
    %6 = vector.load %arg4[%c0_8, %c0_9] : memref<3x32xf32, #tpu.memory_space<vmem>>, vector<3x32xf32>
    %cst = arith.constant dense<0.000000e+00> : vector<16x32xf32>
    %7 = tpu.matmul %1, %6, %cst {dimension_numbers = #tpu.dot_dimension_numbers<[1], [0], [0], [1], [0, 0, 1, 1], [], []>} : vector<16x3xf32>, vector<3x32xf32>, vector<16x32xf32> -> vector<16x32xf32>
    %c0_10 = arith.constant 0 : index
    %c0_11 = arith.constant 0 : index
    %8 = vector.load %arg5[%c0_10, %c0_11] : memref<1x32xf32, #tpu.memory_space<vmem>>, vector<1x32xf32>
    %9 = vector.broadcast %8 : vector<1x32xf32> to vector<16x32xf32>
    %10 = arith.addf %7, %9 : vector<16x32xf32>
    %c0_12 = arith.constant 0 : index
    %c0_13 = arith.constant 0 : index
    %11 = vector.load %arg6[%c0_12, %c0_13] : memref<1x32xf32, #tpu.memory_space<vmem>>, vector<1x32xf32>
    %c0_14 = arith.constant 0 : index
    %c0_15 = arith.constant 0 : index
    %12 = vector.load %arg7[%c0_14, %c0_15] : memref<1x32xf32, #tpu.memory_space<vmem>>, vector<1x32xf32>
    %cst_16 = arith.constant dense<0.000000e+00> : vector<16xf32>
    %13 = vector.multi_reduction <add>, %10, %cst_16 [1] : vector<16x32xf32> to vector<16xf32>
    %14 = vector.shape_cast %13 : vector<16xf32> to vector<16x1xf32>
    %cst_17 = arith.constant 3.200000e+01 : f32
    %15 = vector.broadcast %cst_17 : f32 to vector<16x1xf32>
    %16 = arith.divf %14, %15 : vector<16x1xf32>
    %17 = vector.broadcast %16 : vector<16x1xf32> to vector<16x32xf32>
    %18 = arith.subf %10, %17 : vector<16x32xf32>
    %19 = arith.mulf %18, %18 : vector<16x32xf32>
    %cst_18 = arith.constant dense<0.000000e+00> : vector<16xf32>
    %20 = vector.multi_reduction <add>, %19, %cst_18 [1] : vector<16x32xf32> to vector<16xf32>
    %21 = vector.shape_cast %20 : vector<16xf32> to vector<16x1xf32>
    %cst_19 = arith.constant 3.200000e+01 : f32
    %22 = vector.broadcast %cst_19 : f32 to vector<16x1xf32>
    %23 = arith.divf %21, %22 : vector<16x1xf32>
    %24 = vector.broadcast %16 : vector<16x1xf32> to vector<16x32xf32>
    %25 = arith.subf %10, %24 : vector<16x32xf32>
    %cst_20 = arith.constant 9.99999974E-6 : f32
    %26 = vector.broadcast %cst_20 : f32 to vector<16x1xf32>
    %27 = arith.addf %23, %26 : vector<16x1xf32>
    %28 = math.rsqrt %27 : vector<16x1xf32>
    %29 = vector.broadcast %28 : vector<16x1xf32> to vector<16x32xf32>
    %30 = arith.mulf %25, %29 : vector<16x32xf32>
    %31 = vector.broadcast %11 : vector<1x32xf32> to vector<16x32xf32>
    %32 = arith.mulf %30, %31 : vector<16x32xf32>
    %33 = vector.broadcast %12 : vector<1x32xf32> to vector<16x32xf32>
    %34 = arith.addf %32, %33 : vector<16x32xf32>
    %cst_21 = arith.constant 0.000000e+00 : f32
    %35 = vector.broadcast %cst_21 : f32 to vector<16x32xf32>
    %36 = arith.maximumf %34, %35 : vector<16x32xf32>
    %37 = arith.addf %3, %36 : vector<16x32xf32>
    %c0_22 = arith.constant 0 : index
    %c0_23 = arith.constant 0 : index
    %38 = vector.load %arg8[%c0_22, %c0_23] : memref<32x32xf32, #tpu.memory_space<vmem>>, vector<32x32xf32>
    %cst_24 = arith.constant dense<0.000000e+00> : vector<2x32xf32>
    %39 = tpu.matmul %5, %38, %cst_24 {dimension_numbers = #tpu.dot_dimension_numbers<[1], [0], [0], [1], [0, 0, 1, 1], [], []>} : vector<2x32xf32>, vector<32x32xf32>, vector<2x32xf32> -> vector<2x32xf32>
    %40 = vector.extract_strided_slice %39 {offsets = [0, 0], sizes = [1, 32], strides = [1, 1]} : vector<2x32xf32> to vector<1x32xf32>
    %41 = vector.shape_cast %40 : vector<1x32xf32> to vector<1x32xf32>
    %42 = vector.broadcast %41 : vector<1x32xf32> to vector<8x32xf32>
    %43 = vector.extract_strided_slice %39 {offsets = [1, 0], sizes = [1, 32], strides = [1, 1]} : vector<2x32xf32> to vector<1x32xf32>
    %44 = vector.shape_cast %43 : vector<1x32xf32> to vector<1x32xf32>
    %45 = vector.broadcast %44 : vector<1x32xf32> to vector<8x32xf32>
    %46 = tpu.concatenate %42, %45 in 0 : vector<8x32xf32>, vector<8x32xf32> -> vector<16x32xf32>
    %c0_25 = arith.constant 0 : index
    %c0_26 = arith.constant 0 : index
    %47 = vector.load %arg9[%c0_25, %c0_26] : memref<32x32xf32, #tpu.memory_space<vmem>>, vector<32x32xf32>
    %cst_27 = arith.constant dense<0.000000e+00> : vector<16x32xf32>
    %48 = tpu.matmul %37, %47, %cst_27 {dimension_numbers = #tpu.dot_dimension_numbers<[1], [0], [0], [1], [0, 0, 1, 1], [], []>} : vector<16x32xf32>, vector<32x32xf32>, vector<16x32xf32> -> vector<16x32xf32>
    %49 = arith.addf %46, %48 : vector<16x32xf32>
    %c0_28 = arith.constant 0 : index
    %c0_29 = arith.constant 0 : index
    %50 = vector.load %arg10[%c0_28, %c0_29] : memref<1x32xf32, #tpu.memory_space<vmem>>, vector<1x32xf32>
    %51 = vector.broadcast %50 : vector<1x32xf32> to vector<16x32xf32>
    %52 = arith.addf %49, %51 : vector<16x32xf32>
    %c0_30 = arith.constant 0 : index
    %c0_31 = arith.constant 0 : index
    %53 = vector.load %arg11[%c0_30, %c0_31] : memref<1x32xf32, #tpu.memory_space<vmem>>, vector<1x32xf32>
    %c0_32 = arith.constant 0 : index
    %c0_33 = arith.constant 0 : index
    %54 = vector.load %arg12[%c0_32, %c0_33] : memref<1x32xf32, #tpu.memory_space<vmem>>, vector<1x32xf32>
    %cst_34 = arith.constant dense<0.000000e+00> : vector<16xf32>
    %55 = vector.multi_reduction <add>, %52, %cst_34 [1] : vector<16x32xf32> to vector<16xf32>
    %56 = vector.shape_cast %55 : vector<16xf32> to vector<16x1xf32>
    %cst_35 = arith.constant 3.200000e+01 : f32
    %57 = vector.broadcast %cst_35 : f32 to vector<16x1xf32>
    %58 = arith.divf %56, %57 : vector<16x1xf32>
    %59 = vector.broadcast %58 : vector<16x1xf32> to vector<16x32xf32>
    %60 = arith.subf %52, %59 : vector<16x32xf32>
    %61 = arith.mulf %60, %60 : vector<16x32xf32>
    %cst_36 = arith.constant dense<0.000000e+00> : vector<16xf32>
    %62 = vector.multi_reduction <add>, %61, %cst_36 [1] : vector<16x32xf32> to vector<16xf32>
    %63 = vector.shape_cast %62 : vector<16xf32> to vector<16x1xf32>
    %cst_37 = arith.constant 3.200000e+01 : f32
    %64 = vector.broadcast %cst_37 : f32 to vector<16x1xf32>
    %65 = arith.divf %63, %64 : vector<16x1xf32>
    %66 = vector.broadcast %58 : vector<16x1xf32> to vector<16x32xf32>
    %67 = arith.subf %52, %66 : vector<16x32xf32>
    %cst_38 = arith.constant 9.99999974E-6 : f32
    %68 = vector.broadcast %cst_38 : f32 to vector<16x1xf32>
    %69 = arith.addf %65, %68 : vector<16x1xf32>
    %70 = math.rsqrt %69 : vector<16x1xf32>
    %71 = vector.broadcast %70 : vector<16x1xf32> to vector<16x32xf32>
    %72 = arith.mulf %67, %71 : vector<16x32xf32>
    %73 = vector.broadcast %53 : vector<1x32xf32> to vector<16x32xf32>
    %74 = arith.mulf %72, %73 : vector<16x32xf32>
    %75 = vector.broadcast %54 : vector<1x32xf32> to vector<16x32xf32>
    %76 = arith.addf %74, %75 : vector<16x32xf32>
    %cst_39 = arith.constant 0.000000e+00 : f32
    %77 = vector.broadcast %cst_39 : f32 to vector<16x32xf32>
    %78 = arith.maximumf %76, %77 : vector<16x32xf32>
    %c0_40 = arith.constant 0 : index
    %c0_41 = arith.constant 0 : index
    %79 = vector.load %arg13[%c0_40, %c0_41] : memref<1x32xf32, #tpu.memory_space<vmem>>, vector<1x32xf32>
    %c0_42 = arith.constant 0 : index
    %c0_43 = arith.constant 0 : index
    %80 = vector.load %arg14[%c0_42, %c0_43] : memref<1x32xf32, #tpu.memory_space<vmem>>, vector<1x32xf32>
    %cst_44 = arith.constant dense<0.000000e+00> : vector<16xf32>
    %81 = vector.multi_reduction <add>, %78, %cst_44 [1] : vector<16x32xf32> to vector<16xf32>
    %82 = vector.shape_cast %81 : vector<16xf32> to vector<16x1xf32>
    %cst_45 = arith.constant 3.200000e+01 : f32
    %83 = vector.broadcast %cst_45 : f32 to vector<16x1xf32>
    %84 = arith.divf %82, %83 : vector<16x1xf32>
    %85 = vector.broadcast %84 : vector<16x1xf32> to vector<16x32xf32>
    %86 = arith.subf %78, %85 : vector<16x32xf32>
    %87 = arith.mulf %86, %86 : vector<16x32xf32>
    %cst_46 = arith.constant dense<0.000000e+00> : vector<16xf32>
    %88 = vector.multi_reduction <add>, %87, %cst_46 [1] : vector<16x32xf32> to vector<16xf32>
    %89 = vector.shape_cast %88 : vector<16xf32> to vector<16x1xf32>
    %cst_47 = arith.constant 3.200000e+01 : f32
    %90 = vector.broadcast %cst_47 : f32 to vector<16x1xf32>
    %91 = arith.divf %89, %90 : vector<16x1xf32>
    %92 = vector.broadcast %84 : vector<16x1xf32> to vector<16x32xf32>
    %93 = arith.subf %78, %92 : vector<16x32xf32>
    %cst_48 = arith.constant 9.99999974E-6 : f32
    %94 = vector.broadcast %cst_48 : f32 to vector<16x1xf32>
    %95 = arith.addf %91, %94 : vector<16x1xf32>
    %96 = math.rsqrt %95 : vector<16x1xf32>
    %97 = vector.broadcast %96 : vector<16x1xf32> to vector<16x32xf32>
    %98 = arith.mulf %93, %97 : vector<16x32xf32>
    %99 = vector.broadcast %79 : vector<1x32xf32> to vector<16x32xf32>
    %100 = arith.mulf %98, %99 : vector<16x32xf32>
    %101 = vector.broadcast %80 : vector<1x32xf32> to vector<16x32xf32>
    %102 = arith.addf %100, %101 : vector<16x32xf32>
    %c0_49 = arith.constant 0 : index
    %c0_50 = arith.constant 0 : index
    %c0_51 = arith.constant 0 : index
    %103 = vector.load %arg15[%c0_49, %c0_50, %c0_51] : memref<2x32x32xf32, #tpu.memory_space<vmem>>, vector<1x32x32xf32>
    %104 = vector.shape_cast %103 : vector<1x32x32xf32> to vector<32x32xf32>
    %cst_52 = arith.constant dense<0.000000e+00> : vector<16x32xf32>
    %105 = tpu.matmul %102, %104, %cst_52 {dimension_numbers = #tpu.dot_dimension_numbers<[1], [0], [0], [1], [0, 0, 1, 1], [], []>} : vector<16x32xf32>, vector<32x32xf32>, vector<16x32xf32> -> vector<16x32xf32>
    %c0_53 = arith.constant 0 : index
    %c0_54 = arith.constant 0 : index
    %c0_55 = arith.constant 0 : index
    %106 = vector.load %arg16[%c0_53, %c0_54, %c0_55] : memref<2x1x32xf32, #tpu.memory_space<vmem>>, vector<1x1x32xf32>
    %107 = vector.shape_cast %106 : vector<1x1x32xf32> to vector<1x32xf32>
    %108 = vector.broadcast %107 : vector<1x32xf32> to vector<16x32xf32>
    %109 = arith.addf %105, %108 : vector<16x32xf32>
    %c0_56 = arith.constant 0 : index
    %c0_57 = arith.constant 0 : index
    %c0_58 = arith.constant 0 : index
    %110 = vector.load %arg17[%c0_56, %c0_57, %c0_58] : memref<2x32x32xf32, #tpu.memory_space<vmem>>, vector<1x32x32xf32>
    %111 = vector.shape_cast %110 : vector<1x32x32xf32> to vector<32x32xf32>
    %cst_59 = arith.constant dense<0.000000e+00> : vector<16x32xf32>
    %112 = tpu.matmul %102, %111, %cst_59 {dimension_numbers = #tpu.dot_dimension_numbers<[1], [0], [0], [1], [0, 0, 1, 1], [], []>} : vector<16x32xf32>, vector<32x32xf32>, vector<16x32xf32> -> vector<16x32xf32>
    %c0_60 = arith.constant 0 : index
    %c0_61 = arith.constant 0 : index
    %c0_62 = arith.constant 0 : index
    %113 = vector.load %arg18[%c0_60, %c0_61, %c0_62] : memref<2x1x32xf32, #tpu.memory_space<vmem>>, vector<1x1x32xf32>
    %114 = vector.shape_cast %113 : vector<1x1x32xf32> to vector<1x32xf32>
    %115 = vector.broadcast %114 : vector<1x32xf32> to vector<16x32xf32>
    %116 = arith.addf %112, %115 : vector<16x32xf32>
    %c0_63 = arith.constant 0 : index
    %c0_64 = arith.constant 0 : index
    %c0_65 = arith.constant 0 : index
    %117 = vector.load %arg19[%c0_63, %c0_64, %c0_65] : memref<2x32x32xf32, #tpu.memory_space<vmem>>, vector<1x32x32xf32>
    %118 = vector.shape_cast %117 : vector<1x32x32xf32> to vector<32x32xf32>
    %cst_66 = arith.constant dense<0.000000e+00> : vector<16x32xf32>
    %119 = tpu.matmul %102, %118, %cst_66 {dimension_numbers = #tpu.dot_dimension_numbers<[1], [0], [0], [1], [0, 0, 1, 1], [], []>} : vector<16x32xf32>, vector<32x32xf32>, vector<16x32xf32> -> vector<16x32xf32>
    %c0_67 = arith.constant 0 : index
    %c0_68 = arith.constant 0 : index
    %c0_69 = arith.constant 0 : index
    %120 = vector.load %arg20[%c0_67, %c0_68, %c0_69] : memref<2x1x32xf32, #tpu.memory_space<vmem>>, vector<1x1x32xf32>
    %121 = vector.shape_cast %120 : vector<1x1x32xf32> to vector<1x32xf32>
    %122 = vector.broadcast %121 : vector<1x32xf32> to vector<16x32xf32>
    %123 = arith.addf %119, %122 : vector<16x32xf32>
    %124 = vector.shape_cast %109 : vector<16x32xf32> to vector<2x8x32xf32>
    %125 = vector.shape_cast %116 : vector<16x32xf32> to vector<2x8x32xf32>
    %126 = vector.shape_cast %123 : vector<16x32xf32> to vector<2x8x32xf32>
    %127 = vector.extract_strided_slice %124 {offsets = [0, 0, 0], sizes = [2, 8, 8], strides = [1, 1, 1]} : vector<2x8x32xf32> to vector<2x8x8xf32>
    %128 = vector.extract_strided_slice %125 {offsets = [0, 0, 0], sizes = [2, 8, 8], strides = [1, 1, 1]} : vector<2x8x32xf32> to vector<2x8x8xf32>
    %129 = vector.extract_strided_slice %126 {offsets = [0, 0, 0], sizes = [2, 8, 8], strides = [1, 1, 1]} : vector<2x8x32xf32> to vector<2x8x8xf32>
    "tpu.trace_start"() <{level = 10 : i32, message = "bnd,bmd->bnm"}> : () -> ()
    %cst_70 = arith.constant dense<0.000000e+00> : vector<2x8x8xf32>
    %130 = tpu.matmul %127, %128, %cst_70 {dimension_numbers = #tpu.dot_dimension_numbers<[2], [2], [1], [1], [0, 0, 0, 1, 1, 1], [0], [0]>} : vector<2x8x8xf32>, vector<2x8x8xf32>, vector<2x8x8xf32> -> vector<2x8x8xf32>
    "tpu.trace_stop"() : () -> ()
    %cst_71 = arith.constant 0.353553385 : f32
    %131 = vector.broadcast %cst_71 : f32 to vector<2x8x8xf32>
    %132 = arith.mulf %130, %131 : vector<2x8x8xf32>
    %cst_72 = arith.constant dense<0xFF800000> : vector<2x8xf32>
    %133 = vector.multi_reduction <maximumf>, %132, %cst_72 [2] : vector<2x8x8xf32> to vector<2x8xf32>
    %134 = vector.shape_cast %133 : vector<2x8xf32> to vector<2x8x1xf32>
    %135 = vector.broadcast %134 : vector<2x8x1xf32> to vector<2x8x8xf32>
    %136 = arith.subf %132, %135 : vector<2x8x8xf32>
    %137 = math.exp %136 : vector<2x8x8xf32>
    %cst_73 = arith.constant dense<0.000000e+00> : vector<2x8xf32>
    %138 = vector.multi_reduction <add>, %137, %cst_73 [2] : vector<2x8x8xf32> to vector<2x8xf32>
    %139 = vector.shape_cast %138 : vector<2x8xf32> to vector<2x8x1xf32>
    %140 = tpu.reciprocal %139 {approx = true} : vector<2x8x1xf32> -> vector<2x8x1xf32>
    %141 = vector.broadcast %140 : vector<2x8x1xf32> to vector<2x8x8xf32>
    %142 = arith.mulf %137, %141 : vector<2x8x8xf32>
    "tpu.trace_start"() <{level = 10 : i32, message = "bnm,bmd->bnd"}> : () -> ()
    %cst_74 = arith.constant dense<0.000000e+00> : vector<2x8x8xf32>
    %143 = tpu.matmul %142, %129, %cst_74 {dimension_numbers = #tpu.dot_dimension_numbers<[2], [1], [1], [2], [0, 0, 0, 1, 1, 2], [0], [0]>} : vector<2x8x8xf32>, vector<2x8x8xf32>, vector<2x8x8xf32> -> vector<2x8x8xf32>
    "tpu.trace_stop"() : () -> ()
    %144 = vector.extract_strided_slice %124 {offsets = [0, 0, 8], sizes = [2, 8, 8], strides = [1, 1, 1]} : vector<2x8x32xf32> to vector<2x8x8xf32>
    %145 = vector.extract_strided_slice %125 {offsets = [0, 0, 8], sizes = [2, 8, 8], strides = [1, 1, 1]} : vector<2x8x32xf32> to vector<2x8x8xf32>
    %146 = vector.extract_strided_slice %126 {offsets = [0, 0, 8], sizes = [2, 8, 8], strides = [1, 1, 1]} : vector<2x8x32xf32> to vector<2x8x8xf32>
    "tpu.trace_start"() <{level = 10 : i32, message = "bnd,bmd->bnm"}> : () -> ()
    %cst_75 = arith.constant dense<0.000000e+00> : vector<2x8x8xf32>
    %147 = tpu.matmul %144, %145, %cst_75 {dimension_numbers = #tpu.dot_dimension_numbers<[2], [2], [1], [1], [0, 0, 0, 1, 1, 1], [0], [0]>} : vector<2x8x8xf32>, vector<2x8x8xf32>, vector<2x8x8xf32> -> vector<2x8x8xf32>
    "tpu.trace_stop"() : () -> ()
    %cst_76 = arith.constant 0.353553385 : f32
    %148 = vector.broadcast %cst_76 : f32 to vector<2x8x8xf32>
    %149 = arith.mulf %147, %148 : vector<2x8x8xf32>
    %cst_77 = arith.constant dense<0xFF800000> : vector<2x8xf32>
    %150 = vector.multi_reduction <maximumf>, %149, %cst_77 [2] : vector<2x8x8xf32> to vector<2x8xf32>
    %151 = vector.shape_cast %150 : vector<2x8xf32> to vector<2x8x1xf32>
    %152 = vector.broadcast %151 : vector<2x8x1xf32> to vector<2x8x8xf32>
    %153 = arith.subf %149, %152 : vector<2x8x8xf32>
    %154 = math.exp %153 : vector<2x8x8xf32>
    %cst_78 = arith.constant dense<0.000000e+00> : vector<2x8xf32>
    %155 = vector.multi_reduction <add>, %154, %cst_78 [2] : vector<2x8x8xf32> to vector<2x8xf32>
    %156 = vector.shape_cast %155 : vector<2x8xf32> to vector<2x8x1xf32>
    %157 = tpu.reciprocal %156 {approx = true} : vector<2x8x1xf32> -> vector<2x8x1xf32>
    %158 = vector.broadcast %157 : vector<2x8x1xf32> to vector<2x8x8xf32>
    %159 = arith.mulf %154, %158 : vector<2x8x8xf32>
    "tpu.trace_start"() <{level = 10 : i32, message = "bnm,bmd->bnd"}> : () -> ()
    %cst_79 = arith.constant dense<0.000000e+00> : vector<2x8x8xf32>
    %160 = tpu.matmul %159, %146, %cst_79 {dimension_numbers = #tpu.dot_dimension_numbers<[2], [1], [1], [2], [0, 0, 0, 1, 1, 2], [0], [0]>} : vector<2x8x8xf32>, vector<2x8x8xf32>, vector<2x8x8xf32> -> vector<2x8x8xf32>
    "tpu.trace_stop"() : () -> ()
    %161 = vector.extract_strided_slice %124 {offsets = [0, 0, 16], sizes = [2, 8, 8], strides = [1, 1, 1]} : vector<2x8x32xf32> to vector<2x8x8xf32>
    %162 = vector.extract_strided_slice %125 {offsets = [0, 0, 16], sizes = [2, 8, 8], strides = [1, 1, 1]} : vector<2x8x32xf32> to vector<2x8x8xf32>
    %163 = vector.extract_strided_slice %126 {offsets = [0, 0, 16], sizes = [2, 8, 8], strides = [1, 1, 1]} : vector<2x8x32xf32> to vector<2x8x8xf32>
    "tpu.trace_start"() <{level = 10 : i32, message = "bnd,bmd->bnm"}> : () -> ()
    %cst_80 = arith.constant dense<0.000000e+00> : vector<2x8x8xf32>
    %164 = tpu.matmul %161, %162, %cst_80 {dimension_numbers = #tpu.dot_dimension_numbers<[2], [2], [1], [1], [0, 0, 0, 1, 1, 1], [0], [0]>} : vector<2x8x8xf32>, vector<2x8x8xf32>, vector<2x8x8xf32> -> vector<2x8x8xf32>
    "tpu.trace_stop"() : () -> ()
    %cst_81 = arith.constant 0.353553385 : f32
    %165 = vector.broadcast %cst_81 : f32 to vector<2x8x8xf32>
    %166 = arith.mulf %164, %165 : vector<2x8x8xf32>
    %cst_82 = arith.constant dense<0xFF800000> : vector<2x8xf32>
    %167 = vector.multi_reduction <maximumf>, %166, %cst_82 [2] : vector<2x8x8xf32> to vector<2x8xf32>
    %168 = vector.shape_cast %167 : vector<2x8xf32> to vector<2x8x1xf32>
    %169 = vector.broadcast %168 : vector<2x8x1xf32> to vector<2x8x8xf32>
    %170 = arith.subf %166, %169 : vector<2x8x8xf32>
    %171 = math.exp %170 : vector<2x8x8xf32>
    %cst_83 = arith.constant dense<0.000000e+00> : vector<2x8xf32>
    %172 = vector.multi_reduction <add>, %171, %cst_83 [2] : vector<2x8x8xf32> to vector<2x8xf32>
    %173 = vector.shape_cast %172 : vector<2x8xf32> to vector<2x8x1xf32>
    %174 = tpu.reciprocal %173 {approx = true} : vector<2x8x1xf32> -> vector<2x8x1xf32>
    %175 = vector.broadcast %174 : vector<2x8x1xf32> to vector<2x8x8xf32>
    %176 = arith.mulf %171, %175 : vector<2x8x8xf32>
    "tpu.trace_start"() <{level = 10 : i32, message = "bnm,bmd->bnd"}> : () -> ()
    %cst_84 = arith.constant dense<0.000000e+00> : vector<2x8x8xf32>
    %177 = tpu.matmul %176, %163, %cst_84 {dimension_numbers = #tpu.dot_dimension_numbers<[2], [1], [1], [2], [0, 0, 0, 1, 1, 2], [0], [0]>} : vector<2x8x8xf32>, vector<2x8x8xf32>, vector<2x8x8xf32> -> vector<2x8x8xf32>
    "tpu.trace_stop"() : () -> ()
    %178 = vector.extract_strided_slice %124 {offsets = [0, 0, 24], sizes = [2, 8, 8], strides = [1, 1, 1]} : vector<2x8x32xf32> to vector<2x8x8xf32>
    %179 = vector.extract_strided_slice %125 {offsets = [0, 0, 24], sizes = [2, 8, 8], strides = [1, 1, 1]} : vector<2x8x32xf32> to vector<2x8x8xf32>
    %180 = vector.extract_strided_slice %126 {offsets = [0, 0, 24], sizes = [2, 8, 8], strides = [1, 1, 1]} : vector<2x8x32xf32> to vector<2x8x8xf32>
    "tpu.trace_start"() <{level = 10 : i32, message = "bnd,bmd->bnm"}> : () -> ()
    %cst_85 = arith.constant dense<0.000000e+00> : vector<2x8x8xf32>
    %181 = tpu.matmul %178, %179, %cst_85 {dimension_numbers = #tpu.dot_dimension_numbers<[2], [2], [1], [1], [0, 0, 0, 1, 1, 1], [0], [0]>} : vector<2x8x8xf32>, vector<2x8x8xf32>, vector<2x8x8xf32> -> vector<2x8x8xf32>
    "tpu.trace_stop"() : () -> ()
    %cst_86 = arith.constant 0.353553385 : f32
    %182 = vector.broadcast %cst_86 : f32 to vector<2x8x8xf32>
    %183 = arith.mulf %181, %182 : vector<2x8x8xf32>
    %cst_87 = arith.constant dense<0xFF800000> : vector<2x8xf32>
    %184 = vector.multi_reduction <maximumf>, %183, %cst_87 [2] : vector<2x8x8xf32> to vector<2x8xf32>
    %185 = vector.shape_cast %184 : vector<2x8xf32> to vector<2x8x1xf32>
    %186 = vector.broadcast %185 : vector<2x8x1xf32> to vector<2x8x8xf32>
    %187 = arith.subf %183, %186 : vector<2x8x8xf32>
    %188 = math.exp %187 : vector<2x8x8xf32>
    %cst_88 = arith.constant dense<0.000000e+00> : vector<2x8xf32>
    %189 = vector.multi_reduction <add>, %188, %cst_88 [2] : vector<2x8x8xf32> to vector<2x8xf32>
    %190 = vector.shape_cast %189 : vector<2x8xf32> to vector<2x8x1xf32>
    %191 = tpu.reciprocal %190 {approx = true} : vector<2x8x1xf32> -> vector<2x8x1xf32>
    %192 = vector.broadcast %191 : vector<2x8x1xf32> to vector<2x8x8xf32>
    %193 = arith.mulf %188, %192 : vector<2x8x8xf32>
    "tpu.trace_start"() <{level = 10 : i32, message = "bnm,bmd->bnd"}> : () -> ()
    %cst_89 = arith.constant dense<0.000000e+00> : vector<2x8x8xf32>
    %194 = tpu.matmul %193, %180, %cst_89 {dimension_numbers = #tpu.dot_dimension_numbers<[2], [1], [1], [2], [0, 0, 0, 1, 1, 2], [0], [0]>} : vector<2x8x8xf32>, vector<2x8x8xf32>, vector<2x8x8xf32> -> vector<2x8x8xf32>
    "tpu.trace_stop"() : () -> ()
    %195 = tpu.concatenate %143, %160, %177, %194 in 2 : vector<2x8x8xf32>, vector<2x8x8xf32>, vector<2x8x8xf32>, vector<2x8x8xf32> -> vector<2x8x32xf32>
    %196 = vector.shape_cast %195 : vector<2x8x32xf32> to vector<16x32xf32>
    %c0_90 = arith.constant 0 : index
    %c0_91 = arith.constant 0 : index
    %c0_92 = arith.constant 0 : index
    %197 = vector.load %arg21[%c0_90, %c0_91, %c0_92] : memref<2x32x32xf32, #tpu.memory_space<vmem>>, vector<1x32x32xf32>
    %198 = vector.shape_cast %197 : vector<1x32x32xf32> to vector<32x32xf32>
    %cst_93 = arith.constant dense<0.000000e+00> : vector<16x32xf32>
    %199 = tpu.matmul %196, %198, %cst_93 {dimension_numbers = #tpu.dot_dimension_numbers<[1], [0], [0], [1], [0, 0, 1, 1], [], []>} : vector<16x32xf32>, vector<32x32xf32>, vector<16x32xf32> -> vector<16x32xf32>
    %c0_94 = arith.constant 0 : index
    %c0_95 = arith.constant 0 : index
    %c0_96 = arith.constant 0 : index
    %200 = vector.load %arg22[%c0_94, %c0_95, %c0_96] : memref<2x1x32xf32, #tpu.memory_space<vmem>>, vector<1x1x32xf32>
    %201 = vector.shape_cast %200 : vector<1x1x32xf32> to vector<1x32xf32>
    %202 = vector.broadcast %201 : vector<1x32xf32> to vector<16x32xf32>
    %203 = arith.addf %199, %202 : vector<16x32xf32>
    %c0_97 = arith.constant 0 : index
    %c0_98 = arith.constant 0 : index
    %c0_99 = arith.constant 0 : index
    %204 = vector.load %arg23[%c0_97, %c0_98, %c0_99] : memref<2x64x64xf32, #tpu.memory_space<vmem>>, vector<1x64x64xf32>
    %205 = vector.shape_cast %204 : vector<1x64x64xf32> to vector<64x64xf32>
    %206 = vector.extract_strided_slice %205 {offsets = [0, 0], sizes = [32, 64], strides = [1, 1]} : vector<64x64xf32> to vector<32x64xf32>
    %cst_100 = arith.constant dense<0.000000e+00> : vector<16x64xf32>
    %207 = tpu.matmul %102, %206, %cst_100 {dimension_numbers = #tpu.dot_dimension_numbers<[1], [0], [0], [1], [0, 0, 1, 1], [], []>} : vector<16x32xf32>, vector<32x64xf32>, vector<16x64xf32> -> vector<16x64xf32>
    %208 = vector.extract_strided_slice %205 {offsets = [32, 0], sizes = [32, 64], strides = [1, 1]} : vector<64x64xf32> to vector<32x64xf32>
    %cst_101 = arith.constant dense<0.000000e+00> : vector<16x64xf32>
    %209 = tpu.matmul %203, %208, %cst_101 {dimension_numbers = #tpu.dot_dimension_numbers<[1], [0], [0], [1], [0, 0, 1, 1], [], []>} : vector<16x32xf32>, vector<32x64xf32>, vector<16x64xf32> -> vector<16x64xf32>
    %210 = arith.addf %207, %209 : vector<16x64xf32>
    %c0_102 = arith.constant 0 : index
    %c0_103 = arith.constant 0 : index
    %c0_104 = arith.constant 0 : index
    %211 = vector.load %arg24[%c0_102, %c0_103, %c0_104] : memref<2x1x64xf32, #tpu.memory_space<vmem>>, vector<1x1x64xf32>
    %212 = vector.shape_cast %211 : vector<1x1x64xf32> to vector<1x64xf32>
    %213 = vector.broadcast %212 : vector<1x64xf32> to vector<16x64xf32>
    %214 = arith.addf %210, %213 : vector<16x64xf32>
    %215 = vector.shape_cast %214 : vector<16x64xf32> to vector<2x8x64xf32>
    %cst_105 = arith.constant dense<0.000000e+00> : vector<2x64xf32>
    %216 = vector.multi_reduction <add>, %215, %cst_105 [1] : vector<2x8x64xf32> to vector<2x64xf32>
    %217 = vector.shape_cast %216 : vector<2x64xf32> to vector<2x1x64xf32>
    %cst_106 = arith.constant 8.000000e+00 : f32
    %218 = vector.broadcast %cst_106 : f32 to vector<2x1x64xf32>
    %219 = arith.divf %217, %218 : vector<2x1x64xf32>
    %220 = vector.broadcast %219 : vector<2x1x64xf32> to vector<2x8x64xf32>
    %221 = arith.subf %215, %220 : vector<2x8x64xf32>
    %222 = arith.mulf %221, %221 : vector<2x8x64xf32>
    %cst_107 = arith.constant dense<0.000000e+00> : vector<2x64xf32>
    %223 = vector.multi_reduction <add>, %222, %cst_107 [1] : vector<2x8x64xf32> to vector<2x64xf32>
    %224 = vector.shape_cast %223 : vector<2x64xf32> to vector<2x1x64xf32>
    %cst_108 = arith.constant 8.000000e+00 : f32
    %225 = vector.broadcast %cst_108 : f32 to vector<2x1x64xf32>
    %226 = arith.divf %224, %225 : vector<2x1x64xf32>
    %227 = vector.broadcast %219 : vector<2x1x64xf32> to vector<2x8x64xf32>
    %228 = arith.subf %215, %227 : vector<2x8x64xf32>
    %cst_109 = arith.constant 9.99999974E-6 : f32
    %229 = vector.broadcast %cst_109 : f32 to vector<2x1x64xf32>
    %230 = arith.addf %226, %229 : vector<2x1x64xf32>
    %231 = math.rsqrt %230 : vector<2x1x64xf32>
    %232 = vector.broadcast %231 : vector<2x1x64xf32> to vector<2x8x64xf32>
    %233 = arith.mulf %228, %232 : vector<2x8x64xf32>
    %234 = vector.shape_cast %233 : vector<2x8x64xf32> to vector<16x64xf32>
    %cst_110 = arith.constant 0.000000e+00 : f32
    %235 = vector.broadcast %cst_110 : f32 to vector<16x64xf32>
    %236 = arith.maximumf %234, %235 : vector<16x64xf32>
    %c0_111 = arith.constant 0 : index
    %c0_112 = arith.constant 0 : index
    %c0_113 = arith.constant 0 : index
    %237 = vector.load %arg25[%c0_111, %c0_112, %c0_113] : memref<2x64x32xf32, #tpu.memory_space<vmem>>, vector<1x64x32xf32>
    %238 = vector.shape_cast %237 : vector<1x64x32xf32> to vector<64x32xf32>
    %cst_114 = arith.constant dense<0.000000e+00> : vector<16x32xf32>
    %239 = tpu.matmul %236, %238, %cst_114 {dimension_numbers = #tpu.dot_dimension_numbers<[1], [0], [0], [1], [0, 0, 1, 1], [], []>} : vector<16x64xf32>, vector<64x32xf32>, vector<16x32xf32> -> vector<16x32xf32>
    %c0_115 = arith.constant 0 : index
    %c0_116 = arith.constant 0 : index
    %c0_117 = arith.constant 0 : index
    %240 = vector.load %arg26[%c0_115, %c0_116, %c0_117] : memref<2x1x32xf32, #tpu.memory_space<vmem>>, vector<1x1x32xf32>
    %241 = vector.shape_cast %240 : vector<1x1x32xf32> to vector<1x32xf32>
    %242 = vector.broadcast %241 : vector<1x32xf32> to vector<16x32xf32>
    %243 = arith.addf %239, %242 : vector<16x32xf32>
    %244 = arith.addf %102, %243 : vector<16x32xf32>
    %c1 = arith.constant 1 : index
    %c0_118 = arith.constant 0 : index
    %c0_119 = arith.constant 0 : index
    %245 = vector.load %arg15[%c1, %c0_118, %c0_119] : memref<2x32x32xf32, #tpu.memory_space<vmem>>, vector<1x32x32xf32>
    %246 = vector.shape_cast %245 : vector<1x32x32xf32> to vector<32x32xf32>
    %cst_120 = arith.constant dense<0.000000e+00> : vector<16x32xf32>
    %247 = tpu.matmul %244, %246, %cst_120 {dimension_numbers = #tpu.dot_dimension_numbers<[1], [0], [0], [1], [0, 0, 1, 1], [], []>} : vector<16x32xf32>, vector<32x32xf32>, vector<16x32xf32> -> vector<16x32xf32>
    %c1_121 = arith.constant 1 : index
    %c0_122 = arith.constant 0 : index
    %c0_123 = arith.constant 0 : index
    %248 = vector.load %arg16[%c1_121, %c0_122, %c0_123] : memref<2x1x32xf32, #tpu.memory_space<vmem>>, vector<1x1x32xf32>
    %249 = vector.shape_cast %248 : vector<1x1x32xf32> to vector<1x32xf32>
    %250 = vector.broadcast %249 : vector<1x32xf32> to vector<16x32xf32>
    %251 = arith.addf %247, %250 : vector<16x32xf32>
    %c1_124 = arith.constant 1 : index
    %c0_125 = arith.constant 0 : index
    %c0_126 = arith.constant 0 : index
    %252 = vector.load %arg17[%c1_124, %c0_125, %c0_126] : memref<2x32x32xf32, #tpu.memory_space<vmem>>, vector<1x32x32xf32>
    %253 = vector.shape_cast %252 : vector<1x32x32xf32> to vector<32x32xf32>
    %cst_127 = arith.constant dense<0.000000e+00> : vector<16x32xf32>
    %254 = tpu.matmul %244, %253, %cst_127 {dimension_numbers = #tpu.dot_dimension_numbers<[1], [0], [0], [1], [0, 0, 1, 1], [], []>} : vector<16x32xf32>, vector<32x32xf32>, vector<16x32xf32> -> vector<16x32xf32>
    %c1_128 = arith.constant 1 : index
    %c0_129 = arith.constant 0 : index
    %c0_130 = arith.constant 0 : index
    %255 = vector.load %arg18[%c1_128, %c0_129, %c0_130] : memref<2x1x32xf32, #tpu.memory_space<vmem>>, vector<1x1x32xf32>
    %256 = vector.shape_cast %255 : vector<1x1x32xf32> to vector<1x32xf32>
    %257 = vector.broadcast %256 : vector<1x32xf32> to vector<16x32xf32>
    %258 = arith.addf %254, %257 : vector<16x32xf32>
    %c1_131 = arith.constant 1 : index
    %c0_132 = arith.constant 0 : index
    %c0_133 = arith.constant 0 : index
    %259 = vector.load %arg19[%c1_131, %c0_132, %c0_133] : memref<2x32x32xf32, #tpu.memory_space<vmem>>, vector<1x32x32xf32>
    %260 = vector.shape_cast %259 : vector<1x32x32xf32> to vector<32x32xf32>
    %cst_134 = arith.constant dense<0.000000e+00> : vector<16x32xf32>
    %261 = tpu.matmul %244, %260, %cst_134 {dimension_numbers = #tpu.dot_dimension_numbers<[1], [0], [0], [1], [0, 0, 1, 1], [], []>} : vector<16x32xf32>, vector<32x32xf32>, vector<16x32xf32> -> vector<16x32xf32>
    %c1_135 = arith.constant 1 : index
    %c0_136 = arith.constant 0 : index
    %c0_137 = arith.constant 0 : index
    %262 = vector.load %arg20[%c1_135, %c0_136, %c0_137] : memref<2x1x32xf32, #tpu.memory_space<vmem>>, vector<1x1x32xf32>
    %263 = vector.shape_cast %262 : vector<1x1x32xf32> to vector<1x32xf32>
    %264 = vector.broadcast %263 : vector<1x32xf32> to vector<16x32xf32>
    %265 = arith.addf %261, %264 : vector<16x32xf32>
    %266 = vector.shape_cast %251 : vector<16x32xf32> to vector<2x8x32xf32>
    %267 = vector.shape_cast %258 : vector<16x32xf32> to vector<2x8x32xf32>
    %268 = vector.shape_cast %265 : vector<16x32xf32> to vector<2x8x32xf32>
    %269 = vector.extract_strided_slice %267 {offsets = [1, 0, 0], sizes = [1, 8, 32], strides = [1, 1, 1]} : vector<2x8x32xf32> to vector<1x8x32xf32>
    %270 = vector.extract_strided_slice %267 {offsets = [0, 0, 0], sizes = [1, 8, 32], strides = [1, 1, 1]} : vector<2x8x32xf32> to vector<1x8x32xf32>
    %271 = tpu.concatenate %269, %270 in 0 : vector<1x8x32xf32>, vector<1x8x32xf32> -> vector<2x8x32xf32>
    %272 = vector.extract_strided_slice %268 {offsets = [1, 0, 0], sizes = [1, 8, 32], strides = [1, 1, 1]} : vector<2x8x32xf32> to vector<1x8x32xf32>
    %273 = vector.extract_strided_slice %268 {offsets = [0, 0, 0], sizes = [1, 8, 32], strides = [1, 1, 1]} : vector<2x8x32xf32> to vector<1x8x32xf32>
    %274 = tpu.concatenate %272, %273 in 0 : vector<1x8x32xf32>, vector<1x8x32xf32> -> vector<2x8x32xf32>
    %275 = vector.extract_strided_slice %266 {offsets = [0, 0, 0], sizes = [2, 8, 8], strides = [1, 1, 1]} : vector<2x8x32xf32> to vector<2x8x8xf32>
    %276 = vector.extract_strided_slice %271 {offsets = [0, 0, 0], sizes = [2, 8, 8], strides = [1, 1, 1]} : vector<2x8x32xf32> to vector<2x8x8xf32>
    %277 = vector.extract_strided_slice %274 {offsets = [0, 0, 0], sizes = [2, 8, 8], strides = [1, 1, 1]} : vector<2x8x32xf32> to vector<2x8x8xf32>
    "tpu.trace_start"() <{level = 10 : i32, message = "bnd,bmd->bnm"}> : () -> ()
    %cst_138 = arith.constant dense<0.000000e+00> : vector<2x8x8xf32>
    %278 = tpu.matmul %275, %276, %cst_138 {dimension_numbers = #tpu.dot_dimension_numbers<[2], [2], [1], [1], [0, 0, 0, 1, 1, 1], [0], [0]>} : vector<2x8x8xf32>, vector<2x8x8xf32>, vector<2x8x8xf32> -> vector<2x8x8xf32>
    "tpu.trace_stop"() : () -> ()
    %cst_139 = arith.constant 0.353553385 : f32
    %279 = vector.broadcast %cst_139 : f32 to vector<2x8x8xf32>
    %280 = arith.mulf %278, %279 : vector<2x8x8xf32>
    %cst_140 = arith.constant dense<0xFF800000> : vector<2x8xf32>
    %281 = vector.multi_reduction <maximumf>, %280, %cst_140 [2] : vector<2x8x8xf32> to vector<2x8xf32>
    %282 = vector.shape_cast %281 : vector<2x8xf32> to vector<2x8x1xf32>
    %283 = vector.broadcast %282 : vector<2x8x1xf32> to vector<2x8x8xf32>
    %284 = arith.subf %280, %283 : vector<2x8x8xf32>
    %285 = math.exp %284 : vector<2x8x8xf32>
    %cst_141 = arith.constant dense<0.000000e+00> : vector<2x8xf32>
    %286 = vector.multi_reduction <add>, %285, %cst_141 [2] : vector<2x8x8xf32> to vector<2x8xf32>
    %287 = vector.shape_cast %286 : vector<2x8xf32> to vector<2x8x1xf32>
    %288 = tpu.reciprocal %287 {approx = true} : vector<2x8x1xf32> -> vector<2x8x1xf32>
    %289 = vector.broadcast %288 : vector<2x8x1xf32> to vector<2x8x8xf32>
    %290 = arith.mulf %285, %289 : vector<2x8x8xf32>
    "tpu.trace_start"() <{level = 10 : i32, message = "bnm,bmd->bnd"}> : () -> ()
    %cst_142 = arith.constant dense<0.000000e+00> : vector<2x8x8xf32>
    %291 = tpu.matmul %290, %277, %cst_142 {dimension_numbers = #tpu.dot_dimension_numbers<[2], [1], [1], [2], [0, 0, 0, 1, 1, 2], [0], [0]>} : vector<2x8x8xf32>, vector<2x8x8xf32>, vector<2x8x8xf32> -> vector<2x8x8xf32>
    "tpu.trace_stop"() : () -> ()
    %292 = vector.extract_strided_slice %266 {offsets = [0, 0, 8], sizes = [2, 8, 8], strides = [1, 1, 1]} : vector<2x8x32xf32> to vector<2x8x8xf32>
    %293 = vector.extract_strided_slice %271 {offsets = [0, 0, 8], sizes = [2, 8, 8], strides = [1, 1, 1]} : vector<2x8x32xf32> to vector<2x8x8xf32>
    %294 = vector.extract_strided_slice %274 {offsets = [0, 0, 8], sizes = [2, 8, 8], strides = [1, 1, 1]} : vector<2x8x32xf32> to vector<2x8x8xf32>
    "tpu.trace_start"() <{level = 10 : i32, message = "bnd,bmd->bnm"}> : () -> ()
    %cst_143 = arith.constant dense<0.000000e+00> : vector<2x8x8xf32>
    %295 = tpu.matmul %292, %293, %cst_143 {dimension_numbers = #tpu.dot_dimension_numbers<[2], [2], [1], [1], [0, 0, 0, 1, 1, 1], [0], [0]>} : vector<2x8x8xf32>, vector<2x8x8xf32>, vector<2x8x8xf32> -> vector<2x8x8xf32>
    "tpu.trace_stop"() : () -> ()
    %cst_144 = arith.constant 0.353553385 : f32
    %296 = vector.broadcast %cst_144 : f32 to vector<2x8x8xf32>
    %297 = arith.mulf %295, %296 : vector<2x8x8xf32>
    %cst_145 = arith.constant dense<0xFF800000> : vector<2x8xf32>
    %298 = vector.multi_reduction <maximumf>, %297, %cst_145 [2] : vector<2x8x8xf32> to vector<2x8xf32>
    %299 = vector.shape_cast %298 : vector<2x8xf32> to vector<2x8x1xf32>
    %300 = vector.broadcast %299 : vector<2x8x1xf32> to vector<2x8x8xf32>
    %301 = arith.subf %297, %300 : vector<2x8x8xf32>
    %302 = math.exp %301 : vector<2x8x8xf32>
    %cst_146 = arith.constant dense<0.000000e+00> : vector<2x8xf32>
    %303 = vector.multi_reduction <add>, %302, %cst_146 [2] : vector<2x8x8xf32> to vector<2x8xf32>
    %304 = vector.shape_cast %303 : vector<2x8xf32> to vector<2x8x1xf32>
    %305 = tpu.reciprocal %304 {approx = true} : vector<2x8x1xf32> -> vector<2x8x1xf32>
    %306 = vector.broadcast %305 : vector<2x8x1xf32> to vector<2x8x8xf32>
    %307 = arith.mulf %302, %306 : vector<2x8x8xf32>
    "tpu.trace_start"() <{level = 10 : i32, message = "bnm,bmd->bnd"}> : () -> ()
    %cst_147 = arith.constant dense<0.000000e+00> : vector<2x8x8xf32>
    %308 = tpu.matmul %307, %294, %cst_147 {dimension_numbers = #tpu.dot_dimension_numbers<[2], [1], [1], [2], [0, 0, 0, 1, 1, 2], [0], [0]>} : vector<2x8x8xf32>, vector<2x8x8xf32>, vector<2x8x8xf32> -> vector<2x8x8xf32>
    "tpu.trace_stop"() : () -> ()
    %309 = vector.extract_strided_slice %266 {offsets = [0, 0, 16], sizes = [2, 8, 8], strides = [1, 1, 1]} : vector<2x8x32xf32> to vector<2x8x8xf32>
    %310 = vector.extract_strided_slice %271 {offsets = [0, 0, 16], sizes = [2, 8, 8], strides = [1, 1, 1]} : vector<2x8x32xf32> to vector<2x8x8xf32>
    %311 = vector.extract_strided_slice %274 {offsets = [0, 0, 16], sizes = [2, 8, 8], strides = [1, 1, 1]} : vector<2x8x32xf32> to vector<2x8x8xf32>
    "tpu.trace_start"() <{level = 10 : i32, message = "bnd,bmd->bnm"}> : () -> ()
    %cst_148 = arith.constant dense<0.000000e+00> : vector<2x8x8xf32>
    %312 = tpu.matmul %309, %310, %cst_148 {dimension_numbers = #tpu.dot_dimension_numbers<[2], [2], [1], [1], [0, 0, 0, 1, 1, 1], [0], [0]>} : vector<2x8x8xf32>, vector<2x8x8xf32>, vector<2x8x8xf32> -> vector<2x8x8xf32>
    "tpu.trace_stop"() : () -> ()
    %cst_149 = arith.constant 0.353553385 : f32
    %313 = vector.broadcast %cst_149 : f32 to vector<2x8x8xf32>
    %314 = arith.mulf %312, %313 : vector<2x8x8xf32>
    %cst_150 = arith.constant dense<0xFF800000> : vector<2x8xf32>
    %315 = vector.multi_reduction <maximumf>, %314, %cst_150 [2] : vector<2x8x8xf32> to vector<2x8xf32>
    %316 = vector.shape_cast %315 : vector<2x8xf32> to vector<2x8x1xf32>
    %317 = vector.broadcast %316 : vector<2x8x1xf32> to vector<2x8x8xf32>
    %318 = arith.subf %314, %317 : vector<2x8x8xf32>
    %319 = math.exp %318 : vector<2x8x8xf32>
    %cst_151 = arith.constant dense<0.000000e+00> : vector<2x8xf32>
    %320 = vector.multi_reduction <add>, %319, %cst_151 [2] : vector<2x8x8xf32> to vector<2x8xf32>
    %321 = vector.shape_cast %320 : vector<2x8xf32> to vector<2x8x1xf32>
    %322 = tpu.reciprocal %321 {approx = true} : vector<2x8x1xf32> -> vector<2x8x1xf32>
    %323 = vector.broadcast %322 : vector<2x8x1xf32> to vector<2x8x8xf32>
    %324 = arith.mulf %319, %323 : vector<2x8x8xf32>
    "tpu.trace_start"() <{level = 10 : i32, message = "bnm,bmd->bnd"}> : () -> ()
    %cst_152 = arith.constant dense<0.000000e+00> : vector<2x8x8xf32>
    %325 = tpu.matmul %324, %311, %cst_152 {dimension_numbers = #tpu.dot_dimension_numbers<[2], [1], [1], [2], [0, 0, 0, 1, 1, 2], [0], [0]>} : vector<2x8x8xf32>, vector<2x8x8xf32>, vector<2x8x8xf32> -> vector<2x8x8xf32>
    "tpu.trace_stop"() : () -> ()
    %326 = vector.extract_strided_slice %266 {offsets = [0, 0, 24], sizes = [2, 8, 8], strides = [1, 1, 1]} : vector<2x8x32xf32> to vector<2x8x8xf32>
    %327 = vector.extract_strided_slice %271 {offsets = [0, 0, 24], sizes = [2, 8, 8], strides = [1, 1, 1]} : vector<2x8x32xf32> to vector<2x8x8xf32>
    %328 = vector.extract_strided_slice %274 {offsets = [0, 0, 24], sizes = [2, 8, 8], strides = [1, 1, 1]} : vector<2x8x32xf32> to vector<2x8x8xf32>
    "tpu.trace_start"() <{level = 10 : i32, message = "bnd,bmd->bnm"}> : () -> ()
    %cst_153 = arith.constant dense<0.000000e+00> : vector<2x8x8xf32>
    %329 = tpu.matmul %326, %327, %cst_153 {dimension_numbers = #tpu.dot_dimension_numbers<[2], [2], [1], [1], [0, 0, 0, 1, 1, 1], [0], [0]>} : vector<2x8x8xf32>, vector<2x8x8xf32>, vector<2x8x8xf32> -> vector<2x8x8xf32>
    "tpu.trace_stop"() : () -> ()
    %cst_154 = arith.constant 0.353553385 : f32
    %330 = vector.broadcast %cst_154 : f32 to vector<2x8x8xf32>
    %331 = arith.mulf %329, %330 : vector<2x8x8xf32>
    %cst_155 = arith.constant dense<0xFF800000> : vector<2x8xf32>
    %332 = vector.multi_reduction <maximumf>, %331, %cst_155 [2] : vector<2x8x8xf32> to vector<2x8xf32>
    %333 = vector.shape_cast %332 : vector<2x8xf32> to vector<2x8x1xf32>
    %334 = vector.broadcast %333 : vector<2x8x1xf32> to vector<2x8x8xf32>
    %335 = arith.subf %331, %334 : vector<2x8x8xf32>
    %336 = math.exp %335 : vector<2x8x8xf32>
    %cst_156 = arith.constant dense<0.000000e+00> : vector<2x8xf32>
    %337 = vector.multi_reduction <add>, %336, %cst_156 [2] : vector<2x8x8xf32> to vector<2x8xf32>
    %338 = vector.shape_cast %337 : vector<2x8xf32> to vector<2x8x1xf32>
    %339 = tpu.reciprocal %338 {approx = true} : vector<2x8x1xf32> -> vector<2x8x1xf32>
    %340 = vector.broadcast %339 : vector<2x8x1xf32> to vector<2x8x8xf32>
    %341 = arith.mulf %336, %340 : vector<2x8x8xf32>
    "tpu.trace_start"() <{level = 10 : i32, message = "bnm,bmd->bnd"}> : () -> ()
    %cst_157 = arith.constant dense<0.000000e+00> : vector<2x8x8xf32>
    %342 = tpu.matmul %341, %328, %cst_157 {dimension_numbers = #tpu.dot_dimension_numbers<[2], [1], [1], [2], [0, 0, 0, 1, 1, 2], [0], [0]>} : vector<2x8x8xf32>, vector<2x8x8xf32>, vector<2x8x8xf32> -> vector<2x8x8xf32>
    "tpu.trace_stop"() : () -> ()
    %343 = tpu.concatenate %291, %308, %325, %342 in 2 : vector<2x8x8xf32>, vector<2x8x8xf32>, vector<2x8x8xf32>, vector<2x8x8xf32> -> vector<2x8x32xf32>
    %344 = vector.shape_cast %343 : vector<2x8x32xf32> to vector<16x32xf32>
    %c1_158 = arith.constant 1 : index
    %c0_159 = arith.constant 0 : index
    %c0_160 = arith.constant 0 : index
    %345 = vector.load %arg21[%c1_158, %c0_159, %c0_160] : memref<2x32x32xf32, #tpu.memory_space<vmem>>, vector<1x32x32xf32>
    %346 = vector.shape_cast %345 : vector<1x32x32xf32> to vector<32x32xf32>
    %cst_161 = arith.constant dense<0.000000e+00> : vector<16x32xf32>
    %347 = tpu.matmul %344, %346, %cst_161 {dimension_numbers = #tpu.dot_dimension_numbers<[1], [0], [0], [1], [0, 0, 1, 1], [], []>} : vector<16x32xf32>, vector<32x32xf32>, vector<16x32xf32> -> vector<16x32xf32>
    %c1_162 = arith.constant 1 : index
    %c0_163 = arith.constant 0 : index
    %c0_164 = arith.constant 0 : index
    %348 = vector.load %arg22[%c1_162, %c0_163, %c0_164] : memref<2x1x32xf32, #tpu.memory_space<vmem>>, vector<1x1x32xf32>
    %349 = vector.shape_cast %348 : vector<1x1x32xf32> to vector<1x32xf32>
    %350 = vector.broadcast %349 : vector<1x32xf32> to vector<16x32xf32>
    %351 = arith.addf %347, %350 : vector<16x32xf32>
    %c1_165 = arith.constant 1 : index
    %c0_166 = arith.constant 0 : index
    %c0_167 = arith.constant 0 : index
    %352 = vector.load %arg23[%c1_165, %c0_166, %c0_167] : memref<2x64x64xf32, #tpu.memory_space<vmem>>, vector<1x64x64xf32>
    %353 = vector.shape_cast %352 : vector<1x64x64xf32> to vector<64x64xf32>
    %354 = vector.extract_strided_slice %353 {offsets = [0, 0], sizes = [32, 64], strides = [1, 1]} : vector<64x64xf32> to vector<32x64xf32>
    %cst_168 = arith.constant dense<0.000000e+00> : vector<16x64xf32>
    %355 = tpu.matmul %244, %354, %cst_168 {dimension_numbers = #tpu.dot_dimension_numbers<[1], [0], [0], [1], [0, 0, 1, 1], [], []>} : vector<16x32xf32>, vector<32x64xf32>, vector<16x64xf32> -> vector<16x64xf32>
    %356 = vector.extract_strided_slice %353 {offsets = [32, 0], sizes = [32, 64], strides = [1, 1]} : vector<64x64xf32> to vector<32x64xf32>
    %cst_169 = arith.constant dense<0.000000e+00> : vector<16x64xf32>
    %357 = tpu.matmul %351, %356, %cst_169 {dimension_numbers = #tpu.dot_dimension_numbers<[1], [0], [0], [1], [0, 0, 1, 1], [], []>} : vector<16x32xf32>, vector<32x64xf32>, vector<16x64xf32> -> vector<16x64xf32>
    %358 = arith.addf %355, %357 : vector<16x64xf32>
    %c1_170 = arith.constant 1 : index
    %c0_171 = arith.constant 0 : index
    %c0_172 = arith.constant 0 : index
    %359 = vector.load %arg24[%c1_170, %c0_171, %c0_172] : memref<2x1x64xf32, #tpu.memory_space<vmem>>, vector<1x1x64xf32>
    %360 = vector.shape_cast %359 : vector<1x1x64xf32> to vector<1x64xf32>
    %361 = vector.broadcast %360 : vector<1x64xf32> to vector<16x64xf32>
    %362 = arith.addf %358, %361 : vector<16x64xf32>
    %363 = vector.shape_cast %362 : vector<16x64xf32> to vector<2x8x64xf32>
    %cst_173 = arith.constant dense<0.000000e+00> : vector<2x64xf32>
    %364 = vector.multi_reduction <add>, %363, %cst_173 [1] : vector<2x8x64xf32> to vector<2x64xf32>
    %365 = vector.shape_cast %364 : vector<2x64xf32> to vector<2x1x64xf32>
    %cst_174 = arith.constant 8.000000e+00 : f32
    %366 = vector.broadcast %cst_174 : f32 to vector<2x1x64xf32>
    %367 = arith.divf %365, %366 : vector<2x1x64xf32>
    %368 = vector.broadcast %367 : vector<2x1x64xf32> to vector<2x8x64xf32>
    %369 = arith.subf %363, %368 : vector<2x8x64xf32>
    %370 = arith.mulf %369, %369 : vector<2x8x64xf32>
    %cst_175 = arith.constant dense<0.000000e+00> : vector<2x64xf32>
    %371 = vector.multi_reduction <add>, %370, %cst_175 [1] : vector<2x8x64xf32> to vector<2x64xf32>
    %372 = vector.shape_cast %371 : vector<2x64xf32> to vector<2x1x64xf32>
    %cst_176 = arith.constant 8.000000e+00 : f32
    %373 = vector.broadcast %cst_176 : f32 to vector<2x1x64xf32>
    %374 = arith.divf %372, %373 : vector<2x1x64xf32>
    %375 = vector.broadcast %367 : vector<2x1x64xf32> to vector<2x8x64xf32>
    %376 = arith.subf %363, %375 : vector<2x8x64xf32>
    %cst_177 = arith.constant 9.99999974E-6 : f32
    %377 = vector.broadcast %cst_177 : f32 to vector<2x1x64xf32>
    %378 = arith.addf %374, %377 : vector<2x1x64xf32>
    %379 = math.rsqrt %378 : vector<2x1x64xf32>
    %380 = vector.broadcast %379 : vector<2x1x64xf32> to vector<2x8x64xf32>
    %381 = arith.mulf %376, %380 : vector<2x8x64xf32>
    %382 = vector.shape_cast %381 : vector<2x8x64xf32> to vector<16x64xf32>
    %cst_178 = arith.constant 0.000000e+00 : f32
    %383 = vector.broadcast %cst_178 : f32 to vector<16x64xf32>
    %384 = arith.maximumf %382, %383 : vector<16x64xf32>
    %c1_179 = arith.constant 1 : index
    %c0_180 = arith.constant 0 : index
    %c0_181 = arith.constant 0 : index
    %385 = vector.load %arg25[%c1_179, %c0_180, %c0_181] : memref<2x64x32xf32, #tpu.memory_space<vmem>>, vector<1x64x32xf32>
    %386 = vector.shape_cast %385 : vector<1x64x32xf32> to vector<64x32xf32>
    %cst_182 = arith.constant dense<0.000000e+00> : vector<16x32xf32>
    %387 = tpu.matmul %384, %386, %cst_182 {dimension_numbers = #tpu.dot_dimension_numbers<[1], [0], [0], [1], [0, 0, 1, 1], [], []>} : vector<16x64xf32>, vector<64x32xf32>, vector<16x32xf32> -> vector<16x32xf32>
    %c1_183 = arith.constant 1 : index
    %c0_184 = arith.constant 0 : index
    %c0_185 = arith.constant 0 : index
    %388 = vector.load %arg26[%c1_183, %c0_184, %c0_185] : memref<2x1x32xf32, #tpu.memory_space<vmem>>, vector<1x1x32xf32>
    %389 = vector.shape_cast %388 : vector<1x1x32xf32> to vector<1x32xf32>
    %390 = vector.broadcast %389 : vector<1x32xf32> to vector<16x32xf32>
    %391 = arith.addf %387, %390 : vector<16x32xf32>
    %392 = arith.addf %244, %391 : vector<16x32xf32>
    %393 = vector.extract_strided_slice %392 {offsets = [0, 0], sizes = [1, 32], strides = [1, 1]} : vector<16x32xf32> to vector<1x32xf32>
    %394 = vector.extract_strided_slice %392 {offsets = [1, 0], sizes = [1, 32], strides = [1, 1]} : vector<16x32xf32> to vector<1x32xf32>
    %395 = vector.extract_strided_slice %392 {offsets = [2, 0], sizes = [1, 32], strides = [1, 1]} : vector<16x32xf32> to vector<1x32xf32>
    %396 = vector.extract_strided_slice %392 {offsets = [3, 0], sizes = [1, 32], strides = [1, 1]} : vector<16x32xf32> to vector<1x32xf32>
    %397 = vector.extract_strided_slice %392 {offsets = [4, 0], sizes = [1, 32], strides = [1, 1]} : vector<16x32xf32> to vector<1x32xf32>
    %398 = vector.extract_strided_slice %392 {offsets = [5, 0], sizes = [1, 32], strides = [1, 1]} : vector<16x32xf32> to vector<1x32xf32>
    %399 = vector.extract_strided_slice %392 {offsets = [6, 0], sizes = [1, 32], strides = [1, 1]} : vector<16x32xf32> to vector<1x32xf32>
    %400 = vector.extract_strided_slice %392 {offsets = [7, 0], sizes = [1, 32], strides = [1, 1]} : vector<16x32xf32> to vector<1x32xf32>
    %401 = tpu.concatenate %393, %394, %395, %396, %397, %398, %399, %400 in 1 : vector<1x32xf32>, vector<1x32xf32>, vector<1x32xf32>, vector<1x32xf32>, vector<1x32xf32>, vector<1x32xf32>, vector<1x32xf32>, vector<1x32xf32> -> vector<1x256xf32>
    %402 = vector.extract_strided_slice %392 {offsets = [8, 0], sizes = [1, 32], strides = [1, 1]} : vector<16x32xf32> to vector<1x32xf32>
    %403 = vector.extract_strided_slice %392 {offsets = [9, 0], sizes = [1, 32], strides = [1, 1]} : vector<16x32xf32> to vector<1x32xf32>
    %404 = vector.extract_strided_slice %392 {offsets = [10, 0], sizes = [1, 32], strides = [1, 1]} : vector<16x32xf32> to vector<1x32xf32>
    %405 = vector.extract_strided_slice %392 {offsets = [11, 0], sizes = [1, 32], strides = [1, 1]} : vector<16x32xf32> to vector<1x32xf32>
    %406 = vector.extract_strided_slice %392 {offsets = [12, 0], sizes = [1, 32], strides = [1, 1]} : vector<16x32xf32> to vector<1x32xf32>
    %407 = vector.extract_strided_slice %392 {offsets = [13, 0], sizes = [1, 32], strides = [1, 1]} : vector<16x32xf32> to vector<1x32xf32>
    %408 = vector.extract_strided_slice %392 {offsets = [14, 0], sizes = [1, 32], strides = [1, 1]} : vector<16x32xf32> to vector<1x32xf32>
    %409 = vector.extract_strided_slice %392 {offsets = [15, 0], sizes = [1, 32], strides = [1, 1]} : vector<16x32xf32> to vector<1x32xf32>
    %410 = tpu.concatenate %402, %403, %404, %405, %406, %407, %408, %409 in 1 : vector<1x32xf32>, vector<1x32xf32>, vector<1x32xf32>, vector<1x32xf32>, vector<1x32xf32>, vector<1x32xf32>, vector<1x32xf32>, vector<1x32xf32> -> vector<1x256xf32>
    %411 = tpu.concatenate %401, %410 in 0 : vector<1x256xf32>, vector<1x256xf32> -> vector<2x256xf32>
    %c0_186 = arith.constant 0 : index
    %c0_187 = arith.constant 0 : index
    %c0_188 = arith.constant 0 : index
    %412 = vector.load %arg27[%c0_186, %c0_187, %c0_188] : memref<1x2x256xf32, #tpu.memory_space<vmem>>, vector<1x2x256xf32>
    %413 = vector.shape_cast %412 : vector<1x2x256xf32> to vector<2x256xf32>
    %414 = vector.shape_cast %411 : vector<2x256xf32> to vector<1x2x256xf32>
    tpu.vector_store %arg27[%c0_186, %c0_187, %c0_188], %414 {strides = array<i32>} : memref<1x2x256xf32, #tpu.memory_space<vmem>>, vector<1x2x256xf32>,
    return
  }
  func.func @transform_0(%arg0: i32) -> (i32, i32, i32) {
    %c0_i32 = arith.constant 0 : i32
    %c0_i32_0 = arith.constant 0 : i32
    %c0_i32_1 = arith.constant 0 : i32
    return %arg0, %c0_i32, %c0_i32_0 : i32, i32, i32
  }
  func.func @transform_1(%arg0: i32) -> (i32, i32, i32) {
    %c0_i32 = arith.constant 0 : i32
    %c0_i32_0 = arith.constant 0 : i32
    %c0_i32_1 = arith.constant 0 : i32
    return %arg0, %c0_i32, %c0_i32_0 : i32, i32, i32
  }
  func.func @transform_2(%arg0: i32) -> (i32, i32, i32) {
    %c0_i32 = arith.constant 0 : i32
    %c0_i32_0 = arith.constant 0 : i32
    %c0_i32_1 = arith.constant 0 : i32
    return %arg0, %c0_i32, %c0_i32_0 : i32, i32, i32
  }
  func.func @transform_3(%arg0: i32) -> (i32, i32) {
    %c0_i32 = arith.constant 0 : i32
    %c0_i32_0 = arith.constant 0 : i32
    %c0_i32_1 = arith.constant 0 : i32
    return %c0_i32, %c0_i32_0 : i32, i32
  }
  func.func @transform_4(%arg0: i32) -> (i32, i32) {
    %c0_i32 = arith.constant 0 : i32
    %c0_i32_0 = arith.constant 0 : i32
    %c0_i32_1 = arith.constant 0 : i32
    return %c0_i32, %c0_i32_0 : i32, i32
  }
  func.func @transform_5(%arg0: i32) -> (i32, i32) {
    %c0_i32 = arith.constant 0 : i32
    %c0_i32_0 = arith.constant 0 : i32
    %c0_i32_1 = arith.constant 0 : i32
    return %c0_i32, %c0_i32_0 : i32, i32
  }
  func.func @transform_6(%arg0: i32) -> (i32, i32) {
    %c0_i32 = arith.constant 0 : i32
    %c0_i32_0 = arith.constant 0 : i32
    %c0_i32_1 = arith.constant 0 : i32
    return %c0_i32, %c0_i32_0 : i32, i32
  }
  func.func @transform_7(%arg0: i32) -> (i32, i32) {
    %c0_i32 = arith.constant 0 : i32
    %c0_i32_0 = arith.constant 0 : i32
    %c0_i32_1 = arith.constant 0 : i32
    return %c0_i32, %c0_i32_0 : i32, i32
  }
  func.func @transform_8(%arg0: i32) -> (i32, i32) {
    %c0_i32 = arith.constant 0 : i32
    %c0_i32_0 = arith.constant 0 : i32
    %c0_i32_1 = arith.constant 0 : i32
    return %c0_i32, %c0_i32_0 : i32, i32
  }
  func.func @transform_9(%arg0: i32) -> (i32, i32) {
    %c0_i32 = arith.constant 0 : i32
    %c0_i32_0 = arith.constant 0 : i32
    %c0_i32_1 = arith.constant 0 : i32
    return %c0_i32, %c0_i32_0 : i32, i32
  }
  func.func @transform_10(%arg0: i32) -> (i32, i32) {
    %c0_i32 = arith.constant 0 : i32
    %c0_i32_0 = arith.constant 0 : i32
    %c0_i32_1 = arith.constant 0 : i32
    return %c0_i32, %c0_i32_0 : i32, i32
  }
  func.func @transform_11(%arg0: i32) -> (i32, i32) {
    %c0_i32 = arith.constant 0 : i32
    %c0_i32_0 = arith.constant 0 : i32
    %c0_i32_1 = arith.constant 0 : i32
    return %c0_i32, %c0_i32_0 : i32, i32
  }
  func.func @transform_12(%arg0: i32) -> (i32, i32) {
    %c0_i32 = arith.constant 0 : i32
    %c0_i32_0 = arith.constant 0 : i32
    %c0_i32_1 = arith.constant 0 : i32
    return %c0_i32, %c0_i32_0 : i32, i32
  }
  func.func @transform_13(%arg0: i32) -> (i32, i32) {
    %c0_i32 = arith.constant 0 : i32
    %c0_i32_0 = arith.constant 0 : i32
    %c0_i32_1 = arith.constant 0 : i32
    return %c0_i32, %c0_i32_0 : i32, i32
  }
  func.func @transform_14(%arg0: i32) -> (i32, i32, i32) {
    %c0_i32 = arith.constant 0 : i32
    %c0_i32_0 = arith.constant 0 : i32
    %c0_i32_1 = arith.constant 0 : i32
    %c0_i32_2 = arith.constant 0 : i32
    return %c0_i32, %c0_i32_0, %c0_i32_1 : i32, i32, i32
  }
  func.func @transform_15(%arg0: i32) -> (i32, i32, i32) {
    %c0_i32 = arith.constant 0 : i32
    %c0_i32_0 = arith.constant 0 : i32
    %c0_i32_1 = arith.constant 0 : i32
    %c0_i32_2 = arith.constant 0 : i32
    return %c0_i32, %c0_i32_0, %c0_i32_1 : i32, i32, i32
  }
  func.func @transform_16(%arg0: i32) -> (i32, i32, i32) {
    %c0_i32 = arith.constant 0 : i32
    %c0_i32_0 = arith.constant 0 : i32
    %c0_i32_1 = arith.constant 0 : i32
    %c0_i32_2 = arith.constant 0 : i32
    return %c0_i32, %c0_i32_0, %c0_i32_1 : i32, i32, i32
  }
  func.func @transform_17(%arg0: i32) -> (i32, i32, i32) {
    %c0_i32 = arith.constant 0 : i32
    %c0_i32_0 = arith.constant 0 : i32
    %c0_i32_1 = arith.constant 0 : i32
    %c0_i32_2 = arith.constant 0 : i32
    return %c0_i32, %c0_i32_0, %c0_i32_1 : i32, i32, i32
  }
  func.func @transform_18(%arg0: i32) -> (i32, i32, i32) {
    %c0_i32 = arith.constant 0 : i32
    %c0_i32_0 = arith.constant 0 : i32
    %c0_i32_1 = arith.constant 0 : i32
    %c0_i32_2 = arith.constant 0 : i32
    return %c0_i32, %c0_i32_0, %c0_i32_1 : i32, i32, i32
  }
  func.func @transform_19(%arg0: i32) -> (i32, i32, i32) {
    %c0_i32 = arith.constant 0 : i32
    %c0_i32_0 = arith.constant 0 : i32
    %c0_i32_1 = arith.constant 0 : i32
    %c0_i32_2 = arith.constant 0 : i32
    return %c0_i32, %c0_i32_0, %c0_i32_1 : i32, i32, i32
  }
  func.func @transform_20(%arg0: i32) -> (i32, i32, i32) {
    %c0_i32 = arith.constant 0 : i32
    %c0_i32_0 = arith.constant 0 : i32
    %c0_i32_1 = arith.constant 0 : i32
    %c0_i32_2 = arith.constant 0 : i32
    return %c0_i32, %c0_i32_0, %c0_i32_1 : i32, i32, i32
  }
  func.func @transform_21(%arg0: i32) -> (i32, i32, i32) {
    %c0_i32 = arith.constant 0 : i32
    %c0_i32_0 = arith.constant 0 : i32
    %c0_i32_1 = arith.constant 0 : i32
    %c0_i32_2 = arith.constant 0 : i32
    return %c0_i32, %c0_i32_0, %c0_i32_1 : i32, i32, i32
  }
  func.func @transform_22(%arg0: i32) -> (i32, i32, i32) {
    %c0_i32 = arith.constant 0 : i32
    %c0_i32_0 = arith.constant 0 : i32
    %c0_i32_1 = arith.constant 0 : i32
    %c0_i32_2 = arith.constant 0 : i32
    return %c0_i32, %c0_i32_0, %c0_i32_1 : i32, i32, i32
  }
  func.func @transform_23(%arg0: i32) -> (i32, i32, i32) {
    %c0_i32 = arith.constant 0 : i32
    %c0_i32_0 = arith.constant 0 : i32
    %c0_i32_1 = arith.constant 0 : i32
    %c0_i32_2 = arith.constant 0 : i32
    return %c0_i32, %c0_i32_0, %c0_i32_1 : i32, i32, i32
  }
  func.func @transform_24(%arg0: i32) -> (i32, i32, i32) {
    %c0_i32 = arith.constant 0 : i32
    %c0_i32_0 = arith.constant 0 : i32
    %c0_i32_1 = arith.constant 0 : i32
    %c0_i32_2 = arith.constant 0 : i32
    return %c0_i32, %c0_i32_0, %c0_i32_1 : i32, i32, i32
  }
  func.func @transform_25(%arg0: i32) -> (i32, i32, i32) {
    %c0_i32 = arith.constant 0 : i32
    %c0_i32_0 = arith.constant 0 : i32
    %c0_i32_1 = arith.constant 0 : i32
    %c0_i32_2 = arith.constant 0 : i32
    return %c0_i32, %c0_i32_0, %c0_i32_1 : i32, i32, i32
  }
  func.func @transform_26(%arg0: i32) -> (i32, i32, i32) {
    %c0_i32 = arith.constant 0 : i32
    %c0_i32_0 = arith.constant 0 : i32
    %c0_i32_1 = arith.constant 0 : i32
    return %arg0, %c0_i32, %c0_i32_0 : i32, i32, i32
  }
}

</mosaic_0001>

<llo_original>
// kernel: tpu_custom_call.1
$region0: #{tpu_custom_call.1}
  #allocation0 [shape = 'u32[]', space=smem, size = 0x4, offset = 0x4, fixed_abs, tag = 'smem constant byte address 0x4 - core index']
  #allocation1 [shape = 'u32[144,128]{1,0:T(1,128)}', space=vmem, size = 0x12000, scoped, tag = 'internal scratch']
  %s0 = inlined_call_operand.vmem [shape: f32[2,16,3], index: 0, kind: input, shape index: {}]
  %s1 = inlined_call_operand.hbm [shape: f32[2,16,32], index: 1, kind: input, shape index: {}]
  %s2 = inlined_call_operand.hbm [shape: f32[2,2,32], index: 2, kind: input, shape index: {}]
  %s3 = inlined_call_operand.hbm [shape: f32[3,32], index: 3, kind: input, shape index: {}]
  %s4 = inlined_call_operand.hbm [shape: f32[1,32], index: 4, kind: input, shape index: {}]
  %s5 = inlined_call_operand.hbm [shape: f32[1,32], index: 5, kind: input, shape index: {}]
  %s6 = inlined_call_operand.hbm [shape: f32[1,32], index: 6, kind: input, shape index: {}]
  %s7 = inlined_call_operand.hbm [shape: f32[32,32], index: 7, kind: input, shape index: {}]
  %s8 = inlined_call_operand.hbm [shape: f32[32,32], index: 8, kind: input, shape index: {}]
  %s9 = inlined_call_operand.hbm [shape: f32[1,32], index: 9, kind: input, shape index: {}]
  %s10 = inlined_call_operand.hbm [shape: f32[1,32], index: 10, kind: input, shape index: {}]
  %s11 = inlined_call_operand.hbm [shape: f32[1,32], index: 11, kind: input, shape index: {}]
  %s12 = inlined_call_operand.hbm [shape: f32[1,32], index: 12, kind: input, shape index: {}]
  %s13 = inlined_call_operand.hbm [shape: f32[1,32], index: 13, kind: input, shape index: {}]
  %s14 = inlined_call_operand.vmem [shape: f32[2,32,32], index: 14, kind: input, shape index: {}]
  %s15 = inlined_call_operand.hbm [shape: f32[2,1,32], index: 15, kind: input, shape index: {}]
  %s16 = inlined_call_operand.vmem [shape: f32[2,32,32], index: 16, kind: input, shape index: {}]
  %s17 = inlined_call_operand.hbm [shape: f32[2,1,32], index: 17, kind: input, shape index: {}]
  %s18 = inlined_call_operand.hbm [shape: f32[2,32,32], index: 18, kind: input, shape index: {}]
  %s19 = inlined_call_operand.hbm [shape: f32[2,1,32], index: 19, kind: input, shape index: {}]
  %s20 = inlined_call_operand.hbm [shape: f32[2,32,32], index: 20, kind: input, shape index: {}]
  %s21 = inlined_call_operand.hbm [shape: f32[2,1,32], index: 21, kind: input, shape index: {}]
  %s22 = inlined_call_operand.vmem [shape: f32[2,64,64], index: 22, kind: input, shape index: {}]
  %s23 = inlined_call_operand.hbm [shape: f32[2,1,64], index: 23, kind: input, shape index: {}]
  %s24 = inlined_call_operand.vmem [shape: f32[2,64,32], index: 24, kind: input, shape index: {}]
  %s25 = inlined_call_operand.vmem [shape: f32[2,1,32], index: 25, kind: input, shape index: {}]
  %s26 = inlined_call_operand.hbm [shape: f32[2,2,256], index: 26, kind: output, shape index: {}]
  %s27 = sld [smem:[#allocation0]]
  $region217: #{tpu_custom_call.1} parent=0
    _
  %s29 = ssub.s32 1, %s27
  %s30 = scalar_select 0, %s29, %s27
  $region1: #{tpu_custom_call.1} parent=0
    #allocation2 [shape = 'u8[16384]{0}', space=vmem, size = 0x4000, scoped, tag = 'input window, operand 1']
    #allocation3 [shape = 's32[2]{0}', space=sflag, size = 0x8, scoped, tag = 'scoped memory for tpu_custom_call.1']
    #allocation4 [shape = 's32[2]{0}', space=sflag, size = 0x8, scoped, tag = 'scoped memory for tpu_custom_call.1']
    #allocation5 [shape = 'u8[2048]{0}', space=vmem, size = 0x800, scoped, tag = 'input window, operand 2']
    #allocation6 [shape = 's32[2]{0}', space=sflag, size = 0x8, scoped, tag = 'scoped memory for tpu_custom_call.1']
    #allocation7 [shape = 'u8[2048]{0}', space=vmem, size = 0x800, scoped, tag = 'input window, operand 3, single buffered']
    #allocation8 [shape = 'u8[512]{0}', space=vmem, size = 0x400, scoped, tag = 'input window, operand 4, single buffered']
    #allocation9 [shape = 's32[1]{0}', space=sflag, size = 0x4, scoped, tag = 'scoped memory for tpu_custom_call.1']
    #allocation10 [shape = 'u8[512]{0}', space=vmem, size = 0x400, scoped, tag = 'input window, operand 5, single buffered']
    #allocation11 [shape = 'u8[512]{0}', space=vmem, size = 0x400, scoped, tag = 'input window, operand 6, single buffered']
    #allocation12 [shape = 's32[1]{0}', space=sflag, size = 0x4, scoped, tag = 'scoped memory for tpu_custom_call.1']
    #allocation13 [shape = 'u8[16384]{0}', space=vmem, size = 0x4000, scoped, tag = 'input window, operand 7, single buffered']
    #allocation14 [shape = 'u8[16384]{0}', space=vmem, size = 0x4000, scoped, tag = 'input window, operand 8, single buffered']
    #allocation15 [shape = 's32[1]{0}', space=sflag, size = 0x4, scoped, tag = 'scoped memory for tpu_custom_call.1']
    #allocation16 [shape = 'u8[512]{0}', space=vmem, size = 0x400, scoped, tag = 'input window, operand 9, single buffered']
    #allocation17 [shape = 'u8[512]{0}', space=vmem, size = 0x400, scoped, tag = 'input window, operand 10, single buffered']
    #allocation18 [shape = 's32[1]{0}', space=sflag, size = 0x4, scoped, tag = 'scoped memory for tpu_custom_call.1']
    #allocation19 [shape = 'u8[512]{0}', space=vmem, size = 0x400, scoped, tag = 'input window, operand 11, single buffered']
    #allocation20 [shape = 'u8[512]{0}', space=vmem, size = 0x400, scoped, tag = 'input window, operand 12, single buffered']
    #allocation21 [shape = 's32[1]{0}', space=sflag, size = 0x4, scoped, tag = 'scoped memory for tpu_custom_call.1']
    #allocation22 [shape = 'u8[512]{0}', space=vmem, size = 0x400, scoped, tag = 'input window, operand 13, single buffered']
    #allocation23 [shape = 'u8[1024]{0}', space=vmem, size = 0x400, scoped, tag = 'input window, operand 15, single buffered']
    #allocation24 [shape = 's32[1]{0}', space=sflag, size = 0x4, scoped, tag = 'scoped memory for tpu_custom_call.1']
    #allocation25 [shape = 'u8[1024]{0}', space=vmem, size = 0x400, scoped, tag = 'input window, operand 17, single buffered']
    #allocation26 [shape = 'u8[32768]{0}', space=vmem, size = 0x8000, scoped, tag = 'input window, operand 18, single buffered']
    #allocation27 [shape = 's32[1]{0}', space=sflag, size = 0x4, scoped, tag = 'scoped memory for tpu_custom_call.1']
    #allocation28 [shape = 'u8[1024]{0}', space=vmem, size = 0x400, scoped, tag = 'input window, operand 19, single buffered']
    #allocation29 [shape = 'u8[32768]{0}', space=vmem, size = 0x8000, scoped, tag = 'input window, operand 20, single buffered']
    #allocation30 [shape = 's32[1]{0}', space=sflag, size = 0x4, scoped, tag = 'scoped memory for tpu_custom_call.1']
    #allocation31 [shape = 'u8[1024]{0}', space=vmem, size = 0x400, scoped, tag = 'input window, operand 21, single buffered']
    #allocation32 [shape = 'u8[1024]{0}', space=vmem, size = 0x400, scoped, tag = 'input window, operand 23, single buffered']
    #allocation33 [shape = 's32[1]{0}', space=sflag, size = 0x4, scoped, tag = 'scoped memory for tpu_custom_call.1']
    #allocation34 [shape = 'u8[4096]{0}', space=vmem, size = 0x1000, scoped, tag = 'output window, operand 0']
    %31 = vsyncpa [#allocation3], 0
    %s32 = scalar_lea.sflag [#allocation3], 1
    %33 = vsyncpa %s32, 0
    %34 = vsyncpa [#allocation6], 0
    %s35 = scalar_lea.sflag [#allocation6], 1
    %36 = vsyncpa %s35, 0
    %37 = vsyncpa [#allocation9], 0
    %38 = vsyncpa [#allocation12], 0
    %39 = vsyncpa [#allocation15], 0
    %40 = vsyncpa [#allocation18], 0
    %41 = vsyncpa [#allocation21], 0
    %42 = vsyncpa [#allocation24], 0
    %43 = vsyncpa [#allocation27], 0
    %44 = vsyncpa [#allocation30], 0
    %45 = vsyncpa [#allocation33], 0
    %46 = vsyncpa [#allocation4], 0
    %s47 = scalar_lea.sflag [#allocation4], 1
    %48 = vsyncpa %s47, 0
    loop: start=0, step=1, limit=4
    $region2: #{tpu_custom_call.1} parent=1 // loop_pre_header
      _
    $region3: #{tpu_custom_call.1} parent=1 // loop_header
      %s50 = sphi 0, %s54
      %p51 = scmp.ge.s32.totalorder %s50, 4
      %s60 = sphi 0, %s62
      %s63 = sphi 0, %s60
      %s64 = sphi 0, %s63
      %s80 = sphi 0, %s64
      %s86 = sphi 0, %s88
      %s89 = sphi 0, %s86
      %s90 = sphi 0, %s89
      %s106 = sphi 0, %s90
      %s112 = sphi 0, %s114
      %s115 = sphi 0, %s112
      %s116 = sphi 0, %s115
      %s132 = sphi 0, %s116
      %s136 = sphi 0, %s136
      %s138 = sphi 0, %s136
      %s139 = sphi 0, %s138
      %s153 = sphi 0, %s139
      %s157 = sphi 0, %s157
      %s159 = sphi 0, %s157
      %s160 = sphi 0, %s159
      %s174 = sphi 0, %s160
      %s178 = sphi 0, %s178
      %s180 = sphi 0, %s178
      %s181 = sphi 0, %s180
      %s195 = sphi 0, %s181
      %s199 = sphi 0, %s199
      %s201 = sphi 0, %s199
      %s202 = sphi 0, %s201
      %s216 = sphi 0, %s202
      %s220 = sphi 0, %s220
      %s222 = sphi 0, %s220
      %s223 = sphi 0, %s222
      %s237 = sphi 0, %s223
      %s241 = sphi 0, %s241
      %s243 = sphi 0, %s241
      %s244 = sphi 0, %s243
      %s258 = sphi 0, %s244
      %s262 = sphi 0, %s262
      %s264 = sphi 0, %s262
      %s265 = sphi 0, %s264
      %s279 = sphi 0, %s265
      %s283 = sphi 0, %s283
      %s285 = sphi 0, %s283
      %s286 = sphi 0, %s285
      %s300 = sphi 0, %s286
      %s304 = sphi 0, %s304
      %s306 = sphi 0, %s304
      %s307 = sphi 0, %s306
      %s321 = sphi 0, %s307
      %s325 = sphi 0, %s325
      %s327 = sphi 0, %s325
      %s328 = sphi 0, %s327
      %s342 = sphi 0, %s328
      %s346 = sphi 0, %s346
      %s348 = sphi 0, %s346
      %s349 = sphi 0, %s348
      %s363 = sphi 0, %s349
      %s367 = sphi 0, %s367
      %s369 = sphi 0, %s367
      %s370 = sphi 0, %s369
      %s384 = sphi 0, %s370
      %s388 = sphi 0, %s388
      %s390 = sphi 0, %s388
      %s391 = sphi 0, %s390
      %s405 = sphi 0, %s391
      %s409 = sphi 0, %s409
      %s411 = sphi 0, %s409
      %s412 = sphi 0, %s411
      %s426 = sphi 0, %s412
      %s430 = sphi 0, %s430
      %s432 = sphi 0, %s430
      %s433 = sphi 0, %s432
      %s447 = sphi 0, %s433
      %s451 = sphi 0, %s451
      %s453 = sphi 0, %s451
      %s454 = sphi 0, %s453
      %s468 = sphi 0, %s454
      %s472 = sphi 0, %s472
      %s474 = sphi 0, %s472
      %s475 = sphi 0, %s474
      %s489 = sphi 0, %s475
      %s493 = sphi 0, %s493
      %s495 = sphi 0, %s493
      %s496 = sphi 0, %s495
      %s510 = sphi 0, %s496
      %s514 = sphi 0, %s514
      %s516 = sphi 0, %s514
      %s517 = sphi 0, %s516
      %s531 = sphi 0, %s517
      %s535 = sphi 0, %s535
      %s537 = sphi 0, %s535
      %s538 = sphi 0, %s537
      %s552 = sphi 0, %s538
      %s556 = sphi 0, %s556
      %s558 = sphi 0, %s556
      %s559 = sphi 0, %s558
      %s573 = sphi 0, %s559
      %s577 = sphi 0, %s577
      %s579 = sphi 0, %s577
      %s580 = sphi 0, %s579
      %s594 = sphi 0, %s580
      %s598 = sphi 0, %s598
      %s600 = sphi 0, %s598
      %s601 = sphi 0, %s600
      %s615 = sphi 0, %s601
      %s621 = sphi 0, %s623
      %s624 = sphi 0, %s621
      %s625 = sphi 0, %s624
      %s641 = sphi 0, %s625
    $region4: #{tpu_custom_call.1} parent=1 // loop_header_branch
      %53 = sbr.rel (%p51) target = $region8
    $region5: #{tpu_custom_call.1} parent=1 // loop_body
      %s55 = ssub.s32 %s50, 1
      %s56 = ssub.s32 %s50, 2
      %s57 = sadd.s32 %s50, 1
      %s58 = ssub.s32 %s50, %s57
      %p59 = scmp.eq.s32.totalorder %s58, 0
      %s61 = sadd.s32 %s60, 1
      %s62 = scalar_select %p59, %s60, %s61
      %p65 = pneg %p59
      %p66 = scmp.eq.s32.totalorder %s50, 1
      %p67 = por %p65, %p66
      %p68 = scmp.ne.s32.totalorder %s60, %s63
      %p69 = scmp.eq.s32.totalorder %s50, 0
      %p70 = por %p68, %p69
      %p71 = scmp.ne.s32.totalorder %s60, %s63
      %p72 = scmp.eq.s32.totalorder %s55, 1
      %p73 = por %p71, %p72
      %p74 = scmp.ne.s32.totalorder %s63, %s64
      %p75 = scmp.eq.s32.totalorder %s55, 0
      %p76 = por %p74, %p75
      %p77 = scmp.ne.s32.totalorder %s63, %s64
      %p78 = scmp.eq.s32.totalorder %s56, 1
      %p79 = por %p77, %p78
      %p81 = scmp.ne.s32.totalorder %s64, %s80
      %p82 = scmp.eq.s32.totalorder %s56, 0
      %p83 = por %p81, %p82
      %s84 = ssub.s32 %s50, %s57
      %p85 = scmp.eq.s32.totalorder %s84, 0
      %s87 = sadd.s32 %s86, 1
      %s88 = scalar_select %p85, %s86, %s87
      %p91 = pneg %p85
      %p92 = scmp.eq.s32.totalorder %s50, 1
      %p93 = por %p91, %p92
      %p94 = scmp.ne.s32.totalorder %s86, %s89
      %p95 = scmp.eq.s32.totalorder %s50, 0
      %p96 = por %p94, %p95
      %p97 = scmp.ne.s32.totalorder %s86, %s89
      %p98 = scmp.eq.s32.totalorder %s55, 1
      %p99 = por %p97, %p98
      %p100 = scmp.ne.s32.totalorder %s89, %s90
      %p101 = scmp.eq.s32.totalorder %s55, 0
      %p102 = por %p100, %p101
      %p103 = scmp.ne.s32.totalorder %s89, %s90
      %p104 = scmp.eq.s32.totalorder %s56, 1
      %p105 = por %p103, %p104
      %p107 = scmp.ne.s32.totalorder %s90, %s106
      %p108 = scmp.eq.s32.totalorder %s56, 0
      %p109 = por %p107, %p108
      %s110 = ssub.s32 %s50, %s57
      %p111 = scmp.eq.s32.totalorder %s110, 0
      %s113 = sadd.s32 %s112, 1
      %s114 = scalar_select %p111, %s112, %s113
      %p117 = pneg %p111
      %p118 = scmp.eq.s32.totalorder %s50, 1
      %p119 = por %p117, %p118
      %p120 = scmp.ne.s32.totalorder %s112, %s115
      %p121 = scmp.eq.s32.totalorder %s50, 0
      %p122 = por %p120, %p121
      %p123 = scmp.ne.s32.totalorder %s112, %s115
      %p124 = scmp.eq.s32.totalorder %s55, 1
      %p125 = por %p123, %p124
      %p126 = scmp.ne.s32.totalorder %s115, %s116
      %p127 = scmp.eq.s32.totalorder %s55, 0
      %p128 = por %p126, %p127
      %p129 = scmp.ne.s32.totalorder %s115, %s116
      %p130 = scmp.eq.s32.totalorder %s56, 1
      %p131 = por %p129, %p130
      %p133 = scmp.ne.s32.totalorder %s116, %s132
      %p134 = scmp.eq.s32.totalorder %s56, 0
      %p135 = por %p133, %p134
      %s137 = sadd.s32 %s136, 1
      %p140 = scmp.eq.s32.totalorder %s50, 1
      %p141 = scmp.ne.s32.totalorder %s136, %s138
      %p142 = scmp.eq.s32.totalorder %s50, 0
      %p143 = por %p141, %p142
      %p144 = scmp.ne.s32.totalorder %s136, %s138
      %p145 = scmp.eq.s32.totalorder %s55, 1
      %p146 = por %p144, %p145
      %p147 = scmp.ne.s32.totalorder %s138, %s139
      %p148 = scmp.eq.s32.totalorder %s55, 0
      %p149 = por %p147, %p148
      %p150 = scmp.ne.s32.totalorder %s138, %s139
      %p151 = scmp.eq.s32.totalorder %s56, 1
      %p152 = por %p150, %p151
      %p154 = scmp.ne.s32.totalorder %s139, %s153
      %p155 = scmp.eq.s32.totalorder %s56, 0
      %p156 = por %p154, %p155
      %s158 = sadd.s32 %s157, 1
      %p161 = scmp.eq.s32.totalorder %s50, 1
      %p162 = scmp.ne.s32.totalorder %s157, %s159
      %p163 = scmp.eq.s32.totalorder %s50, 0
      %p164 = por %p162, %p163
      %p165 = scmp.ne.s32.totalorder %s157, %s159
      %p166 = scmp.eq.s32.totalorder %s55, 1
      %p167 = por %p165, %p166
      %p168 = scmp.ne.s32.totalorder %s159, %s160
      %p169 = scmp.eq.s32.totalorder %s55, 0
      %p170 = por %p168, %p169
      %p171 = scmp.ne.s32.totalorder %s159, %s160
      %p172 = scmp.eq.s32.totalorder %s56, 1
      %p173 = por %p171, %p172
      %p175 = scmp.ne.s32.totalorder %s160, %s174
      %p176 = scmp.eq.s32.totalorder %s56, 0
      %p177 = por %p175, %p176
      %s179 = sadd.s32 %s178, 1
      %p182 = scmp.eq.s32.totalorder %s50, 1
      %p183 = scmp.ne.s32.totalorder %s178, %s180
      %p184 = scmp.eq.s32.totalorder %s50, 0
      %p185 = por %p183, %p184
      %p186 = scmp.ne.s32.totalorder %s178, %s180
      %p187 = scmp.eq.s32.totalorder %s55, 1
      %p188 = por %p186, %p187
      %p189 = scmp.ne.s32.totalorder %s180, %s181
      %p190 = scmp.eq.s32.totalorder %s55, 0
      %p191 = por %p189, %p190
      %p192 = scmp.ne.s32.totalorder %s180, %s181
      %p193 = scmp.eq.s32.totalorder %s56, 1
      %p194 = por %p192, %p193
      %p196 = scmp.ne.s32.totalorder %s181, %s195
      %p197 = scmp.eq.s32.totalorder %s56, 0
      %p198 = por %p196, %p197
      %s200 = sadd.s32 %s199, 1
      %p203 = scmp.eq.s32.totalorder %s50, 1
      %p204 = scmp.ne.s32.totalorder %s199, %s201
      %p205 = scmp.eq.s32.totalorder %s50, 0
      %p206 = por %p204, %p205
      %p207 = scmp.ne.s32.totalorder %s199, %s201
      %p208 = scmp.eq.s32.totalorder %s55, 1
      %p209 = por %p207, %p208
      %p210 = scmp.ne.s32.totalorder %s201, %s202
      %p211 = scmp.eq.s32.totalorder %s55, 0
      %p212 = por %p210, %p211
      %p213 = scmp.ne.s32.totalorder %s201, %s202
      %p214 = scmp.eq.s32.totalorder %s56, 1
      %p215 = por %p213, %p214
      %p217 = scmp.ne.s32.totalorder %s202, %s216
      %p218 = scmp.eq.s32.totalorder %s56, 0
      %p219 = por %p217, %p218
      %s221 = sadd.s32 %s220, 1
      %p224 = scmp.eq.s32.totalorder %s50, 1
      %p225 = scmp.ne.s32.totalorder %s220, %s222
      %p226 = scmp.eq.s32.totalorder %s50, 0
      %p227 = por %p225, %p226
      %p228 = scmp.ne.s32.totalorder %s220, %s222
      %p229 = scmp.eq.s32.totalorder %s55, 1
      %p230 = por %p228, %p229
      %p231 = scmp.ne.s32.totalorder %s222, %s223
      %p232 = scmp.eq.s32.totalorder %s55, 0
      %p233 = por %p231, %p232
      %p234 = scmp.ne.s32.totalorder %s222, %s223
      %p235 = scmp.eq.s32.totalorder %s56, 1
      %p236 = por %p234, %p235
      %p238 = scmp.ne.s32.totalorder %s223, %s237
      %p239 = scmp.eq.s32.totalorder %s56, 0
      %p240 = por %p238, %p239
      %s242 = sadd.s32 %s241, 1
      %p245 = scmp.eq.s32.totalorder %s50, 1
      %p246 = scmp.ne.s32.totalorder %s241, %s243
      %p247 = scmp.eq.s32.totalorder %s50, 0
      %p248 = por %p246, %p247
      %p249 = scmp.ne.s32.totalorder %s241, %s243
      %p250 = scmp.eq.s32.totalorder %s55, 1
      %p251 = por %p249, %p250
      %p252 = scmp.ne.s32.totalorder %s243, %s244
      %p253 = scmp.eq.s32.totalorder %s55, 0
      %p254 = por %p252, %p253
      %p255 = scmp.ne.s32.totalorder %s243, %s244
      %p256 = scmp.eq.s32.totalorder %s56, 1
      %p257 = por %p255, %p256
      %p259 = scmp.ne.s32.totalorder %s244, %s258
      %p260 = scmp.eq.s32.totalorder %s56, 0
      %p261 = por %p259, %p260
      %s263 = sadd.s32 %s262, 1
      %p266 = scmp.eq.s32.totalorder %s50, 1
      %p267 = scmp.ne.s32.totalorder %s262, %s264
      %p268 = scmp.eq.s32.totalorder %s50, 0
      %p269 = por %p267, %p268
      %p270 = scmp.ne.s32.totalorder %s262, %s264
      %p271 = scmp.eq.s32.totalorder %s55, 1
      %p272 = por %p270, %p271
      %p273 = scmp.ne.s32.totalorder %s264, %s265
      %p274 = scmp.eq.s32.totalorder %s55, 0
      %p275 = por %p273, %p274
      %p276 = scmp.ne.s32.totalorder %s264, %s265
      %p277 = scmp.eq.s32.totalorder %s56, 1
      %p278 = por %p276, %p277
      %p280 = scmp.ne.s32.totalorder %s265, %s279
      %p281 = scmp.eq.s32.totalorder %s56, 0
      %p282 = por %p280, %p281
      %s284 = sadd.s32 %s283, 1
      %p287 = scmp.eq.s32.totalorder %s50, 1
      %p288 = scmp.ne.s32.totalorder %s283, %s285
      %p289 = scmp.eq.s32.totalorder %s50, 0
      %p290 = por %p288, %p289
      %p291 = scmp.ne.s32.totalorder %s283, %s285
      %p292 = scmp.eq.s32.totalorder %s55, 1
      %p293 = por %p291, %p292
      %p294 = scmp.ne.s32.totalorder %s285, %s286
      %p295 = scmp.eq.s32.totalorder %s55, 0
      %p296 = por %p294, %p295
      %p297 = scmp.ne.s32.totalorder %s285, %s286
      %p298 = scmp.eq.s32.totalorder %s56, 1
      %p299 = por %p297, %p298
      %p301 = scmp.ne.s32.totalorder %s286, %s300
      %p302 = scmp.eq.s32.totalorder %s56, 0
      %p303 = por %p301, %p302
      %s305 = sadd.s32 %s304, 1
      %p308 = scmp.eq.s32.totalorder %s50, 1
      %p309 = scmp.ne.s32.totalorder %s304, %s306
      %p310 = scmp.eq.s32.totalorder %s50, 0
      %p311 = por %p309, %p310
      %p312 = scmp.ne.s32.totalorder %s304, %s306
      %p313 = scmp.eq.s32.totalorder %s55, 1
      %p314 = por %p312, %p313
      %p315 = scmp.ne.s32.totalorder %s306, %s307
      %p316 = scmp.eq.s32.totalorder %s55, 0
      %p317 = por %p315, %p316
      %p318 = scmp.ne.s32.totalorder %s306, %s307
      %p319 = scmp.eq.s32.totalorder %s56, 1
      %p320 = por %p318, %p319
      %p322 = scmp.ne.s32.totalorder %s307, %s321
      %p323 = scmp.eq.s32.totalorder %s56, 0
      %p324 = por %p322, %p323
      %s326 = sadd.s32 %s325, 1
      %p329 = scmp.eq.s32.totalorder %s50, 1
      %p330 = scmp.ne.s32.totalorder %s325, %s327
      %p331 = scmp.eq.s32.totalorder %s50, 0
      %p332 = por %p330, %p331
      %p333 = scmp.ne.s32.totalorder %s325, %s327
      %p334 = scmp.eq.s32.totalorder %s55, 1
      %p335 = por %p333, %p334
      %p336 = scmp.ne.s32.totalorder %s327, %s328
      %p337 = scmp.eq.s32.totalorder %s55, 0
      %p338 = por %p336, %p337
      %p339 = scmp.ne.s32.totalorder %s327, %s328
      %p340 = scmp.eq.s32.totalorder %s56, 1
      %p341 = por %p339, %p340
      %p343 = scmp.ne.s32.totalorder %s328, %s342
      %p344 = scmp.eq.s32.totalorder %s56, 0
      %p345 = por %p343, %p344
      %s347 = sadd.s32 %s346, 1
      %p350 = scmp.eq.s32.totalorder %s50, 1
      %p351 = scmp.ne.s32.totalorder %s346, %s348
      %p352 = scmp.eq.s32.totalorder %s50, 0
      %p353 = por %p351, %p352
      %p354 = scmp.ne.s32.totalorder %s346, %s348
      %p355 = scmp.eq.s32.totalorder %s55, 1
      %p356 = por %p354, %p355
      %p357 = scmp.ne.s32.totalorder %s348, %s349
      %p358 = scmp.eq.s32.totalorder %s55, 0
      %p359 = por %p357, %p358
      %p360 = scmp.ne.s32.totalorder %s348, %s349
      %p361 = scmp.eq.s32.totalorder %s56, 1
      %p362 = por %p360, %p361
      %p364 = scmp.ne.s32.totalorder %s349, %s363
      %p365 = scmp.eq.s32.totalorder %s56, 0
      %p366 = por %p364, %p365
      %s368 = sadd.s32 %s367, 1
      %p371 = scmp.eq.s32.totalorder %s50, 1
      %p372 = scmp.ne.s32.totalorder %s367, %s369
      %p373 = scmp.eq.s32.totalorder %s50, 0
      %p374 = por %p372, %p373
      %p375 = scmp.ne.s32.totalorder %s367, %s369
      %p376 = scmp.eq.s32.totalorder %s55, 1
      %p377 = por %p375, %p376
      %p378 = scmp.ne.s32.totalorder %s369, %s370
      %p379 = scmp.eq.s32.totalorder %s55, 0
      %p380 = por %p378, %p379
      %p381 = scmp.ne.s32.totalorder %s369, %s370
      %p382 = scmp.eq.s32.totalorder %s56, 1
      %p383 = por %p381, %p382
      %p385 = scmp.ne.s32.totalorder %s370, %s384
      %p386 = scmp.eq.s32.totalorder %s56, 0
      %p387 = por %p385, %p386
      %s389 = sadd.s32 %s388, 1
      %p392 = scmp.eq.s32.totalorder %s50, 1
      %p393 = scmp.ne.s32.totalorder %s388, %s390
      %p394 = scmp.eq.s32.totalorder %s50, 0
      %p395 = por %p393, %p394
      %p396 = scmp.ne.s32.totalorder %s388, %s390
      %p397 = scmp.eq.s32.totalorder %s55, 1
      %p398 = por %p396, %p397
      %p399 = scmp.ne.s32.totalorder %s390, %s391
      %p400 = scmp.eq.s32.totalorder %s55, 0
      %p401 = por %p399, %p400
      %p402 = scmp.ne.s32.totalorder %s390, %s391
      %p403 = scmp.eq.s32.totalorder %s56, 1
      %p404 = por %p402, %p403
      %p406 = scmp.ne.s32.totalorder %s391, %s405
      %p407 = scmp.eq.s32.totalorder %s56, 0
      %p408 = por %p406, %p407
      %s410 = sadd.s32 %s409, 1
      %p413 = scmp.eq.s32.totalorder %s50, 1
      %p414 = scmp.ne.s32.totalorder %s409, %s411
      %p415 = scmp.eq.s32.totalorder %s50, 0
      %p416 = por %p414, %p415
      %p417 = scmp.ne.s32.totalorder %s409, %s411
      %p418 = scmp.eq.s32.totalorder %s55, 1
      %p419 = por %p417, %p418
      %p420 = scmp.ne.s32.totalorder %s411, %s412
      %p421 = scmp.eq.s32.totalorder %s55, 0
      %p422 = por %p420, %p421
      %p423 = scmp.ne.s32.totalorder %s411, %s412
      %p424 = scmp.eq.s32.totalorder %s56, 1
      %p425 = por %p423, %p424
      %p427 = scmp.ne.s32.totalorder %s412, %s426
      %p428 = scmp.eq.s32.totalorder %s56, 0
      %p429 = por %p427, %p428
      %s431 = sadd.s32 %s430, 1
      %p434 = scmp.eq.s32.totalorder %s50, 1
      %p435 = scmp.ne.s32.totalorder %s430, %s432
      %p436 = scmp.eq.s32.totalorder %s50, 0
      %p437 = por %p435, %p436
      %p438 = scmp.ne.s32.totalorder %s430, %s432
      %p439 = scmp.eq.s32.totalorder %s55, 1
      %p440 = por %p438, %p439
      %p441 = scmp.ne.s32.totalorder %s432, %s433
      %p442 = scmp.eq.s32.totalorder %s55, 0
      %p443 = por %p441, %p442
      %p444 = scmp.ne.s32.totalorder %s432, %s433
      %p445 = scmp.eq.s32.totalorder %s56, 1
      %p446 = por %p444, %p445
      %p448 = scmp.ne.s32.totalorder %s433, %s447
      %p449 = scmp.eq.s32.totalorder %s56, 0
      %p450 = por %p448, %p449
      %s452 = sadd.s32 %s451, 1
      %p455 = scmp.eq.s32.totalorder %s50, 1
      %p456 = scmp.ne.s32.totalorder %s451, %s453
      %p457 = scmp.eq.s32.totalorder %s50, 0
      %p458 = por %p456, %p457
      %p459 = scmp.ne.s32.totalorder %s451, %s453
      %p460 = scmp.eq.s32.totalorder %s55, 1
      %p461 = por %p459, %p460
      %p462 = scmp.ne.s32.totalorder %s453, %s454
      %p463 = scmp.eq.s32.totalorder %s55, 0
      %p464 = por %p462, %p463
      %p465 = scmp.ne.s32.totalorder %s453, %s454
      %p466 = scmp.eq.s32.totalorder %s56, 1
      %p467 = por %p465, %p466
      %p469 = scmp.ne.s32.totalorder %s454, %s468
      %p470 = scmp.eq.s32.totalorder %s56, 0
      %p471 = por %p469, %p470
      %s473 = sadd.s32 %s472, 1
      %p476 = scmp.eq.s32.totalorder %s50, 1
      %p477 = scmp.ne.s32.totalorder %s472, %s474
      %p478 = scmp.eq.s32.totalorder %s50, 0
      %p479 = por %p477, %p478
      %p480 = scmp.ne.s32.totalorder %s472, %s474
      %p481 = scmp.eq.s32.totalorder %s55, 1
      %p482 = por %p480, %p481
      %p483 = scmp.ne.s32.totalorder %s474, %s475
      %p484 = scmp.eq.s32.totalorder %s55, 0
      %p485 = por %p483, %p484
      %p486 = scmp.ne.s32.totalorder %s474, %s475
      %p487 = scmp.eq.s32.totalorder %s56, 1
      %p488 = por %p486, %p487
      %p490 = scmp.ne.s32.totalorder %s475, %s489
      %p491 = scmp.eq.s32.totalorder %s56, 0
      %p492 = por %p490, %p491
      %s494 = sadd.s32 %s493, 1
      %p497 = scmp.eq.s32.totalorder %s50, 1
      %p498 = scmp.ne.s32.totalorder %s493, %s495
      %p499 = scmp.eq.s32.totalorder %s50, 0
      %p500 = por %p498, %p499
      %p501 = scmp.ne.s32.totalorder %s493, %s495
      %p502 = scmp.eq.s32.totalorder %s55, 1
      %p503 = por %p501, %p502
      %p504 = scmp.ne.s32.totalorder %s495, %s496
      %p505 = scmp.eq.s32.totalorder %s55, 0
      %p506 = por %p504, %p505
      %p507 = scmp.ne.s32.totalorder %s495, %s496
      %p508 = scmp.eq.s32.totalorder %s56, 1
      %p509 = por %p507, %p508
      %p511 = scmp.ne.s32.totalorder %s496, %s510
      %p512 = scmp.eq.s32.totalorder %s56, 0
      %p513 = por %p511, %p512
      %s515 = sadd.s32 %s514, 1
      %p518 = scmp.eq.s32.totalorder %s50, 1
      %p519 = scmp.ne.s32.totalorder %s514, %s516
      %p520 = scmp.eq.s32.totalorder %s50, 0
      %p521 = por %p519, %p520
      %p522 = scmp.ne.s32.totalorder %s514, %s516
      %p523 = scmp.eq.s32.totalorder %s55, 1
      %p524 = por %p522, %p523
      %p525 = scmp.ne.s32.totalorder %s516, %s517
      %p526 = scmp.eq.s32.totalorder %s55, 0
      %p527 = por %p525, %p526
      %p528 = scmp.ne.s32.totalorder %s516, %s517
      %p529 = scmp.eq.s32.totalorder %s56, 1
      %p530 = por %p528, %p529
      %p532 = scmp.ne.s32.totalorder %s517, %s531
      %p533 = scmp.eq.s32.totalorder %s56, 0
      %p534 = por %p532, %p533
      %s536 = sadd.s32 %s535, 1
      %p539 = scmp.eq.s32.totalorder %s50, 1
      %p540 = scmp.ne.s32.totalorder %s535, %s537
      %p541 = scmp.eq.s32.totalorder %s50, 0
      %p542 = por %p540, %p541
      %p543 = scmp.ne.s32.totalorder %s535, %s537
      %p544 = scmp.eq.s32.totalorder %s55, 1
      %p545 = por %p543, %p544
      %p546 = scmp.ne.s32.totalorder %s537, %s538
      %p547 = scmp.eq.s32.totalorder %s55, 0
      %p548 = por %p546, %p547
      %p549 = scmp.ne.s32.totalorder %s537, %s538
      %p550 = scmp.eq.s32.totalorder %s56, 1
      %p551 = por %p549, %p550
      %p553 = scmp.ne.s32.totalorder %s538, %s552
      %p554 = scmp.eq.s32.totalorder %s56, 0
      %p555 = por %p553, %p554
      %s557 = sadd.s32 %s556, 1
      %p560 = scmp.eq.s32.totalorder %s50, 1
      %p561 = scmp.ne.s32.totalorder %s556, %s558
      %p562 = scmp.eq.s32.totalorder %s50, 0
      %p563 = por %p561, %p562
      %p564 = scmp.ne.s32.totalorder %s556, %s558
      %p565 = scmp.eq.s32.totalorder %s55, 1
      %p566 = por %p564, %p565
      %p567 = scmp.ne.s32.totalorder %s558, %s559
      %p568 = scmp.eq.s32.totalorder %s55, 0
      %p569 = por %p567, %p568
      %p570 = scmp.ne.s32.totalorder %s558, %s559
      %p571 = scmp.eq.s32.totalorder %s56, 1
      %p572 = por %p570, %p571
      %p574 = scmp.ne.s32.totalorder %s559, %s573
      %p575 = scmp.eq.s32.totalorder %s56, 0
      %p576 = por %p574, %p575
      %s578 = sadd.s32 %s577, 1
      %p581 = scmp.eq.s32.totalorder %s50, 1
      %p582 = scmp.ne.s32.totalorder %s577, %s579
      %p583 = scmp.eq.s32.totalorder %s50, 0
      %p584 = por %p582, %p583
      %p585 = scmp.ne.s32.totalorder %s577, %s579
      %p586 = scmp.eq.s32.totalorder %s55, 1
      %p587 = por %p585, %p586
      %p588 = scmp.ne.s32.totalorder %s579, %s580
      %p589 = scmp.eq.s32.totalorder %s55, 0
      %p590 = por %p588, %p589
      %p591 = scmp.ne.s32.totalorder %s579, %s580
      %p592 = scmp.eq.s32.totalorder %s56, 1
      %p593 = por %p591, %p592
      %p595 = scmp.ne.s32.totalorder %s580, %s594
      %p596 = scmp.eq.s32.totalorder %s56, 0
      %p597 = por %p595, %p596
      %s599 = sadd.s32 %s598, 1
      %p602 = scmp.eq.s32.totalorder %s50, 1
      %p603 = scmp.ne.s32.totalorder %s598, %s600
      %p604 = scmp.eq.s32.totalorder %s50, 0
      %p605 = por %p603, %p604
      %p606 = scmp.ne.s32.totalorder %s598, %s600
      %p607 = scmp.eq.s32.totalorder %s55, 1
      %p608 = por %p606, %p607
      %p609 = scmp.ne.s32.totalorder %s600, %s601
      %p610 = scmp.eq.s32.totalorder %s55, 0
      %p611 = por %p609, %p610
      %p612 = scmp.ne.s32.totalorder %s600, %s601
      %p613 = scmp.eq.s32.totalorder %s56, 1
      %p614 = por %p612, %p613
      %p616 = scmp.ne.s32.totalorder %s601, %s615
      %p617 = scmp.eq.s32.totalorder %s56, 0
      %p618 = por %p616, %p617
      %s619 = ssub.s32 %s50, %s57
      %p620 = scmp.eq.s32.totalorder %s619, 0
      %s622 = sadd.s32 %s621, 1
      %s623 = scalar_select %p620, %s621, %s622
      %p626 = pneg %p620
      %p627 = scmp.eq.s32.totalorder %s50, 1
      %p628 = por %p626, %p627
      %p629 = scmp.ne.s32.totalorder %s621, %s624
      %p630 = scmp.eq.s32.totalorder %s50, 0
      %p631 = por %p629, %p630
      %p632 = scmp.ne.s32.totalorder %s621, %s624
      %p633 = scmp.eq.s32.totalorder %s55, 1
      %p634 = por %p632, %p633
      %p635 = scmp.ne.s32.totalorder %s624, %s625
      %p636 = scmp.eq.s32.totalorder %s55, 0
      %p637 = por %p635, %p636
      %p638 = scmp.ne.s32.totalorder %s624, %s625
      %p639 = scmp.eq.s32.totalorder %s56, 1
      %p640 = por %p638, %p639
      %p642 = scmp.ne.s32.totalorder %s625, %s641
      %p643 = scmp.eq.s32.totalorder %s56, 0
      %p644 = por %p642, %p643
      %p645 = scmp.le.s32.totalorder 1, %s50
      %p646 = scmp.lt.s32.totalorder %s50, 3
      %p647 = pnand %p645, %p646
      %p648 = pneg %p647
      // Predicated region
      $region9: #{tpu_custom_call.1} parent=5 // pred_check
        _
      $region10: #{tpu_custom_call.1} parent=5 // pred_check_branch
        %650 = sbr.rel (%p647) target = $region12
      $region11: #{tpu_custom_call.1} parent=5 // pred_region
        %s651 = ssub.s32 %s50, 1
        // Predicated region
        $region13: #{tpu_custom_call.1} parent=11 // pred_check
          %p652 = pneg %p149
        $region14: #{tpu_custom_call.1} parent=11 // pred_check_branch
          %654 = sbr.rel (%p652) target = $region16
        $region15: #{tpu_custom_call.1} parent=11 // pred_region
          %s656 = ssub.s32 64, 64
          %657 = vsyncadd [#allocation6], %s656
          %s659 = sshll.u32 [#allocation7], 4
          %s660 = int_to_ptr.vmem [resolvable:$true] %s659
          %662 = dma.hbm_to_vmem [thread:$0]  %s3, 64, %s660, [#allocation6]
        $region16: #{tpu_custom_call.1} parent=11 // pred_fallthru
          _
        // Predicated region
        $region17: #{tpu_custom_call.1} parent=11 // pred_check
          %p663 = pneg %p170
        $region18: #{tpu_custom_call.1} parent=11 // pred_check_branch
          %665 = sbr.rel (%p663) target = $region20
        $region19: #{tpu_custom_call.1} parent=11 // pred_region
          %s667 = ssub.s32 16, 16
          %668 = vsyncadd [#allocation9], %s667
          %s670 = sshll.u32 [#allocation8], 4
          %s671 = int_to_ptr.vmem [resolvable:$true] %s670
          %673 = dma.hbm_to_vmem [thread:$0]  %s4, 16, %s671, [#allocation9]
        $region20: #{tpu_custom_call.1} parent=11 // pred_fallthru
          _
        // Predicated region
        $region21: #{tpu_custom_call.1} parent=11 // pred_check
          %p674 = pneg %p191
        $region22: #{tpu_custom_call.1} parent=11 // pred_check_branch
          %676 = sbr.rel (%p674) target = $region24
        $region23: #{tpu_custom_call.1} parent=11 // pred_region
          %s678 = ssub.s32 16, 16
          %679 = vsyncadd [#allocation9], %s678
          %s681 = sshll.u32 [#allocation10], 4
          %s682 = int_to_ptr.vmem [resolvable:$true] %s681
          %684 = dma.hbm_to_vmem [thread:$0]  %s5, 16, %s682, [#allocation9]
        $region24: #{tpu_custom_call.1} parent=11 // pred_fallthru
          _
        // Predicated region
        $region25: #{tpu_custom_call.1} parent=11 // pred_check
          %p685 = pneg %p212
        $region26: #{tpu_custom_call.1} parent=11 // pred_check_branch
          %687 = sbr.rel (%p685) target = $region28
        $region27: #{tpu_custom_call.1} parent=11 // pred_region
          %s689 = ssub.s32 16, 16
          %690 = vsyncadd [#allocation12], %s689
          %s692 = sshll.u32 [#allocation11], 4
          %s693 = int_to_ptr.vmem [resolvable:$true] %s692
          %695 = dma.hbm_to_vmem [thread:$0]  %s6, 16, %s693, [#allocation12]
        $region28: #{tpu_custom_call.1} parent=11 // pred_fallthru
          _
        // Predicated region
        $region29: #{tpu_custom_call.1} parent=11 // pred_check
          %p696 = pneg %p233
        $region30: #{tpu_custom_call.1} parent=11 // pred_check_branch
          %698 = sbr.rel (%p696) target = $region32
        $region31: #{tpu_custom_call.1} parent=11 // pred_region
          %s700 = ssub.s32 512, 512
          %701 = vsyncadd [#allocation12], %s700
          %s702 = sshll.u32 [#allocation13], 4
          %s703 = int_to_ptr.vmem [resolvable:$true] %s702
          %708 = dma.hbm_to_vmem [thread:$0]  %s7, 512, %s703, [#allocation12], 128, 128, 8
        $region32: #{tpu_custom_call.1} parent=11 // pred_fallthru
          _
        // Predicated region
        $region33: #{tpu_custom_call.1} parent=11 // pred_check
          %p709 = pneg %p254
        $region34: #{tpu_custom_call.1} parent=11 // pred_check_branch
          %711 = sbr.rel (%p709) target = $region36
        $region35: #{tpu_custom_call.1} parent=11 // pred_region
          %s713 = ssub.s32 512, 512
          %714 = vsyncadd [#allocation15], %s713
          %s715 = sshll.u32 [#allocation14], 4
          %s716 = int_to_ptr.vmem [resolvable:$true] %s715
          %721 = dma.hbm_to_vmem [thread:$0]  %s8, 512, %s716, [#allocation15], 128, 128, 8
        $region36: #{tpu_custom_call.1} parent=11 // pred_fallthru
          _
        // Predicated region
        $region37: #{tpu_custom_call.1} parent=11 // pred_check
          %p722 = pneg %p275
        $region38: #{tpu_custom_call.1} parent=11 // pred_check_branch
          %724 = sbr.rel (%p722) target = $region40
        $region39: #{tpu_custom_call.1} parent=11 // pred_region
          %s726 = ssub.s32 16, 16
          %727 = vsyncadd [#allocation15], %s726
          %s729 = sshll.u32 [#allocation16], 4
          %s730 = int_to_ptr.vmem [resolvable:$true] %s729
          %732 = dma.hbm_to_vmem [thread:$0]  %s9, 16, %s730, [#allocation15]
        $region40: #{tpu_custom_call.1} parent=11 // pred_fallthru
          _
        // Predicated region
        $region41: #{tpu_custom_call.1} parent=11 // pred_check
          %p733 = pneg %p296
        $region42: #{tpu_custom_call.1} parent=11 // pred_check_branch
          %735 = sbr.rel (%p733) target = $region44
        $region43: #{tpu_custom_call.1} parent=11 // pred_region
          %s737 = ssub.s32 16, 16
          %738 = vsyncadd [#allocation18], %s737
          %s740 = sshll.u32 [#allocation17], 4
          %s741 = int_to_ptr.vmem [resolvable:$true] %s740
          %743 = dma.hbm_to_vmem [thread:$0]  %s10, 16, %s741, [#allocation18]
        $region44: #{tpu_custom_call.1} parent=11 // pred_fallthru
          _
        // Predicated region
        $region45: #{tpu_custom_call.1} parent=11 // pred_check
          %p744 = pneg %p317
        $region46: #{tpu_custom_call.1} parent=11 // pred_check_branch
          %746 = sbr.rel (%p744) target = $region48
        $region47: #{tpu_custom_call.1} parent=11 // pred_region
          %s748 = ssub.s32 16, 16
          %749 = vsyncadd [#allocation18], %s748
          %s751 = sshll.u32 [#allocation19], 4
          %s752 = int_to_ptr.vmem [resolvable:$true] %s751
          %754 = dma.hbm_to_vmem [thread:$0]  %s11, 16, %s752, [#allocation18]
        $region48: #{tpu_custom_call.1} parent=11 // pred_fallthru
          _
        // Predicated region
        $region49: #{tpu_custom_call.1} parent=11 // pred_check
          %p755 = pneg %p338
        $region50: #{tpu_custom_call.1} parent=11 // pred_check_branch
          %757 = sbr.rel (%p755) target = $region52
        $region51: #{tpu_custom_call.1} parent=11 // pred_region
          %s759 = ssub.s32 16, 16
          %760 = vsyncadd [#allocation21], %s759
          %s762 = sshll.u32 [#allocation20], 4
          %s763 = int_to_ptr.vmem [resolvable:$true] %s762
          %765 = dma.hbm_to_vmem [thread:$0]  %s12, 16, %s763, [#allocation21]
        $region52: #{tpu_custom_call.1} parent=11 // pred_fallthru
          _
        // Predicated region
        $region53: #{tpu_custom_call.1} parent=11 // pred_check
          %p766 = pneg %p359
        $region54: #{tpu_custom_call.1} parent=11 // pred_check_branch
          %768 = sbr.rel (%p766) target = $region56
        $region55: #{tpu_custom_call.1} parent=11 // pred_region
          %s770 = ssub.s32 16, 16
          %771 = vsyncadd [#allocation21], %s770
          %s773 = sshll.u32 [#allocation22], 4
          %s774 = int_to_ptr.vmem [resolvable:$true] %s773
          %776 = dma.hbm_to_vmem [thread:$0]  %s13, 16, %s774, [#allocation21]
        $region56: #{tpu_custom_call.1} parent=11 // pred_fallthru
          _
        // Predicated region
        $region57: #{tpu_custom_call.1} parent=11 // pred_check
          %p777 = pneg %p380
        $region58: #{tpu_custom_call.1} parent=11 // pred_check_branch
          %779 = sbr.rel (%p777) target = $region60
        $region59: #{tpu_custom_call.1} parent=11 // pred_region
          _
        $region60: #{tpu_custom_call.1} parent=11 // pred_fallthru
          _
        // Predicated region
        $region61: #{tpu_custom_call.1} parent=11 // pred_check
          %p780 = pneg %p401
        $region62: #{tpu_custom_call.1} parent=11 // pred_check_branch
          %782 = sbr.rel (%p780) target = $region64
        $region63: #{tpu_custom_call.1} parent=11 // pred_region
          %s784 = ssub.s32 32, 32
          %785 = vsyncadd [#allocation24], %s784
          %s786 = sshll.u32 [#allocation23], 4
          %s787 = int_to_ptr.vmem [resolvable:$true] %s786
          %792 = dma.hbm_to_vmem [thread:$0]  %s15, 32, %s787, [#allocation24], 16, 16, 1
        $region64: #{tpu_custom_call.1} parent=11 // pred_fallthru
          _
        // Predicated region
        $region65: #{tpu_custom_call.1} parent=11 // pred_check
          %p793 = pneg %p422
        $region66: #{tpu_custom_call.1} parent=11 // pred_check_branch
          %795 = sbr.rel (%p793) target = $region68
        $region67: #{tpu_custom_call.1} parent=11 // pred_region
          _
        $region68: #{tpu_custom_call.1} parent=11 // pred_fallthru
          _
        // Predicated region
        $region69: #{tpu_custom_call.1} parent=11 // pred_check
          %p796 = pneg %p443
        $region70: #{tpu_custom_call.1} parent=11 // pred_check_branch
          %798 = sbr.rel (%p796) target = $region72
        $region71: #{tpu_custom_call.1} parent=11 // pred_region
          %s800 = ssub.s32 32, 32
          %801 = vsyncadd [#allocation24], %s800
          %s802 = sshll.u32 [#allocation25], 4
          %s803 = int_to_ptr.vmem [resolvable:$true] %s802
          %808 = dma.hbm_to_vmem [thread:$0]  %s17, 32, %s803, [#allocation24], 16, 16, 1
        $region72: #{tpu_custom_call.1} parent=11 // pred_fallthru
          _
        // Predicated region
        $region73: #{tpu_custom_call.1} parent=11 // pred_check
          %p809 = pneg %p464
        $region74: #{tpu_custom_call.1} parent=11 // pred_check_branch
          %811 = sbr.rel (%p809) target = $region76
        $region75: #{tpu_custom_call.1} parent=11 // pred_region
          %s813 = ssub.s32 1024, 1024
          %814 = vsyncadd [#allocation27], %s813
          %s815 = sshll.u32 [#allocation26], 4
          %s816 = int_to_ptr.vmem [resolvable:$true] %s815
          %821 = dma.hbm_to_vmem [thread:$0]  %s18, 1024, %s816, [#allocation27], 128, 128, 8
        $region76: #{tpu_custom_call.1} parent=11 // pred_fallthru
          _
        // Predicated region
        $region77: #{tpu_custom_call.1} parent=11 // pred_check
          %p822 = pneg %p485
        $region78: #{tpu_custom_call.1} parent=11 // pred_check_branch
          %824 = sbr.rel (%p822) target = $region80
        $region79: #{tpu_custom_call.1} parent=11 // pred_region
          %s826 = ssub.s32 32, 32
          %827 = vsyncadd [#allocation27], %s826
          %s828 = sshll.u32 [#allocation28], 4
          %s829 = int_to_ptr.vmem [resolvable:$true] %s828
          %834 = dma.hbm_to_vmem [thread:$0]  %s19, 32, %s829, [#allocation27], 16, 16, 1
        $region80: #{tpu_custom_call.1} parent=11 // pred_fallthru
          _
        // Predicated region
        $region81: #{tpu_custom_call.1} parent=11 // pred_check
          %p835 = pneg %p506
        $region82: #{tpu_custom_call.1} parent=11 // pred_check_branch
          %837 = sbr.rel (%p835) target = $region84
        $region83: #{tpu_custom_call.1} parent=11 // pred_region
          %s839 = ssub.s32 1024, 1024
          %840 = vsyncadd [#allocation30], %s839
          %s841 = sshll.u32 [#allocation29], 4
          %s842 = int_to_ptr.vmem [resolvable:$true] %s841
          %847 = dma.hbm_to_vmem [thread:$0]  %s20, 1024, %s842, [#allocation30], 128, 128, 8
        $region84: #{tpu_custom_call.1} parent=11 // pred_fallthru
          _
        // Predicated region
        $region85: #{tpu_custom_call.1} parent=11 // pred_check
          %p848 = pneg %p527
        $region86: #{tpu_custom_call.1} parent=11 // pred_check_branch
          %850 = sbr.rel (%p848) target = $region88
        $region87: #{tpu_custom_call.1} parent=11 // pred_region
          %s852 = ssub.s32 32, 32
          %853 = vsyncadd [#allocation30], %s852
          %s854 = sshll.u32 [#allocation31], 4
          %s855 = int_to_ptr.vmem [resolvable:$true] %s854
          %860 = dma.hbm_to_vmem [thread:$0]  %s21, 32, %s855, [#allocation30], 16, 16, 1
        $region88: #{tpu_custom_call.1} parent=11 // pred_fallthru
          _
        // Predicated region
        $region89: #{tpu_custom_call.1} parent=11 // pred_check
          %p861 = pneg %p548
        $region90: #{tpu_custom_call.1} parent=11 // pred_check_branch
          %863 = sbr.rel (%p861) target = $region92
        $region91: #{tpu_custom_call.1} parent=11 // pred_region
          _
        $region92: #{tpu_custom_call.1} parent=11 // pred_fallthru
          _
        // Predicated region
        $region93: #{tpu_custom_call.1} parent=11 // pred_check
          %p864 = pneg %p569
        $region94: #{tpu_custom_call.1} parent=11 // pred_check_branch
          %866 = sbr.rel (%p864) target = $region96
        $region95: #{tpu_custom_call.1} parent=11 // pred_region
          %s868 = ssub.s32 32, 32
          %869 = vsyncadd [#allocation33], %s868
          %s870 = sshll.u32 [#allocation32], 4
          %s871 = int_to_ptr.vmem [resolvable:$true] %s870
          %876 = dma.hbm_to_vmem [thread:$0]  %s23, 32, %s871, [#allocation33], 16, 16, 1
        $region96: #{tpu_custom_call.1} parent=11 // pred_fallthru
          _
        // Predicated region
        $region97: #{tpu_custom_call.1} parent=11 // pred_check
          %p877 = pneg %p590
        $region98: #{tpu_custom_call.1} parent=11 // pred_check_branch
          %879 = sbr.rel (%p877) target = $region100
        $region99: #{tpu_custom_call.1} parent=11 // pred_region
          _
        $region100: #{tpu_custom_call.1} parent=11 // pred_fallthru
          _
        // Predicated region
        $region101: #{tpu_custom_call.1} parent=11 // pred_check
          %p880 = pneg %p611
        $region102: #{tpu_custom_call.1} parent=11 // pred_check_branch
          %882 = sbr.rel (%p880) target = $region104
        $region103: #{tpu_custom_call.1} parent=11 // pred_region
          _
        $region104: #{tpu_custom_call.1} parent=11 // pred_fallthru
          _
      $region12: #{tpu_custom_call.1} parent=5 // pred_fallthru
        _
      %p883 = scmp.lt.s32.totalorder %s50, 2
      // Predicated region
      $region105: #{tpu_custom_call.1} parent=5 // pred_check
        %p884 = pneg %p883
      $region106: #{tpu_custom_call.1} parent=5 // pred_check_branch
        %886 = sbr.rel (%p884) target = $region108
      $region107: #{tpu_custom_call.1} parent=5 // pred_region
        // Predicated region
        $region109: #{tpu_custom_call.1} parent=107 // pred_check
          %p887 = pneg %p70
        $region110: #{tpu_custom_call.1} parent=107 // pred_check_branch
          %889 = sbr.rel (%p887) target = $region112
        $region111: #{tpu_custom_call.1} parent=107 // pred_region
          %p890 = scmp.lt.s32.totalorder %s50, 1
          %s891 = scalar_select %p890, %s50, 1
          %s892 = smul.addr %s891, 2
          %s893 = smul.addr %s892, 8
          %s894 = scalar_lea.vmem %s0, %s893
        $region112: #{tpu_custom_call.1} parent=107 // pred_fallthru
          _
        // Predicated region
        $region113: #{tpu_custom_call.1} parent=107 // pred_check
          %p895 = pneg %p96
        $region114: #{tpu_custom_call.1} parent=107 // pred_check_branch
          %897 = sbr.rel (%p895) target = $region116
        $region115: #{tpu_custom_call.1} parent=107 // pred_region
          %s898 = sand.u32 %s86, 1
          %s899 = scalar_lea.sflag [#allocation3], %s898
          %s900 = sand.u32 %s86, 1
          %s901 = smul.addr %s900, 16
          %s902 = scalar_lea.vmem [#allocation2], %s901
          %s904 = ssub.s32 256, 256
          %905 = vsyncadd %s899, %s904
          %s906 = smul.addr %s50, 2
          %s907 = smul.addr %s906, 128
          %s908 = scalar_lea.hbm %s1, %s907
          %s909 = sshll.u32 %s902, 4
          %s910 = int_to_ptr.vmem [resolvable:$true] %s909
          %915 = dma.hbm_to_vmem [thread:$0]  %s908, 256, %s910, %s899, 128, 128, 8
        $region116: #{tpu_custom_call.1} parent=107 // pred_fallthru
          _
        // Predicated region
        $region117: #{tpu_custom_call.1} parent=107 // pred_check
          %p916 = pneg %p122
        $region118: #{tpu_custom_call.1} parent=107 // pred_check_branch
          %918 = sbr.rel (%p916) target = $region120
        $region119: #{tpu_custom_call.1} parent=107 // pred_region
          %s919 = sand.u32 %s50, 1
          %s920 = scalar_lea.sflag [#allocation6], %s919
          %s921 = sand.u32 %s112, 1
          %s922 = smul.addr %s921, 2
          %s923 = scalar_lea.vmem [#allocation5], %s922
          %s925 = ssub.s32 32, 32
          %926 = vsyncadd %s920, %s925
          %s927 = smul.addr %s50, 32
          %s928 = scalar_lea.hbm %s2, %s927
          %s930 = sshll.u32 %s923, 4
          %s931 = int_to_ptr.vmem [resolvable:$true] %s930
          %933 = dma.hbm_to_vmem [thread:$0]  %s928, 32, %s931, %s920
        $region120: #{tpu_custom_call.1} parent=107 // pred_fallthru
          _
      $region108: #{tpu_custom_call.1} parent=5 // pred_fallthru
        _
      %p934 = scmp.le.s32.totalorder 1, %s50
      %p935 = scmp.lt.s32.totalorder %s50, 3
      %p936 = pnand %p934, %p935
      %p937 = pneg %p936
      // Predicated region
      $region121: #{tpu_custom_call.1} parent=5 // pred_check
        _
      $region122: #{tpu_custom_call.1} parent=5 // pred_check_branch
        %939 = sbr.rel (%p936) target = $region124
      $region123: #{tpu_custom_call.1} parent=5 // pred_region
        %s940 = ssub.s32 %s50, 1
        %s941 = sand.u32 %s89, 1
        %s942 = scalar_lea.sflag [#allocation3], %s941
        %s943 = sand.u32 %s89, 1
        %s944 = smul.addr %s943, 16
        %s945 = scalar_lea.vmem [#allocation2], %s944
        // Predicated region
        $region125: #{tpu_custom_call.1} parent=123 // pred_check
          %p946 = pneg %p102
        $region126: #{tpu_custom_call.1} parent=123 // pred_check_branch
          %948 = sbr.rel (%p946) target = $region128
        $region127: #{tpu_custom_call.1} parent=123 // pred_region
          %949 = dma.done %s942, 256
        $region128: #{tpu_custom_call.1} parent=123 // pred_fallthru
          _
        %s950 = sand.u32 %s55, 1
        %s951 = scalar_lea.sflag [#allocation6], %s950
        %s952 = sand.u32 %s115, 1
        %s953 = smul.addr %s952, 2
        %s954 = scalar_lea.vmem [#allocation5], %s953
        // Predicated region
        $region129: #{tpu_custom_call.1} parent=123 // pred_check
          %p955 = pneg %p128
        $region130: #{tpu_custom_call.1} parent=123 // pred_check_branch
          %957 = sbr.rel (%p955) target = $region132
        $region131: #{tpu_custom_call.1} parent=123 // pred_region
          %958 = dma.done %s951, 32
        $region132: #{tpu_custom_call.1} parent=123 // pred_fallthru
          _
        // Predicated region
        $region133: #{tpu_custom_call.1} parent=123 // pred_check
          %p959 = pneg %p149
        $region134: #{tpu_custom_call.1} parent=123 // pred_check_branch
          %961 = sbr.rel (%p959) target = $region136
        $region135: #{tpu_custom_call.1} parent=123 // pred_region
          %962 = dma.done [#allocation6], 64
        $region136: #{tpu_custom_call.1} parent=123 // pred_fallthru
          _
        // Predicated region
        $region137: #{tpu_custom_call.1} parent=123 // pred_check
          %p963 = pneg %p170
        $region138: #{tpu_custom_call.1} parent=123 // pred_check_branch
          %965 = sbr.rel (%p963) target = $region140
        $region139: #{tpu_custom_call.1} parent=123 // pred_region
          %966 = dma.done [#allocation9], 16
        $region140: #{tpu_custom_call.1} parent=123 // pred_fallthru
          _
        // Predicated region
        $region141: #{tpu_custom_call.1} parent=123 // pred_check
          %p967 = pneg %p191
        $region142: #{tpu_custom_call.1} parent=123 // pred_check_branch
          %969 = sbr.rel (%p967) target = $region144
        $region143: #{tpu_custom_call.1} parent=123 // pred_region
          %970 = dma.done [#allocation9], 16
        $region144: #{tpu_custom_call.1} parent=123 // pred_fallthru
          _
        // Predicated region
        $region145: #{tpu_custom_call.1} parent=123 // pred_check
          %p971 = pneg %p212
        $region146: #{tpu_custom_call.1} parent=123 // pred_check_branch
          %973 = sbr.rel (%p971) target = $region148
        $region147: #{tpu_custom_call.1} parent=123 // pred_region
          %974 = dma.done [#allocation12], 16
        $region148: #{tpu_custom_call.1} parent=123 // pred_fallthru
          _
        // Predicated region
        $region149: #{tpu_custom_call.1} parent=123 // pred_check
          %p975 = pneg %p233
        $region150: #{tpu_custom_call.1} parent=123 // pred_check_branch
          %977 = sbr.rel (%p975) target = $region152
        $region151: #{tpu_custom_call.1} parent=123 // pred_region
          %978 = dma.done [#allocation12], 512
        $region152: #{tpu_custom_call.1} parent=123 // pred_fallthru
          _
        // Predicated region
        $region153: #{tpu_custom_call.1} parent=123 // pred_check
          %p979 = pneg %p254
        $region154: #{tpu_custom_call.1} parent=123 // pred_check_branch
          %981 = sbr.rel (%p979) target = $region156
        $region155: #{tpu_custom_call.1} parent=123 // pred_region
          %982 = dma.done [#allocation15], 512
        $region156: #{tpu_custom_call.1} parent=123 // pred_fallthru
          _
        // Predicated region
        $region157: #{tpu_custom_call.1} parent=123 // pred_check
          %p983 = pneg %p275
        $region158: #{tpu_custom_call.1} parent=123 // pred_check_branch
          %985 = sbr.rel (%p983) target = $region160
        $region159: #{tpu_custom_call.1} parent=123 // pred_region
          %986 = dma.done [#allocation15], 16
        $region160: #{tpu_custom_call.1} parent=123 // pred_fallthru
          _
        // Predicated region
        $region161: #{tpu_custom_call.1} parent=123 // pred_check
          %p987 = pneg %p296
        $region162: #{tpu_custom_call.1} parent=123 // pred_check_branch
          %989 = sbr.rel (%p987) target = $region164
        $region163: #{tpu_custom_call.1} parent=123 // pred_region
          %990 = dma.done [#allocation18], 16
        $region164: #{tpu_custom_call.1} parent=123 // pred_fallthru
          _
        // Predicated region
        $region165: #{tpu_custom_call.1} parent=123 // pred_check
          %p991 = pneg %p317
        $region166: #{tpu_custom_call.1} parent=123 // pred_check_branch
          %993 = sbr.rel (%p991) target = $region168
        $region167: #{tpu_custom_call.1} parent=123 // pred_region
          %994 = dma.done [#allocation18], 16
        $region168: #{tpu_custom_call.1} parent=123 // pred_fallthru
          _
        // Predicated region
        $region169: #{tpu_custom_call.1} parent=123 // pred_check
          %p995 = pneg %p338
        $region170: #{tpu_custom_call.1} parent=123 // pred_check_branch
          %997 = sbr.rel (%p995) target = $region172
        $region171: #{tpu_custom_call.1} parent=123 // pred_region
          %998 = dma.done [#allocation21], 16
        $region172: #{tpu_custom_call.1} parent=123 // pred_fallthru
          _
        // Predicated region
        $region173: #{tpu_custom_call.1} parent=123 // pred_check
          %p999 = pneg %p359
        $region174: #{tpu_custom_call.1} parent=123 // pred_check_branch
          %1001 = sbr.rel (%p999) target = $region176
        $region175: #{tpu_custom_call.1} parent=123 // pred_region
          %1002 = dma.done [#allocation21], 16
        $region176: #{tpu_custom_call.1} parent=123 // pred_fallthru
          _
        // Predicated region
        $region177: #{tpu_custom_call.1} parent=123 // pred_check
          %p1003 = pneg %p401
        $region178: #{tpu_custom_call.1} parent=123 // pred_check_branch
          %1005 = sbr.rel (%p1003) target = $region180
        $region179: #{tpu_custom_call.1} parent=123 // pred_region
          %1006 = dma.done [#allocation24], 32
        $region180: #{tpu_custom_call.1} parent=123 // pred_fallthru
          _
        // Predicated region
        $region181: #{tpu_custom_call.1} parent=123 // pred_check
          %p1007 = pneg %p443
        $region182: #{tpu_custom_call.1} parent=123 // pred_check_branch
          %1009 = sbr.rel (%p1007) target = $region184
        $region183: #{tpu_custom_call.1} parent=123 // pred_region
          %1010 = dma.done [#allocation24], 32
        $region184: #{tpu_custom_call.1} parent=123 // pred_fallthru
          _
        // Predicated region
        $region185: #{tpu_custom_call.1} parent=123 // pred_check
          %p1011 = pneg %p464
        $region186: #{tpu_custom_call.1} parent=123 // pred_check_branch
          %1013 = sbr.rel (%p1011) target = $region188
        $region187: #{tpu_custom_call.1} parent=123 // pred_region
          %1014 = dma.done [#allocation27], 1024
        $region188: #{tpu_custom_call.1} parent=123 // pred_fallthru
          _
        // Predicated region
        $region189: #{tpu_custom_call.1} parent=123 // pred_check
          %p1015 = pneg %p485
        $region190: #{tpu_custom_call.1} parent=123 // pred_check_branch
          %1017 = sbr.rel (%p1015) target = $region192
        $region191: #{tpu_custom_call.1} parent=123 // pred_region
          %1018 = dma.done [#allocation27], 32
        $region192: #{tpu_custom_call.1} parent=123 // pred_fallthru
          _
        // Predicated region
        $region193: #{tpu_custom_call.1} parent=123 // pred_check
          %p1019 = pneg %p506
        $region194: #{tpu_custom_call.1} parent=123 // pred_check_branch
          %1021 = sbr.rel (%p1019) target = $region196
        $region195: #{tpu_custom_call.1} parent=123 // pred_region
          %1022 = dma.done [#allocation30], 1024
        $region196: #{tpu_custom_call.1} parent=123 // pred_fallthru
          _
        // Predicated region
        $region197: #{tpu_custom_call.1} parent=123 // pred_check
          %p1023 = pneg %p527
        $region198: #{tpu_custom_call.1} parent=123 // pred_check_branch
          %1025 = sbr.rel (%p1023) target = $region200
        $region199: #{tpu_custom_call.1} parent=123 // pred_region
          %1026 = dma.done [#allocation30], 32
        $region200: #{tpu_custom_call.1} parent=123 // pred_fallthru
          _
        // Predicated region
        $region201: #{tpu_custom_call.1} parent=123 // pred_check
          %p1027 = pneg %p569
        $region202: #{tpu_custom_call.1} parent=123 // pred_check_branch
          %1029 = sbr.rel (%p1027) target = $region204
        $region203: #{tpu_custom_call.1} parent=123 // pred_region
          %1030 = dma.done [#allocation33], 32
        $region204: #{tpu_custom_call.1} parent=123 // pred_fallthru
          _
        %p1031 = scmp.lt.s32.totalorder %s55, 1
        %s1032 = scalar_select %p1031, %s55, 1
        %s1033 = smul.addr %s1032, 2
        %s1034 = smul.addr %s1033, 8
        %s1035 = scalar_lea.vmem %s0, %s1034
        %p1036 = pneg %p76
        %p1037 = pneg %p73
        %s1038 = sand.u32 %s89, 1
        %s1039 = scalar_lea.sflag [#allocation3], %s1038
        %s1040 = sand.u32 %s89, 1
        %s1041 = smul.addr %s1040, 16
        %s1042 = scalar_lea.vmem [#allocation2], %s1041
        %p1043 = pneg %p102
        %p1044 = pneg %p99
        %s1045 = sand.u32 %s55, 1
        %s1046 = scalar_lea.sflag [#allocation6], %s1045
        %s1047 = sand.u32 %s115, 1
        %s1048 = smul.addr %s1047, 2
        %s1049 = scalar_lea.vmem [#allocation5], %s1048
        %p1050 = pneg %p128
        %p1051 = pneg %p125
        %p1052 = pneg %p149
        %p1053 = pneg %p146
        %p1054 = pneg %p170
        %p1055 = pneg %p167
        %p1056 = pneg %p191
        %p1057 = pneg %p188
        %p1058 = pneg %p212
        %p1059 = pneg %p209
        %p1060 = pneg %p233
        %p1061 = pneg %p230
        %p1062 = pneg %p254
        %p1063 = pneg %p251
        %p1064 = pneg %p275
        %p1065 = pneg %p272
        %p1066 = pneg %p296
        %p1067 = pneg %p293
        %p1068 = pneg %p317
        %p1069 = pneg %p314
        %p1070 = pneg %p338
        %p1071 = pneg %p335
        %p1072 = pneg %p359
        %p1073 = pneg %p356
        %p1074 = pneg %p380
        %p1075 = pneg %p377
        %p1076 = pneg %p401
        %p1077 = pneg %p398
        %p1078 = pneg %p422
        %p1079 = pneg %p419
        %p1080 = pneg %p443
        %p1081 = pneg %p440
        %p1082 = pneg %p464
        %p1083 = pneg %p461
        %p1084 = pneg %p485
        %p1085 = pneg %p482
        %p1086 = pneg %p506
        %p1087 = pneg %p503
        %p1088 = pneg %p527
        %p1089 = pneg %p524
        %p1090 = pneg %p548
        %p1091 = pneg %p545
        %p1092 = pneg %p569
        %p1093 = pneg %p566
        %p1094 = pneg %p590
        %p1095 = pneg %p587
        %p1096 = pneg %p611
        %p1097 = pneg %p608
        %p1098 = pneg %p637
        %p1099 = pneg %p634
        %s1100 = sand.u32 %s624, 1
        %s1101 = scalar_lea.sflag [#allocation4], %s1100
        %s1102 = sand.u32 %s624, 1
        %s1103 = smul.addr %s1102, 4
        %s1104 = scalar_lea.vmem [#allocation34], %s1103
        %p1105 = scmp.lt.s32.totalorder %s55, 1
        %s1106 = scalar_select %p1105, %s55, 1
        %s1107 = smul.addr %s1106, 2
        %s1108 = smul.addr %s1107, 8
        %s1109 = scalar_lea.vmem %s0, %s1108
        %v1110 = vld [vmem:[%s1109] sm:$0xff]
        %v1111 = vld [vmem:[%s1109 + $0x8] sm:$0xff]
        %v1112 = vld [vmem:[%s945] sm:$0xff]
        %v1113 = vld [vmem:[%s945 + $0x8] sm:$0xff]
        %v1114 = vld [vmem:[%s954] sm:$0x3]
        %v1115 = vld [vmem:[#allocation7] sm:$0x7]
        %v1116 = vld [vmem:[#allocation8] sm:$0x1]
        %v1118 = vlaneseq
        %v1119 = vshrl.u32 %v1118, 7
        %v1120 = vsub.s32 0, %v1119
        %v1121 = vrot.slane %v1116, %v1120
        %vm1123 = vcmask 23552
        %v1125 = vsel %vm1123, %v1110, 0
        %v1128 = vsel %vm1123, %v1111, 0
        %vm1130 = vcmask 1042432
        %v1132 = vsel %vm1130, %v1115, 0
        %1134 = vmatprep.subr.mxu0 0.0
        %1135 = vmatpush1.msra.mxu0 %v1132
        %1136 = vmatprep.subr.mxu0 0.0
        %1137 = vmatpush1.msra.mxu0 0.0
        %1138 = vmatprep.subr.mxu0 0.0
        %1139 = vmatpush1.msra.mxu0 0.0
        %1140 = vmatprep.subr.mxu0 0.0
        %1141 = vmatpush1.msra.mxu0 0.0
        %1142 = vmatprep.subr.mxu0 0.0
        %1143 = vmatpush1.msra.mxu0 0.0
        %1144 = vmatprep.subr.mxu0 0.0
        %1145 = vmatpush1.msra.mxu0 0.0
        %1146 = vmatprep.subr.mxu0 0.0
        %1147 = vmatpush1.msra.mxu0 0.0
        %1148 = vmatprep.subr.mxu0 0.0
        %1149 = vmatpush1.msra.mxu0 0.0
        %1150 = vmatprep.subr.mxu0 0.0
        %1151 = vmatpush1.msra.mxu0 0.0
        %1152 = vmatprep.subr.mxu0 0.0
        %1153 = vmatpush1.msra.mxu0 0.0
        %1154 = vmatprep.subr.mxu0 0.0
        %1155 = vmatpush1.msra.mxu0 0.0
        %1156 = vmatprep.subr.mxu0 0.0
        %1157 = vmatpush1.msra.mxu0 0.0
        %1158 = vmatprep.subr.mxu0 0.0
        %1159 = vmatpush1.msra.mxu0 0.0
        %1160 = vmatprep.subr.mxu0 0.0
        %1161 = vmatpush1.msra.mxu0 0.0
        %1162 = vmatprep.subr.mxu0 0.0
        %1163 = vmatpush1.msra.mxu0 0.0
        %1164 = vmatprep.subr.mxu0 0.0
        %1165 = vmatpush1.msra.mxu0 0.0
        %1166 = vmatprep.subr.mxu0 0.0
        %1167 = vmatpush1.msra.mxu0 0.0
        %1168 = vmatprep.subr.mxu0 0.0
        %1169 = vmatpush1.msra.mxu0 0.0
        %1170 = vmatprep.subr.mxu0 0.0
        %1171 = vmatpush1.msra.mxu0 0.0
        %1172 = vmatprep.subr.mxu0 0.0
        %1173 = vmatpush1.msra.mxu0 0.0
        %1174 = vmatprep.subr.mxu0 0.0
        %1175 = vmatpush1.msra.mxu0 0.0
        %1176 = vmatprep.subr.mxu0 0.0
        %1177 = vmatpush1.msra.mxu0 0.0
        %1178 = vmatprep.subr.mxu0 0.0
        %1179 = vmatpush1.msra.mxu0 0.0
        %1180 = vmatprep.subr.mxu0 0.0
        %1181 = vmatpush1.msra.mxu0 0.0
        %1182 = vmatprep.subr.mxu0 0.0
        %1183 = vmatpush1.msra.mxu0 0.0
        %1184 = vmatprep.subr.mxu0 0.0
        %1185 = vmatpush1.msra.mxu0 0.0
        %1186 = vmatprep.subr.mxu0 0.0
        %1187 = vmatpush1.msra.mxu0 0.0
        %1188 = vmatprep.subr.mxu0 0.0
        %1189 = vmatpush1.msra.mxu0 0.0
        %1190 = vmatprep.subr.mxu0 0.0
        %1191 = vmatpush1.msra.mxu0 0.0
        %1192 = vmatprep.subr.mxu0 0.0
        %1193 = vmatpush1.msra.mxu0 0.0
        %1194 = vmatprep.subr.mxu0 0.0
        %1195 = vmatpush1.msra.mxu0 0.0
        %1196 = vmatprep.subr.mxu0 0.0
        %1197 = vmatpush1.msra.mxu0 0.0
        %1198 = vmatprep.mubr.f32.mxu0 0.0
        %1199 = vmatmul.mubr.f32.gmra.mrb[0].mxu0 %v1125
        %v1200 = vpop.f32.mrb[0].mxu0
        %v1201 = vadd.f32 %v1121, %v1200
        %v1202 = vpop.f32.mrb[0].mxu0
        %1203 = vmatprep.mubr.f32.mxu0 0.0
        %1204 = vmatmul.mubr.f32.gmra.mrb[0].mxu0 %v1128
        %v1205 = vpop.f32.mrb[0].mxu0
        %v1206 = vadd.f32 %v1121, %v1205
        %v1207 = vpop.f32.mrb[0].mxu0
        %1208 = vdwg.mxu0
        %v1209 = vld [vmem:[#allocation10] sm:$0x1]
        %v1210 = vld [vmem:[#allocation11] sm:$0x1]
        %vm1211 = vcmask 261120
        %v1212 = vsel %vm1211, %v1201, 0.0
        %1213 = vadd.xlane.f32.xlu0 %v1212
        %v1214 = vpop.xlane.xlu0 %1213
        %v1215 = vsel %vm1211, %v1206, 0.0
        %1216 = vadd.xlane.f32.xlu0 %v1215
        %v1217 = vpop.xlane.xlu0 %1216
        %v1218 = vrcp.pop 32.0
        %v1219 = vmul.f32 %v1214, %v1218
        %v1220 = vmul.f32 %v1217, %v1218
        %v1221 = vsub.f32 %v1201, %v1219
        %v1222 = vsub.f32 %v1206, %v1220
        %v1223 = vmul.f32 %v1221, %v1221
        %v1224 = vmul.f32 %v1222, %v1222
        %v1225 = vsel %vm1211, %v1223, 0.0
        %1226 = vadd.xlane.f32.xlu0 %v1225
        %v1227 = vpop.xlane.xlu0 %1226
        %v1228 = vsel %vm1211, %v1224, 0.0
        %1229 = vadd.xlane.f32.xlu0 %v1228
        %v1230 = vpop.xlane.xlu0 %1229
        %v1231 = vmul.f32 %v1227, %v1218
        %v1232 = vmul.f32 %v1230, %v1218
        %v1233 = vadd.f32 %v1231, 1e-05
        %v1234 = vadd.f32 %v1232, 1e-05
        %v1235 = vrsqrt.pop %v1233
        %v1236 = vrsqrt.pop %v1234
        %v1237 = vmul.f32 %v1221, %v1235
        %v1238 = vmul.f32 %v1222, %v1236
        %v1240 = vlaneseq
        %v1241 = vshrl.u32 %v1240, 7
        %v1242 = vsub.s32 0, %v1241
        %v1243 = vrot.slane %v1209, %v1242
        %v1245 = vmul.f32 %v1237, %v1243
        %v1246 = vmul.f32 %v1238, %v1243
        %v1248 = vlaneseq
        %v1249 = vshrl.u32 %v1248, 7
        %v1250 = vsub.s32 0, %v1249
        %v1251 = vrot.slane %v1210, %v1250
        %v1253 = vadd.f32 %v1245, %v1251
        %v1254 = vadd.f32 %v1246, %v1251
        %v1255 = vmax.f32 %v1253, 0.0
        %v1256 = vmax.f32 %v1254, 0.0
        %v1257 = vadd.f32 %v1112, %v1255
        %v1258 = vadd.f32 %v1113, %v1256
        %v1259 = vld [vmem:[#allocation13] sm:$0xff]
        %v1260 = vld [vmem:[#allocation13 + $0x8] sm:$0xff]
        %v1261 = vld [vmem:[#allocation13 + $0x10] sm:$0xff]
        %v1262 = vld [vmem:[#allocation13 + $0x18] sm:$0xff]
        %v1264 = vsel %vm1211, %v1114, 0
        %1266 = vmatprep.subr.mxu0 0.0
        %1267 = vmatpush1.msra.mxu0 %v1259
        %1268 = vmatprep.subr.mxu0 0.0
        %1269 = vmatpush1.msra.mxu0 %v1260
        %1270 = vmatprep.subr.mxu0 0.0
        %1271 = vmatpush1.msra.mxu0 %v1261
        %1272 = vmatprep.subr.mxu0 0.0
        %1273 = vmatpush1.msra.mxu0 %v1262
        %1274 = vmatprep.subr.mxu0 0.0
        %1275 = vmatpush1.msra.mxu0 0.0
        %1276 = vmatprep.subr.mxu0 0.0
        %1277 = vmatpush1.msra.mxu0 0.0
        %1278 = vmatprep.subr.mxu0 0.0
        %1279 = vmatpush1.msra.mxu0 0.0
        %1280 = vmatprep.subr.mxu0 0.0
        %1281 = vmatpush1.msra.mxu0 0.0
        %1282 = vmatprep.subr.mxu0 0.0
        %1283 = vmatpush1.msra.mxu0 0.0
        %1284 = vmatprep.subr.mxu0 0.0
        %1285 = vmatpush1.msra.mxu0 0.0
        %1286 = vmatprep.subr.mxu0 0.0
        %1287 = vmatpush1.msra.mxu0 0.0
        %1288 = vmatprep.subr.mxu0 0.0
        %1289 = vmatpush1.msra.mxu0 0.0
        %1290 = vmatprep.subr.mxu0 0.0
        %1291 = vmatpush1.msra.mxu0 0.0
        %1292 = vmatprep.subr.mxu0 0.0
        %1293 = vmatpush1.msra.mxu0 0.0
        %1294 = vmatprep.subr.mxu0 0.0
        %1295 = vmatpush1.msra.mxu0 0.0
        %1296 = vmatprep.subr.mxu0 0.0
        %1297 = vmatpush1.msra.mxu0 0.0
        %1298 = vmatprep.subr.mxu0 0.0
        %1299 = vmatpush1.msra.mxu0 0.0
        %1300 = vmatprep.subr.mxu0 0.0
        %1301 = vmatpush1.msra.mxu0 0.0
        %1302 = vmatprep.subr.mxu0 0.0
        %1303 = vmatpush1.msra.mxu0 0.0
        %1304 = vmatprep.subr.mxu0 0.0
        %1305 = vmatpush1.msra.mxu0 0.0
        %1306 = vmatprep.subr.mxu0 0.0
        %1307 = vmatpush1.msra.mxu0 0.0
        %1308 = vmatprep.subr.mxu0 0.0
        %1309 = vmatpush1.msra.mxu0 0.0
        %1310 = vmatprep.subr.mxu0 0.0
        %1311 = vmatpush1.msra.mxu0 0.0
        %1312 = vmatprep.subr.mxu0 0.0
        %1313 = vmatpush1.msra.mxu0 0.0
        %1314 = vmatprep.subr.mxu0 0.0
        %1315 = vmatpush1.msra.mxu0 0.0
        %1316 = vmatprep.subr.mxu0 0.0
        %1317 = vmatpush1.msra.mxu0 0.0
        %1318 = vmatprep.subr.mxu0 0.0
        %1319 = vmatpush1.msra.mxu0 0.0
        %1320 = vmatprep.subr.mxu0 0.0
        %1321 = vmatpush1.msra.mxu0 0.0
        %1322 = vmatprep.subr.mxu0 0.0
        %1323 = vmatpush1.msra.mxu0 0.0
        %1324 = vmatprep.subr.mxu0 0.0
        %1325 = vmatpush1.msra.mxu0 0.0
        %1326 = vmatprep.subr.mxu0 0.0
        %1327 = vmatpush1.msra.mxu0 0.0
        %1328 = vmatprep.subr.mxu0 0.0
        %1329 = vmatpush1.msra.mxu0 0.0
        %1330 = vmatprep.mubr.f32.mxu0 0.0
        %1331 = vmatmul.mubr.f32.gmra.mrb[0].mxu0 %v1264
        %v1332 = vpop.f32.mrb[0].mxu0
        %v1333 = vadd.f32 0.0, %v1332
        %v1334 = vpop.f32.mrb[0].mxu0
        %1335 = vdwg.mxu0
        %v1336 = vlaneseq
        %v1337 = vshrl.u32 %v1336, 7
        %v1338 = vsub.s32 0, %v1337
        %v1339 = vrot.slane %v1333, %v1338
        %v1340 = vlaneseq
        %v1341 = vshrl.u32 %v1340, 7
        %v1342 = vsub.s32 1, %v1341
        %v1343 = vrot.slane %v1333, %v1342
        %v1344 = vld [vmem:[#allocation14] sm:$0xff]
        %v1345 = vld [vmem:[#allocation14 + $0x8] sm:$0xff]
        %v1346 = vld [vmem:[#allocation14 + $0x10] sm:$0xff]
        %v1347 = vld [vmem:[#allocation14 + $0x18] sm:$0xff]
        %v1349 = vsel %vm1211, %v1257, 0
        %v1352 = vsel %vm1211, %v1258, 0
        %1354 = vmatprep.subr.mxu0 0.0
        %1355 = vmatpush1.msra.mxu0 %v1344
        %1356 = vmatprep.subr.mxu0 0.0
        %1357 = vmatpush1.msra.mxu0 %v1345
        %1358 = vmatprep.subr.mxu0 0.0
        %1359 = vmatpush1.msra.mxu0 %v1346
        %1360 = vmatprep.subr.mxu0 0.0
        %1361 = vmatpush1.msra.mxu0 %v1347
        %1362 = vmatprep.subr.mxu0 0.0
        %1363 = vmatpush1.msra.mxu0 0.0
        %1364 = vmatprep.subr.mxu0 0.0
        %1365 = vmatpush1.msra.mxu0 0.0
        %1366 = vmatprep.subr.mxu0 0.0
        %1367 = vmatpush1.msra.mxu0 0.0
        %1368 = vmatprep.subr.mxu0 0.0
        %1369 = vmatpush1.msra.mxu0 0.0
        %1370 = vmatprep.subr.mxu0 0.0
        %1371 = vmatpush1.msra.mxu0 0.0
        %1372 = vmatprep.subr.mxu0 0.0
        %1373 = vmatpush1.msra.mxu0 0.0
        %1374 = vmatprep.subr.mxu0 0.0
        %1375 = vmatpush1.msra.mxu0 0.0
        %1376 = vmatprep.subr.mxu0 0.0
        %1377 = vmatpush1.msra.mxu0 0.0
        %1378 = vmatprep.subr.mxu0 0.0
        %1379 = vmatpush1.msra.mxu0 0.0
        %1380 = vmatprep.subr.mxu0 0.0
        %1381 = vmatpush1.msra.mxu0 0.0
        %1382 = vmatprep.subr.mxu0 0.0
        %1383 = vmatpush1.msra.mxu0 0.0
        %1384 = vmatprep.subr.mxu0 0.0
        %1385 = vmatpush1.msra.mxu0 0.0
        %1386 = vmatprep.subr.mxu0 0.0
        %1387 = vmatpush1.msra.mxu0 0.0
        %1388 = vmatprep.subr.mxu0 0.0
        %1389 = vmatpush1.msra.mxu0 0.0
        %1390 = vmatprep.subr.mxu0 0.0
        %1391 = vmatpush1.msra.mxu0 0.0
        %1392 = vmatprep.subr.mxu0 0.0
        %1393 = vmatpush1.msra.mxu0 0.0
        %1394 = vmatprep.subr.mxu0 0.0
        %1395 = vmatpush1.msra.mxu0 0.0
        %1396 = vmatprep.subr.mxu0 0.0
        %1397 = vmatpush1.msra.mxu0 0.0
        %1398 = vmatprep.subr.mxu0 0.0
        %1399 = vmatpush1.msra.mxu0 0.0
        %1400 = vmatprep.subr.mxu0 0.0
        %1401 = vmatpush1.msra.mxu0 0.0
        %1402 = vmatprep.subr.mxu0 0.0
        %1403 = vmatpush1.msra.mxu0 0.0
        %1404 = vmatprep.subr.mxu0 0.0
        %1405 = vmatpush1.msra.mxu0 0.0
        %1406 = vmatprep.subr.mxu0 0.0
        %1407 = vmatpush1.msra.mxu0 0.0
        %1408 = vmatprep.subr.mxu0 0.0
        %1409 = vmatpush1.msra.mxu0 0.0
        %1410 = vmatprep.subr.mxu0 0.0
        %1411 = vmatpush1.msra.mxu0 0.0
        %1412 = vmatprep.subr.mxu0 0.0
        %1413 = vmatpush1.msra.mxu0 0.0
        %1414 = vmatprep.subr.mxu0 0.0
        %1415 = vmatpush1.msra.mxu0 0.0
        %1416 = vmatprep.subr.mxu0 0.0
        %1417 = vmatpush1.msra.mxu0 0.0
        %1418 = vmatprep.mubr.f32.mxu0 0.0
        %1419 = vmatmul.mubr.f32.gmra.mrb[0].mxu0 %v1349
        %v1420 = vpop.f32.mrb[0].mxu0
        %v1421 = vadd.f32 0.0, %v1420
        %v1422 = vpop.f32.mrb[0].mxu0
        %1423 = vmatprep.mubr.f32.mxu0 0.0
        %1424 = vmatmul.mubr.f32.gmra.mrb[0].mxu0 %v1352
        %v1425 = vpop.f32.mrb[0].mxu0
        %v1426 = vadd.f32 0.0, %v1425
        %v1427 = vpop.f32.mrb[0].mxu0
        %1428 = vdwg.mxu0
        %v1429 = vadd.f32 %v1339, %v1421
        %v1430 = vadd.f32 %v1343, %v1426
        %v1431 = vld [vmem:[#allocation16] sm:$0x1]
        %v1433 = vlaneseq
        %v1434 = vshrl.u32 %v1433, 7
        %v1435 = vsub.s32 0, %v1434
        %v1436 = vrot.slane %v1431, %v1435
        %v1438 = vadd.f32 %v1429, %v1436
        %v1439 = vadd.f32 %v1430, %v1436
        %v1440 = vld [vmem:[#allocation17] sm:$0x1]
        %v1441 = vld [vmem:[#allocation19] sm:$0x1]
        %v1442 = vsel %vm1211, %v1438, 0.0
        %1443 = vadd.xlane.f32.xlu0 %v1442
        %v1444 = vpop.xlane.xlu0 %1443
        %v1445 = vsel %vm1211, %v1439, 0.0
        %1446 = vadd.xlane.f32.xlu0 %v1445
        %v1447 = vpop.xlane.xlu0 %1446
        %v1448 = vmul.f32 %v1444, %v1218
        %v1449 = vmul.f32 %v1447, %v1218
        %v1450 = vsub.f32 %v1438, %v1448
        %v1451 = vsub.f32 %v1439, %v1449
        %v1452 = vmul.f32 %v1450, %v1450
        %v1453 = vmul.f32 %v1451, %v1451
        %v1454 = vsel %vm1211, %v1452, 0.0
        %1455 = vadd.xlane.f32.xlu0 %v1454
        %v1456 = vpop.xlane.xlu0 %1455
        %v1457 = vsel %vm1211, %v1453, 0.0
        %1458 = vadd.xlane.f32.xlu0 %v1457
        %v1459 = vpop.xlane.xlu0 %1458
        %v1460 = vmul.f32 %v1456, %v1218
        %v1461 = vmul.f32 %v1459, %v1218
        %v1462 = vadd.f32 %v1460, 1e-05
        %v1463 = vadd.f32 %v1461, 1e-05
        %v1464 = vrsqrt.pop %v1462
        %v1465 = vrsqrt.pop %v1463
        %v1466 = vmul.f32 %v1450, %v1464
        %v1467 = vmul.f32 %v1451, %v1465
        %v1469 = vlaneseq
        %v1470 = vshrl.u32 %v1469, 7
        %v1471 = vsub.s32 0, %v1470
        %v1472 = vrot.slane %v1440, %v1471
        %v1474 = vmul.f32 %v1466, %v1472
        %v1475 = vmul.f32 %v1467, %v1472
        %v1477 = vlaneseq
        %v1478 = vshrl.u32 %v1477, 7
        %v1479 = vsub.s32 0, %v1478
        %v1480 = vrot.slane %v1441, %v1479
        %v1482 = vadd.f32 %v1474, %v1480
        %v1483 = vadd.f32 %v1475, %v1480
        %v1484 = vmax.f32 %v1482, 0.0
        %v1485 = vmax.f32 %v1483, 0.0
        %v1486 = vld [vmem:[#allocation20] sm:$0x1]
        %v1487 = vld [vmem:[#allocation22] sm:$0x1]
        %v1488 = vsel %vm1211, %v1484, 0.0
        %1489 = vadd.xlane.f32.xlu0 %v1488
        %v1490 = vpop.xlane.xlu0 %1489
        %v1491 = vsel %vm1211, %v1485, 0.0
        %1492 = vadd.xlane.f32.xlu0 %v1491
        %v1493 = vpop.xlane.xlu0 %1492
        %v1494 = vmul.f32 %v1490, %v1218
        %v1495 = vmul.f32 %v1493, %v1218
        %v1496 = vsub.f32 %v1484, %v1494
        %v1497 = vsub.f32 %v1485, %v1495
        %v1498 = vmul.f32 %v1496, %v1496
        %v1499 = vmul.f32 %v1497, %v1497
        %v1500 = vsel %vm1211, %v1498, 0.0
        %1501 = vadd.xlane.f32.xlu0 %v1500
        %v1502 = vpop.xlane.xlu0 %1501
        %v1503 = vsel %vm1211, %v1499, 0.0
        %1504 = vadd.xlane.f32.xlu0 %v1503
        %v1505 = vpop.xlane.xlu0 %1504
        %v1506 = vmul.f32 %v1502, %v1218
        %v1507 = vmul.f32 %v1505, %v1218
        %v1508 = vadd.f32 %v1506, 1e-05
        %v1509 = vadd.f32 %v1507, 1e-05
        %v1510 = vrsqrt.pop %v1508
        %v1511 = vrsqrt.pop %v1509
        %v1512 = vmul.f32 %v1496, %v1510
        %v1513 = vmul.f32 %v1497, %v1511
        %v1515 = vlaneseq
        %v1516 = vshrl.u32 %v1515, 7
        %v1517 = vsub.s32 0, %v1516
        %v1518 = vrot.slane %v1486, %v1517
        %v1520 = vmul.f32 %v1512, %v1518
        %v1521 = vmul.f32 %v1513, %v1518
        %v1523 = vlaneseq
        %v1524 = vshrl.u32 %v1523, 7
        %v1525 = vsub.s32 0, %v1524
        %v1526 = vrot.slane %v1487, %v1525
        %v1528 = vadd.f32 %v1520, %v1526
        %v1529 = vadd.f32 %v1521, %v1526
        %v1530 = vld [vmem:[%s14] sm:$0xff]
        %v1531 = vld [vmem:[%s14 + $0x8] sm:$0xff]
        %v1532 = vld [vmem:[%s14 + $0x10] sm:$0xff]
        %v1533 = vld [vmem:[%s14 + $0x18] sm:$0xff]
        %v1534 = vld [vmem:[#allocation23] sm:$0x1]
        %v1536 = vlaneseq
        %v1537 = vshrl.u32 %v1536, 7
        %v1538 = vsub.s32 0, %v1537
        %v1539 = vrot.slane %v1534, %v1538
        %v1542 = vsel %vm1211, %v1528, 0
        %v1545 = vsel %vm1211, %v1529, 0
        %1547 = vmatprep.subr.mxu0 0.0
        %1548 = vmatpush1.msra.mxu0 %v1530
        %1549 = vmatprep.subr.mxu0 0.0
        %1550 = vmatpush1.msra.mxu0 %v1531
        %1551 = vmatprep.subr.mxu0 0.0
        %1552 = vmatpush1.msra.mxu0 %v1532
        %1553 = vmatprep.subr.mxu0 0.0
        %1554 = vmatpush1.msra.mxu0 %v1533
        %1555 = vmatprep.subr.mxu0 0.0
        %1556 = vmatpush1.msra.mxu0 0.0
        %1557 = vmatprep.subr.mxu0 0.0
        %1558 = vmatpush1.msra.mxu0 0.0
        %1559 = vmatprep.subr.mxu0 0.0
        %1560 = vmatpush1.msra.mxu0 0.0
        %1561 = vmatprep.subr.mxu0 0.0
        %1562 = vmatpush1.msra.mxu0 0.0
        %1563 = vmatprep.subr.mxu0 0.0
        %1564 = vmatpush1.msra.mxu0 0.0
        %1565 = vmatprep.subr.mxu0 0.0
        %1566 = vmatpush1.msra.mxu0 0.0
        %1567 = vmatprep.subr.mxu0 0.0
        %1568 = vmatpush1.msra.mxu0 0.0
        %1569 = vmatprep.subr.mxu0 0.0
        %1570 = vmatpush1.msra.mxu0 0.0
        %1571 = vmatprep.subr.mxu0 0.0
        %1572 = vmatpush1.msra.mxu0 0.0
        %1573 = vmatprep.subr.mxu0 0.0
        %1574 = vmatpush1.msra.mxu0 0.0
        %1575 = vmatprep.subr.mxu0 0.0
        %1576 = vmatpush1.msra.mxu0 0.0
        %1577 = vmatprep.subr.mxu0 0.0
        %1578 = vmatpush1.msra.mxu0 0.0
        %1579 = vmatprep.subr.mxu0 0.0
        %1580 = vmatpush1.msra.mxu0 0.0
        %1581 = vmatprep.subr.mxu0 0.0
        %1582 = vmatpush1.msra.mxu0 0.0
        %1583 = vmatprep.subr.mxu0 0.0
        %1584 = vmatpush1.msra.mxu0 0.0
        %1585 = vmatprep.subr.mxu0 0.0
        %1586 = vmatpush1.msra.mxu0 0.0
        %1587 = vmatprep.subr.mxu0 0.0
        %1588 = vmatpush1.msra.mxu0 0.0
        %1589 = vmatprep.subr.mxu0 0.0
        %1590 = vmatpush1.msra.mxu0 0.0
        %1591 = vmatprep.subr.mxu0 0.0
        %1592 = vmatpush1.msra.mxu0 0.0
        %1593 = vmatprep.subr.mxu0 0.0
        %1594 = vmatpush1.msra.mxu0 0.0
        %1595 = vmatprep.subr.mxu0 0.0
        %1596 = vmatpush1.msra.mxu0 0.0
        %1597 = vmatprep.subr.mxu0 0.0
        %1598 = vmatpush1.msra.mxu0 0.0
        %1599 = vmatprep.subr.mxu0 0.0
        %1600 = vmatpush1.msra.mxu0 0.0
        %1601 = vmatprep.subr.mxu0 0.0
        %1602 = vmatpush1.msra.mxu0 0.0
        %1603 = vmatprep.subr.mxu0 0.0
        %1604 = vmatpush1.msra.mxu0 0.0
        %1605 = vmatprep.subr.mxu0 0.0
        %1606 = vmatpush1.msra.mxu0 0.0
        %1607 = vmatprep.subr.mxu0 0.0
        %1608 = vmatpush1.msra.mxu0 0.0
        %1609 = vmatprep.subr.mxu0 0.0
        %1610 = vmatpush1.msra.mxu0 0.0
        %1611 = vmatprep.mubr.f32.mxu0 0.0
        %1612 = vmatmul.mubr.f32.gmra.mrb[0].mxu0 %v1542
        %v1613 = vpop.f32.mrb[0].mxu0
        %v1614 = vadd.f32 %v1539, %v1613
        %v1615 = vpop.f32.mrb[0].mxu0
        %1616 = vmatprep.mubr.f32.mxu0 0.0
        %1617 = vmatmul.mubr.f32.gmra.mrb[0].mxu0 %v1545
        %v1618 = vpop.f32.mrb[0].mxu0
        %v1619 = vadd.f32 %v1539, %v1618
        %v1620 = vpop.f32.mrb[0].mxu0
        %1621 = vdwg.mxu0
        %v1622 = vld [vmem:[%s16] sm:$0xff]
        %v1623 = vld [vmem:[%s16 + $0x8] sm:$0xff]
        %v1624 = vld [vmem:[%s16 + $0x10] sm:$0xff]
        %v1625 = vld [vmem:[%s16 + $0x18] sm:$0xff]
        %v1626 = vld [vmem:[#allocation25] sm:$0x1]
        %v1628 = vlaneseq
        %v1629 = vshrl.u32 %v1628, 7
        %v1630 = vsub.s32 0, %v1629
        %v1631 = vrot.slane %v1626, %v1630
        %1633 = vmatprep.subr.mxu0 0.0
        %1634 = vmatpush1.msra.mxu0 %v1622
        %1635 = vmatprep.subr.mxu0 0.0
        %1636 = vmatpush1.msra.mxu0 %v1623
        %1637 = vmatprep.subr.mxu0 0.0
        %1638 = vmatpush1.msra.mxu0 %v1624
        %1639 = vmatprep.subr.mxu0 0.0
        %1640 = vmatpush1.msra.mxu0 %v1625
        %1641 = vmatprep.subr.mxu0 0.0
        %1642 = vmatpush1.msra.mxu0 0.0
        %1643 = vmatprep.subr.mxu0 0.0
        %1644 = vmatpush1.msra.mxu0 0.0
        %1645 = vmatprep.subr.mxu0 0.0
        %1646 = vmatpush1.msra.mxu0 0.0
        %1647 = vmatprep.subr.mxu0 0.0
        %1648 = vmatpush1.msra.mxu0 0.0
        %1649 = vmatprep.subr.mxu0 0.0
        %1650 = vmatpush1.msra.mxu0 0.0
        %1651 = vmatprep.subr.mxu0 0.0
        %1652 = vmatpush1.msra.mxu0 0.0
        %1653 = vmatprep.subr.mxu0 0.0
        %1654 = vmatpush1.msra.mxu0 0.0
        %1655 = vmatprep.subr.mxu0 0.0
        %1656 = vmatpush1.msra.mxu0 0.0
        %1657 = vmatprep.subr.mxu0 0.0
        %1658 = vmatpush1.msra.mxu0 0.0
        %1659 = vmatprep.subr.mxu0 0.0
        %1660 = vmatpush1.msra.mxu0 0.0
        %1661 = vmatprep.subr.mxu0 0.0
        %1662 = vmatpush1.msra.mxu0 0.0
        %1663 = vmatprep.subr.mxu0 0.0
        %1664 = vmatpush1.msra.mxu0 0.0
        %1665 = vmatprep.subr.mxu0 0.0
        %1666 = vmatpush1.msra.mxu0 0.0
        %1667 = vmatprep.subr.mxu0 0.0
        %1668 = vmatpush1.msra.mxu0 0.0
        %1669 = vmatprep.subr.mxu0 0.0
        %1670 = vmatpush1.msra.mxu0 0.0
        %1671 = vmatprep.subr.mxu0 0.0
        %1672 = vmatpush1.msra.mxu0 0.0
        %1673 = vmatprep.subr.mxu0 0.0
        %1674 = vmatpush1.msra.mxu0 0.0
        %1675 = vmatprep.subr.mxu0 0.0
        %1676 = vmatpush1.msra.mxu0 0.0
        %1677 = vmatprep.subr.mxu0 0.0
        %1678 = vmatpush1.msra.mxu0 0.0
        %1679 = vmatprep.subr.mxu0 0.0
        %1680 = vmatpush1.msra.mxu0 0.0
        %1681 = vmatprep.subr.mxu0 0.0
        %1682 = vmatpush1.msra.mxu0 0.0
        %1683 = vmatprep.subr.mxu0 0.0
        %1684 = vmatpush1.msra.mxu0 0.0
        %1685 = vmatprep.subr.mxu0 0.0
        %1686 = vmatpush1.msra.mxu0 0.0
        %1687 = vmatprep.subr.mxu0 0.0
        %1688 = vmatpush1.msra.mxu0 0.0
        %1689 = vmatprep.subr.mxu0 0.0
        %1690 = vmatpush1.msra.mxu0 0.0
        %1691 = vmatprep.subr.mxu0 0.0
        %1692 = vmatpush1.msra.mxu0 0.0
        %1693 = vmatprep.subr.mxu0 0.0
        %1694 = vmatpush1.msra.mxu0 0.0
        %1695 = vmatprep.subr.mxu0 0.0
        %1696 = vmatpush1.msra.mxu0 0.0
        %1697 = vmatprep.mubr.f32.mxu0 0.0
        %1698 = vmatmul.mubr.f32.gmra.mrb[0].mxu0 %v1542
        %v1699 = vpop.f32.mrb[0].mxu0
        %v1700 = vadd.f32 %v1631, %v1699
        %v1701 = vpop.f32.mrb[0].mxu0
        %1702 = vmatprep.mubr.f32.mxu0 0.0
        %1703 = vmatmul.mubr.f32.gmra.mrb[0].mxu0 %v1545
        %v1704 = vpop.f32.mrb[0].mxu0
        %v1705 = vadd.f32 %v1631, %v1704
        %v1706 = vpop.f32.mrb[0].mxu0
        %1707 = vdwg.mxu0
        %v1708 = vld [vmem:[#allocation26] sm:$0xff]
        %v1709 = vld [vmem:[#allocation26 + $0x8] sm:$0xff]
        %v1710 = vld [vmem:[#allocation26 + $0x10] sm:$0xff]
        %v1711 = vld [vmem:[#allocation26 + $0x18] sm:$0xff]
        %v1712 = vld [vmem:[#allocation28] sm:$0x1]
        %v1714 = vlaneseq
        %v1715 = vshrl.u32 %v1714, 7
        %v1716 = vsub.s32 0, %v1715
        %v1717 = vrot.slane %v1712, %v1716
        %1719 = vmatprep.subr.mxu0 0.0
        %1720 = vmatpush1.msra.mxu0 %v1708
        %1721 = vmatprep.subr.mxu0 0.0
        %1722 = vmatpush1.msra.mxu0 %v1709
        %1723 = vmatprep.subr.mxu0 0.0
        %1724 = vmatpush1.msra.mxu0 %v1710
        %1725 = vmatprep.subr.mxu0 0.0
        %1726 = vmatpush1.msra.mxu0 %v1711
        %1727 = vmatprep.subr.mxu0 0.0
        %1728 = vmatpush1.msra.mxu0 0.0
        %1729 = vmatprep.subr.mxu0 0.0
        %1730 = vmatpush1.msra.mxu0 0.0
        %1731 = vmatprep.subr.mxu0 0.0
        %1732 = vmatpush1.msra.mxu0 0.0
        %1733 = vmatprep.subr.mxu0 0.0
        %1734 = vmatpush1.msra.mxu0 0.0
        %1735 = vmatprep.subr.mxu0 0.0
        %1736 = vmatpush1.msra.mxu0 0.0
        %1737 = vmatprep.subr.mxu0 0.0
        %1738 = vmatpush1.msra.mxu0 0.0
        %1739 = vmatprep.subr.mxu0 0.0
        %1740 = vmatpush1.msra.mxu0 0.0
        %1741 = vmatprep.subr.mxu0 0.0
        %1742 = vmatpush1.msra.mxu0 0.0
        %1743 = vmatprep.subr.mxu0 0.0
        %1744 = vmatpush1.msra.mxu0 0.0
        %1745 = vmatprep.subr.mxu0 0.0
        %1746 = vmatpush1.msra.mxu0 0.0
        %1747 = vmatprep.subr.mxu0 0.0
        %1748 = vmatpush1.msra.mxu0 0.0
        %1749 = vmatprep.subr.mxu0 0.0
        %1750 = vmatpush1.msra.mxu0 0.0
        %1751 = vmatprep.subr.mxu0 0.0
        %1752 = vmatpush1.msra.mxu0 0.0
        %1753 = vmatprep.subr.mxu0 0.0
        %1754 = vmatpush1.msra.mxu0 0.0
        %1755 = vmatprep.subr.mxu0 0.0
        %1756 = vmatpush1.msra.mxu0 0.0
        %1757 = vmatprep.subr.mxu0 0.0
        %1758 = vmatpush1.msra.mxu0 0.0
        %1759 = vmatprep.subr.mxu0 0.0
        %1760 = vmatpush1.msra.mxu0 0.0
        %1761 = vmatprep.subr.mxu0 0.0
        %1762 = vmatpush1.msra.mxu0 0.0
        %1763 = vmatprep.subr.mxu0 0.0
        %1764 = vmatpush1.msra.mxu0 0.0
        %1765 = vmatprep.subr.mxu0 0.0
        %1766 = vmatpush1.msra.mxu0 0.0
        %1767 = vmatprep.subr.mxu0 0.0
        %1768 = vmatpush1.msra.mxu0 0.0
        %1769 = vmatprep.subr.mxu0 0.0
        %1770 = vmatpush1.msra.mxu0 0.0
        %1771 = vmatprep.subr.mxu0 0.0
        %1772 = vmatpush1.msra.mxu0 0.0
        %1773 = vmatprep.subr.mxu0 0.0
        %1774 = vmatpush1.msra.mxu0 0.0
        %1775 = vmatprep.subr.mxu0 0.0
        %1776 = vmatpush1.msra.mxu0 0.0
        %1777 = vmatprep.subr.mxu0 0.0
        %1778 = vmatpush1.msra.mxu0 0.0
        %1779 = vmatprep.subr.mxu0 0.0
        %1780 = vmatpush1.msra.mxu0 0.0
        %1781 = vmatprep.subr.mxu0 0.0
        %1782 = vmatpush1.msra.mxu0 0.0
        %1783 = vmatprep.mubr.f32.mxu0 0.0
        %1784 = vmatmul.mubr.f32.gmra.mrb[0].mxu0 %v1542
        %v1785 = vpop.f32.mrb[0].mxu0
        %v1786 = vadd.f32 %v1717, %v1785
        %v1787 = vpop.f32.mrb[0].mxu0
        %1788 = vmatprep.mubr.f32.mxu0 0.0
        %1789 = vmatmul.mubr.f32.gmra.mrb[0].mxu0 %v1545
        %v1790 = vpop.f32.mrb[0].mxu0
        %v1791 = vadd.f32 %v1717, %v1790
        %v1792 = vpop.f32.mrb[0].mxu0
        %1793 = vdwg.mxu0
        %vm1794 = vcmask 64512
        %v1796 = vsel %vm1794, %v1614, 0
        %v1799 = vsel %vm1794, %v1700, 0
        %1801 = vmatprep.subr.mxu0 0.0
        %1802 = vmatpush1.xpose.msra.mxu0 %v1799
        %1803 = vmatprep.subr.mxu0 0.0
        %1804 = vmatpush1.xpose.msra.mxu0 0.0
        %1805 = vmatprep.subr.mxu0 0.0
        %1806 = vmatpush1.xpose.msra.mxu0 0.0
        %1807 = vmatprep.subr.mxu0 0.0
        %1808 = vmatpush1.xpose.msra.mxu0 0.0
        %1809 = vmatprep.subr.mxu0 0.0
        %1810 = vmatpush1.xpose.msra.mxu0 0.0
        %1811 = vmatprep.subr.mxu0 0.0
        %1812 = vmatpush1.xpose.msra.mxu0 0.0
        %1813 = vmatprep.subr.mxu0 0.0
        %1814 = vmatpush1.xpose.msra.mxu0 0.0
        %1815 = vmatprep.subr.mxu0 0.0
        %1816 = vmatpush1.xpose.msra.mxu0 0.0
        %1817 = vmatprep.subr.mxu0 0.0
        %1818 = vmatpush1.xpose.msra.mxu0 0.0
        %1819 = vmatprep.subr.mxu0 0.0
        %1820 = vmatpush1.xpose.msra.mxu0 0.0
        %1821 = vmatprep.subr.mxu0 0.0
        %1822 = vmatpush1.xpose.msra.mxu0 0.0
        %1823 = vmatprep.subr.mxu0 0.0
        %1824 = vmatpush1.xpose.msra.mxu0 0.0
        %1825 = vmatprep.subr.mxu0 0.0
        %1826 = vmatpush1.xpose.msra.mxu0 0.0
        %1827 = vmatprep.subr.mxu0 0.0
        %1828 = vmatpush1.xpose.msra.mxu0 0.0
        %1829 = vmatprep.subr.mxu0 0.0
        %1830 = vmatpush1.xpose.msra.mxu0 0.0
        %1831 = vmatprep.subr.mxu0 0.0
        %1832 = vmatpush1.xpose.msra.mxu0 0.0
        %1833 = vmatprep.subr.mxu0 0.0
        %1834 = vmatpush1.xpose.msra.mxu0 0.0
        %1835 = vmatprep.subr.mxu0 0.0
        %1836 = vmatpush1.xpose.msra.mxu0 0.0
        %1837 = vmatprep.subr.mxu0 0.0
        %1838 = vmatpush1.xpose.msra.mxu0 0.0
        %1839 = vmatprep.subr.mxu0 0.0
        %1840 = vmatpush1.xpose.msra.mxu0 0.0
        %1841 = vmatprep.subr.mxu0 0.0
        %1842 = vmatpush1.xpose.msra.mxu0 0.0
        %1843 = vmatprep.subr.mxu0 0.0
        %1844 = vmatpush1.xpose.msra.mxu0 0.0
        %1845 = vmatprep.subr.mxu0 0.0
        %1846 = vmatpush1.xpose.msra.mxu0 0.0
        %1847 = vmatprep.subr.mxu0 0.0
        %1848 = vmatpush1.xpose.msra.mxu0 0.0
        %1849 = vmatprep.subr.mxu0 0.0
        %1850 = vmatpush1.xpose.msra.mxu0 0.0
        %1851 = vmatprep.subr.mxu0 0.0
        %1852 = vmatpush1.xpose.msra.mxu0 0.0
        %1853 = vmatprep.subr.mxu0 0.0
        %1854 = vmatpush1.xpose.msra.mxu0 0.0
        %1855 = vmatprep.subr.mxu0 0.0
        %1856 = vmatpush1.xpose.msra.mxu0 0.0
        %1857 = vmatprep.subr.mxu0 0.0
        %1858 = vmatpush1.xpose.msra.mxu0 0.0
        %1859 = vmatprep.subr.mxu0 0.0
        %1860 = vmatpush1.xpose.msra.mxu0 0.0
        %1861 = vmatprep.subr.mxu0 0.0
        %1862 = vmatpush1.xpose.msra.mxu0 0.0
        %1863 = vmatprep.subr.mxu0 0.0
        %1864 = vmatpush1.xpose.msra.mxu0 0.0
        %1865 = vmatprep.mubr.f32.mxu0 0.0
        %1866 = vmatmul.mubr.f32.gmra.mrb[0].mxu0 %v1796
        %v1867 = vpop.f32.mrb[0].mxu0
        %v1868 = vadd.f32 0.0, %v1867
        %v1869 = vpop.f32.mrb[0].mxu0
        %1870 = vdwg.mxu0
        %v1872 = vsel %vm1794, %v1619, 0
        %v1875 = vsel %vm1794, %v1705, 0
        %1877 = vmatprep.subr.mxu0 0.0
        %1878 = vmatpush1.xpose.msra.mxu0 %v1875
        %1879 = vmatprep.subr.mxu0 0.0
        %1880 = vmatpush1.xpose.msra.mxu0 0.0
        %1881 = vmatprep.subr.mxu0 0.0
        %1882 = vmatpush1.xpose.msra.mxu0 0.0
        %1883 = vmatprep.subr.mxu0 0.0
        %1884 = vmatpush1.xpose.msra.mxu0 0.0
        %1885 = vmatprep.subr.mxu0 0.0
        %1886 = vmatpush1.xpose.msra.mxu0 0.0
        %1887 = vmatprep.subr.mxu0 0.0
        %1888 = vmatpush1.xpose.msra.mxu0 0.0
        %1889 = vmatprep.subr.mxu0 0.0
        %1890 = vmatpush1.xpose.msra.mxu0 0.0
        %1891 = vmatprep.subr.mxu0 0.0
        %1892 = vmatpush1.xpose.msra.mxu0 0.0
        %1893 = vmatprep.subr.mxu0 0.0
        %1894 = vmatpush1.xpose.msra.mxu0 0.0
        %1895 = vmatprep.subr.mxu0 0.0
        %1896 = vmatpush1.xpose.msra.mxu0 0.0
        %1897 = vmatprep.subr.mxu0 0.0
        %1898 = vmatpush1.xpose.msra.mxu0 0.0
        %1899 = vmatprep.subr.mxu0 0.0
        %1900 = vmatpush1.xpose.msra.mxu0 0.0
        %1901 = vmatprep.subr.mxu0 0.0
        %1902 = vmatpush1.xpose.msra.mxu0 0.0
        %1903 = vmatprep.subr.mxu0 0.0
        %1904 = vmatpush1.xpose.msra.mxu0 0.0
        %1905 = vmatprep.subr.mxu0 0.0
        %1906 = vmatpush1.xpose.msra.mxu0 0.0
        %1907 = vmatprep.subr.mxu0 0.0
        %1908 = vmatpush1.xpose.msra.mxu0 0.0
        %1909 = vmatprep.subr.mxu0 0.0
        %1910 = vmatpush1.xpose.msra.mxu0 0.0
        %1911 = vmatprep.subr.mxu0 0.0
        %1912 = vmatpush1.xpose.msra.mxu0 0.0
        %1913 = vmatprep.subr.mxu0 0.0
        %1914 = vmatpush1.xpose.msra.mxu0 0.0
        %1915 = vmatprep.subr.mxu0 0.0
        %1916 = vmatpush1.xpose.msra.mxu0 0.0
        %1917 = vmatprep.subr.mxu0 0.0
        %1918 = vmatpush1.xpose.msra.mxu0 0.0
        %1919 = vmatprep.subr.mxu0 0.0
        %1920 = vmatpush1.xpose.msra.mxu0 0.0
        %1921 = vmatprep.subr.mxu0 0.0
        %1922 = vmatpush1.xpose.msra.mxu0 0.0
        %1923 = vmatprep.subr.mxu0 0.0
        %1924 = vmatpush1.xpose.msra.mxu0 0.0
        %1925 = vmatprep.subr.mxu0 0.0
        %1926 = vmatpush1.xpose.msra.mxu0 0.0
        %1927 = vmatprep.subr.mxu0 0.0
        %1928 = vmatpush1.xpose.msra.mxu0 0.0
        %1929 = vmatprep.subr.mxu0 0.0
        %1930 = vmatpush1.xpose.msra.mxu0 0.0
        %1931 = vmatprep.subr.mxu0 0.0
        %1932 = vmatpush1.xpose.msra.mxu0 0.0
        %1933 = vmatprep.subr.mxu0 0.0
        %1934 = vmatpush1.xpose.msra.mxu0 0.0
        %1935 = vmatprep.subr.mxu0 0.0
        %1936 = vmatpush1.xpose.msra.mxu0 0.0
        %1937 = vmatprep.subr.mxu0 0.0
        %1938 = vmatpush1.xpose.msra.mxu0 0.0
        %1939 = vmatprep.subr.mxu0 0.0
        %1940 = vmatpush1.xpose.msra.mxu0 0.0
        %1941 = vmatprep.mubr.f32.mxu0 0.0
        %1942 = vmatmul.mubr.f32.gmra.mrb[0].mxu0 %v1872
        %v1943 = vpop.f32.mrb[0].mxu0
        %v1944 = vadd.f32 0.0, %v1943
        %v1945 = vpop.f32.mrb[0].mxu0
        %1946 = vdwg.mxu0
        %v1947 = vmul.f32 %v1868, 0.35355338
        %v1948 = vmul.f32 %v1944, 0.35355338
        %v1949 = vsel %vm1794, %v1947, -inf
        %1950 = vmax.xlane.f32.xlu0 %v1949
        %v1951 = vpop.xlane.xlu0 %1950
        %v1952 = vsel %vm1794, %v1948, -inf
        %1953 = vmax.xlane.f32.xlu0 %v1952
        %v1954 = vpop.xlane.xlu0 %1953
        %v1955 = vsub.f32 %v1947, %v1951
        %v1956 = vsub.f32 %v1948, %v1954
        %v1957 = vmul.f32 %v1955, 1.442695
        %v1958 = vpow.pop %v1957
        %v1959 = vmul.f32 %v1956, 1.442695
        %v1960 = vpow.pop %v1959
        %v1961 = vsel %vm1794, %v1958, 0.0
        %1962 = vadd.xlane.f32.xlu0 %v1961
        %v1963 = vpop.xlane.xlu0 %1962
        %v1964 = vsel %vm1794, %v1960, 0.0
        %1965 = vadd.xlane.f32.xlu0 %v1964
        %v1966 = vpop.xlane.xlu0 %1965
        %v1967 = vrcp.pop %v1963
        %v1968 = vrcp.pop %v1966
        %v1969 = vmul.f32 %v1958, %v1967
        %v1970 = vmul.f32 %v1960, %v1968
        %v1972 = vsel %vm1794, %v1969, 0
        %1974 = vmatprep.subr.mxu0 0.0
        %1975 = vmatpush1.msra.mxu0 %v1786
        %1976 = vmatprep.subr.mxu0 0.0
        %1977 = vmatpush1.msra.mxu0 0.0
        %1978 = vmatprep.subr.mxu0 0.0
        %1979 = vmatpush1.msra.mxu0 0.0
        %1980 = vmatprep.subr.mxu0 0.0
        %1981 = vmatpush1.msra.mxu0 0.0
        %1982 = vmatprep.subr.mxu0 0.0
        %1983 = vmatpush1.msra.mxu0 0.0
        %1984 = vmatprep.subr.mxu0 0.0
        %1985 = vmatpush1.msra.mxu0 0.0
        %1986 = vmatprep.subr.mxu0 0.0
        %1987 = vmatpush1.msra.mxu0 0.0
        %1988 = vmatprep.subr.mxu0 0.0
        %1989 = vmatpush1.msra.mxu0 0.0
        %1990 = vmatprep.subr.mxu0 0.0
        %1991 = vmatpush1.msra.mxu0 0.0
        %1992 = vmatprep.subr.mxu0 0.0
        %1993 = vmatpush1.msra.mxu0 0.0
        %1994 = vmatprep.subr.mxu0 0.0
        %1995 = vmatpush1.msra.mxu0 0.0
        %1996 = vmatprep.subr.mxu0 0.0
        %1997 = vmatpush1.msra.mxu0 0.0
        %1998 = vmatprep.subr.mxu0 0.0
        %1999 = vmatpush1.msra.mxu0 0.0
        %2000 = vmatprep.subr.mxu0 0.0
        %2001 = vmatpush1.msra.mxu0 0.0
        %2002 = vmatprep.subr.mxu0 0.0
        %2003 = vmatpush1.msra.mxu0 0.0
        %2004 = vmatprep.subr.mxu0 0.0
        %2005 = vmatpush1.msra.mxu0 0.0
        %2006 = vmatprep.subr.mxu0 0.0
        %2007 = vmatpush1.msra.mxu0 0.0
        %2008 = vmatprep.subr.mxu0 0.0
        %2009 = vmatpush1.msra.mxu0 0.0
        %2010 = vmatprep.subr.mxu0 0.0
        %2011 = vmatpush1.msra.mxu0 0.0
        %2012 = vmatprep.subr.mxu0 0.0
        %2013 = vmatpush1.msra.mxu0 0.0
        %2014 = vmatprep.subr.mxu0 0.0
        %2015 = vmatpush1.msra.mxu0 0.0
        %2016 = vmatprep.subr.mxu0 0.0
        %2017 = vmatpush1.msra.mxu0 0.0
        %2018 = vmatprep.subr.mxu0 0.0
        %2019 = vmatpush1.msra.mxu0 0.0
        %2020 = vmatprep.subr.mxu0 0.0
        %2021 = vmatpush1.msra.mxu0 0.0
        %2022 = vmatprep.subr.mxu0 0.0
        %2023 = vmatpush1.msra.mxu0 0.0
        %2024 = vmatprep.subr.mxu0 0.0
        %2025 = vmatpush1.msra.mxu0 0.0
        %2026 = vmatprep.subr.mxu0 0.0
        %2027 = vmatpush1.msra.mxu0 0.0
        %2028 = vmatprep.subr.mxu0 0.0
        %2029 = vmatpush1.msra.mxu0 0.0
        %2030 = vmatprep.subr.mxu0 0.0
        %2031 = vmatpush1.msra.mxu0 0.0
        %2032 = vmatprep.subr.mxu0 0.0
        %2033 = vmatpush1.msra.mxu0 0.0
        %2034 = vmatprep.subr.mxu0 0.0
        %2035 = vmatpush1.msra.mxu0 0.0
        %2036 = vmatprep.subr.mxu0 0.0
        %2037 = vmatpush1.msra.mxu0 0.0
        %2038 = vmatprep.mubr.f32.mxu0 0.0
        %2039 = vmatmul.mubr.f32.gmra.mrb[0].mxu0 %v1972
        %v2040 = vpop.f32.mrb[0].mxu0
        %v2041 = vadd.f32 0.0, %v2040
        %v2042 = vpop.f32.mrb[0].mxu0
        %2043 = vdwg.mxu0
        %v2045 = vsel %vm1794, %v1970, 0
        %2047 = vmatprep.subr.mxu0 0.0
        %2048 = vmatpush1.msra.mxu0 %v1791
        %2049 = vmatprep.subr.mxu0 0.0
        %2050 = vmatpush1.msra.mxu0 0.0
        %2051 = vmatprep.subr.mxu0 0.0
        %2052 = vmatpush1.msra.mxu0 0.0
        %2053 = vmatprep.subr.mxu0 0.0
        %2054 = vmatpush1.msra.mxu0 0.0
        %2055 = vmatprep.subr.mxu0 0.0
        %2056 = vmatpush1.msra.mxu0 0.0
        %2057 = vmatprep.subr.mxu0 0.0
        %2058 = vmatpush1.msra.mxu0 0.0
        %2059 = vmatprep.subr.mxu0 0.0
        %2060 = vmatpush1.msra.mxu0 0.0
        %2061 = vmatprep.subr.mxu0 0.0
        %2062 = vmatpush1.msra.mxu0 0.0
        %2063 = vmatprep.subr.mxu0 0.0
        %2064 = vmatpush1.msra.mxu0 0.0
        %2065 = vmatprep.subr.mxu0 0.0
        %2066 = vmatpush1.msra.mxu0 0.0
        %2067 = vmatprep.subr.mxu0 0.0
        %2068 = vmatpush1.msra.mxu0 0.0
        %2069 = vmatprep.subr.mxu0 0.0
        %2070 = vmatpush1.msra.mxu0 0.0
        %2071 = vmatprep.subr.mxu0 0.0
        %2072 = vmatpush1.msra.mxu0 0.0
        %2073 = vmatprep.subr.mxu0 0.0
        %2074 = vmatpush1.msra.mxu0 0.0
        %2075 = vmatprep.subr.mxu0 0.0
        %2076 = vmatpush1.msra.mxu0 0.0
        %2077 = vmatprep.subr.mxu0 0.0
        %2078 = vmatpush1.msra.mxu0 0.0
        %2079 = vmatprep.subr.mxu0 0.0
        %2080 = vmatpush1.msra.mxu0 0.0
        %2081 = vmatprep.subr.mxu0 0.0
        %2082 = vmatpush1.msra.mxu0 0.0
        %2083 = vmatprep.subr.mxu0 0.0
        %2084 = vmatpush1.msra.mxu0 0.0
        %2085 = vmatprep.subr.mxu0 0.0
        %2086 = vmatpush1.msra.mxu0 0.0
        %2087 = vmatprep.subr.mxu0 0.0
        %2088 = vmatpush1.msra.mxu0 0.0
        %2089 = vmatprep.subr.mxu0 0.0
        %2090 = vmatpush1.msra.mxu0 0.0
        %2091 = vmatprep.subr.mxu0 0.0
        %2092 = vmatpush1.msra.mxu0 0.0
        %2093 = vmatprep.subr.mxu0 0.0
        %2094 = vmatpush1.msra.mxu0 0.0
        %2095 = vmatprep.subr.mxu0 0.0
        %2096 = vmatpush1.msra.mxu0 0.0
        %2097 = vmatprep.subr.mxu0 0.0
        %2098 = vmatpush1.msra.mxu0 0.0
        %2099 = vmatprep.subr.mxu0 0.0
        %2100 = vmatpush1.msra.mxu0 0.0
        %2101 = vmatprep.subr.mxu0 0.0
        %2102 = vmatpush1.msra.mxu0 0.0
        %2103 = vmatprep.subr.mxu0 0.0
        %2104 = vmatpush1.msra.mxu0 0.0
        %2105 = vmatprep.subr.mxu0 0.0
        %2106 = vmatpush1.msra.mxu0 0.0
        %2107 = vmatprep.subr.mxu0 0.0
        %2108 = vmatpush1.msra.mxu0 0.0
        %2109 = vmatprep.subr.mxu0 0.0
        %2110 = vmatpush1.msra.mxu0 0.0
        %2111 = vmatprep.mubr.f32.mxu0 0.0
        %2112 = vmatmul.mubr.f32.gmra.mrb[0].mxu0 %v2045
        %v2113 = vpop.f32.mrb[0].mxu0
        %v2114 = vadd.f32 0.0, %v2113
        %v2115 = vpop.f32.mrb[0].mxu0
        %2116 = vdwg.mxu0
        %2117 = vrot.lane.b32.xlu0 %v1614, 120
        %v2118 = vpop.permute.xlu0 %2117
        %2119 = vrot.lane.b32.xlu0 %v1700, 120
        %v2120 = vpop.permute.xlu0 %2119
        %v2121 = vsel %vm1794, %v2118, 0
        %v2123 = vsel %vm1794, %v2120, 0
        %2125 = vmatprep.subr.mxu0 0.0
        %2126 = vmatpush1.xpose.msra.mxu0 %v2123
        %2127 = vmatprep.subr.mxu0 0.0
        %2128 = vmatpush1.xpose.msra.mxu0 0.0
        %2129 = vmatprep.subr.mxu0 0.0
        %2130 = vmatpush1.xpose.msra.mxu0 0.0
        %2131 = vmatprep.subr.mxu0 0.0
        %2132 = vmatpush1.xpose.msra.mxu0 0.0
        %2133 = vmatprep.subr.mxu0 0.0
        %2134 = vmatpush1.xpose.msra.mxu0 0.0
        %2135 = vmatprep.subr.mxu0 0.0
        %2136 = vmatpush1.xpose.msra.mxu0 0.0
        %2137 = vmatprep.subr.mxu0 0.0
        %2138 = vmatpush1.xpose.msra.mxu0 0.0
        %2139 = vmatprep.subr.mxu0 0.0
        %2140 = vmatpush1.xpose.msra.mxu0 0.0
        %2141 = vmatprep.subr.mxu0 0.0
        %2142 = vmatpush1.xpose.msra.mxu0 0.0
        %2143 = vmatprep.subr.mxu0 0.0
        %2144 = vmatpush1.xpose.msra.mxu0 0.0
        %2145 = vmatprep.subr.mxu0 0.0
        %2146 = vmatpush1.xpose.msra.mxu0 0.0
        %2147 = vmatprep.subr.mxu0 0.0
        %2148 = vmatpush1.xpose.msra.mxu0 0.0
        %2149 = vmatprep.subr.mxu0 0.0
        %2150 = vmatpush1.xpose.msra.mxu0 0.0
        %2151 = vmatprep.subr.mxu0 0.0
        %2152 = vmatpush1.xpose.msra.mxu0 0.0
        %2153 = vmatprep.subr.mxu0 0.0
        %2154 = vmatpush1.xpose.msra.mxu0 0.0
        %2155 = vmatprep.subr.mxu0 0.0
        %2156 = vmatpush1.xpose.msra.mxu0 0.0
        %2157 = vmatprep.subr.mxu0 0.0
        %2158 = vmatpush1.xpose.msra.mxu0 0.0
        %2159 = vmatprep.subr.mxu0 0.0
        %2160 = vmatpush1.xpose.msra.mxu0 0.0
        %2161 = vmatprep.subr.mxu0 0.0
        %2162 = vmatpush1.xpose.msra.mxu0 0.0
        %2163 = vmatprep.subr.mxu0 0.0
        %2164 = vmatpush1.xpose.msra.mxu0 0.0
        %2165 = vmatprep.subr.mxu0 0.0
        %2166 = vmatpush1.xpose.msra.mxu0 0.0
        %2167 = vmatprep.subr.mxu0 0.0
        %2168 = vmatpush1.xpose.msra.mxu0 0.0
        %2169 = vmatprep.subr.mxu0 0.0
        %2170 = vmatpush1.xpose.msra.mxu0 0.0
        %2171 = vmatprep.subr.mxu0 0.0
        %2172 = vmatpush1.xpose.msra.mxu0 0.0
        %2173 = vmatprep.subr.mxu0 0.0
        %2174 = vmatpush1.xpose.msra.mxu0 0.0
        %2175 = vmatprep.subr.mxu0 0.0
        %2176 = vmatpush1.xpose.msra.mxu0 0.0
        %2177 = vmatprep.subr.mxu0 0.0
        %2178 = vmatpush1.xpose.msra.mxu0 0.0
        %2179 = vmatprep.subr.mxu0 0.0
        %2180 = vmatpush1.xpose.msra.mxu0 0.0
        %2181 = vmatprep.subr.mxu0 0.0
        %2182 = vmatpush1.xpose.msra.mxu0 0.0
        %2183 = vmatprep.subr.mxu0 0.0
        %2184 = vmatpush1.xpose.msra.mxu0 0.0
        %2185 = vmatprep.subr.mxu0 0.0
        %2186 = vmatpush1.xpose.msra.mxu0 0.0
        %2187 = vmatprep.subr.mxu0 0.0
        %2188 = vmatpush1.xpose.msra.mxu0 0.0
        %2189 = vmatprep.mubr.f32.mxu0 0.0
        %2190 = vmatmul.mubr.f32.gmra.mrb[0].mxu0 %v2121
        %v2191 = vpop.f32.mrb[0].mxu0
        %v2192 = vadd.f32 0.0, %v2191
        %v2193 = vpop.f32.mrb[0].mxu0
        %2194 = vdwg.mxu0
        %2195 = vrot.lane.b32.xlu0 %v1619, 120
        %v2196 = vpop.permute.xlu0 %2195
        %2197 = vrot.lane.b32.xlu0 %v1705, 120
        %v2198 = vpop.permute.xlu0 %2197
        %v2199 = vsel %vm1794, %v2196, 0
        %v2201 = vsel %vm1794, %v2198, 0
        %2203 = vmatprep.subr.mxu0 0.0
        %2204 = vmatpush1.xpose.msra.mxu0 %v2201
        %2205 = vmatprep.subr.mxu0 0.0
        %2206 = vmatpush1.xpose.msra.mxu0 0.0
        %2207 = vmatprep.subr.mxu0 0.0
        %2208 = vmatpush1.xpose.msra.mxu0 0.0
        %2209 = vmatprep.subr.mxu0 0.0
        %2210 = vmatpush1.xpose.msra.mxu0 0.0
        %2211 = vmatprep.subr.mxu0 0.0
        %2212 = vmatpush1.xpose.msra.mxu0 0.0
        %2213 = vmatprep.subr.mxu0 0.0
        %2214 = vmatpush1.xpose.msra.mxu0 0.0
        %2215 = vmatprep.subr.mxu0 0.0
        %2216 = vmatpush1.xpose.msra.mxu0 0.0
        %2217 = vmatprep.subr.mxu0 0.0
        %2218 = vmatpush1.xpose.msra.mxu0 0.0
        %2219 = vmatprep.subr.mxu0 0.0
        %2220 = vmatpush1.xpose.msra.mxu0 0.0
        %2221 = vmatprep.subr.mxu0 0.0
        %2222 = vmatpush1.xpose.msra.mxu0 0.0
        %2223 = vmatprep.subr.mxu0 0.0
        %2224 = vmatpush1.xpose.msra.mxu0 0.0
        %2225 = vmatprep.subr.mxu0 0.0
        %2226 = vmatpush1.xpose.msra.mxu0 0.0
        %2227 = vmatprep.subr.mxu0 0.0
        %2228 = vmatpush1.xpose.msra.mxu0 0.0
        %2229 = vmatprep.subr.mxu0 0.0
        %2230 = vmatpush1.xpose.msra.mxu0 0.0
        %2231 = vmatprep.subr.mxu0 0.0
        %2232 = vmatpush1.xpose.msra.mxu0 0.0
        %2233 = vmatprep.subr.mxu0 0.0
        %2234 = vmatpush1.xpose.msra.mxu0 0.0
        %2235 = vmatprep.subr.mxu0 0.0
        %2236 = vmatpush1.xpose.msra.mxu0 0.0
        %2237 = vmatprep.subr.mxu0 0.0
        %2238 = vmatpush1.xpose.msra.mxu0 0.0
        %2239 = vmatprep.subr.mxu0 0.0
        %2240 = vmatpush1.xpose.msra.mxu0 0.0
        %2241 = vmatprep.subr.mxu0 0.0
        %2242 = vmatpush1.xpose.msra.mxu0 0.0
        %2243 = vmatprep.subr.mxu0 0.0
        %2244 = vmatpush1.xpose.msra.mxu0 0.0
        %2245 = vmatprep.subr.mxu0 0.0
        %2246 = vmatpush1.xpose.msra.mxu0 0.0
        %2247 = vmatprep.subr.mxu0 0.0
        %2248 = vmatpush1.xpose.msra.mxu0 0.0
        %2249 = vmatprep.subr.mxu0 0.0
        %2250 = vmatpush1.xpose.msra.mxu0 0.0
        %2251 = vmatprep.subr.mxu0 0.0
        %2252 = vmatpush1.xpose.msra.mxu0 0.0
        %2253 = vmatprep.subr.mxu0 0.0
        %2254 = vmatpush1.xpose.msra.mxu0 0.0
        %2255 = vmatprep.subr.mxu0 0.0
        %2256 = vmatpush1.xpose.msra.mxu0 0.0
        %2257 = vmatprep.subr.mxu0 0.0
        %2258 = vmatpush1.xpose.msra.mxu0 0.0
        %2259 = vmatprep.subr.mxu0 0.0
        %2260 = vmatpush1.xpose.msra.mxu0 0.0
        %2261 = vmatprep.subr.mxu0 0.0
        %2262 = vmatpush1.xpose.msra.mxu0 0.0
        %2263 = vmatprep.subr.mxu0 0.0
        %2264 = vmatpush1.xpose.msra.mxu0 0.0
        %2265 = vmatprep.subr.mxu0 0.0
        %2266 = vmatpush1.xpose.msra.mxu0 0.0
        %2267 = vmatprep.mubr.f32.mxu0 0.0
        %2268 = vmatmul.mubr.f32.gmra.mrb[0].mxu0 %v2199
        %v2269 = vpop.f32.mrb[0].mxu0
        %v2270 = vadd.f32 0.0, %v2269
        %v2271 = vpop.f32.mrb[0].mxu0
        %2272 = vdwg.mxu0
        %v2273 = vmul.f32 %v2192, 0.35355338
        %v2274 = vmul.f32 %v2270, 0.35355338
        %v2275 = vsel %vm1794, %v2273, -inf
        %2276 = vmax.xlane.f32.xlu0 %v2275
        %v2277 = vpop.xlane.xlu0 %2276
        %v2278 = vsel %vm1794, %v2274, -inf
        %2279 = vmax.xlane.f32.xlu0 %v2278
        %v2280 = vpop.xlane.xlu0 %2279
        %v2281 = vsub.f32 %v2273, %v2277
        %v2282 = vsub.f32 %v2274, %v2280
        %v2283 = vmul.f32 %v2281, 1.442695
        %v2284 = vpow.pop %v2283
        %v2285 = vmul.f32 %v2282, 1.442695
        %v2286 = vpow.pop %v2285
        %v2287 = vsel %vm1794, %v2284, 0.0
        %2288 = vadd.xlane.f32.xlu0 %v2287
        %v2289 = vpop.xlane.xlu0 %2288
        %v2290 = vsel %vm1794, %v2286, 0.0
        %2291 = vadd.xlane.f32.xlu0 %v2290
        %v2292 = vpop.xlane.xlu0 %2291
        %v2293 = vrcp.pop %v2289
        %v2294 = vrcp.pop %v2292
        %v2295 = vmul.f32 %v2284, %v2293
        %v2296 = vmul.f32 %v2286, %v2294
        %2298 = vrot.lane.b32.xlu0 %v1786, 120
        %v2299 = vpop.permute.xlu0 %2298
        %v2302 = vsel %vm1794, %v2295, 0
        %2304 = vmatprep.subr.mxu0 0.0
        %2305 = vmatpush1.msra.mxu0 %v2299
        %2306 = vmatprep.subr.mxu0 0.0
        %2307 = vmatpush1.msra.mxu0 0.0
        %2308 = vmatprep.subr.mxu0 0.0
        %2309 = vmatpush1.msra.mxu0 0.0
        %2310 = vmatprep.subr.mxu0 0.0
        %2311 = vmatpush1.msra.mxu0 0.0
        %2312 = vmatprep.subr.mxu0 0.0
        %2313 = vmatpush1.msra.mxu0 0.0
        %2314 = vmatprep.subr.mxu0 0.0
        %2315 = vmatpush1.msra.mxu0 0.0
        %2316 = vmatprep.subr.mxu0 0.0
        %2317 = vmatpush1.msra.mxu0 0.0
        %2318 = vmatprep.subr.mxu0 0.0
        %2319 = vmatpush1.msra.mxu0 0.0
        %2320 = vmatprep.subr.mxu0 0.0
        %2321 = vmatpush1.msra.mxu0 0.0
        %2322 = vmatprep.subr.mxu0 0.0
        %2323 = vmatpush1.msra.mxu0 0.0
        %2324 = vmatprep.subr.mxu0 0.0
        %2325 = vmatpush1.msra.mxu0 0.0
        %2326 = vmatprep.subr.mxu0 0.0
        %2327 = vmatpush1.msra.mxu0 0.0
        %2328 = vmatprep.subr.mxu0 0.0
        %2329 = vmatpush1.msra.mxu0 0.0
        %2330 = vmatprep.subr.mxu0 0.0
        %2331 = vmatpush1.msra.mxu0 0.0
        %2332 = vmatprep.subr.mxu0 0.0
        %2333 = vmatpush1.msra.mxu0 0.0
        %2334 = vmatprep.subr.mxu0 0.0
        %2335 = vmatpush1.msra.mxu0 0.0
        %2336 = vmatprep.subr.mxu0 0.0
        %2337 = vmatpush1.msra.mxu0 0.0
        %2338 = vmatprep.subr.mxu0 0.0
        %2339 = vmatpush1.msra.mxu0 0.0
        %2340 = vmatprep.subr.mxu0 0.0
        %2341 = vmatpush1.msra.mxu0 0.0
        %2342 = vmatprep.subr.mxu0 0.0
        %2343 = vmatpush1.msra.mxu0 0.0
        %2344 = vmatprep.subr.mxu0 0.0
        %2345 = vmatpush1.msra.mxu0 0.0
        %2346 = vmatprep.subr.mxu0 0.0
        %2347 = vmatpush1.msra.mxu0 0.0
        %2348 = vmatprep.subr.mxu0 0.0
        %2349 = vmatpush1.msra.mxu0 0.0
        %2350 = vmatprep.subr.mxu0 0.0
        %2351 = vmatpush1.msra.mxu0 0.0
        %2352 = vmatprep.subr.mxu0 0.0
        %2353 = vmatpush1.msra.mxu0 0.0
        %2354 = vmatprep.subr.mxu0 0.0
        %2355 = vmatpush1.msra.mxu0 0.0
        %2356 = vmatprep.subr.mxu0 0.0
        %2357 = vmatpush1.msra.mxu0 0.0
        %2358 = vmatprep.subr.mxu0 0.0
        %2359 = vmatpush1.msra.mxu0 0.0
        %2360 = vmatprep.subr.mxu0 0.0
        %2361 = vmatpush1.msra.mxu0 0.0
        %2362 = vmatprep.subr.mxu0 0.0
        %2363 = vmatpush1.msra.mxu0 0.0
        %2364 = vmatprep.subr.mxu0 0.0
        %2365 = vmatpush1.msra.mxu0 0.0
        %2366 = vmatprep.subr.mxu0 0.0
        %2367 = vmatpush1.msra.mxu0 0.0
        %2368 = vmatprep.mubr.f32.mxu0 0.0
        %2369 = vmatmul.mubr.f32.gmra.mrb[0].mxu0 %v2302
        %v2370 = vpop.f32.mrb[0].mxu0
        %v2371 = vadd.f32 0.0, %v2370
        %v2372 = vpop.f32.mrb[0].mxu0
        %2373 = vdwg.mxu0
        %2375 = vrot.lane.b32.xlu0 %v1791, 120
        %v2376 = vpop.permute.xlu0 %2375
        %v2379 = vsel %vm1794, %v2296, 0
        %2381 = vmatprep.subr.mxu0 0.0
        %2382 = vmatpush1.msra.mxu0 %v2376
        %2383 = vmatprep.subr.mxu0 0.0
        %2384 = vmatpush1.msra.mxu0 0.0
        %2385 = vmatprep.subr.mxu0 0.0
        %2386 = vmatpush1.msra.mxu0 0.0
        %2387 = vmatprep.subr.mxu0 0.0
        %2388 = vmatpush1.msra.mxu0 0.0
        %2389 = vmatprep.subr.mxu0 0.0
        %2390 = vmatpush1.msra.mxu0 0.0
        %2391 = vmatprep.subr.mxu0 0.0
        %2392 = vmatpush1.msra.mxu0 0.0
        %2393 = vmatprep.subr.mxu0 0.0
        %2394 = vmatpush1.msra.mxu0 0.0
        %2395 = vmatprep.subr.mxu0 0.0
        %2396 = vmatpush1.msra.mxu0 0.0
        %2397 = vmatprep.subr.mxu0 0.0
        %2398 = vmatpush1.msra.mxu0 0.0
        %2399 = vmatprep.subr.mxu0 0.0
        %2400 = vmatpush1.msra.mxu0 0.0
        %2401 = vmatprep.subr.mxu0 0.0
        %2402 = vmatpush1.msra.mxu0 0.0
        %2403 = vmatprep.subr.mxu0 0.0
        %2404 = vmatpush1.msra.mxu0 0.0
        %2405 = vmatprep.subr.mxu0 0.0
        %2406 = vmatpush1.msra.mxu0 0.0
        %2407 = vmatprep.subr.mxu0 0.0
        %2408 = vmatpush1.msra.mxu0 0.0
        %2409 = vmatprep.subr.mxu0 0.0
        %2410 = vmatpush1.msra.mxu0 0.0
        %2411 = vmatprep.subr.mxu0 0.0
        %2412 = vmatpush1.msra.mxu0 0.0
        %2413 = vmatprep.subr.mxu0 0.0
        %2414 = vmatpush1.msra.mxu0 0.0
        %2415 = vmatprep.subr.mxu0 0.0
        %2416 = vmatpush1.msra.mxu0 0.0
        %2417 = vmatprep.subr.mxu0 0.0
        %2418 = vmatpush1.msra.mxu0 0.0
        %2419 = vmatprep.subr.mxu0 0.0
        %2420 = vmatpush1.msra.mxu0 0.0
        %2421 = vmatprep.subr.mxu0 0.0
        %2422 = vmatpush1.msra.mxu0 0.0
        %2423 = vmatprep.subr.mxu0 0.0
        %2424 = vmatpush1.msra.mxu0 0.0
        %2425 = vmatprep.subr.mxu0 0.0
        %2426 = vmatpush1.msra.mxu0 0.0
        %2427 = vmatprep.subr.mxu0 0.0
        %2428 = vmatpush1.msra.mxu0 0.0
        %2429 = vmatprep.subr.mxu0 0.0
        %2430 = vmatpush1.msra.mxu0 0.0
        %2431 = vmatprep.subr.mxu0 0.0
        %2432 = vmatpush1.msra.mxu0 0.0
        %2433 = vmatprep.subr.mxu0 0.0
        %2434 = vmatpush1.msra.mxu0 0.0
        %2435 = vmatprep.subr.mxu0 0.0
        %2436 = vmatpush1.msra.mxu0 0.0
        %2437 = vmatprep.subr.mxu0 0.0
        %2438 = vmatpush1.msra.mxu0 0.0
        %2439 = vmatprep.subr.mxu0 0.0
        %2440 = vmatpush1.msra.mxu0 0.0
        %2441 = vmatprep.subr.mxu0 0.0
        %2442 = vmatpush1.msra.mxu0 0.0
        %2443 = vmatprep.subr.mxu0 0.0
        %2444 = vmatpush1.msra.mxu0 0.0
        %2445 = vmatprep.mubr.f32.mxu0 0.0
        %2446 = vmatmul.mubr.f32.gmra.mrb[0].mxu0 %v2379
        %v2447 = vpop.f32.mrb[0].mxu0
        %v2448 = vadd.f32 0.0, %v2447
        %v2449 = vpop.f32.mrb[0].mxu0
        %2450 = vdwg.mxu0
        %2451 = vrot.lane.b32.xlu0 %v1614, 112
        %v2452 = vpop.permute.xlu0 %2451
        %2453 = vrot.lane.b32.xlu0 %v1700, 112
        %v2454 = vpop.permute.xlu0 %2453
        %v2455 = vsel %vm1794, %v2452, 0
        %v2457 = vsel %vm1794, %v2454, 0
        %2459 = vmatprep.subr.mxu0 0.0
        %2460 = vmatpush1.xpose.msra.mxu0 %v2457
        %2461 = vmatprep.subr.mxu0 0.0
        %2462 = vmatpush1.xpose.msra.mxu0 0.0
        %2463 = vmatprep.subr.mxu0 0.0
        %2464 = vmatpush1.xpose.msra.mxu0 0.0
        %2465 = vmatprep.subr.mxu0 0.0
        %2466 = vmatpush1.xpose.msra.mxu0 0.0
        %2467 = vmatprep.subr.mxu0 0.0
        %2468 = vmatpush1.xpose.msra.mxu0 0.0
        %2469 = vmatprep.subr.mxu0 0.0
        %2470 = vmatpush1.xpose.msra.mxu0 0.0
        %2471 = vmatprep.subr.mxu0 0.0
        %2472 = vmatpush1.xpose.msra.mxu0 0.0
        %2473 = vmatprep.subr.mxu0 0.0
        %2474 = vmatpush1.xpose.msra.mxu0 0.0
        %2475 = vmatprep.subr.mxu0 0.0
        %2476 = vmatpush1.xpose.msra.mxu0 0.0
        %2477 = vmatprep.subr.mxu0 0.0
        %2478 = vmatpush1.xpose.msra.mxu0 0.0
        %2479 = vmatprep.subr.mxu0 0.0
        %2480 = vmatpush1.xpose.msra.mxu0 0.0
        %2481 = vmatprep.subr.mxu0 0.0
        %2482 = vmatpush1.xpose.msra.mxu0 0.0
        %2483 = vmatprep.subr.mxu0 0.0
        %2484 = vmatpush1.xpose.msra.mxu0 0.0
        %2485 = vmatprep.subr.mxu0 0.0
        %2486 = vmatpush1.xpose.msra.mxu0 0.0
        %2487 = vmatprep.subr.mxu0 0.0
        %2488 = vmatpush1.xpose.msra.mxu0 0.0
        %2489 = vmatprep.subr.mxu0 0.0
        %2490 = vmatpush1.xpose.msra.mxu0 0.0
        %2491 = vmatprep.subr.mxu0 0.0
        %2492 = vmatpush1.xpose.msra.mxu0 0.0
        %2493 = vmatprep.subr.mxu0 0.0
        %2494 = vmatpush1.xpose.msra.mxu0 0.0
        %2495 = vmatprep.subr.mxu0 0.0
        %2496 = vmatpush1.xpose.msra.mxu0 0.0
        %2497 = vmatprep.subr.mxu0 0.0
        %2498 = vmatpush1.xpose.msra.mxu0 0.0
        %2499 = vmatprep.subr.mxu0 0.0
        %2500 = vmatpush1.xpose.msra.mxu0 0.0
        %2501 = vmatprep.subr.mxu0 0.0
        %2502 = vmatpush1.xpose.msra.mxu0 0.0
        %2503 = vmatprep.subr.mxu0 0.0
        %2504 = vmatpush1.xpose.msra.mxu0 0.0
        %2505 = vmatprep.subr.mxu0 0.0
        %2506 = vmatpush1.xpose.msra.mxu0 0.0
        %2507 = vmatprep.subr.mxu0 0.0
        %2508 = vmatpush1.xpose.msra.mxu0 0.0
        %2509 = vmatprep.subr.mxu0 0.0
        %2510 = vmatpush1.xpose.msra.mxu0 0.0
        %2511 = vmatprep.subr.mxu0 0.0
        %2512 = vmatpush1.xpose.msra.mxu0 0.0
        %2513 = vmatprep.subr.mxu0 0.0
        %2514 = vmatpush1.xpose.msra.mxu0 0.0
        %2515 = vmatprep.subr.mxu0 0.0
        %2516 = vmatpush1.xpose.msra.mxu0 0.0
        %2517 = vmatprep.subr.mxu0 0.0
        %2518 = vmatpush1.xpose.msra.mxu0 0.0
        %2519 = vmatprep.subr.mxu0 0.0
        %2520 = vmatpush1.xpose.msra.mxu0 0.0
        %2521 = vmatprep.subr.mxu0 0.0
        %2522 = vmatpush1.xpose.msra.mxu0 0.0
        %2523 = vmatprep.mubr.f32.mxu0 0.0
        %2524 = vmatmul.mubr.f32.gmra.mrb[0].mxu0 %v2455
        %v2525 = vpop.f32.mrb[0].mxu0
        %v2526 = vadd.f32 0.0, %v2525
        %v2527 = vpop.f32.mrb[0].mxu0
        %2528 = vdwg.mxu0
        %2529 = vrot.lane.b32.xlu0 %v1619, 112
        %v2530 = vpop.permute.xlu0 %2529
        %2531 = vrot.lane.b32.xlu0 %v1705, 112
        %v2532 = vpop.permute.xlu0 %2531
        %v2533 = vsel %vm1794, %v2530, 0
        %v2535 = vsel %vm1794, %v2532, 0
        %2537 = vmatprep.subr.mxu0 0.0
        %2538 = vmatpush1.xpose.msra.mxu0 %v2535
        %2539 = vmatprep.subr.mxu0 0.0
        %2540 = vmatpush1.xpose.msra.mxu0 0.0
        %2541 = vmatprep.subr.mxu0 0.0
        %2542 = vmatpush1.xpose.msra.mxu0 0.0
        %2543 = vmatprep.subr.mxu0 0.0
        %2544 = vmatpush1.xpose.msra.mxu0 0.0
        %2545 = vmatprep.subr.mxu0 0.0
        %2546 = vmatpush1.xpose.msra.mxu0 0.0
        %2547 = vmatprep.subr.mxu0 0.0
        %2548 = vmatpush1.xpose.msra.mxu0 0.0
        %2549 = vmatprep.subr.mxu0 0.0
        %2550 = vmatpush1.xpose.msra.mxu0 0.0
        %2551 = vmatprep.subr.mxu0 0.0
        %2552 = vmatpush1.xpose.msra.mxu0 0.0
        %2553 = vmatprep.subr.mxu0 0.0
        %2554 = vmatpush1.xpose.msra.mxu0 0.0
        %2555 = vmatprep.subr.mxu0 0.0
        %2556 = vmatpush1.xpose.msra.mxu0 0.0
        %2557 = vmatprep.subr.mxu0 0.0
        %2558 = vmatpush1.xpose.msra.mxu0 0.0
        %2559 = vmatprep.subr.mxu0 0.0
        %2560 = vmatpush1.xpose.msra.mxu0 0.0
        %2561 = vmatprep.subr.mxu0 0.0
        %2562 = vmatpush1.xpose.msra.mxu0 0.0
        %2563 = vmatprep.subr.mxu0 0.0
        %2564 = vmatpush1.xpose.msra.mxu0 0.0
        %2565 = vmatprep.subr.mxu0 0.0
        %2566 = vmatpush1.xpose.msra.mxu0 0.0
        %2567 = vmatprep.subr.mxu0 0.0
        %2568 = vmatpush1.xpose.msra.mxu0 0.0
        %2569 = vmatprep.subr.mxu0 0.0
        %2570 = vmatpush1.xpose.msra.mxu0 0.0
        %2571 = vmatprep.subr.mxu0 0.0
        %2572 = vmatpush1.xpose.msra.mxu0 0.0
        %2573 = vmatprep.subr.mxu0 0.0
        %2574 = vmatpush1.xpose.msra.mxu0 0.0
        %2575 = vmatprep.subr.mxu0 0.0
        %2576 = vmatpush1.xpose.msra.mxu0 0.0
        %2577 = vmatprep.subr.mxu0 0.0
        %2578 = vmatpush1.xpose.msra.mxu0 0.0
        %2579 = vmatprep.subr.mxu0 0.0
        %2580 = vmatpush1.xpose.msra.mxu0 0.0
        %2581 = vmatprep.subr.mxu0 0.0
        %2582 = vmatpush1.xpose.msra.mxu0 0.0
        %2583 = vmatprep.subr.mxu0 0.0
        %2584 = vmatpush1.xpose.msra.mxu0 0.0
        %2585 = vmatprep.subr.mxu0 0.0
        %2586 = vmatpush1.xpose.msra.mxu0 0.0
        %2587 = vmatprep.subr.mxu0 0.0
        %2588 = vmatpush1.xpose.msra.mxu0 0.0
        %2589 = vmatprep.subr.mxu0 0.0
        %2590 = vmatpush1.xpose.msra.mxu0 0.0
        %2591 = vmatprep.subr.mxu0 0.0
        %2592 = vmatpush1.xpose.msra.mxu0 0.0
        %2593 = vmatprep.subr.mxu0 0.0
        %2594 = vmatpush1.xpose.msra.mxu0 0.0
        %2595 = vmatprep.subr.mxu0 0.0
        %2596 = vmatpush1.xpose.msra.mxu0 0.0
        %2597 = vmatprep.subr.mxu0 0.0
        %2598 = vmatpush1.xpose.msra.mxu0 0.0
        %2599 = vmatprep.subr.mxu0 0.0
        %2600 = vmatpush1.xpose.msra.mxu0 0.0
        %2601 = vmatprep.mubr.f32.mxu0 0.0
        %2602 = vmatmul.mubr.f32.gmra.mrb[0].mxu0 %v2533
        %v2603 = vpop.f32.mrb[0].mxu0
        %v2604 = vadd.f32 0.0, %v2603
        %v2605 = vpop.f32.mrb[0].mxu0
        %2606 = vdwg.mxu0
        %v2607 = vmul.f32 %v2526, 0.35355338
        %v2608 = vmul.f32 %v2604, 0.35355338
        %v2609 = vsel %vm1794, %v2607, -inf
        %2610 = vmax.xlane.f32.xlu0 %v2609
        %v2611 = vpop.xlane.xlu0 %2610
        %v2612 = vsel %vm1794, %v2608, -inf
        %2613 = vmax.xlane.f32.xlu0 %v2612
        %v2614 = vpop.xlane.xlu0 %2613
        %v2615 = vsub.f32 %v2607, %v2611
        %v2616 = vsub.f32 %v2608, %v2614
        %v2617 = vmul.f32 %v2615, 1.442695
        %v2618 = vpow.pop %v2617
        %v2619 = vmul.f32 %v2616, 1.442695
        %v2620 = vpow.pop %v2619
        %v2621 = vsel %vm1794, %v2618, 0.0
        %2622 = vadd.xlane.f32.xlu0 %v2621
        %v2623 = vpop.xlane.xlu0 %2622
        %v2624 = vsel %vm1794, %v2620, 0.0
        %2625 = vadd.xlane.f32.xlu0 %v2624
        %v2626 = vpop.xlane.xlu0 %2625
        %v2627 = vrcp.pop %v2623
        %v2628 = vrcp.pop %v2626
        %v2629 = vmul.f32 %v2618, %v2627
        %v2630 = vmul.f32 %v2620, %v2628
        %2631 = vrot.lane.b32.xlu0 %v1786, 112
        %v2632 = vpop.permute.xlu0 %2631
        %v2635 = vsel %vm1794, %v2629, 0
        %2637 = vmatprep.subr.mxu0 0.0
        %2638 = vmatpush1.msra.mxu0 %v2632
        %2639 = vmatprep.subr.mxu0 0.0
        %2640 = vmatpush1.msra.mxu0 0.0
        %2641 = vmatprep.subr.mxu0 0.0
        %2642 = vmatpush1.msra.mxu0 0.0
        %2643 = vmatprep.subr.mxu0 0.0
        %2644 = vmatpush1.msra.mxu0 0.0
        %2645 = vmatprep.subr.mxu0 0.0
        %2646 = vmatpush1.msra.mxu0 0.0
        %2647 = vmatprep.subr.mxu0 0.0
        %2648 = vmatpush1.msra.mxu0 0.0
        %2649 = vmatprep.subr.mxu0 0.0
        %2650 = vmatpush1.msra.mxu0 0.0
        %2651 = vmatprep.subr.mxu0 0.0
        %2652 = vmatpush1.msra.mxu0 0.0
        %2653 = vmatprep.subr.mxu0 0.0
        %2654 = vmatpush1.msra.mxu0 0.0
        %2655 = vmatprep.subr.mxu0 0.0
        %2656 = vmatpush1.msra.mxu0 0.0
        %2657 = vmatprep.subr.mxu0 0.0
        %2658 = vmatpush1.msra.mxu0 0.0
        %2659 = vmatprep.subr.mxu0 0.0
        %2660 = vmatpush1.msra.mxu0 0.0
        %2661 = vmatprep.subr.mxu0 0.0
        %2662 = vmatpush1.msra.mxu0 0.0
        %2663 = vmatprep.subr.mxu0 0.0
        %2664 = vmatpush1.msra.mxu0 0.0
        %2665 = vmatprep.subr.mxu0 0.0
        %2666 = vmatpush1.msra.mxu0 0.0
        %2667 = vmatprep.subr.mxu0 0.0
        %2668 = vmatpush1.msra.mxu0 0.0
        %2669 = vmatprep.subr.mxu0 0.0
        %2670 = vmatpush1.msra.mxu0 0.0
        %2671 = vmatprep.subr.mxu0 0.0
        %2672 = vmatpush1.msra.mxu0 0.0
        %2673 = vmatprep.subr.mxu0 0.0
        %2674 = vmatpush1.msra.mxu0 0.0
        %2675 = vmatprep.subr.mxu0 0.0
        %2676 = vmatpush1.msra.mxu0 0.0
        %2677 = vmatprep.subr.mxu0 0.0
        %2678 = vmatpush1.msra.mxu0 0.0
        %2679 = vmatprep.subr.mxu0 0.0
        %2680 = vmatpush1.msra.mxu0 0.0
        %2681 = vmatprep.subr.mxu0 0.0
        %2682 = vmatpush1.msra.mxu0 0.0
        %2683 = vmatprep.subr.mxu0 0.0
        %2684 = vmatpush1.msra.mxu0 0.0
        %2685 = vmatprep.subr.mxu0 0.0
        %2686 = vmatpush1.msra.mxu0 0.0
        %2687 = vmatprep.subr.mxu0 0.0
        %2688 = vmatpush1.msra.mxu0 0.0
        %2689 = vmatprep.subr.mxu0 0.0
        %2690 = vmatpush1.msra.mxu0 0.0
        %2691 = vmatprep.subr.mxu0 0.0
        %2692 = vmatpush1.msra.mxu0 0.0
        %2693 = vmatprep.subr.mxu0 0.0
        %2694 = vmatpush1.msra.mxu0 0.0
        %2695 = vmatprep.subr.mxu0 0.0
        %2696 = vmatpush1.msra.mxu0 0.0
        %2697 = vmatprep.subr.mxu0 0.0
        %2698 = vmatpush1.msra.mxu0 0.0
        %2699 = vmatprep.subr.mxu0 0.0
        %2700 = vmatpush1.msra.mxu0 0.0
        %2701 = vmatprep.mubr.f32.mxu0 0.0
        %2702 = vmatmul.mubr.f32.gmra.mrb[0].mxu0 %v2635
        %v2703 = vpop.f32.mrb[0].mxu0
        %v2704 = vadd.f32 0.0, %v2703
        %v2705 = vpop.f32.mrb[0].mxu0
        %2706 = vdwg.mxu0
        %2707 = vrot.lane.b32.xlu0 %v1791, 112
        %v2708 = vpop.permute.xlu0 %2707
        %v2711 = vsel %vm1794, %v2630, 0
        %2713 = vmatprep.subr.mxu0 0.0
        %2714 = vmatpush1.msra.mxu0 %v2708
        %2715 = vmatprep.subr.mxu0 0.0
        %2716 = vmatpush1.msra.mxu0 0.0
        %2717 = vmatprep.subr.mxu0 0.0
        %2718 = vmatpush1.msra.mxu0 0.0
        %2719 = vmatprep.subr.mxu0 0.0
        %2720 = vmatpush1.msra.mxu0 0.0
        %2721 = vmatprep.subr.mxu0 0.0
        %2722 = vmatpush1.msra.mxu0 0.0
        %2723 = vmatprep.subr.mxu0 0.0
        %2724 = vmatpush1.msra.mxu0 0.0
        %2725 = vmatprep.subr.mxu0 0.0
        %2726 = vmatpush1.msra.mxu0 0.0
        %2727 = vmatprep.subr.mxu0 0.0
        %2728 = vmatpush1.msra.mxu0 0.0
        %2729 = vmatprep.subr.mxu0 0.0
        %2730 = vmatpush1.msra.mxu0 0.0
        %2731 = vmatprep.subr.mxu0 0.0
        %2732 = vmatpush1.msra.mxu0 0.0
        %2733 = vmatprep.subr.mxu0 0.0
        %2734 = vmatpush1.msra.mxu0 0.0
        %2735 = vmatprep.subr.mxu0 0.0
        %2736 = vmatpush1.msra.mxu0 0.0
        %2737 = vmatprep.subr.mxu0 0.0
        %2738 = vmatpush1.msra.mxu0 0.0
        %2739 = vmatprep.subr.mxu0 0.0
        %2740 = vmatpush1.msra.mxu0 0.0
        %2741 = vmatprep.subr.mxu0 0.0
        %2742 = vmatpush1.msra.mxu0 0.0
        %2743 = vmatprep.subr.mxu0 0.0
        %2744 = vmatpush1.msra.mxu0 0.0
        %2745 = vmatprep.subr.mxu0 0.0
        %2746 = vmatpush1.msra.mxu0 0.0
        %2747 = vmatprep.subr.mxu0 0.0
        %2748 = vmatpush1.msra.mxu0 0.0
        %2749 = vmatprep.subr.mxu0 0.0
        %2750 = vmatpush1.msra.mxu0 0.0
        %2751 = vmatprep.subr.mxu0 0.0
        %2752 = vmatpush1.msra.mxu0 0.0
        %2753 = vmatprep.subr.mxu0 0.0
        %2754 = vmatpush1.msra.mxu0 0.0
        %2755 = vmatprep.subr.mxu0 0.0
        %2756 = vmatpush1.msra.mxu0 0.0
        %2757 = vmatprep.subr.mxu0 0.0
        %2758 = vmatpush1.msra.mxu0 0.0
        %2759 = vmatprep.subr.mxu0 0.0
        %2760 = vmatpush1.msra.mxu0 0.0
        %2761 = vmatprep.subr.mxu0 0.0
        %2762 = vmatpush1.msra.mxu0 0.0
        %2763 = vmatprep.subr.mxu0 0.0
        %2764 = vmatpush1.msra.mxu0 0.0
        %2765 = vmatprep.subr.mxu0 0.0
        %2766 = vmatpush1.msra.mxu0 0.0
        %2767 = vmatprep.subr.mxu0 0.0
        %2768 = vmatpush1.msra.mxu0 0.0
        %2769 = vmatprep.subr.mxu0 0.0
        %2770 = vmatpush1.msra.mxu0 0.0
        %2771 = vmatprep.subr.mxu0 0.0
        %2772 = vmatpush1.msra.mxu0 0.0
        %2773 = vmatprep.subr.mxu0 0.0
        %2774 = vmatpush1.msra.mxu0 0.0
        %2775 = vmatprep.subr.mxu0 0.0
        %2776 = vmatpush1.msra.mxu0 0.0
        %2777 = vmatprep.mubr.f32.mxu0 0.0
        %2778 = vmatmul.mubr.f32.gmra.mrb[0].mxu0 %v2711
        %v2779 = vpop.f32.mrb[0].mxu0
        %v2780 = vadd.f32 0.0, %v2779
        %v2781 = vpop.f32.mrb[0].mxu0
        %2782 = vdwg.mxu0
        %2783 = vrot.lane.b32.xlu0 %v1614, 104
        %v2784 = vpop.permute.xlu0 %2783
        %2785 = vrot.lane.b32.xlu0 %v1700, 104
        %v2786 = vpop.permute.xlu0 %2785
        %v2787 = vsel %vm1794, %v2784, 0
        %v2789 = vsel %vm1794, %v2786, 0
        %2791 = vmatprep.subr.mxu0 0.0
        %2792 = vmatpush1.xpose.msra.mxu0 %v2789
        %2793 = vmatprep.subr.mxu0 0.0
        %2794 = vmatpush1.xpose.msra.mxu0 0.0
        %2795 = vmatprep.subr.mxu0 0.0
        %2796 = vmatpush1.xpose.msra.mxu0 0.0
        %2797 = vmatprep.subr.mxu0 0.0
        %2798 = vmatpush1.xpose.msra.mxu0 0.0
        %2799 = vmatprep.subr.mxu0 0.0
        %2800 = vmatpush1.xpose.msra.mxu0 0.0
        %2801 = vmatprep.subr.mxu0 0.0
        %2802 = vmatpush1.xpose.msra.mxu0 0.0
        %2803 = vmatprep.subr.mxu0 0.0
        %2804 = vmatpush1.xpose.msra.mxu0 0.0
        %2805 = vmatprep.subr.mxu0 0.0
        %2806 = vmatpush1.xpose.msra.mxu0 0.0
        %2807 = vmatprep.subr.mxu0 0.0
        %2808 = vmatpush1.xpose.msra.mxu0 0.0
        %2809 = vmatprep.subr.mxu0 0.0
        %2810 = vmatpush1.xpose.msra.mxu0 0.0
        %2811 = vmatprep.subr.mxu0 0.0
        %2812 = vmatpush1.xpose.msra.mxu0 0.0
        %2813 = vmatprep.subr.mxu0 0.0
        %2814 = vmatpush1.xpose.msra.mxu0 0.0
        %2815 = vmatprep.subr.mxu0 0.0
        %2816 = vmatpush1.xpose.msra.mxu0 0.0
        %2817 = vmatprep.subr.mxu0 0.0
        %2818 = vmatpush1.xpose.msra.mxu0 0.0
        %2819 = vmatprep.subr.mxu0 0.0
        %2820 = vmatpush1.xpose.msra.mxu0 0.0
        %2821 = vmatprep.subr.mxu0 0.0
        %2822 = vmatpush1.xpose.msra.mxu0 0.0
        %2823 = vmatprep.subr.mxu0 0.0
        %2824 = vmatpush1.xpose.msra.mxu0 0.0
        %2825 = vmatprep.subr.mxu0 0.0
        %2826 = vmatpush1.xpose.msra.mxu0 0.0
        %2827 = vmatprep.subr.mxu0 0.0
        %2828 = vmatpush1.xpose.msra.mxu0 0.0
        %2829 = vmatprep.subr.mxu0 0.0
        %2830 = vmatpush1.xpose.msra.mxu0 0.0
        %2831 = vmatprep.subr.mxu0 0.0
        %2832 = vmatpush1.xpose.msra.mxu0 0.0
        %2833 = vmatprep.subr.mxu0 0.0
        %2834 = vmatpush1.xpose.msra.mxu0 0.0
        %2835 = vmatprep.subr.mxu0 0.0
        %2836 = vmatpush1.xpose.msra.mxu0 0.0
        %2837 = vmatprep.subr.mxu0 0.0
        %2838 = vmatpush1.xpose.msra.mxu0 0.0
        %2839 = vmatprep.subr.mxu0 0.0
        %2840 = vmatpush1.xpose.msra.mxu0 0.0
        %2841 = vmatprep.subr.mxu0 0.0
        %2842 = vmatpush1.xpose.msra.mxu0 0.0
        %2843 = vmatprep.subr.mxu0 0.0
        %2844 = vmatpush1.xpose.msra.mxu0 0.0
        %2845 = vmatprep.subr.mxu0 0.0
        %2846 = vmatpush1.xpose.msra.mxu0 0.0
        %2847 = vmatprep.subr.mxu0 0.0
        %2848 = vmatpush1.xpose.msra.mxu0 0.0
        %2849 = vmatprep.subr.mxu0 0.0
        %2850 = vmatpush1.xpose.msra.mxu0 0.0
        %2851 = vmatprep.subr.mxu0 0.0
        %2852 = vmatpush1.xpose.msra.mxu0 0.0
        %2853 = vmatprep.subr.mxu0 0.0
        %2854 = vmatpush1.xpose.msra.mxu0 0.0
        %2855 = vmatprep.mubr.f32.mxu0 0.0
        %2856 = vmatmul.mubr.f32.gmra.mrb[0].mxu0 %v2787
        %v2857 = vpop.f32.mrb[0].mxu0
        %v2858 = vadd.f32 0.0, %v2857
        %v2859 = vpop.f32.mrb[0].mxu0
        %2860 = vdwg.mxu0
        %2861 = vrot.lane.b32.xlu0 %v1619, 104
        %v2862 = vpop.permute.xlu0 %2861
        %2863 = vrot.lane.b32.xlu0 %v1705, 104
        %v2864 = vpop.permute.xlu0 %2863
        %v2865 = vsel %vm1794, %v2862, 0
        %v2867 = vsel %vm1794, %v2864, 0
        %2869 = vmatprep.subr.mxu0 0.0
        %2870 = vmatpush1.xpose.msra.mxu0 %v2867
        %2871 = vmatprep.subr.mxu0 0.0
        %2872 = vmatpush1.xpose.msra.mxu0 0.0
        %2873 = vmatprep.subr.mxu0 0.0
        %2874 = vmatpush1.xpose.msra.mxu0 0.0
        %2875 = vmatprep.subr.mxu0 0.0
        %2876 = vmatpush1.xpose.msra.mxu0 0.0
        %2877 = vmatprep.subr.mxu0 0.0
        %2878 = vmatpush1.xpose.msra.mxu0 0.0
        %2879 = vmatprep.subr.mxu0 0.0
        %2880 = vmatpush1.xpose.msra.mxu0 0.0
        %2881 = vmatprep.subr.mxu0 0.0
        %2882 = vmatpush1.xpose.msra.mxu0 0.0
        %2883 = vmatprep.subr.mxu0 0.0
        %2884 = vmatpush1.xpose.msra.mxu0 0.0
        %2885 = vmatprep.subr.mxu0 0.0
        %2886 = vmatpush1.xpose.msra.mxu0 0.0
        %2887 = vmatprep.subr.mxu0 0.0
        %2888 = vmatpush1.xpose.msra.mxu0 0.0
        %2889 = vmatprep.subr.mxu0 0.0
        %2890 = vmatpush1.xpose.msra.mxu0 0.0
        %2891 = vmatprep.subr.mxu0 0.0
        %2892 = vmatpush1.xpose.msra.mxu0 0.0
        %2893 = vmatprep.subr.mxu0 0.0
        %2894 = vmatpush1.xpose.msra.mxu0 0.0
        %2895 = vmatprep.subr.mxu0 0.0
        %2896 = vmatpush1.xpose.msra.mxu0 0.0
        %2897 = vmatprep.subr.mxu0 0.0
        %2898 = vmatpush1.xpose.msra.mxu0 0.0
        %2899 = vmatprep.subr.mxu0 0.0
        %2900 = vmatpush1.xpose.msra.mxu0 0.0
        %2901 = vmatprep.subr.mxu0 0.0
        %2902 = vmatpush1.xpose.msra.mxu0 0.0
        %2903 = vmatprep.subr.mxu0 0.0
        %2904 = vmatpush1.xpose.msra.mxu0 0.0
        %2905 = vmatprep.subr.mxu0 0.0
        %2906 = vmatpush1.xpose.msra.mxu0 0.0
        %2907 = vmatprep.subr.mxu0 0.0
        %2908 = vmatpush1.xpose.msra.mxu0 0.0
        %2909 = vmatprep.subr.mxu0 0.0
        %2910 = vmatpush1.xpose.msra.mxu0 0.0
        %2911 = vmatprep.subr.mxu0 0.0
        %2912 = vmatpush1.xpose.msra.mxu0 0.0
        %2913 = vmatprep.subr.mxu0 0.0
        %2914 = vmatpush1.xpose.msra.mxu0 0.0
        %2915 = vmatprep.subr.mxu0 0.0
        %2916 = vmatpush1.xpose.msra.mxu0 0.0
        %2917 = vmatprep.subr.mxu0 0.0
        %2918 = vmatpush1.xpose.msra.mxu0 0.0
        %2919 = vmatprep.subr.mxu0 0.0
        %2920 = vmatpush1.xpose.msra.mxu0 0.0
        %2921 = vmatprep.subr.mxu0 0.0
        %2922 = vmatpush1.xpose.msra.mxu0 0.0
        %2923 = vmatprep.subr.mxu0 0.0
        %2924 = vmatpush1.xpose.msra.mxu0 0.0
        %2925 = vmatprep.subr.mxu0 0.0
        %2926 = vmatpush1.xpose.msra.mxu0 0.0
        %2927 = vmatprep.subr.mxu0 0.0
        %2928 = vmatpush1.xpose.msra.mxu0 0.0
        %2929 = vmatprep.subr.mxu0 0.0
        %2930 = vmatpush1.xpose.msra.mxu0 0.0
        %2931 = vmatprep.subr.mxu0 0.0
        %2932 = vmatpush1.xpose.msra.mxu0 0.0
        %2933 = vmatprep.mubr.f32.mxu0 0.0
        %2934 = vmatmul.mubr.f32.gmra.mrb[0].mxu0 %v2865
        %v2935 = vpop.f32.mrb[0].mxu0
        %v2936 = vadd.f32 0.0, %v2935
        %v2937 = vpop.f32.mrb[0].mxu0
        %2938 = vdwg.mxu0
        %v2939 = vmul.f32 %v2858, 0.35355338
        %v2940 = vmul.f32 %v2936, 0.35355338
        %v2941 = vsel %vm1794, %v2939, -inf
        %2942 = vmax.xlane.f32.xlu0 %v2941
        %v2943 = vpop.xlane.xlu0 %2942
        %v2944 = vsel %vm1794, %v2940, -inf
        %2945 = vmax.xlane.f32.xlu0 %v2944
        %v2946 = vpop.xlane.xlu0 %2945
        %v2947 = vsub.f32 %v2939, %v2943
        %v2948 = vsub.f32 %v2940, %v2946
        %v2949 = vmul.f32 %v2947, 1.442695
        %v2950 = vpow.pop %v2949
        %v2951 = vmul.f32 %v2948, 1.442695
        %v2952 = vpow.pop %v2951
        %v2953 = vsel %vm1794, %v2950, 0.0
        %2954 = vadd.xlane.f32.xlu0 %v2953
        %v2955 = vpop.xlane.xlu0 %2954
        %v2956 = vsel %vm1794, %v2952, 0.0
        %2957 = vadd.xlane.f32.xlu0 %v2956
        %v2958 = vpop.xlane.xlu0 %2957
        %v2959 = vrcp.pop %v2955
        %v2960 = vrcp.pop %v2958
        %v2961 = vmul.f32 %v2950, %v2959
        %v2962 = vmul.f32 %v2952, %v2960
        %2963 = vrot.lane.b32.xlu0 %v1786, 104
        %v2964 = vpop.permute.xlu0 %2963
        %v2967 = vsel %vm1794, %v2961, 0
        %2969 = vmatprep.subr.mxu0 0.0
        %2970 = vmatpush1.msra.mxu0 %v2964
        %2971 = vmatprep.subr.mxu0 0.0
        %2972 = vmatpush1.msra.mxu0 0.0
        %2973 = vmatprep.subr.mxu0 0.0
        %2974 = vmatpush1.msra.mxu0 0.0
        %2975 = vmatprep.subr.mxu0 0.0
        %2976 = vmatpush1.msra.mxu0 0.0
        %2977 = vmatprep.subr.mxu0 0.0
        %2978 = vmatpush1.msra.mxu0 0.0
        %2979 = vmatprep.subr.mxu0 0.0
        %2980 = vmatpush1.msra.mxu0 0.0
        %2981 = vmatprep.subr.mxu0 0.0
        %2982 = vmatpush1.msra.mxu0 0.0
        %2983 = vmatprep.subr.mxu0 0.0
        %2984 = vmatpush1.msra.mxu0 0.0
        %2985 = vmatprep.subr.mxu0 0.0
        %2986 = vmatpush1.msra.mxu0 0.0
        %2987 = vmatprep.subr.mxu0 0.0
        %2988 = vmatpush1.msra.mxu0 0.0
        %2989 = vmatprep.subr.mxu0 0.0
        %2990 = vmatpush1.msra.mxu0 0.0
        %2991 = vmatprep.subr.mxu0 0.0
        %2992 = vmatpush1.msra.mxu0 0.0
        %2993 = vmatprep.subr.mxu0 0.0
        %2994 = vmatpush1.msra.mxu0 0.0
        %2995 = vmatprep.subr.mxu0 0.0
        %2996 = vmatpush1.msra.mxu0 0.0
        %2997 = vmatprep.subr.mxu0 0.0
        %2998 = vmatpush1.msra.mxu0 0.0
        %2999 = vmatprep.subr.mxu0 0.0
        %3000 = vmatpush1.msra.mxu0 0.0
        %3001 = vmatprep.subr.mxu0 0.0
        %3002 = vmatpush1.msra.mxu0 0.0
        %3003 = vmatprep.subr.mxu0 0.0
        %3004 = vmatpush1.msra.mxu0 0.0
        %3005 = vmatprep.subr.mxu0 0.0
        %3006 = vmatpush1.msra.mxu0 0.0
        %3007 = vmatprep.subr.mxu0 0.0
        %3008 = vmatpush1.msra.mxu0 0.0
        %3009 = vmatprep.subr.mxu0 0.0
        %3010 = vmatpush1.msra.mxu0 0.0
        %3011 = vmatprep.subr.mxu0 0.0
        %3012 = vmatpush1.msra.mxu0 0.0
        %3013 = vmatprep.subr.mxu0 0.0
        %3014 = vmatpush1.msra.mxu0 0.0
        %3015 = vmatprep.subr.mxu0 0.0
        %3016 = vmatpush1.msra.mxu0 0.0
        %3017 = vmatprep.subr.mxu0 0.0
        %3018 = vmatpush1.msra.mxu0 0.0
        %3019 = vmatprep.subr.mxu0 0.0
        %3020 = vmatpush1.msra.mxu0 0.0
        %3021 = vmatprep.subr.mxu0 0.0
        %3022 = vmatpush1.msra.mxu0 0.0
        %3023 = vmatprep.subr.mxu0 0.0
        %3024 = vmatpush1.msra.mxu0 0.0
        %3025 = vmatprep.subr.mxu0 0.0
        %3026 = vmatpush1.msra.mxu0 0.0
        %3027 = vmatprep.subr.mxu0 0.0
        %3028 = vmatpush1.msra.mxu0 0.0
        %3029 = vmatprep.subr.mxu0 0.0
        %3030 = vmatpush1.msra.mxu0 0.0
        %3031 = vmatprep.subr.mxu0 0.0
        %3032 = vmatpush1.msra.mxu0 0.0
        %3033 = vmatprep.mubr.f32.mxu0 0.0
        %3034 = vmatmul.mubr.f32.gmra.mrb[0].mxu0 %v2967
        %v3035 = vpop.f32.mrb[0].mxu0
        %v3036 = vadd.f32 0.0, %v3035
        %v3037 = vpop.f32.mrb[0].mxu0
        %3038 = vdwg.mxu0
        %3039 = vrot.lane.b32.xlu0 %v1791, 104
        %v3040 = vpop.permute.xlu0 %3039
        %v3043 = vsel %vm1794, %v2962, 0
        %3045 = vmatprep.subr.mxu0 0.0
        %3046 = vmatpush1.msra.mxu0 %v3040
        %3047 = vmatprep.subr.mxu0 0.0
        %3048 = vmatpush1.msra.mxu0 0.0
        %3049 = vmatprep.subr.mxu0 0.0
        %3050 = vmatpush1.msra.mxu0 0.0
        %3051 = vmatprep.subr.mxu0 0.0
        %3052 = vmatpush1.msra.mxu0 0.0
        %3053 = vmatprep.subr.mxu0 0.0
        %3054 = vmatpush1.msra.mxu0 0.0
        %3055 = vmatprep.subr.mxu0 0.0
        %3056 = vmatpush1.msra.mxu0 0.0
        %3057 = vmatprep.subr.mxu0 0.0
        %3058 = vmatpush1.msra.mxu0 0.0
        %3059 = vmatprep.subr.mxu0 0.0
        %3060 = vmatpush1.msra.mxu0 0.0
        %3061 = vmatprep.subr.mxu0 0.0
        %3062 = vmatpush1.msra.mxu0 0.0
        %3063 = vmatprep.subr.mxu0 0.0
        %3064 = vmatpush1.msra.mxu0 0.0
        %3065 = vmatprep.subr.mxu0 0.0
        %3066 = vmatpush1.msra.mxu0 0.0
        %3067 = vmatprep.subr.mxu0 0.0
        %3068 = vmatpush1.msra.mxu0 0.0
        %3069 = vmatprep.subr.mxu0 0.0
        %3070 = vmatpush1.msra.mxu0 0.0
        %3071 = vmatprep.subr.mxu0 0.0
        %3072 = vmatpush1.msra.mxu0 0.0
        %3073 = vmatprep.subr.mxu0 0.0
        %3074 = vmatpush1.msra.mxu0 0.0
        %3075 = vmatprep.subr.mxu0 0.0
        %3076 = vmatpush1.msra.mxu0 0.0
        %3077 = vmatprep.subr.mxu0 0.0
        %3078 = vmatpush1.msra.mxu0 0.0
        %3079 = vmatprep.subr.mxu0 0.0
        %3080 = vmatpush1.msra.mxu0 0.0
        %3081 = vmatprep.subr.mxu0 0.0
        %3082 = vmatpush1.msra.mxu0 0.0
        %3083 = vmatprep.subr.mxu0 0.0
        %3084 = vmatpush1.msra.mxu0 0.0
        %3085 = vmatprep.subr.mxu0 0.0
        %3086 = vmatpush1.msra.mxu0 0.0
        %3087 = vmatprep.subr.mxu0 0.0
        %3088 = vmatpush1.msra.mxu0 0.0
        %3089 = vmatprep.subr.mxu0 0.0
        %3090 = vmatpush1.msra.mxu0 0.0
        %3091 = vmatprep.subr.mxu0 0.0
        %3092 = vmatpush1.msra.mxu0 0.0
        %3093 = vmatprep.subr.mxu0 0.0
        %3094 = vmatpush1.msra.mxu0 0.0
        %3095 = vmatprep.subr.mxu0 0.0
        %3096 = vmatpush1.msra.mxu0 0.0
        %3097 = vmatprep.subr.mxu0 0.0
        %3098 = vmatpush1.msra.mxu0 0.0
        %3099 = vmatprep.subr.mxu0 0.0
        %3100 = vmatpush1.msra.mxu0 0.0
        %3101 = vmatprep.subr.mxu0 0.0
        %3102 = vmatpush1.msra.mxu0 0.0
        %3103 = vmatprep.subr.mxu0 0.0
        %3104 = vmatpush1.msra.mxu0 0.0
        %3105 = vmatprep.subr.mxu0 0.0
        %3106 = vmatpush1.msra.mxu0 0.0
        %3107 = vmatprep.subr.mxu0 0.0
        %3108 = vmatpush1.msra.mxu0 0.0
        %3109 = vmatprep.mubr.f32.mxu0 0.0
        %3110 = vmatmul.mubr.f32.gmra.mrb[0].mxu0 %v3043
        %v3111 = vpop.f32.mrb[0].mxu0
        %v3112 = vadd.f32 0.0, %v3111
        %v3113 = vpop.f32.mrb[0].mxu0
        %3114 = vdwg.mxu0
        %3117 = vrot.lane.b32.xlu0 %v2371, 8
        %v3118 = vpop.permute.xlu0 %3117
        %3119 = vrot.lane.b32.xlu0 %v2448, 8
        %v3120 = vpop.permute.xlu0 %3119
        %3125 = vrot.lane.b32.xlu0 %v2704, 16
        %v3126 = vpop.permute.xlu0 %3125
        %3127 = vrot.lane.b32.xlu0 %v2780, 16
        %v3128 = vpop.permute.xlu0 %3127
        %3133 = vrot.lane.b32.xlu0 %v3036, 24
        %v3134 = vpop.permute.xlu0 %3133
        %3135 = vrot.lane.b32.xlu0 %v3112, 24
        %v3136 = vpop.permute.xlu0 %3135
        %v3139 = vsel %vm1794, %v2041, %v3118
        %v3140 = vsel %vm1794, %v2114, %v3120
        %vm3141 = vcmask 130048
        %v3142 = vsel %vm3141, %v3139, %v3126
        %v3143 = vsel %vm3141, %v3140, %v3128
        %vm3144 = vcmask 195584
        %v3145 = vsel %vm3144, %v3142, %v3134
        %v3146 = vsel %vm3144, %v3143, %v3136
        %v3147 = vld [vmem:[#allocation29] sm:$0xff]
        %v3148 = vld [vmem:[#allocation29 + $0x8] sm:$0xff]
        %v3149 = vld [vmem:[#allocation29 + $0x10] sm:$0xff]
        %v3150 = vld [vmem:[#allocation29 + $0x18] sm:$0xff]
        %v3151 = vld [vmem:[#allocation31] sm:$0x1]
        %v3153 = vlaneseq
        %v3154 = vshrl.u32 %v3153, 7
        %v3155 = vsub.s32 0, %v3154
        %v3156 = vrot.slane %v3151, %v3155
        %v3159 = vsel %vm1211, %v3145, 0
        %v3162 = vsel %vm1211, %v3146, 0
        %3164 = vmatprep.subr.mxu0 0.0
        %3165 = vmatpush1.msra.mxu0 %v3147
        %3166 = vmatprep.subr.mxu0 0.0
        %3167 = vmatpush1.msra.mxu0 %v3148
        %3168 = vmatprep.subr.mxu0 0.0
        %3169 = vmatpush1.msra.mxu0 %v3149
        %3170 = vmatprep.subr.mxu0 0.0
        %3171 = vmatpush1.msra.mxu0 %v3150
        %3172 = vmatprep.subr.mxu0 0.0
        %3173 = vmatpush1.msra.mxu0 0.0
        %3174 = vmatprep.subr.mxu0 0.0
        %3175 = vmatpush1.msra.mxu0 0.0
        %3176 = vmatprep.subr.mxu0 0.0
        %3177 = vmatpush1.msra.mxu0 0.0
        %3178 = vmatprep.subr.mxu0 0.0
        %3179 = vmatpush1.msra.mxu0 0.0
        %3180 = vmatprep.subr.mxu0 0.0
        %3181 = vmatpush1.msra.mxu0 0.0
        %3182 = vmatprep.subr.mxu0 0.0
        %3183 = vmatpush1.msra.mxu0 0.0
        %3184 = vmatprep.subr.mxu0 0.0
        %3185 = vmatpush1.msra.mxu0 0.0
        %3186 = vmatprep.subr.mxu0 0.0
        %3187 = vmatpush1.msra.mxu0 0.0
        %3188 = vmatprep.subr.mxu0 0.0
        %3189 = vmatpush1.msra.mxu0 0.0
        %3190 = vmatprep.subr.mxu0 0.0
        %3191 = vmatpush1.msra.mxu0 0.0
        %3192 = vmatprep.subr.mxu0 0.0
        %3193 = vmatpush1.msra.mxu0 0.0
        %3194 = vmatprep.subr.mxu0 0.0
        %3195 = vmatpush1.msra.mxu0 0.0
        %3196 = vmatprep.subr.mxu0 0.0
        %3197 = vmatpush1.msra.mxu0 0.0
        %3198 = vmatprep.subr.mxu0 0.0
        %3199 = vmatpush1.msra.mxu0 0.0
        %3200 = vmatprep.subr.mxu0 0.0
        %3201 = vmatpush1.msra.mxu0 0.0
        %3202 = vmatprep.subr.mxu0 0.0
        %3203 = vmatpush1.msra.mxu0 0.0
        %3204 = vmatprep.subr.mxu0 0.0
        %3205 = vmatpush1.msra.mxu0 0.0
        %3206 = vmatprep.subr.mxu0 0.0
        %3207 = vmatpush1.msra.mxu0 0.0
        %3208 = vmatprep.subr.mxu0 0.0
        %3209 = vmatpush1.msra.mxu0 0.0
        %3210 = vmatprep.subr.mxu0 0.0
        %3211 = vmatpush1.msra.mxu0 0.0
        %3212 = vmatprep.subr.mxu0 0.0
        %3213 = vmatpush1.msra.mxu0 0.0
        %3214 = vmatprep.subr.mxu0 0.0
        %3215 = vmatpush1.msra.mxu0 0.0
        %3216 = vmatprep.subr.mxu0 0.0
        %3217 = vmatpush1.msra.mxu0 0.0
        %3218 = vmatprep.subr.mxu0 0.0
        %3219 = vmatpush1.msra.mxu0 0.0
        %3220 = vmatprep.subr.mxu0 0.0
        %3221 = vmatpush1.msra.mxu0 0.0
        %3222 = vmatprep.subr.mxu0 0.0
        %3223 = vmatpush1.msra.mxu0 0.0
        %3224 = vmatprep.subr.mxu0 0.0
        %3225 = vmatpush1.msra.mxu0 0.0
        %3226 = vmatprep.subr.mxu0 0.0
        %3227 = vmatpush1.msra.mxu0 0.0
        %3228 = vmatprep.mubr.f32.mxu0 0.0
        %3229 = vmatmul.mubr.f32.gmra.mrb[0].mxu0 %v3159
        %v3230 = vpop.f32.mrb[0].mxu0
        %v3231 = vadd.f32 %v3156, %v3230
        %v3232 = vpop.f32.mrb[0].mxu0
        %3233 = vmatprep.mubr.f32.mxu0 0.0
        %3234 = vmatmul.mubr.f32.gmra.mrb[0].mxu0 %v3162
        %v3235 = vpop.f32.mrb[0].mxu0
        %v3236 = vadd.f32 %v3156, %v3235
        %v3237 = vpop.f32.mrb[0].mxu0
        %3238 = vdwg.mxu0
        %v3239 = vld [vmem:[%s22] sm:$0xff]
        %v3240 = vld [vmem:[%s22 + $0x8] sm:$0xff]
        %v3241 = vld [vmem:[%s22 + $0x10] sm:$0xff]
        %v3242 = vld [vmem:[%s22 + $0x18] sm:$0xff]
        %v3243 = vld [vmem:[%s22 + $0x20] sm:$0xff]
        %v3244 = vld [vmem:[%s22 + $0x28] sm:$0xff]
        %v3245 = vld [vmem:[%s22 + $0x30] sm:$0xff]
        %v3246 = vld [vmem:[%s22 + $0x38] sm:$0xff]
        %v3248 = vsel %vm1211, %v3231, 0
        %v3251 = vsel %vm1211, %v3236, 0
        %3253 = vmatprep.subr.mxu0 0.0
        %3254 = vmatpush1.msra.mxu0 %v3243
        %3255 = vmatprep.subr.mxu0 0.0
        %3256 = vmatpush1.msra.mxu0 %v3244
        %3257 = vmatprep.subr.mxu0 0.0
        %3258 = vmatpush1.msra.mxu0 %v3245
        %3259 = vmatprep.subr.mxu0 0.0
        %3260 = vmatpush1.msra.mxu0 %v3246
        %3261 = vmatprep.subr.mxu0 0.0
        %3262 = vmatpush1.msra.mxu0 0.0
        %3263 = vmatprep.subr.mxu0 0.0
        %3264 = vmatpush1.msra.mxu0 0.0
        %3265 = vmatprep.subr.mxu0 0.0
        %3266 = vmatpush1.msra.mxu0 0.0
        %3267 = vmatprep.subr.mxu0 0.0
        %3268 = vmatpush1.msra.mxu0 0.0
        %3269 = vmatprep.subr.mxu0 0.0
        %3270 = vmatpush1.msra.mxu0 0.0
        %3271 = vmatprep.subr.mxu0 0.0
        %3272 = vmatpush1.msra.mxu0 0.0
        %3273 = vmatprep.subr.mxu0 0.0
        %3274 = vmatpush1.msra.mxu0 0.0
        %3275 = vmatprep.subr.mxu0 0.0
        %3276 = vmatpush1.msra.mxu0 0.0
        %3277 = vmatprep.subr.mxu0 0.0
        %3278 = vmatpush1.msra.mxu0 0.0
        %3279 = vmatprep.subr.mxu0 0.0
        %3280 = vmatpush1.msra.mxu0 0.0
        %3281 = vmatprep.subr.mxu0 0.0
        %3282 = vmatpush1.msra.mxu0 0.0
        %3283 = vmatprep.subr.mxu0 0.0
        %3284 = vmatpush1.msra.mxu0 0.0
        %3285 = vmatprep.subr.mxu0 0.0
        %3286 = vmatpush1.msra.mxu0 0.0
        %3287 = vmatprep.subr.mxu0 0.0
        %3288 = vmatpush1.msra.mxu0 0.0
        %3289 = vmatprep.subr.mxu0 0.0
        %3290 = vmatpush1.msra.mxu0 0.0
        %3291 = vmatprep.subr.mxu0 0.0
        %3292 = vmatpush1.msra.mxu0 0.0
        %3293 = vmatprep.subr.mxu0 0.0
        %3294 = vmatpush1.msra.mxu0 0.0
        %3295 = vmatprep.subr.mxu0 0.0
        %3296 = vmatpush1.msra.mxu0 0.0
        %3297 = vmatprep.subr.mxu0 0.0
        %3298 = vmatpush1.msra.mxu0 0.0
        %3299 = vmatprep.subr.mxu0 0.0
        %3300 = vmatpush1.msra.mxu0 0.0
        %3301 = vmatprep.subr.mxu0 0.0
        %3302 = vmatpush1.msra.mxu0 0.0
        %3303 = vmatprep.subr.mxu0 0.0
        %3304 = vmatpush1.msra.mxu0 0.0
        %3305 = vmatprep.subr.mxu0 0.0
        %3306 = vmatpush1.msra.mxu0 0.0
        %3307 = vmatprep.subr.mxu0 0.0
        %3308 = vmatpush1.msra.mxu0 0.0
        %3309 = vmatprep.subr.mxu0 0.0
        %3310 = vmatpush1.msra.mxu0 0.0
        %3311 = vmatprep.subr.mxu0 0.0
        %3312 = vmatpush1.msra.mxu0 0.0
        %3313 = vmatprep.subr.mxu0 0.0
        %3314 = vmatpush1.msra.mxu0 0.0
        %3315 = vmatprep.subr.mxu0 0.0
        %3316 = vmatpush1.msra.mxu0 0.0
        %3317 = vmatprep.mubr.f32.mxu0 0.0
        %3318 = vmatmul.mubr.f32.gmra.mrb[0].mxu0 %v3248
        %v3319 = vpop.f32.mrb[0].mxu0
        %v3320 = vadd.f32 0.0, %v3319
        %v3321 = vpop.f32.mrb[0].mxu0
        %3322 = vmatprep.mubr.f32.mxu0 0.0
        %3323 = vmatmul.mubr.f32.gmra.mrb[0].mxu0 %v3251
        %v3324 = vpop.f32.mrb[0].mxu0
        %v3325 = vadd.f32 0.0, %v3324
        %v3326 = vpop.f32.mrb[0].mxu0
        %3327 = vdwg.mxu0
        %3328 = vmatprep.subr.mxu0 0.0
        %3329 = vmatpush1.msra.mxu0 %v3239
        %3330 = vmatprep.subr.mxu0 0.0
        %3331 = vmatpush1.msra.mxu0 %v3240
        %3332 = vmatprep.subr.mxu0 0.0
        %3333 = vmatpush1.msra.mxu0 %v3241
        %3334 = vmatprep.subr.mxu0 0.0
        %3335 = vmatpush1.msra.mxu0 %v3242
        %3336 = vmatprep.subr.mxu0 0.0
        %3337 = vmatpush1.msra.mxu0 0.0
        %3338 = vmatprep.subr.mxu0 0.0
        %3339 = vmatpush1.msra.mxu0 0.0
        %3340 = vmatprep.subr.mxu0 0.0
        %3341 = vmatpush1.msra.mxu0 0.0
        %3342 = vmatprep.subr.mxu0 0.0
        %3343 = vmatpush1.msra.mxu0 0.0
        %3344 = vmatprep.subr.mxu0 0.0
        %3345 = vmatpush1.msra.mxu0 0.0
        %3346 = vmatprep.subr.mxu0 0.0
        %3347 = vmatpush1.msra.mxu0 0.0
        %3348 = vmatprep.subr.mxu0 0.0
        %3349 = vmatpush1.msra.mxu0 0.0
        %3350 = vmatprep.subr.mxu0 0.0
        %3351 = vmatpush1.msra.mxu0 0.0
        %3352 = vmatprep.subr.mxu0 0.0
        %3353 = vmatpush1.msra.mxu0 0.0
        %3354 = vmatprep.subr.mxu0 0.0
        %3355 = vmatpush1.msra.mxu0 0.0
        %3356 = vmatprep.subr.mxu0 0.0
        %3357 = vmatpush1.msra.mxu0 0.0
        %3358 = vmatprep.subr.mxu0 0.0
        %3359 = vmatpush1.msra.mxu0 0.0
        %3360 = vmatprep.subr.mxu0 0.0
        %3361 = vmatpush1.msra.mxu0 0.0
        %3362 = vmatprep.subr.mxu0 0.0
        %3363 = vmatpush1.msra.mxu0 0.0
        %3364 = vmatprep.subr.mxu0 0.0
        %3365 = vmatpush1.msra.mxu0 0.0
        %3366 = vmatprep.subr.mxu0 0.0
        %3367 = vmatpush1.msra.mxu0 0.0
        %3368 = vmatprep.subr.mxu0 0.0
        %3369 = vmatpush1.msra.mxu0 0.0
        %3370 = vmatprep.subr.mxu0 0.0
        %3371 = vmatpush1.msra.mxu0 0.0
        %3372 = vmatprep.subr.mxu0 0.0
        %3373 = vmatpush1.msra.mxu0 0.0
        %3374 = vmatprep.subr.mxu0 0.0
        %3375 = vmatpush1.msra.mxu0 0.0
        %3376 = vmatprep.subr.mxu0 0.0
        %3377 = vmatpush1.msra.mxu0 0.0
        %3378 = vmatprep.subr.mxu0 0.0
        %3379 = vmatpush1.msra.mxu0 0.0
        %3380 = vmatprep.subr.mxu0 0.0
        %3381 = vmatpush1.msra.mxu0 0.0
        %3382 = vmatprep.subr.mxu0 0.0
        %3383 = vmatpush1.msra.mxu0 0.0
        %3384 = vmatprep.subr.mxu0 0.0
        %3385 = vmatpush1.msra.mxu0 0.0
        %3386 = vmatprep.subr.mxu0 0.0
        %3387 = vmatpush1.msra.mxu0 0.0
        %3388 = vmatprep.subr.mxu0 0.0
        %3389 = vmatpush1.msra.mxu0 0.0
        %3390 = vmatprep.subr.mxu0 0.0
        %3391 = vmatpush1.msra.mxu0 0.0
        %3392 = vmatprep.mubr.f32.mxu0 0.0
        %3393 = vmatmul.mubr.f32.gmra.mrb[0].mxu0 %v1542
        %v3394 = vpop.f32.mrb[0].mxu0
        %v3395 = vadd.f32 %v3320, %v3394
        %v3396 = vpop.f32.mrb[0].mxu0
        %3397 = vmatprep.mubr.f32.mxu0 0.0
        %3398 = vmatmul.mubr.f32.gmra.mrb[0].mxu0 %v1545
        %v3399 = vpop.f32.mrb[0].mxu0
        %v3400 = vadd.f32 %v3325, %v3399
        %v3401 = vpop.f32.mrb[0].mxu0
        %3402 = vdwg.mxu0
        %v3403 = vld [vmem:[#allocation32] sm:$0x1]
        %v3405 = vlaneseq
        %v3406 = vshrl.u32 %v3405, 7
        %v3407 = vsub.s32 0, %v3406
        %v3408 = vrot.slane %v3403, %v3407
        %v3410 = vadd.f32 %v3395, %v3408
        %v3411 = vadd.f32 %v3400, %v3408
        %vm3412 = vcmask 523264
        %v3413 = vsel %vm3412, %v3410, 0.0
        %v3414 = vrot.slane %v3413, 4
        %v3415 = vadd.f32 %v3413, %v3414
        %v3416 = vrot.slane %v3415, 2
        %v3417 = vadd.f32 %v3415, %v3416
        %v3418 = vrot.slane %v3417, 1
        %v3419 = vadd.f32 %v3417, %v3418
        %v3420 = vsel %vm3412, %v3411, 0.0
        %v3421 = vrot.slane %v3420, 4
        %v3422 = vadd.f32 %v3420, %v3421
        %v3423 = vrot.slane %v3422, 2
        %v3424 = vadd.f32 %v3422, %v3423
        %v3425 = vrot.slane %v3424, 1
        %v3426 = vadd.f32 %v3424, %v3425
        %v3427 = vrcp.pop 8.0
        %v3428 = vmul.f32 %v3419, %v3427
        %v3429 = vmul.f32 %v3426, %v3427
        %v3430 = vsub.f32 %v3410, %v3428
        %v3431 = vsub.f32 %v3411, %v3429
        %v3432 = vmul.f32 %v3430, %v3430
        %v3433 = vmul.f32 %v3431, %v3431
        %v3434 = vsel %vm3412, %v3432, 0.0
        %v3435 = vrot.slane %v3434, 4
        %v3436 = vadd.f32 %v3434, %v3435
        %v3437 = vrot.slane %v3436, 2
        %v3438 = vadd.f32 %v3436, %v3437
        %v3439 = vrot.slane %v3438, 1
        %v3440 = vadd.f32 %v3438, %v3439
        %v3441 = vsel %vm3412, %v3433, 0.0
        %v3442 = vrot.slane %v3441, 4
        %v3443 = vadd.f32 %v3441, %v3442
        %v3444 = vrot.slane %v3443, 2
        %v3445 = vadd.f32 %v3443, %v3444
        %v3446 = vrot.slane %v3445, 1
        %v3447 = vadd.f32 %v3445, %v3446
        %v3448 = vmul.f32 %v3440, %v3427
        %v3449 = vmul.f32 %v3447, %v3427
        %v3450 = vadd.f32 %v3448, 1e-05
        %v3451 = vadd.f32 %v3449, 1e-05
        %v3452 = vrsqrt.pop %v3450
        %v3453 = vrsqrt.pop %v3451
        %v3454 = vmul.f32 %v3430, %v3452
        %v3455 = vmul.f32 %v3431, %v3453
        %v3456 = vmax.f32 %v3454, 0.0
        %v3457 = vmax.f32 %v3455, 0.0
        %v3458 = vld [vmem:[%s24] sm:$0xff]
        %v3459 = vld [vmem:[%s24 + $0x8] sm:$0xff]
        %v3460 = vld [vmem:[%s24 + $0x10] sm:$0xff]
        %v3461 = vld [vmem:[%s24 + $0x18] sm:$0xff]
        %v3462 = vld [vmem:[%s24 + $0x20] sm:$0xff]
        %v3463 = vld [vmem:[%s24 + $0x28] sm:$0xff]
        %v3464 = vld [vmem:[%s24 + $0x30] sm:$0xff]
        %v3465 = vld [vmem:[%s24 + $0x38] sm:$0xff]
        %v3466 = vld [vmem:[%s25] sm:$0x1]
        %v3468 = vlaneseq
        %v3469 = vshrl.u32 %v3468, 7
        %v3470 = vsub.s32 0, %v3469
        %v3471 = vrot.slane %v3466, %v3470
        %v3474 = vsel %vm3412, %v3456, 0
        %v3477 = vsel %vm3412, %v3457, 0
        %3479 = vmatprep.subr.mxu0 0.0
        %3480 = vmatpush1.msra.mxu0 %v3458
        %3481 = vmatprep.subr.mxu0 0.0
        %3482 = vmatpush1.msra.mxu0 %v3459
        %3483 = vmatprep.subr.mxu0 0.0
        %3484 = vmatpush1.msra.mxu0 %v3460
        %3485 = vmatprep.subr.mxu0 0.0
        %3486 = vmatpush1.msra.mxu0 %v3461
        %3487 = vmatprep.subr.mxu0 0.0
        %3488 = vmatpush1.msra.mxu0 %v3462
        %3489 = vmatprep.subr.mxu0 0.0
        %3490 = vmatpush1.msra.mxu0 %v3463
        %3491 = vmatprep.subr.mxu0 0.0
        %3492 = vmatpush1.msra.mxu0 %v3464
        %3493 = vmatprep.subr.mxu0 0.0
        %3494 = vmatpush1.msra.mxu0 %v3465
        %3495 = vmatprep.subr.mxu0 0.0
        %3496 = vmatpush1.msra.mxu0 0.0
        %3497 = vmatprep.subr.mxu0 0.0
        %3498 = vmatpush1.msra.mxu0 0.0
        %3499 = vmatprep.subr.mxu0 0.0
        %3500 = vmatpush1.msra.mxu0 0.0
        %3501 = vmatprep.subr.mxu0 0.0
        %3502 = vmatpush1.msra.mxu0 0.0
        %3503 = vmatprep.subr.mxu0 0.0
        %3504 = vmatpush1.msra.mxu0 0.0
        %3505 = vmatprep.subr.mxu0 0.0
        %3506 = vmatpush1.msra.mxu0 0.0
        %3507 = vmatprep.subr.mxu0 0.0
        %3508 = vmatpush1.msra.mxu0 0.0
        %3509 = vmatprep.subr.mxu0 0.0
        %3510 = vmatpush1.msra.mxu0 0.0
        %3511 = vmatprep.subr.mxu0 0.0
        %3512 = vmatpush1.msra.mxu0 0.0
        %3513 = vmatprep.subr.mxu0 0.0
        %3514 = vmatpush1.msra.mxu0 0.0
        %3515 = vmatprep.subr.mxu0 0.0
        %3516 = vmatpush1.msra.mxu0 0.0
        %3517 = vmatprep.subr.mxu0 0.0
        %3518 = vmatpush1.msra.mxu0 0.0
        %3519 = vmatprep.subr.mxu0 0.0
        %3520 = vmatpush1.msra.mxu0 0.0
        %3521 = vmatprep.subr.mxu0 0.0
        %3522 = vmatpush1.msra.mxu0 0.0
        %3523 = vmatprep.subr.mxu0 0.0
        %3524 = vmatpush1.msra.mxu0 0.0
        %3525 = vmatprep.subr.mxu0 0.0
        %3526 = vmatpush1.msra.mxu0 0.0
        %3527 = vmatprep.subr.mxu0 0.0
        %3528 = vmatpush1.msra.mxu0 0.0
        %3529 = vmatprep.subr.mxu0 0.0
        %3530 = vmatpush1.msra.mxu0 0.0
        %3531 = vmatprep.subr.mxu0 0.0
        %3532 = vmatpush1.msra.mxu0 0.0
        %3533 = vmatprep.subr.mxu0 0.0
        %3534 = vmatpush1.msra.mxu0 0.0
        %3535 = vmatprep.subr.mxu0 0.0
        %3536 = vmatpush1.msra.mxu0 0.0
        %3537 = vmatprep.subr.mxu0 0.0
        %3538 = vmatpush1.msra.mxu0 0.0
        %3539 = vmatprep.subr.mxu0 0.0
        %3540 = vmatpush1.msra.mxu0 0.0
        %3541 = vmatprep.subr.mxu0 0.0
        %3542 = vmatpush1.msra.mxu0 0.0
        %3543 = vmatprep.mubr.f32.mxu0 0.0
        %3544 = vmatmul.mubr.f32.gmra.mrb[0].mxu0 %v3474
        %v3545 = vpop.f32.mrb[0].mxu0
        %v3546 = vadd.f32 %v3471, %v3545
        %v3547 = vpop.f32.mrb[0].mxu0
        %3548 = vmatprep.mubr.f32.mxu0 0.0
        %3549 = vmatmul.mubr.f32.gmra.mrb[0].mxu0 %v3477
        %v3550 = vpop.f32.mrb[0].mxu0
        %v3551 = vadd.f32 %v3471, %v3550
        %v3552 = vpop.f32.mrb[0].mxu0
        %3553 = vdwg.mxu0
        %v3554 = vadd.f32 %v1528, %v3546
        %v3555 = vadd.f32 %v1529, %v3551
        %s3556 = scalar_lea.vmem %s14, 32
        %v3557 = vld [vmem:[%s3556] sm:$0xff]
        %v3558 = vld [vmem:[%s3556 + $0x8] sm:$0xff]
        %v3559 = vld [vmem:[%s3556 + $0x10] sm:$0xff]
        %v3560 = vld [vmem:[%s3556 + $0x18] sm:$0xff]
        %s3561 = scalar_lea.vmem [#allocation23], 1
        %v3562 = vld [vmem:[%s3561] sm:$0x1]
        %v3564 = vlaneseq
        %v3565 = vshrl.u32 %v3564, 7
        %v3566 = vsub.s32 0, %v3565
        %v3567 = vrot.slane %v3562, %v3566
        %v3570 = vsel %vm1211, %v3554, 0
        %v3573 = vsel %vm1211, %v3555, 0
        %3575 = vmatprep.subr.mxu0 0.0
        %3576 = vmatpush1.msra.mxu0 %v3557
        %3577 = vmatprep.subr.mxu0 0.0
        %3578 = vmatpush1.msra.mxu0 %v3558
        %3579 = vmatprep.subr.mxu0 0.0
        %3580 = vmatpush1.msra.mxu0 %v3559
        %3581 = vmatprep.subr.mxu0 0.0
        %3582 = vmatpush1.msra.mxu0 %v3560
        %3583 = vmatprep.subr.mxu0 0.0
        %3584 = vmatpush1.msra.mxu0 0.0
        %3585 = vmatprep.subr.mxu0 0.0
        %3586 = vmatpush1.msra.mxu0 0.0
        %3587 = vmatprep.subr.mxu0 0.0
        %3588 = vmatpush1.msra.mxu0 0.0
        %3589 = vmatprep.subr.mxu0 0.0
        %3590 = vmatpush1.msra.mxu0 0.0
        %3591 = vmatprep.subr.mxu0 0.0
        %3592 = vmatpush1.msra.mxu0 0.0
        %3593 = vmatprep.subr.mxu0 0.0
        %3594 = vmatpush1.msra.mxu0 0.0
        %3595 = vmatprep.subr.mxu0 0.0
        %3596 = vmatpush1.msra.mxu0 0.0
        %3597 = vmatprep.subr.mxu0 0.0
        %3598 = vmatpush1.msra.mxu0 0.0
        %3599 = vmatprep.subr.mxu0 0.0
        %3600 = vmatpush1.msra.mxu0 0.0
        %3601 = vmatprep.subr.mxu0 0.0
        %3602 = vmatpush1.msra.mxu0 0.0
        %3603 = vmatprep.subr.mxu0 0.0
        %3604 = vmatpush1.msra.mxu0 0.0
        %3605 = vmatprep.subr.mxu0 0.0
        %3606 = vmatpush1.msra.mxu0 0.0
        %3607 = vmatprep.subr.mxu0 0.0
        %3608 = vmatpush1.msra.mxu0 0.0
        %3609 = vmatprep.subr.mxu0 0.0
        %3610 = vmatpush1.msra.mxu0 0.0
        %3611 = vmatprep.subr.mxu0 0.0
        %3612 = vmatpush1.msra.mxu0 0.0
        %3613 = vmatprep.subr.mxu0 0.0
        %3614 = vmatpush1.msra.mxu0 0.0
        %3615 = vmatprep.subr.mxu0 0.0
        %3616 = vmatpush1.msra.mxu0 0.0
        %3617 = vmatprep.subr.mxu0 0.0
        %3618 = vmatpush1.msra.mxu0 0.0
        %3619 = vmatprep.subr.mxu0 0.0
        %3620 = vmatpush1.msra.mxu0 0.0
        %3621 = vmatprep.subr.mxu0 0.0
        %3622 = vmatpush1.msra.mxu0 0.0
        %3623 = vmatprep.subr.mxu0 0.0
        %3624 = vmatpush1.msra.mxu0 0.0
        %3625 = vmatprep.subr.mxu0 0.0
        %3626 = vmatpush1.msra.mxu0 0.0
        %3627 = vmatprep.subr.mxu0 0.0
        %3628 = vmatpush1.msra.mxu0 0.0
        %3629 = vmatprep.subr.mxu0 0.0
        %3630 = vmatpush1.msra.mxu0 0.0
        %3631 = vmatprep.subr.mxu0 0.0
        %3632 = vmatpush1.msra.mxu0 0.0
        %3633 = vmatprep.subr.mxu0 0.0
        %3634 = vmatpush1.msra.mxu0 0.0
        %3635 = vmatprep.subr.mxu0 0.0
        %3636 = vmatpush1.msra.mxu0 0.0
        %3637 = vmatprep.subr.mxu0 0.0
        %3638 = vmatpush1.msra.mxu0 0.0
        %3639 = vmatprep.mubr.f32.mxu0 0.0
        %3640 = vmatmul.mubr.f32.gmra.mrb[0].mxu0 %v3570
        %v3641 = vpop.f32.mrb[0].mxu0
        %v3642 = vadd.f32 %v3567, %v3641
        %v3643 = vpop.f32.mrb[0].mxu0
        %3644 = vmatprep.mubr.f32.mxu0 0.0
        %3645 = vmatmul.mubr.f32.gmra.mrb[0].mxu0 %v3573
        %v3646 = vpop.f32.mrb[0].mxu0
        %v3647 = vadd.f32 %v3567, %v3646
        %v3648 = vpop.f32.mrb[0].mxu0
        %3649 = vdwg.mxu0
        %s3650 = scalar_lea.vmem %s16, 32
        %v3651 = vld [vmem:[%s3650] sm:$0xff]
        %v3652 = vld [vmem:[%s3650 + $0x8] sm:$0xff]
        %v3653 = vld [vmem:[%s3650 + $0x10] sm:$0xff]
        %v3654 = vld [vmem:[%s3650 + $0x18] sm:$0xff]
        %s3655 = scalar_lea.vmem [#allocation25], 1
        %v3656 = vld [vmem:[%s3655] sm:$0x1]
        %v3658 = vlaneseq
        %v3659 = vshrl.u32 %v3658, 7
        %v3660 = vsub.s32 0, %v3659
        %v3661 = vrot.slane %v3656, %v3660
        %3663 = vmatprep.subr.mxu0 0.0
        %3664 = vmatpush1.msra.mxu0 %v3651
        %3665 = vmatprep.subr.mxu0 0.0
        %3666 = vmatpush1.msra.mxu0 %v3652
        %3667 = vmatprep.subr.mxu0 0.0
        %3668 = vmatpush1.msra.mxu0 %v3653
        %3669 = vmatprep.subr.mxu0 0.0
        %3670 = vmatpush1.msra.mxu0 %v3654
        %3671 = vmatprep.subr.mxu0 0.0
        %3672 = vmatpush1.msra.mxu0 0.0
        %3673 = vmatprep.subr.mxu0 0.0
        %3674 = vmatpush1.msra.mxu0 0.0
        %3675 = vmatprep.subr.mxu0 0.0
        %3676 = vmatpush1.msra.mxu0 0.0
        %3677 = vmatprep.subr.mxu0 0.0
        %3678 = vmatpush1.msra.mxu0 0.0
        %3679 = vmatprep.subr.mxu0 0.0
        %3680 = vmatpush1.msra.mxu0 0.0
        %3681 = vmatprep.subr.mxu0 0.0
        %3682 = vmatpush1.msra.mxu0 0.0
        %3683 = vmatprep.subr.mxu0 0.0
        %3684 = vmatpush1.msra.mxu0 0.0
        %3685 = vmatprep.subr.mxu0 0.0
        %3686 = vmatpush1.msra.mxu0 0.0
        %3687 = vmatprep.subr.mxu0 0.0
        %3688 = vmatpush1.msra.mxu0 0.0
        %3689 = vmatprep.subr.mxu0 0.0
        %3690 = vmatpush1.msra.mxu0 0.0
        %3691 = vmatprep.subr.mxu0 0.0
        %3692 = vmatpush1.msra.mxu0 0.0
        %3693 = vmatprep.subr.mxu0 0.0
        %3694 = vmatpush1.msra.mxu0 0.0
        %3695 = vmatprep.subr.mxu0 0.0
        %3696 = vmatpush1.msra.mxu0 0.0
        %3697 = vmatprep.subr.mxu0 0.0
        %3698 = vmatpush1.msra.mxu0 0.0
        %3699 = vmatprep.subr.mxu0 0.0
        %3700 = vmatpush1.msra.mxu0 0.0
        %3701 = vmatprep.subr.mxu0 0.0
        %3702 = vmatpush1.msra.mxu0 0.0
        %3703 = vmatprep.subr.mxu0 0.0
        %3704 = vmatpush1.msra.mxu0 0.0
        %3705 = vmatprep.subr.mxu0 0.0
        %3706 = vmatpush1.msra.mxu0 0.0
        %3707 = vmatprep.subr.mxu0 0.0
        %3708 = vmatpush1.msra.mxu0 0.0
        %3709 = vmatprep.subr.mxu0 0.0
        %3710 = vmatpush1.msra.mxu0 0.0
        %3711 = vmatprep.subr.mxu0 0.0
        %3712 = vmatpush1.msra.mxu0 0.0
        %3713 = vmatprep.subr.mxu0 0.0
        %3714 = vmatpush1.msra.mxu0 0.0
        %3715 = vmatprep.subr.mxu0 0.0
        %3716 = vmatpush1.msra.mxu0 0.0
        %3717 = vmatprep.subr.mxu0 0.0
        %3718 = vmatpush1.msra.mxu0 0.0
        %3719 = vmatprep.subr.mxu0 0.0
        %3720 = vmatpush1.msra.mxu0 0.0
        %3721 = vmatprep.subr.mxu0 0.0
        %3722 = vmatpush1.msra.mxu0 0.0
        %3723 = vmatprep.subr.mxu0 0.0
        %3724 = vmatpush1.msra.mxu0 0.0
        %3725 = vmatprep.subr.mxu0 0.0
        %3726 = vmatpush1.msra.mxu0 0.0
        %3727 = vmatprep.mubr.f32.mxu0 0.0
        %3728 = vmatmul.mubr.f32.gmra.mrb[0].mxu0 %v3570
        %v3729 = vpop.f32.mrb[0].mxu0
        %v3730 = vadd.f32 %v3661, %v3729
        %v3731 = vpop.f32.mrb[0].mxu0
        %3732 = vmatprep.mubr.f32.mxu0 0.0
        %3733 = vmatmul.mubr.f32.gmra.mrb[0].mxu0 %v3573
        %v3734 = vpop.f32.mrb[0].mxu0
        %v3735 = vadd.f32 %v3661, %v3734
        %v3736 = vpop.f32.mrb[0].mxu0
        %3737 = vdwg.mxu0
        %s3738 = scalar_lea.vmem [#allocation26], 32
        %v3739 = vld [vmem:[%s3738] sm:$0xff]
        %v3740 = vld [vmem:[%s3738 + $0x8] sm:$0xff]
        %v3741 = vld [vmem:[%s3738 + $0x10] sm:$0xff]
        %v3742 = vld [vmem:[%s3738 + $0x18] sm:$0xff]
        %s3743 = scalar_lea.vmem [#allocation28], 1
        %v3744 = vld [vmem:[%s3743] sm:$0x1]
        %v3746 = vlaneseq
        %v3747 = vshrl.u32 %v3746, 7
        %v3748 = vsub.s32 0, %v3747
        %v3749 = vrot.slane %v3744, %v3748
        %3751 = vmatprep.subr.mxu0 0.0
        %3752 = vmatpush1.msra.mxu0 %v3739
        %3753 = vmatprep.subr.mxu0 0.0
        %3754 = vmatpush1.msra.mxu0 %v3740
        %3755 = vmatprep.subr.mxu0 0.0
        %3756 = vmatpush1.msra.mxu0 %v3741
        %3757 = vmatprep.subr.mxu0 0.0
        %3758 = vmatpush1.msra.mxu0 %v3742
        %3759 = vmatprep.subr.mxu0 0.0
        %3760 = vmatpush1.msra.mxu0 0.0
        %3761 = vmatprep.subr.mxu0 0.0
        %3762 = vmatpush1.msra.mxu0 0.0
        %3763 = vmatprep.subr.mxu0 0.0
        %3764 = vmatpush1.msra.mxu0 0.0
        %3765 = vmatprep.subr.mxu0 0.0
        %3766 = vmatpush1.msra.mxu0 0.0
        %3767 = vmatprep.subr.mxu0 0.0
        %3768 = vmatpush1.msra.mxu0 0.0
        %3769 = vmatprep.subr.mxu0 0.0
        %3770 = vmatpush1.msra.mxu0 0.0
        %3771 = vmatprep.subr.mxu0 0.0
        %3772 = vmatpush1.msra.mxu0 0.0
        %3773 = vmatprep.subr.mxu0 0.0
        %3774 = vmatpush1.msra.mxu0 0.0
        %3775 = vmatprep.subr.mxu0 0.0
        %3776 = vmatpush1.msra.mxu0 0.0
        %3777 = vmatprep.subr.mxu0 0.0
        %3778 = vmatpush1.msra.mxu0 0.0
        %3779 = vmatprep.subr.mxu0 0.0
        %3780 = vmatpush1.msra.mxu0 0.0
        %3781 = vmatprep.subr.mxu0 0.0
        %3782 = vmatpush1.msra.mxu0 0.0
        %3783 = vmatprep.subr.mxu0 0.0
        %3784 = vmatpush1.msra.mxu0 0.0
        %3785 = vmatprep.subr.mxu0 0.0
        %3786 = vmatpush1.msra.mxu0 0.0
        %3787 = vmatprep.subr.mxu0 0.0
        %3788 = vmatpush1.msra.mxu0 0.0
        %3789 = vmatprep.subr.mxu0 0.0
        %3790 = vmatpush1.msra.mxu0 0.0
        %3791 = vmatprep.subr.mxu0 0.0
        %3792 = vmatpush1.msra.mxu0 0.0
        %3793 = vmatprep.subr.mxu0 0.0
        %3794 = vmatpush1.msra.mxu0 0.0
        %3795 = vmatprep.subr.mxu0 0.0
        %3796 = vmatpush1.msra.mxu0 0.0
        %3797 = vmatprep.subr.mxu0 0.0
        %3798 = vmatpush1.msra.mxu0 0.0
        %3799 = vmatprep.subr.mxu0 0.0
        %3800 = vmatpush1.msra.mxu0 0.0
        %3801 = vmatprep.subr.mxu0 0.0
        %3802 = vmatpush1.msra.mxu0 0.0
        %3803 = vmatprep.subr.mxu0 0.0
        %3804 = vmatpush1.msra.mxu0 0.0
        %3805 = vmatprep.subr.mxu0 0.0
        %3806 = vmatpush1.msra.mxu0 0.0
        %3807 = vmatprep.subr.mxu0 0.0
        %3808 = vmatpush1.msra.mxu0 0.0
        %3809 = vmatprep.subr.mxu0 0.0
        %3810 = vmatpush1.msra.mxu0 0.0
        %3811 = vmatprep.subr.mxu0 0.0
        %3812 = vmatpush1.msra.mxu0 0.0
        %3813 = vmatprep.subr.mxu0 0.0
        %3814 = vmatpush1.msra.mxu0 0.0
        %3815 = vmatprep.mubr.f32.mxu0 0.0
        %3816 = vmatmul.mubr.f32.gmra.mrb[0].mxu0 %v3570
        %v3817 = vpop.f32.mrb[0].mxu0
        %v3818 = vadd.f32 %v3749, %v3817
        %v3819 = vpop.f32.mrb[0].mxu0
        %3820 = vmatprep.mubr.f32.mxu0 0.0
        %3821 = vmatmul.mubr.f32.gmra.mrb[0].mxu0 %v3573
        %v3822 = vpop.f32.mrb[0].mxu0
        %v3823 = vadd.f32 %v3749, %v3822
        %v3824 = vpop.f32.mrb[0].mxu0
        %3825 = vdwg.mxu0
        %v3827 = vsel %vm1794, %v3642, 0
        %v3830 = vsel %vm1794, %v3735, 0
        %3832 = vmatprep.subr.mxu0 0.0
        %3833 = vmatpush1.xpose.msra.mxu0 %v3830
        %3834 = vmatprep.subr.mxu0 0.0
        %3835 = vmatpush1.xpose.msra.mxu0 0.0
        %3836 = vmatprep.subr.mxu0 0.0
        %3837 = vmatpush1.xpose.msra.mxu0 0.0
        %3838 = vmatprep.subr.mxu0 0.0
        %3839 = vmatpush1.xpose.msra.mxu0 0.0
        %3840 = vmatprep.subr.mxu0 0.0
        %3841 = vmatpush1.xpose.msra.mxu0 0.0
        %3842 = vmatprep.subr.mxu0 0.0
        %3843 = vmatpush1.xpose.msra.mxu0 0.0
        %3844 = vmatprep.subr.mxu0 0.0
        %3845 = vmatpush1.xpose.msra.mxu0 0.0
        %3846 = vmatprep.subr.mxu0 0.0
        %3847 = vmatpush1.xpose.msra.mxu0 0.0
        %3848 = vmatprep.subr.mxu0 0.0
        %3849 = vmatpush1.xpose.msra.mxu0 0.0
        %3850 = vmatprep.subr.mxu0 0.0
        %3851 = vmatpush1.xpose.msra.mxu0 0.0
        %3852 = vmatprep.subr.mxu0 0.0
        %3853 = vmatpush1.xpose.msra.mxu0 0.0
        %3854 = vmatprep.subr.mxu0 0.0
        %3855 = vmatpush1.xpose.msra.mxu0 0.0
        %3856 = vmatprep.subr.mxu0 0.0
        %3857 = vmatpush1.xpose.msra.mxu0 0.0
        %3858 = vmatprep.subr.mxu0 0.0
        %3859 = vmatpush1.xpose.msra.mxu0 0.0
        %3860 = vmatprep.subr.mxu0 0.0
        %3861 = vmatpush1.xpose.msra.mxu0 0.0
        %3862 = vmatprep.subr.mxu0 0.0
        %3863 = vmatpush1.xpose.msra.mxu0 0.0
        %3864 = vmatprep.subr.mxu0 0.0
        %3865 = vmatpush1.xpose.msra.mxu0 0.0
        %3866 = vmatprep.subr.mxu0 0.0
        %3867 = vmatpush1.xpose.msra.mxu0 0.0
        %3868 = vmatprep.subr.mxu0 0.0
        %3869 = vmatpush1.xpose.msra.mxu0 0.0
        %3870 = vmatprep.subr.mxu0 0.0
        %3871 = vmatpush1.xpose.msra.mxu0 0.0
        %3872 = vmatprep.subr.mxu0 0.0
        %3873 = vmatpush1.xpose.msra.mxu0 0.0
        %3874 = vmatprep.subr.mxu0 0.0
        %3875 = vmatpush1.xpose.msra.mxu0 0.0
        %3876 = vmatprep.subr.mxu0 0.0
        %3877 = vmatpush1.xpose.msra.mxu0 0.0
        %3878 = vmatprep.subr.mxu0 0.0
        %3879 = vmatpush1.xpose.msra.mxu0 0.0
        %3880 = vmatprep.subr.mxu0 0.0
        %3881 = vmatpush1.xpose.msra.mxu0 0.0
        %3882 = vmatprep.subr.mxu0 0.0
        %3883 = vmatpush1.xpose.msra.mxu0 0.0
        %3884 = vmatprep.subr.mxu0 0.0
        %3885 = vmatpush1.xpose.msra.mxu0 0.0
        %3886 = vmatprep.subr.mxu0 0.0
        %3887 = vmatpush1.xpose.msra.mxu0 0.0
        %3888 = vmatprep.subr.mxu0 0.0
        %3889 = vmatpush1.xpose.msra.mxu0 0.0
        %3890 = vmatprep.subr.mxu0 0.0
        %3891 = vmatpush1.xpose.msra.mxu0 0.0
        %3892 = vmatprep.subr.mxu0 0.0
        %3893 = vmatpush1.xpose.msra.mxu0 0.0
        %3894 = vmatprep.subr.mxu0 0.0
        %3895 = vmatpush1.xpose.msra.mxu0 0.0
        %3896 = vmatprep.mubr.f32.mxu0 0.0
        %3897 = vmatmul.mubr.f32.gmra.mrb[0].mxu0 %v3827
        %v3898 = vpop.f32.mrb[0].mxu0
        %v3899 = vadd.f32 0.0, %v3898
        %v3900 = vpop.f32.mrb[0].mxu0
        %3901 = vdwg.mxu0
        %v3903 = vsel %vm1794, %v3647, 0
        %v3906 = vsel %vm1794, %v3730, 0
        %3908 = vmatprep.subr.mxu0 0.0
        %3909 = vmatpush1.xpose.msra.mxu0 %v3906
        %3910 = vmatprep.subr.mxu0 0.0
        %3911 = vmatpush1.xpose.msra.mxu0 0.0
        %3912 = vmatprep.subr.mxu0 0.0
        %3913 = vmatpush1.xpose.msra.mxu0 0.0
        %3914 = vmatprep.subr.mxu0 0.0
        %3915 = vmatpush1.xpose.msra.mxu0 0.0
        %3916 = vmatprep.subr.mxu0 0.0
        %3917 = vmatpush1.xpose.msra.mxu0 0.0
        %3918 = vmatprep.subr.mxu0 0.0
        %3919 = vmatpush1.xpose.msra.mxu0 0.0
        %3920 = vmatprep.subr.mxu0 0.0
        %3921 = vmatpush1.xpose.msra.mxu0 0.0
        %3922 = vmatprep.subr.mxu0 0.0
        %3923 = vmatpush1.xpose.msra.mxu0 0.0
        %3924 = vmatprep.subr.mxu0 0.0
        %3925 = vmatpush1.xpose.msra.mxu0 0.0
        %3926 = vmatprep.subr.mxu0 0.0
        %3927 = vmatpush1.xpose.msra.mxu0 0.0
        %3928 = vmatprep.subr.mxu0 0.0
        %3929 = vmatpush1.xpose.msra.mxu0 0.0
        %3930 = vmatprep.subr.mxu0 0.0
        %3931 = vmatpush1.xpose.msra.mxu0 0.0
        %3932 = vmatprep.subr.mxu0 0.0
        %3933 = vmatpush1.xpose.msra.mxu0 0.0
        %3934 = vmatprep.subr.mxu0 0.0
        %3935 = vmatpush1.xpose.msra.mxu0 0.0
        %3936 = vmatprep.subr.mxu0 0.0
        %3937 = vmatpush1.xpose.msra.mxu0 0.0
        %3938 = vmatprep.subr.mxu0 0.0
        %3939 = vmatpush1.xpose.msra.mxu0 0.0
        %3940 = vmatprep.subr.mxu0 0.0
        %3941 = vmatpush1.xpose.msra.mxu0 0.0
        %3942 = vmatprep.subr.mxu0 0.0
        %3943 = vmatpush1.xpose.msra.mxu0 0.0
        %3944 = vmatprep.subr.mxu0 0.0
        %3945 = vmatpush1.xpose.msra.mxu0 0.0
        %3946 = vmatprep.subr.mxu0 0.0
        %3947 = vmatpush1.xpose.msra.mxu0 0.0
        %3948 = vmatprep.subr.mxu0 0.0
        %3949 = vmatpush1.xpose.msra.mxu0 0.0
        %3950 = vmatprep.subr.mxu0 0.0
        %3951 = vmatpush1.xpose.msra.mxu0 0.0
        %3952 = vmatprep.subr.mxu0 0.0
        %3953 = vmatpush1.xpose.msra.mxu0 0.0
        %3954 = vmatprep.subr.mxu0 0.0
        %3955 = vmatpush1.xpose.msra.mxu0 0.0
        %3956 = vmatprep.subr.mxu0 0.0
        %3957 = vmatpush1.xpose.msra.mxu0 0.0
        %3958 = vmatprep.subr.mxu0 0.0
        %3959 = vmatpush1.xpose.msra.mxu0 0.0
        %3960 = vmatprep.subr.mxu0 0.0
        %3961 = vmatpush1.xpose.msra.mxu0 0.0
        %3962 = vmatprep.subr.mxu0 0.0
        %3963 = vmatpush1.xpose.msra.mxu0 0.0
        %3964 = vmatprep.subr.mxu0 0.0
        %3965 = vmatpush1.xpose.msra.mxu0 0.0
        %3966 = vmatprep.subr.mxu0 0.0
        %3967 = vmatpush1.xpose.msra.mxu0 0.0
        %3968 = vmatprep.subr.mxu0 0.0
        %3969 = vmatpush1.xpose.msra.mxu0 0.0
        %3970 = vmatprep.subr.mxu0 0.0
        %3971 = vmatpush1.xpose.msra.mxu0 0.0
        %3972 = vmatprep.mubr.f32.mxu0 0.0
        %3973 = vmatmul.mubr.f32.gmra.mrb[0].mxu0 %v3903
        %v3974 = vpop.f32.mrb[0].mxu0
        %v3975 = vadd.f32 0.0, %v3974
        %v3976 = vpop.f32.mrb[0].mxu0
        %3977 = vdwg.mxu0
        %v3978 = vmul.f32 %v3899, 0.35355338
        %v3979 = vmul.f32 %v3975, 0.35355338
        %v3980 = vsel %vm1794, %v3978, -inf
        %3981 = vmax.xlane.f32.xlu0 %v3980
        %v3982 = vpop.xlane.xlu0 %3981
        %v3983 = vsel %vm1794, %v3979, -inf
        %3984 = vmax.xlane.f32.xlu0 %v3983
        %v3985 = vpop.xlane.xlu0 %3984
        %v3986 = vsub.f32 %v3978, %v3982
        %v3987 = vsub.f32 %v3979, %v3985
        %v3988 = vmul.f32 %v3986, 1.442695
        %v3989 = vpow.pop %v3988
        %v3990 = vmul.f32 %v3987, 1.442695
        %v3991 = vpow.pop %v3990
        %v3992 = vsel %vm1794, %v3989, 0.0
        %3993 = vadd.xlane.f32.xlu0 %v3992
        %v3994 = vpop.xlane.xlu0 %3993
        %v3995 = vsel %vm1794, %v3991, 0.0
        %3996 = vadd.xlane.f32.xlu0 %v3995
        %v3997 = vpop.xlane.xlu0 %3996
        %v3998 = vrcp.pop %v3994
        %v3999 = vrcp.pop %v3997
        %v4000 = vmul.f32 %v3989, %v3998
        %v4001 = vmul.f32 %v3991, %v3999
        %v4003 = vsel %vm1794, %v4000, 0
        %4005 = vmatprep.subr.mxu0 0.0
        %4006 = vmatpush1.msra.mxu0 %v3823
        %4007 = vmatprep.subr.mxu0 0.0
        %4008 = vmatpush1.msra.mxu0 0.0
        %4009 = vmatprep.subr.mxu0 0.0
        %4010 = vmatpush1.msra.mxu0 0.0
        %4011 = vmatprep.subr.mxu0 0.0
        %4012 = vmatpush1.msra.mxu0 0.0
        %4013 = vmatprep.subr.mxu0 0.0
        %4014 = vmatpush1.msra.mxu0 0.0
        %4015 = vmatprep.subr.mxu0 0.0
        %4016 = vmatpush1.msra.mxu0 0.0
        %4017 = vmatprep.subr.mxu0 0.0
        %4018 = vmatpush1.msra.mxu0 0.0
        %4019 = vmatprep.subr.mxu0 0.0
        %4020 = vmatpush1.msra.mxu0 0.0
        %4021 = vmatprep.subr.mxu0 0.0
        %4022 = vmatpush1.msra.mxu0 0.0
        %4023 = vmatprep.subr.mxu0 0.0
        %4024 = vmatpush1.msra.mxu0 0.0
        %4025 = vmatprep.subr.mxu0 0.0
        %4026 = vmatpush1.msra.mxu0 0.0
        %4027 = vmatprep.subr.mxu0 0.0
        %4028 = vmatpush1.msra.mxu0 0.0
        %4029 = vmatprep.subr.mxu0 0.0
        %4030 = vmatpush1.msra.mxu0 0.0
        %4031 = vmatprep.subr.mxu0 0.0
        %4032 = vmatpush1.msra.mxu0 0.0
        %4033 = vmatprep.subr.mxu0 0.0
        %4034 = vmatpush1.msra.mxu0 0.0
        %4035 = vmatprep.subr.mxu0 0.0
        %4036 = vmatpush1.msra.mxu0 0.0
        %4037 = vmatprep.subr.mxu0 0.0
        %4038 = vmatpush1.msra.mxu0 0.0
        %4039 = vmatprep.subr.mxu0 0.0
        %4040 = vmatpush1.msra.mxu0 0.0
        %4041 = vmatprep.subr.mxu0 0.0
        %4042 = vmatpush1.msra.mxu0 0.0
        %4043 = vmatprep.subr.mxu0 0.0
        %4044 = vmatpush1.msra.mxu0 0.0
        %4045 = vmatprep.subr.mxu0 0.0
        %4046 = vmatpush1.msra.mxu0 0.0
        %4047 = vmatprep.subr.mxu0 0.0
        %4048 = vmatpush1.msra.mxu0 0.0
        %4049 = vmatprep.subr.mxu0 0.0
        %4050 = vmatpush1.msra.mxu0 0.0
        %4051 = vmatprep.subr.mxu0 0.0
        %4052 = vmatpush1.msra.mxu0 0.0
        %4053 = vmatprep.subr.mxu0 0.0
        %4054 = vmatpush1.msra.mxu0 0.0
        %4055 = vmatprep.subr.mxu0 0.0
        %4056 = vmatpush1.msra.mxu0 0.0
        %4057 = vmatprep.subr.mxu0 0.0
        %4058 = vmatpush1.msra.mxu0 0.0
        %4059 = vmatprep.subr.mxu0 0.0
        %4060 = vmatpush1.msra.mxu0 0.0
        %4061 = vmatprep.subr.mxu0 0.0
        %4062 = vmatpush1.msra.mxu0 0.0
        %4063 = vmatprep.subr.mxu0 0.0
        %4064 = vmatpush1.msra.mxu0 0.0
        %4065 = vmatprep.subr.mxu0 0.0
        %4066 = vmatpush1.msra.mxu0 0.0
        %4067 = vmatprep.subr.mxu0 0.0
        %4068 = vmatpush1.msra.mxu0 0.0
        %4069 = vmatprep.mubr.f32.mxu0 0.0
        %4070 = vmatmul.mubr.f32.gmra.mrb[0].mxu0 %v4003
        %v4071 = vpop.f32.mrb[0].mxu0
        %v4072 = vadd.f32 0.0, %v4071
        %v4073 = vpop.f32.mrb[0].mxu0
        %4074 = vdwg.mxu0
        %v4076 = vsel %vm1794, %v4001, 0
        %4078 = vmatprep.subr.mxu0 0.0
        %4079 = vmatpush1.msra.mxu0 %v3818
        %4080 = vmatprep.subr.mxu0 0.0
        %4081 = vmatpush1.msra.mxu0 0.0
        %4082 = vmatprep.subr.mxu0 0.0
        %4083 = vmatpush1.msra.mxu0 0.0
        %4084 = vmatprep.subr.mxu0 0.0
        %4085 = vmatpush1.msra.mxu0 0.0
        %4086 = vmatprep.subr.mxu0 0.0
        %4087 = vmatpush1.msra.mxu0 0.0
        %4088 = vmatprep.subr.mxu0 0.0
        %4089 = vmatpush1.msra.mxu0 0.0
        %4090 = vmatprep.subr.mxu0 0.0
        %4091 = vmatpush1.msra.mxu0 0.0
        %4092 = vmatprep.subr.mxu0 0.0
        %4093 = vmatpush1.msra.mxu0 0.0
        %4094 = vmatprep.subr.mxu0 0.0
        %4095 = vmatpush1.msra.mxu0 0.0
        %4096 = vmatprep.subr.mxu0 0.0
        %4097 = vmatpush1.msra.mxu0 0.0
        %4098 = vmatprep.subr.mxu0 0.0
        %4099 = vmatpush1.msra.mxu0 0.0
        %4100 = vmatprep.subr.mxu0 0.0
        %4101 = vmatpush1.msra.mxu0 0.0
        %4102 = vmatprep.subr.mxu0 0.0
        %4103 = vmatpush1.msra.mxu0 0.0
        %4104 = vmatprep.subr.mxu0 0.0
        %4105 = vmatpush1.msra.mxu0 0.0
        %4106 = vmatprep.subr.mxu0 0.0
        %4107 = vmatpush1.msra.mxu0 0.0
        %4108 = vmatprep.subr.mxu0 0.0
        %4109 = vmatpush1.msra.mxu0 0.0
        %4110 = vmatprep.subr.mxu0 0.0
        %4111 = vmatpush1.msra.mxu0 0.0
        %4112 = vmatprep.subr.mxu0 0.0
        %4113 = vmatpush1.msra.mxu0 0.0
        %4114 = vmatprep.subr.mxu0 0.0
        %4115 = vmatpush1.msra.mxu0 0.0
        %4116 = vmatprep.subr.mxu0 0.0
        %4117 = vmatpush1.msra.mxu0 0.0
        %4118 = vmatprep.subr.mxu0 0.0
        %4119 = vmatpush1.msra.mxu0 0.0
        %4120 = vmatprep.subr.mxu0 0.0
        %4121 = vmatpush1.msra.mxu0 0.0
        %4122 = vmatprep.subr.mxu0 0.0
        %4123 = vmatpush1.msra.mxu0 0.0
        %4124 = vmatprep.subr.mxu0 0.0
        %4125 = vmatpush1.msra.mxu0 0.0
        %4126 = vmatprep.subr.mxu0 0.0
        %4127 = vmatpush1.msra.mxu0 0.0
        %4128 = vmatprep.subr.mxu0 0.0
        %4129 = vmatpush1.msra.mxu0 0.0
        %4130 = vmatprep.subr.mxu0 0.0
        %4131 = vmatpush1.msra.mxu0 0.0
        %4132 = vmatprep.subr.mxu0 0.0
        %4133 = vmatpush1.msra.mxu0 0.0
        %4134 = vmatprep.subr.mxu0 0.0
        %4135 = vmatpush1.msra.mxu0 0.0
        %4136 = vmatprep.subr.mxu0 0.0
        %4137 = vmatpush1.msra.mxu0 0.0
        %4138 = vmatprep.subr.mxu0 0.0
        %4139 = vmatpush1.msra.mxu0 0.0
        %4140 = vmatprep.subr.mxu0 0.0
        %4141 = vmatpush1.msra.mxu0 0.0
        %4142 = vmatprep.mubr.f32.mxu0 0.0
        %4143 = vmatmul.mubr.f32.gmra.mrb[0].mxu0 %v4076
        %v4144 = vpop.f32.mrb[0].mxu0
        %v4145 = vadd.f32 0.0, %v4144
        %v4146 = vpop.f32.mrb[0].mxu0
        %4147 = vdwg.mxu0
        %4148 = vrot.lane.b32.xlu0 %v3642, 120
        %v4149 = vpop.permute.xlu0 %4148
        %4150 = vrot.lane.b32.xlu0 %v3735, 120
        %v4151 = vpop.permute.xlu0 %4150
        %v4152 = vsel %vm1794, %v4149, 0
        %v4154 = vsel %vm1794, %v4151, 0
        %4156 = vmatprep.subr.mxu0 0.0
        %4157 = vmatpush1.xpose.msra.mxu0 %v4154
        %4158 = vmatprep.subr.mxu0 0.0
        %4159 = vmatpush1.xpose.msra.mxu0 0.0
        %4160 = vmatprep.subr.mxu0 0.0
        %4161 = vmatpush1.xpose.msra.mxu0 0.0
        %4162 = vmatprep.subr.mxu0 0.0
        %4163 = vmatpush1.xpose.msra.mxu0 0.0
        %4164 = vmatprep.subr.mxu0 0.0
        %4165 = vmatpush1.xpose.msra.mxu0 0.0
        %4166 = vmatprep.subr.mxu0 0.0
        %4167 = vmatpush1.xpose.msra.mxu0 0.0
        %4168 = vmatprep.subr.mxu0 0.0
        %4169 = vmatpush1.xpose.msra.mxu0 0.0
        %4170 = vmatprep.subr.mxu0 0.0
        %4171 = vmatpush1.xpose.msra.mxu0 0.0
        %4172 = vmatprep.subr.mxu0 0.0
        %4173 = vmatpush1.xpose.msra.mxu0 0.0
        %4174 = vmatprep.subr.mxu0 0.0
        %4175 = vmatpush1.xpose.msra.mxu0 0.0
        %4176 = vmatprep.subr.mxu0 0.0
        %4177 = vmatpush1.xpose.msra.mxu0 0.0
        %4178 = vmatprep.subr.mxu0 0.0
        %4179 = vmatpush1.xpose.msra.mxu0 0.0
        %4180 = vmatprep.subr.mxu0 0.0
        %4181 = vmatpush1.xpose.msra.mxu0 0.0
        %4182 = vmatprep.subr.mxu0 0.0
        %4183 = vmatpush1.xpose.msra.mxu0 0.0
        %4184 = vmatprep.subr.mxu0 0.0
        %4185 = vmatpush1.xpose.msra.mxu0 0.0
        %4186 = vmatprep.subr.mxu0 0.0
        %4187 = vmatpush1.xpose.msra.mxu0 0.0
        %4188 = vmatprep.subr.mxu0 0.0
        %4189 = vmatpush1.xpose.msra.mxu0 0.0
        %4190 = vmatprep.subr.mxu0 0.0
        %4191 = vmatpush1.xpose.msra.mxu0 0.0
        %4192 = vmatprep.subr.mxu0 0.0
        %4193 = vmatpush1.xpose.msra.mxu0 0.0
        %4194 = vmatprep.subr.mxu0 0.0
        %4195 = vmatpush1.xpose.msra.mxu0 0.0
        %4196 = vmatprep.subr.mxu0 0.0
        %4197 = vmatpush1.xpose.msra.mxu0 0.0
        %4198 = vmatprep.subr.mxu0 0.0
        %4199 = vmatpush1.xpose.msra.mxu0 0.0
        %4200 = vmatprep.subr.mxu0 0.0
        %4201 = vmatpush1.xpose.msra.mxu0 0.0
        %4202 = vmatprep.subr.mxu0 0.0
        %4203 = vmatpush1.xpose.msra.mxu0 0.0
        %4204 = vmatprep.subr.mxu0 0.0
        %4205 = vmatpush1.xpose.msra.mxu0 0.0
        %4206 = vmatprep.subr.mxu0 0.0
        %4207 = vmatpush1.xpose.msra.mxu0 0.0
        %4208 = vmatprep.subr.mxu0 0.0
        %4209 = vmatpush1.xpose.msra.mxu0 0.0
        %4210 = vmatprep.subr.mxu0 0.0
        %4211 = vmatpush1.xpose.msra.mxu0 0.0
        %4212 = vmatprep.subr.mxu0 0.0
        %4213 = vmatpush1.xpose.msra.mxu0 0.0
        %4214 = vmatprep.subr.mxu0 0.0
        %4215 = vmatpush1.xpose.msra.mxu0 0.0
        %4216 = vmatprep.subr.mxu0 0.0
        %4217 = vmatpush1.xpose.msra.mxu0 0.0
        %4218 = vmatprep.subr.mxu0 0.0
        %4219 = vmatpush1.xpose.msra.mxu0 0.0
        %4220 = vmatprep.mubr.f32.mxu0 0.0
        %4221 = vmatmul.mubr.f32.gmra.mrb[0].mxu0 %v4152
        %v4222 = vpop.f32.mrb[0].mxu0
        %v4223 = vadd.f32 0.0, %v4222
        %v4224 = vpop.f32.mrb[0].mxu0
        %4225 = vdwg.mxu0
        %4226 = vrot.lane.b32.xlu0 %v3647, 120
        %v4227 = vpop.permute.xlu0 %4226
        %4228 = vrot.lane.b32.xlu0 %v3730, 120
        %v4229 = vpop.permute.xlu0 %4228
        %v4230 = vsel %vm1794, %v4227, 0
        %v4232 = vsel %vm1794, %v4229, 0
        %4234 = vmatprep.subr.mxu0 0.0
        %4235 = vmatpush1.xpose.msra.mxu0 %v4232
        %4236 = vmatprep.subr.mxu0 0.0
        %4237 = vmatpush1.xpose.msra.mxu0 0.0
        %4238 = vmatprep.subr.mxu0 0.0
        %4239 = vmatpush1.xpose.msra.mxu0 0.0
        %4240 = vmatprep.subr.mxu0 0.0
        %4241 = vmatpush1.xpose.msra.mxu0 0.0
        %4242 = vmatprep.subr.mxu0 0.0
        %4243 = vmatpush1.xpose.msra.mxu0 0.0
        %4244 = vmatprep.subr.mxu0 0.0
        %4245 = vmatpush1.xpose.msra.mxu0 0.0
        %4246 = vmatprep.subr.mxu0 0.0
        %4247 = vmatpush1.xpose.msra.mxu0 0.0
        %4248 = vmatprep.subr.mxu0 0.0
        %4249 = vmatpush1.xpose.msra.mxu0 0.0
        %4250 = vmatprep.subr.mxu0 0.0
        %4251 = vmatpush1.xpose.msra.mxu0 0.0
        %4252 = vmatprep.subr.mxu0 0.0
        %4253 = vmatpush1.xpose.msra.mxu0 0.0
        %4254 = vmatprep.subr.mxu0 0.0
        %4255 = vmatpush1.xpose.msra.mxu0 0.0
        %4256 = vmatprep.subr.mxu0 0.0
        %4257 = vmatpush1.xpose.msra.mxu0 0.0
        %4258 = vmatprep.subr.mxu0 0.0
        %4259 = vmatpush1.xpose.msra.mxu0 0.0
        %4260 = vmatprep.subr.mxu0 0.0
        %4261 = vmatpush1.xpose.msra.mxu0 0.0
        %4262 = vmatprep.subr.mxu0 0.0
        %4263 = vmatpush1.xpose.msra.mxu0 0.0
        %4264 = vmatprep.subr.mxu0 0.0
        %4265 = vmatpush1.xpose.msra.mxu0 0.0
        %4266 = vmatprep.subr.mxu0 0.0
        %4267 = vmatpush1.xpose.msra.mxu0 0.0
        %4268 = vmatprep.subr.mxu0 0.0
        %4269 = vmatpush1.xpose.msra.mxu0 0.0
        %4270 = vmatprep.subr.mxu0 0.0
        %4271 = vmatpush1.xpose.msra.mxu0 0.0
        %4272 = vmatprep.subr.mxu0 0.0
        %4273 = vmatpush1.xpose.msra.mxu0 0.0
        %4274 = vmatprep.subr.mxu0 0.0
        %4275 = vmatpush1.xpose.msra.mxu0 0.0
        %4276 = vmatprep.subr.mxu0 0.0
        %4277 = vmatpush1.xpose.msra.mxu0 0.0
        %4278 = vmatprep.subr.mxu0 0.0
        %4279 = vmatpush1.xpose.msra.mxu0 0.0
        %4280 = vmatprep.subr.mxu0 0.0
        %4281 = vmatpush1.xpose.msra.mxu0 0.0
        %4282 = vmatprep.subr.mxu0 0.0
        %4283 = vmatpush1.xpose.msra.mxu0 0.0
        %4284 = vmatprep.subr.mxu0 0.0
        %4285 = vmatpush1.xpose.msra.mxu0 0.0
        %4286 = vmatprep.subr.mxu0 0.0
        %4287 = vmatpush1.xpose.msra.mxu0 0.0
        %4288 = vmatprep.subr.mxu0 0.0
        %4289 = vmatpush1.xpose.msra.mxu0 0.0
        %4290 = vmatprep.subr.mxu0 0.0
        %4291 = vmatpush1.xpose.msra.mxu0 0.0
        %4292 = vmatprep.subr.mxu0 0.0
        %4293 = vmatpush1.xpose.msra.mxu0 0.0
        %4294 = vmatprep.subr.mxu0 0.0
        %4295 = vmatpush1.xpose.msra.mxu0 0.0
        %4296 = vmatprep.subr.mxu0 0.0
        %4297 = vmatpush1.xpose.msra.mxu0 0.0
        %4298 = vmatprep.mubr.f32.mxu0 0.0
        %4299 = vmatmul.mubr.f32.gmra.mrb[0].mxu0 %v4230
        %v4300 = vpop.f32.mrb[0].mxu0
        %v4301 = vadd.f32 0.0, %v4300
        %v4302 = vpop.f32.mrb[0].mxu0
        %4303 = vdwg.mxu0
        %v4304 = vmul.f32 %v4223, 0.35355338
        %v4305 = vmul.f32 %v4301, 0.35355338
        %v4306 = vsel %vm1794, %v4304, -inf
        %4307 = vmax.xlane.f32.xlu0 %v4306
        %v4308 = vpop.xlane.xlu0 %4307
        %v4309 = vsel %vm1794, %v4305, -inf
        %4310 = vmax.xlane.f32.xlu0 %v4309
        %v4311 = vpop.xlane.xlu0 %4310
        %v4312 = vsub.f32 %v4304, %v4308
        %v4313 = vsub.f32 %v4305, %v4311
        %v4314 = vmul.f32 %v4312, 1.442695
        %v4315 = vpow.pop %v4314
        %v4316 = vmul.f32 %v4313, 1.442695
        %v4317 = vpow.pop %v4316
        %v4318 = vsel %vm1794, %v4315, 0.0
        %4319 = vadd.xlane.f32.xlu0 %v4318
        %v4320 = vpop.xlane.xlu0 %4319
        %v4321 = vsel %vm1794, %v4317, 0.0
        %4322 = vadd.xlane.f32.xlu0 %v4321
        %v4323 = vpop.xlane.xlu0 %4322
        %v4324 = vrcp.pop %v4320
        %v4325 = vrcp.pop %v4323
        %v4326 = vmul.f32 %v4315, %v4324
        %v4327 = vmul.f32 %v4317, %v4325
        %4329 = vrot.lane.b32.xlu0 %v3823, 120
        %v4330 = vpop.permute.xlu0 %4329
        %v4333 = vsel %vm1794, %v4326, 0
        %4335 = vmatprep.subr.mxu0 0.0
        %4336 = vmatpush1.msra.mxu0 %v4330
        %4337 = vmatprep.subr.mxu0 0.0
        %4338 = vmatpush1.msra.mxu0 0.0
        %4339 = vmatprep.subr.mxu0 0.0
        %4340 = vmatpush1.msra.mxu0 0.0
        %4341 = vmatprep.subr.mxu0 0.0
        %4342 = vmatpush1.msra.mxu0 0.0
        %4343 = vmatprep.subr.mxu0 0.0
        %4344 = vmatpush1.msra.mxu0 0.0
        %4345 = vmatprep.subr.mxu0 0.0
        %4346 = vmatpush1.msra.mxu0 0.0
        %4347 = vmatprep.subr.mxu0 0.0
        %4348 = vmatpush1.msra.mxu0 0.0
        %4349 = vmatprep.subr.mxu0 0.0
        %4350 = vmatpush1.msra.mxu0 0.0
        %4351 = vmatprep.subr.mxu0 0.0
        %4352 = vmatpush1.msra.mxu0 0.0
        %4353 = vmatprep.subr.mxu0 0.0
        %4354 = vmatpush1.msra.mxu0 0.0
        %4355 = vmatprep.subr.mxu0 0.0
        %4356 = vmatpush1.msra.mxu0 0.0
        %4357 = vmatprep.subr.mxu0 0.0
        %4358 = vmatpush1.msra.mxu0 0.0
        %4359 = vmatprep.subr.mxu0 0.0
        %4360 = vmatpush1.msra.mxu0 0.0
        %4361 = vmatprep.subr.mxu0 0.0
        %4362 = vmatpush1.msra.mxu0 0.0
        %4363 = vmatprep.subr.mxu0 0.0
        %4364 = vmatpush1.msra.mxu0 0.0
        %4365 = vmatprep.subr.mxu0 0.0
        %4366 = vmatpush1.msra.mxu0 0.0
        %4367 = vmatprep.subr.mxu0 0.0
        %4368 = vmatpush1.msra.mxu0 0.0
        %4369 = vmatprep.subr.mxu0 0.0
        %4370 = vmatpush1.msra.mxu0 0.0
        %4371 = vmatprep.subr.mxu0 0.0
        %4372 = vmatpush1.msra.mxu0 0.0
        %4373 = vmatprep.subr.mxu0 0.0
        %4374 = vmatpush1.msra.mxu0 0.0
        %4375 = vmatprep.subr.mxu0 0.0
        %4376 = vmatpush1.msra.mxu0 0.0
        %4377 = vmatprep.subr.mxu0 0.0
        %4378 = vmatpush1.msra.mxu0 0.0
        %4379 = vmatprep.subr.mxu0 0.0
        %4380 = vmatpush1.msra.mxu0 0.0
        %4381 = vmatprep.subr.mxu0 0.0
        %4382 = vmatpush1.msra.mxu0 0.0
        %4383 = vmatprep.subr.mxu0 0.0
        %4384 = vmatpush1.msra.mxu0 0.0
        %4385 = vmatprep.subr.mxu0 0.0
        %4386 = vmatpush1.msra.mxu0 0.0
        %4387 = vmatprep.subr.mxu0 0.0
        %4388 = vmatpush1.msra.mxu0 0.0
        %4389 = vmatprep.subr.mxu0 0.0
        %4390 = vmatpush1.msra.mxu0 0.0
        %4391 = vmatprep.subr.mxu0 0.0
        %4392 = vmatpush1.msra.mxu0 0.0
        %4393 = vmatprep.subr.mxu0 0.0
        %4394 = vmatpush1.msra.mxu0 0.0
        %4395 = vmatprep.subr.mxu0 0.0
        %4396 = vmatpush1.msra.mxu0 0.0
        %4397 = vmatprep.subr.mxu0 0.0
        %4398 = vmatpush1.msra.mxu0 0.0
        %4399 = vmatprep.mubr.f32.mxu0 0.0
        %4400 = vmatmul.mubr.f32.gmra.mrb[0].mxu0 %v4333
        %v4401 = vpop.f32.mrb[0].mxu0
        %v4402 = vadd.f32 0.0, %v4401
        %v4403 = vpop.f32.mrb[0].mxu0
        %4404 = vdwg.mxu0
        %4406 = vrot.lane.b32.xlu0 %v3818, 120
        %v4407 = vpop.permute.xlu0 %4406
        %v4410 = vsel %vm1794, %v4327, 0
        %4412 = vmatprep.subr.mxu0 0.0
        %4413 = vmatpush1.msra.mxu0 %v4407
        %4414 = vmatprep.subr.mxu0 0.0
        %4415 = vmatpush1.msra.mxu0 0.0
        %4416 = vmatprep.subr.mxu0 0.0
        %4417 = vmatpush1.msra.mxu0 0.0
        %4418 = vmatprep.subr.mxu0 0.0
        %4419 = vmatpush1.msra.mxu0 0.0
        %4420 = vmatprep.subr.mxu0 0.0
        %4421 = vmatpush1.msra.mxu0 0.0
        %4422 = vmatprep.subr.mxu0 0.0
        %4423 = vmatpush1.msra.mxu0 0.0
        %4424 = vmatprep.subr.mxu0 0.0
        %4425 = vmatpush1.msra.mxu0 0.0
        %4426 = vmatprep.subr.mxu0 0.0
        %4427 = vmatpush1.msra.mxu0 0.0
        %4428 = vmatprep.subr.mxu0 0.0
        %4429 = vmatpush1.msra.mxu0 0.0
        %4430 = vmatprep.subr.mxu0 0.0
        %4431 = vmatpush1.msra.mxu0 0.0
        %4432 = vmatprep.subr.mxu0 0.0
        %4433 = vmatpush1.msra.mxu0 0.0
        %4434 = vmatprep.subr.mxu0 0.0
        %4435 = vmatpush1.msra.mxu0 0.0
        %4436 = vmatprep.subr.mxu0 0.0
        %4437 = vmatpush1.msra.mxu0 0.0
        %4438 = vmatprep.subr.mxu0 0.0
        %4439 = vmatpush1.msra.mxu0 0.0
        %4440 = vmatprep.subr.mxu0 0.0
        %4441 = vmatpush1.msra.mxu0 0.0
        %4442 = vmatprep.subr.mxu0 0.0
        %4443 = vmatpush1.msra.mxu0 0.0
        %4444 = vmatprep.subr.mxu0 0.0
        %4445 = vmatpush1.msra.mxu0 0.0
        %4446 = vmatprep.subr.mxu0 0.0
        %4447 = vmatpush1.msra.mxu0 0.0
        %4448 = vmatprep.subr.mxu0 0.0
        %4449 = vmatpush1.msra.mxu0 0.0
        %4450 = vmatprep.subr.mxu0 0.0
        %4451 = vmatpush1.msra.mxu0 0.0
        %4452 = vmatprep.subr.mxu0 0.0
        %4453 = vmatpush1.msra.mxu0 0.0
        %4454 = vmatprep.subr.mxu0 0.0
        %4455 = vmatpush1.msra.mxu0 0.0
        %4456 = vmatprep.subr.mxu0 0.0
        %4457 = vmatpush1.msra.mxu0 0.0
        %4458 = vmatprep.subr.mxu0 0.0
        %4459 = vmatpush1.msra.mxu0 0.0
        %4460 = vmatprep.subr.mxu0 0.0
        %4461 = vmatpush1.msra.mxu0 0.0
        %4462 = vmatprep.subr.mxu0 0.0
        %4463 = vmatpush1.msra.mxu0 0.0
        %4464 = vmatprep.subr.mxu0 0.0
        %4465 = vmatpush1.msra.mxu0 0.0
        %4466 = vmatprep.subr.mxu0 0.0
        %4467 = vmatpush1.msra.mxu0 0.0
        %4468 = vmatprep.subr.mxu0 0.0
        %4469 = vmatpush1.msra.mxu0 0.0
        %4470 = vmatprep.subr.mxu0 0.0
        %4471 = vmatpush1.msra.mxu0 0.0
        %4472 = vmatprep.subr.mxu0 0.0
        %4473 = vmatpush1.msra.mxu0 0.0
        %4474 = vmatprep.subr.mxu0 0.0
        %4475 = vmatpush1.msra.mxu0 0.0
        %4476 = vmatprep.mubr.f32.mxu0 0.0
        %4477 = vmatmul.mubr.f32.gmra.mrb[0].mxu0 %v4410
        %v4478 = vpop.f32.mrb[0].mxu0
        %v4479 = vadd.f32 0.0, %v4478
        %v4480 = vpop.f32.mrb[0].mxu0
        %4481 = vdwg.mxu0
        %4482 = vrot.lane.b32.xlu0 %v3642, 112
        %v4483 = vpop.permute.xlu0 %4482
        %4484 = vrot.lane.b32.xlu0 %v3735, 112
        %v4485 = vpop.permute.xlu0 %4484
        %v4486 = vsel %vm1794, %v4483, 0
        %v4488 = vsel %vm1794, %v4485, 0
        %4490 = vmatprep.subr.mxu0 0.0
        %4491 = vmatpush1.xpose.msra.mxu0 %v4488
        %4492 = vmatprep.subr.mxu0 0.0
        %4493 = vmatpush1.xpose.msra.mxu0 0.0
        %4494 = vmatprep.subr.mxu0 0.0
        %4495 = vmatpush1.xpose.msra.mxu0 0.0
        %4496 = vmatprep.subr.mxu0 0.0
        %4497 = vmatpush1.xpose.msra.mxu0 0.0
        %4498 = vmatprep.subr.mxu0 0.0
        %4499 = vmatpush1.xpose.msra.mxu0 0.0
        %4500 = vmatprep.subr.mxu0 0.0
        %4501 = vmatpush1.xpose.msra.mxu0 0.0
        %4502 = vmatprep.subr.mxu0 0.0
        %4503 = vmatpush1.xpose.msra.mxu0 0.0
        %4504 = vmatprep.subr.mxu0 0.0
        %4505 = vmatpush1.xpose.msra.mxu0 0.0
        %4506 = vmatprep.subr.mxu0 0.0
        %4507 = vmatpush1.xpose.msra.mxu0 0.0
        %4508 = vmatprep.subr.mxu0 0.0
        %4509 = vmatpush1.xpose.msra.mxu0 0.0
        %4510 = vmatprep.subr.mxu0 0.0
        %4511 = vmatpush1.xpose.msra.mxu0 0.0
        %4512 = vmatprep.subr.mxu0 0.0
        %4513 = vmatpush1.xpose.msra.mxu0 0.0
        %4514 = vmatprep.subr.mxu0 0.0
        %4515 = vmatpush1.xpose.msra.mxu0 0.0
        %4516 = vmatprep.subr.mxu0 0.0
        %4517 = vmatpush1.xpose.msra.mxu0 0.0
        %4518 = vmatprep.subr.mxu0 0.0
        %4519 = vmatpush1.xpose.msra.mxu0 0.0
        %4520 = vmatprep.subr.mxu0 0.0
        %4521 = vmatpush1.xpose.msra.mxu0 0.0
        %4522 = vmatprep.subr.mxu0 0.0
        %4523 = vmatpush1.xpose.msra.mxu0 0.0
        %4524 = vmatprep.subr.mxu0 0.0
        %4525 = vmatpush1.xpose.msra.mxu0 0.0
        %4526 = vmatprep.subr.mxu0 0.0
        %4527 = vmatpush1.xpose.msra.mxu0 0.0
        %4528 = vmatprep.subr.mxu0 0.0
        %4529 = vmatpush1.xpose.msra.mxu0 0.0
        %4530 = vmatprep.subr.mxu0 0.0
        %4531 = vmatpush1.xpose.msra.mxu0 0.0
        %4532 = vmatprep.subr.mxu0 0.0
        %4533 = vmatpush1.xpose.msra.mxu0 0.0
        %4534 = vmatprep.subr.mxu0 0.0
        %4535 = vmatpush1.xpose.msra.mxu0 0.0
        %4536 = vmatprep.subr.mxu0 0.0
        %4537 = vmatpush1.xpose.msra.mxu0 0.0
        %4538 = vmatprep.subr.mxu0 0.0
        %4539 = vmatpush1.xpose.msra.mxu0 0.0
        %4540 = vmatprep.subr.mxu0 0.0
        %4541 = vmatpush1.xpose.msra.mxu0 0.0
        %4542 = vmatprep.subr.mxu0 0.0
        %4543 = vmatpush1.xpose.msra.mxu0 0.0
        %4544 = vmatprep.subr.mxu0 0.0
        %4545 = vmatpush1.xpose.msra.mxu0 0.0
        %4546 = vmatprep.subr.mxu0 0.0
        %4547 = vmatpush1.xpose.msra.mxu0 0.0
        %4548 = vmatprep.subr.mxu0 0.0
        %4549 = vmatpush1.xpose.msra.mxu0 0.0
        %4550 = vmatprep.subr.mxu0 0.0
        %4551 = vmatpush1.xpose.msra.mxu0 0.0
        %4552 = vmatprep.subr.mxu0 0.0
        %4553 = vmatpush1.xpose.msra.mxu0 0.0
        %4554 = vmatprep.mubr.f32.mxu0 0.0
        %4555 = vmatmul.mubr.f32.gmra.mrb[0].mxu0 %v4486
        %v4556 = vpop.f32.mrb[0].mxu0
        %v4557 = vadd.f32 0.0, %v4556
        %v4558 = vpop.f32.mrb[0].mxu0
        %4559 = vdwg.mxu0
        %4560 = vrot.lane.b32.xlu0 %v3647, 112
        %v4561 = vpop.permute.xlu0 %4560
        %4562 = vrot.lane.b32.xlu0 %v3730, 112
        %v4563 = vpop.permute.xlu0 %4562
        %v4564 = vsel %vm1794, %v4561, 0
        %v4566 = vsel %vm1794, %v4563, 0
        %4568 = vmatprep.subr.mxu0 0.0
        %4569 = vmatpush1.xpose.msra.mxu0 %v4566
        %4570 = vmatprep.subr.mxu0 0.0
        %4571 = vmatpush1.xpose.msra.mxu0 0.0
        %4572 = vmatprep.subr.mxu0 0.0
        %4573 = vmatpush1.xpose.msra.mxu0 0.0
        %4574 = vmatprep.subr.mxu0 0.0
        %4575 = vmatpush1.xpose.msra.mxu0 0.0
        %4576 = vmatprep.subr.mxu0 0.0
        %4577 = vmatpush1.xpose.msra.mxu0 0.0
        %4578 = vmatprep.subr.mxu0 0.0
        %4579 = vmatpush1.xpose.msra.mxu0 0.0
        %4580 = vmatprep.subr.mxu0 0.0
        %4581 = vmatpush1.xpose.msra.mxu0 0.0
        %4582 = vmatprep.subr.mxu0 0.0
        %4583 = vmatpush1.xpose.msra.mxu0 0.0
        %4584 = vmatprep.subr.mxu0 0.0
        %4585 = vmatpush1.xpose.msra.mxu0 0.0
        %4586 = vmatprep.subr.mxu0 0.0
        %4587 = vmatpush1.xpose.msra.mxu0 0.0
        %4588 = vmatprep.subr.mxu0 0.0
        %4589 = vmatpush1.xpose.msra.mxu0 0.0
        %4590 = vmatprep.subr.mxu0 0.0
        %4591 = vmatpush1.xpose.msra.mxu0 0.0
        %4592 = vmatprep.subr.mxu0 0.0
        %4593 = vmatpush1.xpose.msra.mxu0 0.0
        %4594 = vmatprep.subr.mxu0 0.0
        %4595 = vmatpush1.xpose.msra.mxu0 0.0
        %4596 = vmatprep.subr.mxu0 0.0
        %4597 = vmatpush1.xpose.msra.mxu0 0.0
        %4598 = vmatprep.subr.mxu0 0.0
        %4599 = vmatpush1.xpose.msra.mxu0 0.0
        %4600 = vmatprep.subr.mxu0 0.0
        %4601 = vmatpush1.xpose.msra.mxu0 0.0
        %4602 = vmatprep.subr.mxu0 0.0
        %4603 = vmatpush1.xpose.msra.mxu0 0.0
        %4604 = vmatprep.subr.mxu0 0.0
        %4605 = vmatpush1.xpose.msra.mxu0 0.0
        %4606 = vmatprep.subr.mxu0 0.0
        %4607 = vmatpush1.xpose.msra.mxu0 0.0
        %4608 = vmatprep.subr.mxu0 0.0
        %4609 = vmatpush1.xpose.msra.mxu0 0.0
        %4610 = vmatprep.subr.mxu0 0.0
        %4611 = vmatpush1.xpose.msra.mxu0 0.0
        %4612 = vmatprep.subr.mxu0 0.0
        %4613 = vmatpush1.xpose.msra.mxu0 0.0
        %4614 = vmatprep.subr.mxu0 0.0
        %4615 = vmatpush1.xpose.msra.mxu0 0.0
        %4616 = vmatprep.subr.mxu0 0.0
        %4617 = vmatpush1.xpose.msra.mxu0 0.0
        %4618 = vmatprep.subr.mxu0 0.0
        %4619 = vmatpush1.xpose.msra.mxu0 0.0
        %4620 = vmatprep.subr.mxu0 0.0
        %4621 = vmatpush1.xpose.msra.mxu0 0.0
        %4622 = vmatprep.subr.mxu0 0.0
        %4623 = vmatpush1.xpose.msra.mxu0 0.0
        %4624 = vmatprep.subr.mxu0 0.0
        %4625 = vmatpush1.xpose.msra.mxu0 0.0
        %4626 = vmatprep.subr.mxu0 0.0
        %4627 = vmatpush1.xpose.msra.mxu0 0.0
        %4628 = vmatprep.subr.mxu0 0.0
        %4629 = vmatpush1.xpose.msra.mxu0 0.0
        %4630 = vmatprep.subr.mxu0 0.0
        %4631 = vmatpush1.xpose.msra.mxu0 0.0
        %4632 = vmatprep.mubr.f32.mxu0 0.0
        %4633 = vmatmul.mubr.f32.gmra.mrb[0].mxu0 %v4564
        %v4634 = vpop.f32.mrb[0].mxu0
        %v4635 = vadd.f32 0.0, %v4634
        %v4636 = vpop.f32.mrb[0].mxu0
        %4637 = vdwg.mxu0
        %v4638 = vmul.f32 %v4557, 0.35355338
        %v4639 = vmul.f32 %v4635, 0.35355338
        %v4640 = vsel %vm1794, %v4638, -inf
        %4641 = vmax.xlane.f32.xlu0 %v4640
        %v4642 = vpop.xlane.xlu0 %4641
        %v4643 = vsel %vm1794, %v4639, -inf
        %4644 = vmax.xlane.f32.xlu0 %v4643
        %v4645 = vpop.xlane.xlu0 %4644
        %v4646 = vsub.f32 %v4638, %v4642
        %v4647 = vsub.f32 %v4639, %v4645
        %v4648 = vmul.f32 %v4646, 1.442695
        %v4649 = vpow.pop %v4648
        %v4650 = vmul.f32 %v4647, 1.442695
        %v4651 = vpow.pop %v4650
        %v4652 = vsel %vm1794, %v4649, 0.0
        %4653 = vadd.xlane.f32.xlu0 %v4652
        %v4654 = vpop.xlane.xlu0 %4653
        %v4655 = vsel %vm1794, %v4651, 0.0
        %4656 = vadd.xlane.f32.xlu0 %v4655
        %v4657 = vpop.xlane.xlu0 %4656
        %v4658 = vrcp.pop %v4654
        %v4659 = vrcp.pop %v4657
        %v4660 = vmul.f32 %v4649, %v4658
        %v4661 = vmul.f32 %v4651, %v4659
        %4662 = vrot.lane.b32.xlu0 %v3823, 112
        %v4663 = vpop.permute.xlu0 %4662
        %v4666 = vsel %vm1794, %v4660, 0
        %4668 = vmatprep.subr.mxu0 0.0
        %4669 = vmatpush1.msra.mxu0 %v4663
        %4670 = vmatprep.subr.mxu0 0.0
        %4671 = vmatpush1.msra.mxu0 0.0
        %4672 = vmatprep.subr.mxu0 0.0
        %4673 = vmatpush1.msra.mxu0 0.0
        %4674 = vmatprep.subr.mxu0 0.0
        %4675 = vmatpush1.msra.mxu0 0.0
        %4676 = vmatprep.subr.mxu0 0.0
        %4677 = vmatpush1.msra.mxu0 0.0
        %4678 = vmatprep.subr.mxu0 0.0
        %4679 = vmatpush1.msra.mxu0 0.0
        %4680 = vmatprep.subr.mxu0 0.0
        %4681 = vmatpush1.msra.mxu0 0.0
        %4682 = vmatprep.subr.mxu0 0.0
        %4683 = vmatpush1.msra.mxu0 0.0
        %4684 = vmatprep.subr.mxu0 0.0
        %4685 = vmatpush1.msra.mxu0 0.0
        %4686 = vmatprep.subr.mxu0 0.0
        %4687 = vmatpush1.msra.mxu0 0.0
        %4688 = vmatprep.subr.mxu0 0.0
        %4689 = vmatpush1.msra.mxu0 0.0
        %4690 = vmatprep.subr.mxu0 0.0
        %4691 = vmatpush1.msra.mxu0 0.0
        %4692 = vmatprep.subr.mxu0 0.0
        %4693 = vmatpush1.msra.mxu0 0.0
        %4694 = vmatprep.subr.mxu0 0.0
        %4695 = vmatpush1.msra.mxu0 0.0
        %4696 = vmatprep.subr.mxu0 0.0
        %4697 = vmatpush1.msra.mxu0 0.0
        %4698 = vmatprep.subr.mxu0 0.0
        %4699 = vmatpush1.msra.mxu0 0.0
        %4700 = vmatprep.subr.mxu0 0.0
        %4701 = vmatpush1.msra.mxu0 0.0
        %4702 = vmatprep.subr.mxu0 0.0
        %4703 = vmatpush1.msra.mxu0 0.0
        %4704 = vmatprep.subr.mxu0 0.0
        %4705 = vmatpush1.msra.mxu0 0.0
        %4706 = vmatprep.subr.mxu0 0.0
        %4707 = vmatpush1.msra.mxu0 0.0
        %4708 = vmatprep.subr.mxu0 0.0
        %4709 = vmatpush1.msra.mxu0 0.0
        %4710 = vmatprep.subr.mxu0 0.0
        %4711 = vmatpush1.msra.mxu0 0.0
        %4712 = vmatprep.subr.mxu0 0.0
        %4713 = vmatpush1.msra.mxu0 0.0
        %4714 = vmatprep.subr.mxu0 0.0
        %4715 = vmatpush1.msra.mxu0 0.0
        %4716 = vmatprep.subr.mxu0 0.0
        %4717 = vmatpush1.msra.mxu0 0.0
        %4718 = vmatprep.subr.mxu0 0.0
        %4719 = vmatpush1.msra.mxu0 0.0
        %4720 = vmatprep.subr.mxu0 0.0
        %4721 = vmatpush1.msra.mxu0 0.0
        %4722 = vmatprep.subr.mxu0 0.0
        %4723 = vmatpush1.msra.mxu0 0.0
        %4724 = vmatprep.subr.mxu0 0.0
        %4725 = vmatpush1.msra.mxu0 0.0
        %4726 = vmatprep.subr.mxu0 0.0
        %4727 = vmatpush1.msra.mxu0 0.0
        %4728 = vmatprep.subr.mxu0 0.0
        %4729 = vmatpush1.msra.mxu0 0.0
        %4730 = vmatprep.subr.mxu0 0.0
        %4731 = vmatpush1.msra.mxu0 0.0
        %4732 = vmatprep.mubr.f32.mxu0 0.0
        %4733 = vmatmul.mubr.f32.gmra.mrb[0].mxu0 %v4666
        %v4734 = vpop.f32.mrb[0].mxu0
        %v4735 = vadd.f32 0.0, %v4734
        %v4736 = vpop.f32.mrb[0].mxu0
        %4737 = vdwg.mxu0
        %4738 = vrot.lane.b32.xlu0 %v3818, 112
        %v4739 = vpop.permute.xlu0 %4738
        %v4742 = vsel %vm1794, %v4661, 0
        %4744 = vmatprep.subr.mxu0 0.0
        %4745 = vmatpush1.msra.mxu0 %v4739
        %4746 = vmatprep.subr.mxu0 0.0
        %4747 = vmatpush1.msra.mxu0 0.0
        %4748 = vmatprep.subr.mxu0 0.0
        %4749 = vmatpush1.msra.mxu0 0.0
        %4750 = vmatprep.subr.mxu0 0.0
        %4751 = vmatpush1.msra.mxu0 0.0
        %4752 = vmatprep.subr.mxu0 0.0
        %4753 = vmatpush1.msra.mxu0 0.0
        %4754 = vmatprep.subr.mxu0 0.0
        %4755 = vmatpush1.msra.mxu0 0.0
        %4756 = vmatprep.subr.mxu0 0.0
        %4757 = vmatpush1.msra.mxu0 0.0
        %4758 = vmatprep.subr.mxu0 0.0
        %4759 = vmatpush1.msra.mxu0 0.0
        %4760 = vmatprep.subr.mxu0 0.0
        %4761 = vmatpush1.msra.mxu0 0.0
        %4762 = vmatprep.subr.mxu0 0.0
        %4763 = vmatpush1.msra.mxu0 0.0
        %4764 = vmatprep.subr.mxu0 0.0
        %4765 = vmatpush1.msra.mxu0 0.0
        %4766 = vmatprep.subr.mxu0 0.0
        %4767 = vmatpush1.msra.mxu0 0.0
        %4768 = vmatprep.subr.mxu0 0.0
        %4769 = vmatpush1.msra.mxu0 0.0
        %4770 = vmatprep.subr.mxu0 0.0
        %4771 = vmatpush1.msra.mxu0 0.0
        %4772 = vmatprep.subr.mxu0 0.0
        %4773 = vmatpush1.msra.mxu0 0.0
        %4774 = vmatprep.subr.mxu0 0.0
        %4775 = vmatpush1.msra.mxu0 0.0
        %4776 = vmatprep.subr.mxu0 0.0
        %4777 = vmatpush1.msra.mxu0 0.0
        %4778 = vmatprep.subr.mxu0 0.0
        %4779 = vmatpush1.msra.mxu0 0.0
        %4780 = vmatprep.subr.mxu0 0.0
        %4781 = vmatpush1.msra.mxu0 0.0
        %4782 = vmatprep.subr.mxu0 0.0
        %4783 = vmatpush1.msra.mxu0 0.0
        %4784 = vmatprep.subr.mxu0 0.0
        %4785 = vmatpush1.msra.mxu0 0.0
        %4786 = vmatprep.subr.mxu0 0.0
        %4787 = vmatpush1.msra.mxu0 0.0
        %4788 = vmatprep.subr.mxu0 0.0
        %4789 = vmatpush1.msra.mxu0 0.0
        %4790 = vmatprep.subr.mxu0 0.0
        %4791 = vmatpush1.msra.mxu0 0.0
        %4792 = vmatprep.subr.mxu0 0.0
        %4793 = vmatpush1.msra.mxu0 0.0
        %4794 = vmatprep.subr.mxu0 0.0
        %4795 = vmatpush1.msra.mxu0 0.0
        %4796 = vmatprep.subr.mxu0 0.0
        %4797 = vmatpush1.msra.mxu0 0.0
        %4798 = vmatprep.subr.mxu0 0.0
        %4799 = vmatpush1.msra.mxu0 0.0
        %4800 = vmatprep.subr.mxu0 0.0
        %4801 = vmatpush1.msra.mxu0 0.0
        %4802 = vmatprep.subr.mxu0 0.0
        %4803 = vmatpush1.msra.mxu0 0.0
        %4804 = vmatprep.subr.mxu0 0.0
        %4805 = vmatpush1.msra.mxu0 0.0
        %4806 = vmatprep.subr.mxu0 0.0
        %4807 = vmatpush1.msra.mxu0 0.0
        %4808 = vmatprep.mubr.f32.mxu0 0.0
        %4809 = vmatmul.mubr.f32.gmra.mrb[0].mxu0 %v4742
        %v4810 = vpop.f32.mrb[0].mxu0
        %v4811 = vadd.f32 0.0, %v4810
        %v4812 = vpop.f32.mrb[0].mxu0
        %4813 = vdwg.mxu0
        %4814 = vrot.lane.b32.xlu0 %v3642, 104
        %v4815 = vpop.permute.xlu0 %4814
        %4816 = vrot.lane.b32.xlu0 %v3735, 104
        %v4817 = vpop.permute.xlu0 %4816
        %v4818 = vsel %vm1794, %v4815, 0
        %v4820 = vsel %vm1794, %v4817, 0
        %4822 = vmatprep.subr.mxu0 0.0
        %4823 = vmatpush1.xpose.msra.mxu0 %v4820
        %4824 = vmatprep.subr.mxu0 0.0
        %4825 = vmatpush1.xpose.msra.mxu0 0.0
        %4826 = vmatprep.subr.mxu0 0.0
        %4827 = vmatpush1.xpose.msra.mxu0 0.0
        %4828 = vmatprep.subr.mxu0 0.0
        %4829 = vmatpush1.xpose.msra.mxu0 0.0
        %4830 = vmatprep.subr.mxu0 0.0
        %4831 = vmatpush1.xpose.msra.mxu0 0.0
        %4832 = vmatprep.subr.mxu0 0.0
        %4833 = vmatpush1.xpose.msra.mxu0 0.0
        %4834 = vmatprep.subr.mxu0 0.0
        %4835 = vmatpush1.xpose.msra.mxu0 0.0
        %4836 = vmatprep.subr.mxu0 0.0
        %4837 = vmatpush1.xpose.msra.mxu0 0.0
        %4838 = vmatprep.subr.mxu0 0.0
        %4839 = vmatpush1.xpose.msra.mxu0 0.0
        %4840 = vmatprep.subr.mxu0 0.0
        %4841 = vmatpush1.xpose.msra.mxu0 0.0
        %4842 = vmatprep.subr.mxu0 0.0
        %4843 = vmatpush1.xpose.msra.mxu0 0.0
        %4844 = vmatprep.subr.mxu0 0.0
        %4845 = vmatpush1.xpose.msra.mxu0 0.0
        %4846 = vmatprep.subr.mxu0 0.0
        %4847 = vmatpush1.xpose.msra.mxu0 0.0
        %4848 = vmatprep.subr.mxu0 0.0
        %4849 = vmatpush1.xpose.msra.mxu0 0.0
        %4850 = vmatprep.subr.mxu0 0.0
        %4851 = vmatpush1.xpose.msra.mxu0 0.0
        %4852 = vmatprep.subr.mxu0 0.0
        %4853 = vmatpush1.xpose.msra.mxu0 0.0
        %4854 = vmatprep.subr.mxu0 0.0
        %4855 = vmatpush1.xpose.msra.mxu0 0.0
        %4856 = vmatprep.subr.mxu0 0.0
        %4857 = vmatpush1.xpose.msra.mxu0 0.0
        %4858 = vmatprep.subr.mxu0 0.0
        %4859 = vmatpush1.xpose.msra.mxu0 0.0
        %4860 = vmatprep.subr.mxu0 0.0
        %4861 = vmatpush1.xpose.msra.mxu0 0.0
        %4862 = vmatprep.subr.mxu0 0.0
        %4863 = vmatpush1.xpose.msra.mxu0 0.0
        %4864 = vmatprep.subr.mxu0 0.0
        %4865 = vmatpush1.xpose.msra.mxu0 0.0
        %4866 = vmatprep.subr.mxu0 0.0
        %4867 = vmatpush1.xpose.msra.mxu0 0.0
        %4868 = vmatprep.subr.mxu0 0.0
        %4869 = vmatpush1.xpose.msra.mxu0 0.0
        %4870 = vmatprep.subr.mxu0 0.0
        %4871 = vmatpush1.xpose.msra.mxu0 0.0
        %4872 = vmatprep.subr.mxu0 0.0
        %4873 = vmatpush1.xpose.msra.mxu0 0.0
        %4874 = vmatprep.subr.mxu0 0.0
        %4875 = vmatpush1.xpose.msra.mxu0 0.0
        %4876 = vmatprep.subr.mxu0 0.0
        %4877 = vmatpush1.xpose.msra.mxu0 0.0
        %4878 = vmatprep.subr.mxu0 0.0
        %4879 = vmatpush1.xpose.msra.mxu0 0.0
        %4880 = vmatprep.subr.mxu0 0.0
        %4881 = vmatpush1.xpose.msra.mxu0 0.0
        %4882 = vmatprep.subr.mxu0 0.0
        %4883 = vmatpush1.xpose.msra.mxu0 0.0
        %4884 = vmatprep.subr.mxu0 0.0
        %4885 = vmatpush1.xpose.msra.mxu0 0.0
        %4886 = vmatprep.mubr.f32.mxu0 0.0
        %4887 = vmatmul.mubr.f32.gmra.mrb[0].mxu0 %v4818
        %v4888 = vpop.f32.mrb[0].mxu0
        %v4889 = vadd.f32 0.0, %v4888
        %v4890 = vpop.f32.mrb[0].mxu0
        %4891 = vdwg.mxu0
        %4892 = vrot.lane.b32.xlu0 %v3647, 104
        %v4893 = vpop.permute.xlu0 %4892
        %4894 = vrot.lane.b32.xlu0 %v3730, 104
        %v4895 = vpop.permute.xlu0 %4894
        %v4896 = vsel %vm1794, %v4893, 0
        %v4898 = vsel %vm1794, %v4895, 0
        %4900 = vmatprep.subr.mxu0 0.0
        %4901 = vmatpush1.xpose.msra.mxu0 %v4898
        %4902 = vmatprep.subr.mxu0 0.0
        %4903 = vmatpush1.xpose.msra.mxu0 0.0
        %4904 = vmatprep.subr.mxu0 0.0
        %4905 = vmatpush1.xpose.msra.mxu0 0.0
        %4906 = vmatprep.subr.mxu0 0.0
        %4907 = vmatpush1.xpose.msra.mxu0 0.0
        %4908 = vmatprep.subr.mxu0 0.0
        %4909 = vmatpush1.xpose.msra.mxu0 0.0
        %4910 = vmatprep.subr.mxu0 0.0
        %4911 = vmatpush1.xpose.msra.mxu0 0.0
        %4912 = vmatprep.subr.mxu0 0.0
        %4913 = vmatpush1.xpose.msra.mxu0 0.0
        %4914 = vmatprep.subr.mxu0 0.0
        %4915 = vmatpush1.xpose.msra.mxu0 0.0
        %4916 = vmatprep.subr.mxu0 0.0
        %4917 = vmatpush1.xpose.msra.mxu0 0.0
        %4918 = vmatprep.subr.mxu0 0.0
        %4919 = vmatpush1.xpose.msra.mxu0 0.0
        %4920 = vmatprep.subr.mxu0 0.0
        %4921 = vmatpush1.xpose.msra.mxu0 0.0
        %4922 = vmatprep.subr.mxu0 0.0
        %4923 = vmatpush1.xpose.msra.mxu0 0.0
        %4924 = vmatprep.subr.mxu0 0.0
        %4925 = vmatpush1.xpose.msra.mxu0 0.0
        %4926 = vmatprep.subr.mxu0 0.0
        %4927 = vmatpush1.xpose.msra.mxu0 0.0
        %4928 = vmatprep.subr.mxu0 0.0
        %4929 = vmatpush1.xpose.msra.mxu0 0.0
        %4930 = vmatprep.subr.mxu0 0.0
        %4931 = vmatpush1.xpose.msra.mxu0 0.0
        %4932 = vmatprep.subr.mxu0 0.0
        %4933 = vmatpush1.xpose.msra.mxu0 0.0
        %4934 = vmatprep.subr.mxu0 0.0
        %4935 = vmatpush1.xpose.msra.mxu0 0.0
        %4936 = vmatprep.subr.mxu0 0.0
        %4937 = vmatpush1.xpose.msra.mxu0 0.0
        %4938 = vmatprep.subr.mxu0 0.0
        %4939 = vmatpush1.xpose.msra.mxu0 0.0
        %4940 = vmatprep.subr.mxu0 0.0
        %4941 = vmatpush1.xpose.msra.mxu0 0.0
        %4942 = vmatprep.subr.mxu0 0.0
        %4943 = vmatpush1.xpose.msra.mxu0 0.0
        %4944 = vmatprep.subr.mxu0 0.0
        %4945 = vmatpush1.xpose.msra.mxu0 0.0
        %4946 = vmatprep.subr.mxu0 0.0
        %4947 = vmatpush1.xpose.msra.mxu0 0.0
        %4948 = vmatprep.subr.mxu0 0.0
        %4949 = vmatpush1.xpose.msra.mxu0 0.0
        %4950 = vmatprep.subr.mxu0 0.0
        %4951 = vmatpush1.xpose.msra.mxu0 0.0
        %4952 = vmatprep.subr.mxu0 0.0
        %4953 = vmatpush1.xpose.msra.mxu0 0.0
        %4954 = vmatprep.subr.mxu0 0.0
        %4955 = vmatpush1.xpose.msra.mxu0 0.0
        %4956 = vmatprep.subr.mxu0 0.0
        %4957 = vmatpush1.xpose.msra.mxu0 0.0
        %4958 = vmatprep.subr.mxu0 0.0
        %4959 = vmatpush1.xpose.msra.mxu0 0.0
        %4960 = vmatprep.subr.mxu0 0.0
        %4961 = vmatpush1.xpose.msra.mxu0 0.0
        %4962 = vmatprep.subr.mxu0 0.0
        %4963 = vmatpush1.xpose.msra.mxu0 0.0
        %4964 = vmatprep.mubr.f32.mxu0 0.0
        %4965 = vmatmul.mubr.f32.gmra.mrb[0].mxu0 %v4896
        %v4966 = vpop.f32.mrb[0].mxu0
        %v4967 = vadd.f32 0.0, %v4966
        %v4968 = vpop.f32.mrb[0].mxu0
        %4969 = vdwg.mxu0
        %v4970 = vmul.f32 %v4889, 0.35355338
        %v4971 = vmul.f32 %v4967, 0.35355338
        %v4972 = vsel %vm1794, %v4970, -inf
        %4973 = vmax.xlane.f32.xlu0 %v4972
        %v4974 = vpop.xlane.xlu0 %4973
        %v4975 = vsel %vm1794, %v4971, -inf
        %4976 = vmax.xlane.f32.xlu0 %v4975
        %v4977 = vpop.xlane.xlu0 %4976
        %v4978 = vsub.f32 %v4970, %v4974
        %v4979 = vsub.f32 %v4971, %v4977
        %v4980 = vmul.f32 %v4978, 1.442695
        %v4981 = vpow.pop %v4980
        %v4982 = vmul.f32 %v4979, 1.442695
        %v4983 = vpow.pop %v4982
        %v4984 = vsel %vm1794, %v4981, 0.0
        %4985 = vadd.xlane.f32.xlu0 %v4984
        %v4986 = vpop.xlane.xlu0 %4985
        %v4987 = vsel %vm1794, %v4983, 0.0
        %4988 = vadd.xlane.f32.xlu0 %v4987
        %v4989 = vpop.xlane.xlu0 %4988
        %v4990 = vrcp.pop %v4986
        %v4991 = vrcp.pop %v4989
        %v4992 = vmul.f32 %v4981, %v4990
        %v4993 = vmul.f32 %v4983, %v4991
        %4994 = vrot.lane.b32.xlu0 %v3823, 104
        %v4995 = vpop.permute.xlu0 %4994
        %v4998 = vsel %vm1794, %v4992, 0
        %5000 = vmatprep.subr.mxu0 0.0
        %5001 = vmatpush1.msra.mxu0 %v4995
        %5002 = vmatprep.subr.mxu0 0.0
        %5003 = vmatpush1.msra.mxu0 0.0
        %5004 = vmatprep.subr.mxu0 0.0
        %5005 = vmatpush1.msra.mxu0 0.0
        %5006 = vmatprep.subr.mxu0 0.0
        %5007 = vmatpush1.msra.mxu0 0.0
        %5008 = vmatprep.subr.mxu0 0.0
        %5009 = vmatpush1.msra.mxu0 0.0
        %5010 = vmatprep.subr.mxu0 0.0
        %5011 = vmatpush1.msra.mxu0 0.0
        %5012 = vmatprep.subr.mxu0 0.0
        %5013 = vmatpush1.msra.mxu0 0.0
        %5014 = vmatprep.subr.mxu0 0.0
        %5015 = vmatpush1.msra.mxu0 0.0
        %5016 = vmatprep.subr.mxu0 0.0
        %5017 = vmatpush1.msra.mxu0 0.0
        %5018 = vmatprep.subr.mxu0 0.0
        %5019 = vmatpush1.msra.mxu0 0.0
        %5020 = vmatprep.subr.mxu0 0.0
        %5021 = vmatpush1.msra.mxu0 0.0
        %5022 = vmatprep.subr.mxu0 0.0
        %5023 = vmatpush1.msra.mxu0 0.0
        %5024 = vmatprep.subr.mxu0 0.0
        %5025 = vmatpush1.msra.mxu0 0.0
        %5026 = vmatprep.subr.mxu0 0.0
        %5027 = vmatpush1.msra.mxu0 0.0
        %5028 = vmatprep.subr.mxu0 0.0
        %5029 = vmatpush1.msra.mxu0 0.0
        %5030 = vmatprep.subr.mxu0 0.0
        %5031 = vmatpush1.msra.mxu0 0.0
        %5032 = vmatprep.subr.mxu0 0.0
        %5033 = vmatpush1.msra.mxu0 0.0
        %5034 = vmatprep.subr.mxu0 0.0
        %5035 = vmatpush1.msra.mxu0 0.0
        %5036 = vmatprep.subr.mxu0 0.0
        %5037 = vmatpush1.msra.mxu0 0.0
        %5038 = vmatprep.subr.mxu0 0.0
        %5039 = vmatpush1.msra.mxu0 0.0
        %5040 = vmatprep.subr.mxu0 0.0
        %5041 = vmatpush1.msra.mxu0 0.0
        %5042 = vmatprep.subr.mxu0 0.0
        %5043 = vmatpush1.msra.mxu0 0.0
        %5044 = vmatprep.subr.mxu0 0.0
        %5045 = vmatpush1.msra.mxu0 0.0
        %5046 = vmatprep.subr.mxu0 0.0
        %5047 = vmatpush1.msra.mxu0 0.0
        %5048 = vmatprep.subr.mxu0 0.0
        %5049 = vmatpush1.msra.mxu0 0.0
        %5050 = vmatprep.subr.mxu0 0.0
        %5051 = vmatpush1.msra.mxu0 0.0
        %5052 = vmatprep.subr.mxu0 0.0
        %5053 = vmatpush1.msra.mxu0 0.0
        %5054 = vmatprep.subr.mxu0 0.0
        %5055 = vmatpush1.msra.mxu0 0.0
        %5056 = vmatprep.subr.mxu0 0.0
        %5057 = vmatpush1.msra.mxu0 0.0
        %5058 = vmatprep.subr.mxu0 0.0
        %5059 = vmatpush1.msra.mxu0 0.0
        %5060 = vmatprep.subr.mxu0 0.0
        %5061 = vmatpush1.msra.mxu0 0.0
        %5062 = vmatprep.subr.mxu0 0.0
        %5063 = vmatpush1.msra.mxu0 0.0
        %5064 = vmatprep.mubr.f32.mxu0 0.0
        %5065 = vmatmul.mubr.f32.gmra.mrb[0].mxu0 %v4998
        %v5066 = vpop.f32.mrb[0].mxu0
        %v5067 = vadd.f32 0.0, %v5066
        %v5068 = vpop.f32.mrb[0].mxu0
        %5069 = vdwg.mxu0
        %5070 = vrot.lane.b32.xlu0 %v3818, 104
        %v5071 = vpop.permute.xlu0 %5070
        %v5074 = vsel %vm1794, %v4993, 0
        %5076 = vmatprep.subr.mxu0 0.0
        %5077 = vmatpush1.msra.mxu0 %v5071
        %5078 = vmatprep.subr.mxu0 0.0
        %5079 = vmatpush1.msra.mxu0 0.0
        %5080 = vmatprep.subr.mxu0 0.0
        %5081 = vmatpush1.msra.mxu0 0.0
        %5082 = vmatprep.subr.mxu0 0.0
        %5083 = vmatpush1.msra.mxu0 0.0
        %5084 = vmatprep.subr.mxu0 0.0
        %5085 = vmatpush1.msra.mxu0 0.0
        %5086 = vmatprep.subr.mxu0 0.0
        %5087 = vmatpush1.msra.mxu0 0.0
        %5088 = vmatprep.subr.mxu0 0.0
        %5089 = vmatpush1.msra.mxu0 0.0
        %5090 = vmatprep.subr.mxu0 0.0
        %5091 = vmatpush1.msra.mxu0 0.0
        %5092 = vmatprep.subr.mxu0 0.0
        %5093 = vmatpush1.msra.mxu0 0.0
        %5094 = vmatprep.subr.mxu0 0.0
        %5095 = vmatpush1.msra.mxu0 0.0
        %5096 = vmatprep.subr.mxu0 0.0
        %5097 = vmatpush1.msra.mxu0 0.0
        %5098 = vmatprep.subr.mxu0 0.0
        %5099 = vmatpush1.msra.mxu0 0.0
        %5100 = vmatprep.subr.mxu0 0.0
        %5101 = vmatpush1.msra.mxu0 0.0
        %5102 = vmatprep.subr.mxu0 0.0
        %5103 = vmatpush1.msra.mxu0 0.0
        %5104 = vmatprep.subr.mxu0 0.0
        %5105 = vmatpush1.msra.mxu0 0.0
        %5106 = vmatprep.subr.mxu0 0.0
        %5107 = vmatpush1.msra.mxu0 0.0
        %5108 = vmatprep.subr.mxu0 0.0
        %5109 = vmatpush1.msra.mxu0 0.0
        %5110 = vmatprep.subr.mxu0 0.0
        %5111 = vmatpush1.msra.mxu0 0.0
        %5112 = vmatprep.subr.mxu0 0.0
        %5113 = vmatpush1.msra.mxu0 0.0
        %5114 = vmatprep.subr.mxu0 0.0
        %5115 = vmatpush1.msra.mxu0 0.0
        %5116 = vmatprep.subr.mxu0 0.0
        %5117 = vmatpush1.msra.mxu0 0.0
        %5118 = vmatprep.subr.mxu0 0.0
        %5119 = vmatpush1.msra.mxu0 0.0
        %5120 = vmatprep.subr.mxu0 0.0
        %5121 = vmatpush1.msra.mxu0 0.0
        %5122 = vmatprep.subr.mxu0 0.0
        %5123 = vmatpush1.msra.mxu0 0.0
        %5124 = vmatprep.subr.mxu0 0.0
        %5125 = vmatpush1.msra.mxu0 0.0
        %5126 = vmatprep.subr.mxu0 0.0
        %5127 = vmatpush1.msra.mxu0 0.0
        %5128 = vmatprep.subr.mxu0 0.0
        %5129 = vmatpush1.msra.mxu0 0.0
        %5130 = vmatprep.subr.mxu0 0.0
        %5131 = vmatpush1.msra.mxu0 0.0
        %5132 = vmatprep.subr.mxu0 0.0
        %5133 = vmatpush1.msra.mxu0 0.0
        %5134 = vmatprep.subr.mxu0 0.0
        %5135 = vmatpush1.msra.mxu0 0.0
        %5136 = vmatprep.subr.mxu0 0.0
        %5137 = vmatpush1.msra.mxu0 0.0
        %5138 = vmatprep.subr.mxu0 0.0
        %5139 = vmatpush1.msra.mxu0 0.0
        %5140 = vmatprep.mubr.f32.mxu0 0.0
        %5141 = vmatmul.mubr.f32.gmra.mrb[0].mxu0 %v5074
        %v5142 = vpop.f32.mrb[0].mxu0
        %v5143 = vadd.f32 0.0, %v5142
        %v5144 = vpop.f32.mrb[0].mxu0
        %5145 = vdwg.mxu0
        %5148 = vrot.lane.b32.xlu0 %v4402, 8
        %v5149 = vpop.permute.xlu0 %5148
        %5150 = vrot.lane.b32.xlu0 %v4479, 8
        %v5151 = vpop.permute.xlu0 %5150
        %5156 = vrot.lane.b32.xlu0 %v4735, 16
        %v5157 = vpop.permute.xlu0 %5156
        %5158 = vrot.lane.b32.xlu0 %v4811, 16
        %v5159 = vpop.permute.xlu0 %5158
        %5164 = vrot.lane.b32.xlu0 %v5067, 24
        %v5165 = vpop.permute.xlu0 %5164
        %5166 = vrot.lane.b32.xlu0 %v5143, 24
        %v5167 = vpop.permute.xlu0 %5166
        %v5170 = vsel %vm1794, %v4072, %v5149
        %v5171 = vsel %vm1794, %v4145, %v5151
        %v5172 = vsel %vm3141, %v5170, %v5157
        %v5173 = vsel %vm3141, %v5171, %v5159
        %v5174 = vsel %vm3144, %v5172, %v5165
        %v5175 = vsel %vm3144, %v5173, %v5167
        %s5176 = scalar_lea.vmem [#allocation29], 32
        %v5177 = vld [vmem:[%s5176] sm:$0xff]
        %v5178 = vld [vmem:[%s5176 + $0x8] sm:$0xff]
        %v5179 = vld [vmem:[%s5176 + $0x10] sm:$0xff]
        %v5180 = vld [vmem:[%s5176 + $0x18] sm:$0xff]
        %s5181 = scalar_lea.vmem [#allocation31], 1
        %v5182 = vld [vmem:[%s5181] sm:$0x1]
        %v5184 = vlaneseq
        %v5185 = vshrl.u32 %v5184, 7
        %v5186 = vsub.s32 0, %v5185
        %v5187 = vrot.slane %v5182, %v5186
        %v5190 = vsel %vm1211, %v5174, 0
        %v5193 = vsel %vm1211, %v5175, 0
        %5195 = vmatprep.subr.mxu0 0.0
        %5196 = vmatpush1.msra.mxu0 %v5177
        %5197 = vmatprep.subr.mxu0 0.0
        %5198 = vmatpush1.msra.mxu0 %v5178
        %5199 = vmatprep.subr.mxu0 0.0
        %5200 = vmatpush1.msra.mxu0 %v5179
        %5201 = vmatprep.subr.mxu0 0.0
        %5202 = vmatpush1.msra.mxu0 %v5180
        %5203 = vmatprep.subr.mxu0 0.0
        %5204 = vmatpush1.msra.mxu0 0.0
        %5205 = vmatprep.subr.mxu0 0.0
        %5206 = vmatpush1.msra.mxu0 0.0
        %5207 = vmatprep.subr.mxu0 0.0
        %5208 = vmatpush1.msra.mxu0 0.0
        %5209 = vmatprep.subr.mxu0 0.0
        %5210 = vmatpush1.msra.mxu0 0.0
        %5211 = vmatprep.subr.mxu0 0.0
        %5212 = vmatpush1.msra.mxu0 0.0
        %5213 = vmatprep.subr.mxu0 0.0
        %5214 = vmatpush1.msra.mxu0 0.0
        %5215 = vmatprep.subr.mxu0 0.0
        %5216 = vmatpush1.msra.mxu0 0.0
        %5217 = vmatprep.subr.mxu0 0.0
        %5218 = vmatpush1.msra.mxu0 0.0
        %5219 = vmatprep.subr.mxu0 0.0
        %5220 = vmatpush1.msra.mxu0 0.0
        %5221 = vmatprep.subr.mxu0 0.0
        %5222 = vmatpush1.msra.mxu0 0.0
        %5223 = vmatprep.subr.mxu0 0.0
        %5224 = vmatpush1.msra.mxu0 0.0
        %5225 = vmatprep.subr.mxu0 0.0
        %5226 = vmatpush1.msra.mxu0 0.0
        %5227 = vmatprep.subr.mxu0 0.0
        %5228 = vmatpush1.msra.mxu0 0.0
        %5229 = vmatprep.subr.mxu0 0.0
        %5230 = vmatpush1.msra.mxu0 0.0
        %5231 = vmatprep.subr.mxu0 0.0
        %5232 = vmatpush1.msra.mxu0 0.0
        %5233 = vmatprep.subr.mxu0 0.0
        %5234 = vmatpush1.msra.mxu0 0.0
        %5235 = vmatprep.subr.mxu0 0.0
        %5236 = vmatpush1.msra.mxu0 0.0
        %5237 = vmatprep.subr.mxu0 0.0
        %5238 = vmatpush1.msra.mxu0 0.0
        %5239 = vmatprep.subr.mxu0 0.0
        %5240 = vmatpush1.msra.mxu0 0.0
        %5241 = vmatprep.subr.mxu0 0.0
        %5242 = vmatpush1.msra.mxu0 0.0
        %5243 = vmatprep.subr.mxu0 0.0
        %5244 = vmatpush1.msra.mxu0 0.0
        %5245 = vmatprep.subr.mxu0 0.0
        %5246 = vmatpush1.msra.mxu0 0.0
        %5247 = vmatprep.subr.mxu0 0.0
        %5248 = vmatpush1.msra.mxu0 0.0
        %5249 = vmatprep.subr.mxu0 0.0
        %5250 = vmatpush1.msra.mxu0 0.0
        %5251 = vmatprep.subr.mxu0 0.0
        %5252 = vmatpush1.msra.mxu0 0.0
        %5253 = vmatprep.subr.mxu0 0.0
        %5254 = vmatpush1.msra.mxu0 0.0
        %5255 = vmatprep.subr.mxu0 0.0
        %5256 = vmatpush1.msra.mxu0 0.0
        %5257 = vmatprep.subr.mxu0 0.0
        %5258 = vmatpush1.msra.mxu0 0.0
        %5259 = vmatprep.mubr.f32.mxu0 0.0
        %5260 = vmatmul.mubr.f32.gmra.mrb[0].mxu0 %v5190
        %v5261 = vpop.f32.mrb[0].mxu0
        %v5262 = vadd.f32 %v5187, %v5261
        %v5263 = vpop.f32.mrb[0].mxu0
        %5264 = vmatprep.mubr.f32.mxu0 0.0
        %5265 = vmatmul.mubr.f32.gmra.mrb[0].mxu0 %v5193
        %v5266 = vpop.f32.mrb[0].mxu0
        %v5267 = vadd.f32 %v5187, %v5266
        %v5268 = vpop.f32.mrb[0].mxu0
        %5269 = vdwg.mxu0
        %s5270 = scalar_lea.vmem %s22, 64
        %v5271 = vld [vmem:[%s5270] sm:$0xff]
        %v5272 = vld [vmem:[%s5270 + $0x8] sm:$0xff]
        %v5273 = vld [vmem:[%s5270 + $0x10] sm:$0xff]
        %v5274 = vld [vmem:[%s5270 + $0x18] sm:$0xff]
        %v5275 = vld [vmem:[%s5270 + $0x20] sm:$0xff]
        %v5276 = vld [vmem:[%s5270 + $0x28] sm:$0xff]
        %v5277 = vld [vmem:[%s5270 + $0x30] sm:$0xff]
        %v5278 = vld [vmem:[%s5270 + $0x38] sm:$0xff]
        %v5280 = vsel %vm1211, %v5262, 0
        %v5283 = vsel %vm1211, %v5267, 0
        %5285 = vmatprep.subr.mxu0 0.0
        %5286 = vmatpush1.msra.mxu0 %v5275
        %5287 = vmatprep.subr.mxu0 0.0
        %5288 = vmatpush1.msra.mxu0 %v5276
        %5289 = vmatprep.subr.mxu0 0.0
        %5290 = vmatpush1.msra.mxu0 %v5277
        %5291 = vmatprep.subr.mxu0 0.0
        %5292 = vmatpush1.msra.mxu0 %v5278
        %5293 = vmatprep.subr.mxu0 0.0
        %5294 = vmatpush1.msra.mxu0 0.0
        %5295 = vmatprep.subr.mxu0 0.0
        %5296 = vmatpush1.msra.mxu0 0.0
        %5297 = vmatprep.subr.mxu0 0.0
        %5298 = vmatpush1.msra.mxu0 0.0
        %5299 = vmatprep.subr.mxu0 0.0
        %5300 = vmatpush1.msra.mxu0 0.0
        %5301 = vmatprep.subr.mxu0 0.0
        %5302 = vmatpush1.msra.mxu0 0.0
        %5303 = vmatprep.subr.mxu0 0.0
        %5304 = vmatpush1.msra.mxu0 0.0
        %5305 = vmatprep.subr.mxu0 0.0
        %5306 = vmatpush1.msra.mxu0 0.0
        %5307 = vmatprep.subr.mxu0 0.0
        %5308 = vmatpush1.msra.mxu0 0.0
        %5309 = vmatprep.subr.mxu0 0.0
        %5310 = vmatpush1.msra.mxu0 0.0
        %5311 = vmatprep.subr.mxu0 0.0
        %5312 = vmatpush1.msra.mxu0 0.0
        %5313 = vmatprep.subr.mxu0 0.0
        %5314 = vmatpush1.msra.mxu0 0.0
        %5315 = vmatprep.subr.mxu0 0.0
        %5316 = vmatpush1.msra.mxu0 0.0
        %5317 = vmatprep.subr.mxu0 0.0
        %5318 = vmatpush1.msra.mxu0 0.0
        %5319 = vmatprep.subr.mxu0 0.0
        %5320 = vmatpush1.msra.mxu0 0.0
        %5321 = vmatprep.subr.mxu0 0.0
        %5322 = vmatpush1.msra.mxu0 0.0
        %5323 = vmatprep.subr.mxu0 0.0
        %5324 = vmatpush1.msra.mxu0 0.0
        %5325 = vmatprep.subr.mxu0 0.0
        %5326 = vmatpush1.msra.mxu0 0.0
        %5327 = vmatprep.subr.mxu0 0.0
        %5328 = vmatpush1.msra.mxu0 0.0
        %5329 = vmatprep.subr.mxu0 0.0
        %5330 = vmatpush1.msra.mxu0 0.0
        %5331 = vmatprep.subr.mxu0 0.0
        %5332 = vmatpush1.msra.mxu0 0.0
        %5333 = vmatprep.subr.mxu0 0.0
        %5334 = vmatpush1.msra.mxu0 0.0
        %5335 = vmatprep.subr.mxu0 0.0
        %5336 = vmatpush1.msra.mxu0 0.0
        %5337 = vmatprep.subr.mxu0 0.0
        %5338 = vmatpush1.msra.mxu0 0.0
        %5339 = vmatprep.subr.mxu0 0.0
        %5340 = vmatpush1.msra.mxu0 0.0
        %5341 = vmatprep.subr.mxu0 0.0
        %5342 = vmatpush1.msra.mxu0 0.0
        %5343 = vmatprep.subr.mxu0 0.0
        %5344 = vmatpush1.msra.mxu0 0.0
        %5345 = vmatprep.subr.mxu0 0.0
        %5346 = vmatpush1.msra.mxu0 0.0
        %5347 = vmatprep.subr.mxu0 0.0
        %5348 = vmatpush1.msra.mxu0 0.0
        %5349 = vmatprep.mubr.f32.mxu0 0.0
        %5350 = vmatmul.mubr.f32.gmra.mrb[0].mxu0 %v5280
        %v5351 = vpop.f32.mrb[0].mxu0
        %v5352 = vadd.f32 0.0, %v5351
        %v5353 = vpop.f32.mrb[0].mxu0
        %5354 = vmatprep.mubr.f32.mxu0 0.0
        %5355 = vmatmul.mubr.f32.gmra.mrb[0].mxu0 %v5283
        %v5356 = vpop.f32.mrb[0].mxu0
        %v5357 = vadd.f32 0.0, %v5356
        %v5358 = vpop.f32.mrb[0].mxu0
        %5359 = vdwg.mxu0
        %5360 = vmatprep.subr.mxu0 0.0
        %5361 = vmatpush1.msra.mxu0 %v5271
        %5362 = vmatprep.subr.mxu0 0.0
        %5363 = vmatpush1.msra.mxu0 %v5272
        %5364 = vmatprep.subr.mxu0 0.0
        %5365 = vmatpush1.msra.mxu0 %v5273
        %5366 = vmatprep.subr.mxu0 0.0
        %5367 = vmatpush1.msra.mxu0 %v5274
        %5368 = vmatprep.subr.mxu0 0.0
        %5369 = vmatpush1.msra.mxu0 0.0
        %5370 = vmatprep.subr.mxu0 0.0
        %5371 = vmatpush1.msra.mxu0 0.0
        %5372 = vmatprep.subr.mxu0 0.0
        %5373 = vmatpush1.msra.mxu0 0.0
        %5374 = vmatprep.subr.mxu0 0.0
        %5375 = vmatpush1.msra.mxu0 0.0
        %5376 = vmatprep.subr.mxu0 0.0
        %5377 = vmatpush1.msra.mxu0 0.0
        %5378 = vmatprep.subr.mxu0 0.0
        %5379 = vmatpush1.msra.mxu0 0.0
        %5380 = vmatprep.subr.mxu0 0.0
        %5381 = vmatpush1.msra.mxu0 0.0
        %5382 = vmatprep.subr.mxu0 0.0
        %5383 = vmatpush1.msra.mxu0 0.0
        %5384 = vmatprep.subr.mxu0 0.0
        %5385 = vmatpush1.msra.mxu0 0.0
        %5386 = vmatprep.subr.mxu0 0.0
        %5387 = vmatpush1.msra.mxu0 0.0
        %5388 = vmatprep.subr.mxu0 0.0
        %5389 = vmatpush1.msra.mxu0 0.0
        %5390 = vmatprep.subr.mxu0 0.0
        %5391 = vmatpush1.msra.mxu0 0.0
        %5392 = vmatprep.subr.mxu0 0.0
        %5393 = vmatpush1.msra.mxu0 0.0
        %5394 = vmatprep.subr.mxu0 0.0
        %5395 = vmatpush1.msra.mxu0 0.0
        %5396 = vmatprep.subr.mxu0 0.0
        %5397 = vmatpush1.msra.mxu0 0.0
        %5398 = vmatprep.subr.mxu0 0.0
        %5399 = vmatpush1.msra.mxu0 0.0
        %5400 = vmatprep.subr.mxu0 0.0
        %5401 = vmatpush1.msra.mxu0 0.0
        %5402 = vmatprep.subr.mxu0 0.0
        %5403 = vmatpush1.msra.mxu0 0.0
        %5404 = vmatprep.subr.mxu0 0.0
        %5405 = vmatpush1.msra.mxu0 0.0
        %5406 = vmatprep.subr.mxu0 0.0
        %5407 = vmatpush1.msra.mxu0 0.0
        %5408 = vmatprep.subr.mxu0 0.0
        %5409 = vmatpush1.msra.mxu0 0.0
        %5410 = vmatprep.subr.mxu0 0.0
        %5411 = vmatpush1.msra.mxu0 0.0
        %5412 = vmatprep.subr.mxu0 0.0
        %5413 = vmatpush1.msra.mxu0 0.0
        %5414 = vmatprep.subr.mxu0 0.0
        %5415 = vmatpush1.msra.mxu0 0.0
        %5416 = vmatprep.subr.mxu0 0.0
        %5417 = vmatpush1.msra.mxu0 0.0
        %5418 = vmatprep.subr.mxu0 0.0
        %5419 = vmatpush1.msra.mxu0 0.0
        %5420 = vmatprep.subr.mxu0 0.0
        %5421 = vmatpush1.msra.mxu0 0.0
        %5422 = vmatprep.subr.mxu0 0.0
        %5423 = vmatpush1.msra.mxu0 0.0
        %5424 = vmatprep.mubr.f32.mxu0 0.0
        %5425 = vmatmul.mubr.f32.gmra.mrb[0].mxu0 %v3570
        %v5426 = vpop.f32.mrb[0].mxu0
        %v5427 = vadd.f32 %v5352, %v5426
        %v5428 = vpop.f32.mrb[0].mxu0
        %5429 = vmatprep.mubr.f32.mxu0 0.0
        %5430 = vmatmul.mubr.f32.gmra.mrb[0].mxu0 %v3573
        %v5431 = vpop.f32.mrb[0].mxu0
        %v5432 = vadd.f32 %v5357, %v5431
        %v5433 = vpop.f32.mrb[0].mxu0
        %5434 = vdwg.mxu0
        %s5435 = scalar_lea.vmem [#allocation32], 1
        %v5436 = vld [vmem:[%s5435] sm:$0x1]
        %v5438 = vlaneseq
        %v5439 = vshrl.u32 %v5438, 7
        %v5440 = vsub.s32 0, %v5439
        %v5441 = vrot.slane %v5436, %v5440
        %v5443 = vadd.f32 %v5427, %v5441
        %v5444 = vadd.f32 %v5432, %v5441
        %v5445 = vsel %vm3412, %v5443, 0.0
        %v5446 = vrot.slane %v5445, 4
        %v5447 = vadd.f32 %v5445, %v5446
        %v5448 = vrot.slane %v5447, 2
        %v5449 = vadd.f32 %v5447, %v5448
        %v5450 = vrot.slane %v5449, 1
        %v5451 = vadd.f32 %v5449, %v5450
        %v5452 = vsel %vm3412, %v5444, 0.0
        %v5453 = vrot.slane %v5452, 4
        %v5454 = vadd.f32 %v5452, %v5453
        %v5455 = vrot.slane %v5454, 2
        %v5456 = vadd.f32 %v5454, %v5455
        %v5457 = vrot.slane %v5456, 1
        %v5458 = vadd.f32 %v5456, %v5457
        %v5459 = vmul.f32 %v5451, %v3427
        %v5460 = vmul.f32 %v5458, %v3427
        %v5461 = vsub.f32 %v5443, %v5459
        %v5462 = vsub.f32 %v5444, %v5460
        %v5463 = vmul.f32 %v5461, %v5461
        %v5464 = vmul.f32 %v5462, %v5462
        %v5465 = vsel %vm3412, %v5463, 0.0
        %v5466 = vrot.slane %v5465, 4
        %v5467 = vadd.f32 %v5465, %v5466
        %v5468 = vrot.slane %v5467, 2
        %v5469 = vadd.f32 %v5467, %v5468
        %v5470 = vrot.slane %v5469, 1
        %v5471 = vadd.f32 %v5469, %v5470
        %v5472 = vsel %vm3412, %v5464, 0.0
        %v5473 = vrot.slane %v5472, 4
        %v5474 = vadd.f32 %v5472, %v5473
        %v5475 = vrot.slane %v5474, 2
        %v5476 = vadd.f32 %v5474, %v5475
        %v5477 = vrot.slane %v5476, 1
        %v5478 = vadd.f32 %v5476, %v5477
        %v5479 = vmul.f32 %v5471, %v3427
        %v5480 = vmul.f32 %v5478, %v3427
        %v5481 = vadd.f32 %v5479, 1e-05
        %v5482 = vadd.f32 %v5480, 1e-05
        %v5483 = vrsqrt.pop %v5481
        %v5484 = vrsqrt.pop %v5482
        %v5485 = vmul.f32 %v5461, %v5483
        %v5486 = vmul.f32 %v5462, %v5484
        %v5487 = vmax.f32 %v5485, 0.0
        %v5488 = vmax.f32 %v5486, 0.0
        %s5489 = scalar_lea.vmem %s24, 64
        %v5490 = vld [vmem:[%s5489] sm:$0xff]
        %v5491 = vld [vmem:[%s5489 + $0x8] sm:$0xff]
        %v5492 = vld [vmem:[%s5489 + $0x10] sm:$0xff]
        %v5493 = vld [vmem:[%s5489 + $0x18] sm:$0xff]
        %v5494 = vld [vmem:[%s5489 + $0x20] sm:$0xff]
        %v5495 = vld [vmem:[%s5489 + $0x28] sm:$0xff]
        %v5496 = vld [vmem:[%s5489 + $0x30] sm:$0xff]
        %v5497 = vld [vmem:[%s5489 + $0x38] sm:$0xff]
        %s5498 = scalar_lea.vmem %s25, 1
        %v5499 = vld [vmem:[%s5498] sm:$0x1]
        %v5501 = vlaneseq
        %v5502 = vshrl.u32 %v5501, 7
        %v5503 = vsub.s32 0, %v5502
        %v5504 = vrot.slane %v5499, %v5503
        %v5507 = vsel %vm3412, %v5487, 0
        %v5510 = vsel %vm3412, %v5488, 0
        %5512 = vmatprep.subr.mxu0 0.0
        %5513 = vmatpush1.msra.mxu0 %v5490
        %5514 = vmatprep.subr.mxu0 0.0
        %5515 = vmatpush1.msra.mxu0 %v5491
        %5516 = vmatprep.subr.mxu0 0.0
        %5517 = vmatpush1.msra.mxu0 %v5492
        %5518 = vmatprep.subr.mxu0 0.0
        %5519 = vmatpush1.msra.mxu0 %v5493
        %5520 = vmatprep.subr.mxu0 0.0
        %5521 = vmatpush1.msra.mxu0 %v5494
        %5522 = vmatprep.subr.mxu0 0.0
        %5523 = vmatpush1.msra.mxu0 %v5495
        %5524 = vmatprep.subr.mxu0 0.0
        %5525 = vmatpush1.msra.mxu0 %v5496
        %5526 = vmatprep.subr.mxu0 0.0
        %5527 = vmatpush1.msra.mxu0 %v5497
        %5528 = vmatprep.subr.mxu0 0.0
        %5529 = vmatpush1.msra.mxu0 0.0
        %5530 = vmatprep.subr.mxu0 0.0
        %5531 = vmatpush1.msra.mxu0 0.0
        %5532 = vmatprep.subr.mxu0 0.0
        %5533 = vmatpush1.msra.mxu0 0.0
        %5534 = vmatprep.subr.mxu0 0.0
        %5535 = vmatpush1.msra.mxu0 0.0
        %5536 = vmatprep.subr.mxu0 0.0
        %5537 = vmatpush1.msra.mxu0 0.0
        %5538 = vmatprep.subr.mxu0 0.0
        %5539 = vmatpush1.msra.mxu0 0.0
        %5540 = vmatprep.subr.mxu0 0.0
        %5541 = vmatpush1.msra.mxu0 0.0
        %5542 = vmatprep.subr.mxu0 0.0
        %5543 = vmatpush1.msra.mxu0 0.0
        %5544 = vmatprep.subr.mxu0 0.0
        %5545 = vmatpush1.msra.mxu0 0.0
        %5546 = vmatprep.subr.mxu0 0.0
        %5547 = vmatpush1.msra.mxu0 0.0
        %5548 = vmatprep.subr.mxu0 0.0
        %5549 = vmatpush1.msra.mxu0 0.0
        %5550 = vmatprep.subr.mxu0 0.0
        %5551 = vmatpush1.msra.mxu0 0.0
        %5552 = vmatprep.subr.mxu0 0.0
        %5553 = vmatpush1.msra.mxu0 0.0
        %5554 = vmatprep.subr.mxu0 0.0
        %5555 = vmatpush1.msra.mxu0 0.0
        %5556 = vmatprep.subr.mxu0 0.0
        %5557 = vmatpush1.msra.mxu0 0.0
        %5558 = vmatprep.subr.mxu0 0.0
        %5559 = vmatpush1.msra.mxu0 0.0
        %5560 = vmatprep.subr.mxu0 0.0
        %5561 = vmatpush1.msra.mxu0 0.0
        %5562 = vmatprep.subr.mxu0 0.0
        %5563 = vmatpush1.msra.mxu0 0.0
        %5564 = vmatprep.subr.mxu0 0.0
        %5565 = vmatpush1.msra.mxu0 0.0
        %5566 = vmatprep.subr.mxu0 0.0
        %5567 = vmatpush1.msra.mxu0 0.0
        %5568 = vmatprep.subr.mxu0 0.0
        %5569 = vmatpush1.msra.mxu0 0.0
        %5570 = vmatprep.subr.mxu0 0.0
        %5571 = vmatpush1.msra.mxu0 0.0
        %5572 = vmatprep.subr.mxu0 0.0
        %5573 = vmatpush1.msra.mxu0 0.0
        %5574 = vmatprep.subr.mxu0 0.0
        %5575 = vmatpush1.msra.mxu0 0.0
        %5576 = vmatprep.mubr.f32.mxu0 0.0
        %5577 = vmatmul.mubr.f32.gmra.mrb[0].mxu0 %v5507
        %v5578 = vpop.f32.mrb[0].mxu0
        %v5579 = vadd.f32 %v5504, %v5578
        %v5580 = vpop.f32.mrb[0].mxu0
        %5581 = vmatprep.mubr.f32.mxu0 0.0
        %5582 = vmatmul.mubr.f32.gmra.mrb[0].mxu0 %v5510
        %v5583 = vpop.f32.mrb[0].mxu0
        %v5584 = vadd.f32 %v5504, %v5583
        %v5585 = vpop.f32.mrb[0].mxu0
        %5586 = vdwg.mxu0
        %v5587 = vadd.f32 %v3554, %v5579
        %v5588 = vadd.f32 %v3555, %v5584
        %v5590 = vrot.slane %v5587, 1
        %5591 = vrot.lane.b32.xlu0 %v5590, 32
        %v5592 = vpop.permute.xlu0 %5591
        %v5594 = vrot.slane %v5587, 2
        %5595 = vrot.lane.b32.xlu0 %v5594, 64
        %v5596 = vpop.permute.xlu0 %5595
        %v5598 = vrot.slane %v5587, 3
        %5599 = vrot.lane.b32.xlu0 %v5598, 96
        %v5600 = vpop.permute.xlu0 %5599
        %v5602 = vrot.slane %v5587, 4
        %v5604 = vrot.slane %v5587, 5
        %5605 = vrot.lane.b32.xlu0 %v5604, 32
        %v5606 = vpop.permute.xlu0 %5605
        %v5608 = vrot.slane %v5587, 6
        %5609 = vrot.lane.b32.xlu0 %v5608, 64
        %v5610 = vpop.permute.xlu0 %5609
        %v5612 = vrot.slane %v5587, 7
        %5613 = vrot.lane.b32.xlu0 %v5612, 96
        %v5614 = vpop.permute.xlu0 %5613
        %v5616 = vsel %vm1211, %v5587, %v5592
        %v5617 = vsel %vm3412, %v5616, %v5596
        %vm5618 = vcmask 785408
        %v5619 = vsel %vm5618, %v5617, %v5600
        %v5620 = vsel %vm1211, %v5602, %v5606
        %v5621 = vsel %vm3412, %v5620, %v5610
        %v5622 = vsel %vm5618, %v5621, %v5614
        %v5624 = vrot.slane %v5588, 1
        %5625 = vrot.lane.b32.xlu0 %v5624, 32
        %v5626 = vpop.permute.xlu0 %5625
        %v5628 = vrot.slane %v5588, 2
        %5629 = vrot.lane.b32.xlu0 %v5628, 64
        %v5630 = vpop.permute.xlu0 %5629
        %v5632 = vrot.slane %v5588, 3
        %5633 = vrot.lane.b32.xlu0 %v5632, 96
        %v5634 = vpop.permute.xlu0 %5633
        %v5636 = vrot.slane %v5588, 4
        %v5638 = vrot.slane %v5588, 5
        %5639 = vrot.lane.b32.xlu0 %v5638, 32
        %v5640 = vpop.permute.xlu0 %5639
        %v5642 = vrot.slane %v5588, 6
        %5643 = vrot.lane.b32.xlu0 %v5642, 64
        %v5644 = vpop.permute.xlu0 %5643
        %v5646 = vrot.slane %v5588, 7
        %5647 = vrot.lane.b32.xlu0 %v5646, 96
        %v5648 = vpop.permute.xlu0 %5647
        %v5650 = vsel %vm1211, %v5588, %v5626
        %v5651 = vsel %vm3412, %v5650, %v5630
        %v5652 = vsel %vm5618, %v5651, %v5634
        %v5653 = vsel %vm1211, %v5636, %v5640
        %v5654 = vsel %vm3412, %v5653, %v5644
        %v5655 = vsel %vm5618, %v5654, %v5648
        %v5658 = vrot.slane %v5652, 7
        %v5659 = vrot.slane %v5655, 7
        %vm5662 = vcmask 1040384
        %v5663 = vsel %vm5662, %v5619, %v5658
        %v5664 = vsel %vm5662, %v5622, %v5659
        %v5667 = vcombine.low %v5663, %v5664
        %v5669 = vunpack.c.l.s4 1983009808
        %v5670 = vunpack.c.0.s8 %v5669
        %v5671 = vlaneseq
        %v5672 = vshrl.u32 %v5671, 7
        %v5673 = vsub.s32 %v5670, %v5672
        %v5674 = vrot.slane %v5667, %v5673
        %5676 = vst [vmem:[%s1104] sm:$0xf] %v5674
        %s5677 = sand.u32 %s624, 1
        %s5678 = scalar_lea.sflag [#allocation4], %s5677
        %s5679 = sand.u32 %s624, 1
        %s5680 = smul.addr %s5679, 4
        %s5681 = scalar_lea.vmem [#allocation34], %s5680
        // Predicated region
        $region205: #{tpu_custom_call.1} parent=123 // pred_check
          %p5682 = pneg %p634
        $region206: #{tpu_custom_call.1} parent=123 // pred_check_branch
          %5684 = sbr.rel (%p5682) target = $region208
        $region207: #{tpu_custom_call.1} parent=123 // pred_region
          %s5686 = ssub.s32 64, 64
          %5687 = vsyncadd %s5678, %s5686
          %s5688 = smul.addr %s55, 2
          %s5689 = smul.addr %s5688, 32
          %s5690 = scalar_lea.hbm %s26, %s5689
          %s5692 = sshll.u32 %s5681, 4
          %s5693 = int_to_ptr.vmem [resolvable:$true] %s5692
          %5695 = dma.vmem_to_hbm [thread:$0]  %s5693, 64, %s5690, %s5678
        $region208: #{tpu_custom_call.1} parent=123 // pred_fallthru
          _
      $region124: #{tpu_custom_call.1} parent=5 // pred_fallthru
        _
      %p5696 = scmp.le.s32.totalorder 2, %s50
      // Predicated region
      $region209: #{tpu_custom_call.1} parent=5 // pred_check
        %p5697 = pneg %p5696
      $region210: #{tpu_custom_call.1} parent=5 // pred_check_branch
        %5699 = sbr.rel (%p5697) target = $region212
      $region211: #{tpu_custom_call.1} parent=5 // pred_region
        %s5700 = ssub.s32 %s50, 2
        // Predicated region
        $region213: #{tpu_custom_call.1} parent=211 // pred_check
          %p5701 = pneg %p640
        $region214: #{tpu_custom_call.1} parent=211 // pred_check_branch
          %5703 = sbr.rel (%p5701) target = $region216
        $region215: #{tpu_custom_call.1} parent=211 // pred_region
          %s5704 = sand.u32 %s625, 1
          %s5705 = scalar_lea.sflag [#allocation4], %s5704
          %s5706 = sand.u32 %s625, 1
          %s5707 = smul.addr %s5706, 4
          %s5708 = scalar_lea.vmem [#allocation34], %s5707
          %5709 = dma.done %s5705, 64
        $region216: #{tpu_custom_call.1} parent=211 // pred_fallthru
          _
      $region212: #{tpu_custom_call.1} parent=5 // pred_fallthru
        _
    $region6: #{tpu_custom_call.1} parent=1 // loop_footer
      %s54 = sadd.s32 1, %s50
    $region7: #{tpu_custom_call.1} parent=1 // loop_footer_branch
      %49 = sbr.rel target = $region3
    $region8: #{tpu_custom_call.1} parent=1 // loop_exit
      _
    %5710 = vsyncpa [#allocation3], 1
    %s5711 = scalar_lea.sflag [#allocation3], 1
    %5712 = vsyncpa %s5711, 1
    %5713 = vsyncpa [#allocation6], 1
    %s5714 = scalar_lea.sflag [#allocation6], 1
    %5715 = vsyncpa %s5714, 1
    %5716 = vsyncpa [#allocation9], 1
    %5717 = vsyncpa [#allocation12], 1
    %5718 = vsyncpa [#allocation15], 1
    %5719 = vsyncpa [#allocation18], 1
    %5720 = vsyncpa [#allocation21], 1
    %5721 = vsyncpa [#allocation24], 1
    %5722 = vsyncpa [#allocation27], 1
    %5723 = vsyncpa [#allocation30], 1
    %5724 = vsyncpa [#allocation33], 1
    %5725 = vsyncpa [#allocation4], 1
    %s5726 = scalar_lea.sflag [#allocation4], 1
    %5727 = vsyncpa %s5726, 1

</llo_original>
